<compile_context>
chip_gen: v7x
topology: tpu7x:2x2x1
jax: 0.10.0
libtpu: 0.0.40
codegen_flags: <defaults>
</compile_context>

<pallas_src>
import math
import numpy as np
import jax
import jax.numpy as jnp
from jax.experimental import pallas as pl
from jax.experimental.pallas import tpu as pltpu


def _contract(x_tile, wt):
    """(TM, in) x (in, out) -> (TM, out).  VPU broadcast-FMA path for tiny K,
    MXU path when K is large enough to amortize push/pop latency."""
    in_f = wt.shape[0]
    if in_f >= 32:
        return jnp.dot(x_tile, wt, preferred_element_type=jnp.float32)
    y = x_tile[:, 0:1] * wt[0:1, :]
    for i in range(1, in_f):                      # in_f is static & tiny -> unrolled
        y = y + x_tile[:, i:i + 1] * wt[i:i + 1, :]
    return y


def _fourier_nobias_kernel(x_ref, wt_ref, out_ref):
    out_f = wt_ref.shape[1]
    y = _contract(x_ref[...], wt_ref[...])
    # Store sin/cos halves directly into the output tile (no in-kernel concatenate).
    out_ref[:, :out_f] = jnp.sin(y)
    out_ref[:, out_f:] = jnp.cos(y)


def _fourier_bias_kernel(x_ref, wt_ref, b_ref, out_ref):
    y = _contract(x_ref[...], wt_ref[...]) + b_ref[...]   # (1, out) broadcasts over rows
    out_ref[...] = jnp.sin(y)


def fourier_layer(x, weight, bias=None, *, block_rows=256):
    """x: (..., in_features); weight: (out_features, in_features); bias: (out_features,) or None.
    Matches FourierLayer.forward. Returns float32."""
    *lead, in_f = x.shape
    out_f = weight.shape[0]
    N = int(np.prod(lead)) if lead else 1

    x_flat = x.reshape(N, in_f).astype(jnp.float32)          # free: last dim contiguous
    wt = jnp.transpose(weight, (1, 0)).astype(jnp.float32)   # (in, out) — tiny, resident

    tm = int(block_rows)
    n_blocks = pl.cdiv(N, tm)
    n_pad = n_blocks * tm
    if n_pad != N:
        x_flat = jnp.pad(x_flat, ((0, n_pad - N), (0, 0)))

    if bias is None:
        width = 2 * out_f
        cost = pl.CostEstimate(
            flops=2 * n_pad * out_f * in_f,
            transcendentals=2 * n_pad * out_f,
            bytes_accessed=4 * (n_pad * in_f + in_f * out_f + n_pad * width),
        )
        y = pl.pallas_call(
            _fourier_nobias_kernel,
            out_shape=jax.ShapeDtypeStruct((n_pad, width), jnp.float32),
            grid=(n_blocks,),
            in_specs=[
                pl.BlockSpec((tm, in_f), lambda g: (g, 0)),        # x rows for this step
                pl.BlockSpec((in_f, out_f), lambda g: (0, 0)),     # W^T, resident
            ],
            out_specs=pl.BlockSpec((tm, width), lambda g: (g, 0)),
            compiler_params=pltpu.CompilerParams(dimension_semantics=("parallel",)),
            cost_estimate=cost,
        )(x_flat, wt)
    else:
        width = out_f
        b2 = bias.reshape(1, out_f).astype(jnp.float32)
        cost = pl.CostEstimate(
            flops=2 * n_pad * out_f * in_f + n_pad * out_f,
            transcendentals=n_pad * out_f,
            bytes_accessed=4 * (n_pad * in_f + in_f * out_f + out_f + n_pad * width),
        )
        y = pl.pallas_call(
            _fourier_bias_kernel,
            out_shape=jax.ShapeDtypeStruct((n_pad, width), jnp.float32),
            grid=(n_blocks,),
            in_specs=[
                pl.BlockSpec((tm, in_f), lambda g: (g, 0)),
                pl.BlockSpec((in_f, out_f), lambda g: (0, 0)),
                pl.BlockSpec((1, out_f), lambda g: (0, 0)),
            ],
            out_specs=pl.BlockSpec((tm, width), lambda g: (g, 0)),
            compiler_params=pltpu.CompilerParams(dimension_semantics=("parallel",)),
            cost_estimate=cost,
        )(x_flat, wt, b2)

    y = y[:N]
    return y.reshape(*lead, width) if lead else y.reshape(width)


def reference(x, weight, bias=None):
    """Pure-JAX transcription of FourierLayer.forward for validation."""
    y = jnp.einsum('...i,oi->...o', x, weight)
    if bias is None:
        return jnp.concatenate([jnp.sin(y), jnp.cos(y)], axis=-1)
    return jnp.sin(y + bias)


if __name__ == "__main__":
    key = jax.random.PRNGKey(0)
    batch, n_points, in_features, out_features = 2, 256, 3, 64
    weight_scale = 1.0

    k1, k2, k3 = jax.random.split(key, 3)

    # Parameter init matching FourierLayer.reset_parameters:
    #   weight: kaiming_uniform(a=sqrt(5)) -> U(-1/sqrt(in), 1/sqrt(in)), then *= weight_scale
    #   bias  : U(-pi, pi)   (only used on the bias=True path)
    bound = 1.0 / math.sqrt(in_features)
    W = jax.random.uniform(k1, (out_features, in_features), jnp.float32,
                           -bound, bound) * weight_scale
    bias = jax.random.uniform(k2, (out_features,), jnp.float32, -math.pi, math.pi)
    x = jax.random.uniform(k3, (batch, n_points, in_features), jnp.float32, -1.0, 1.0)

    # Default (bias=False) path: concat(sin, cos).
    y = fourier_layer(x, W)
    y = jax.block_until_ready(y)
    assert y.shape == (batch, n_points, 2 * out_features), y.shape
    np.testing.assert_allclose(np.asarray(y), np.asarray(reference(x, W)),
                               rtol=1e-4, atol=1e-4)

    # bias=True path: sin(x @ W.T + b).
    yb = fourier_layer(x, W, bias)
    yb = jax.block_until_ready(yb)
    assert yb.shape == (batch, n_points, out_features), yb.shape
    np.testing.assert_allclose(np.asarray(yb), np.asarray(reference(x, W, bias)),
                               rtol=1e-4, atol=1e-4)

    print("KERNEL_OK")
</pallas_src>

<mosaic_0001>
module attributes {stable_mosaic.version = 11 : i64} {
  func.func @_fourier_nobias_kernel(%arg0: i32, %arg1: memref<256x3xf32, #tpu.memory_space<vmem>>, %arg2: memref<3x64xf32, #tpu.memory_space<vmem>>, %arg3: memref<256x128xf32, #tpu.memory_space<vmem>>) attributes {dimension_semantics = [#tpu.dimension_semantics<parallel>], iteration_bounds = array<i64: 2>, scalar_prefetch = 0 : i64, scratch_operands = 0 : i64, tpu.core_type = #tpu.core_type<tc>, window_params = [{transform_indices = @transform_0, window_bounds = array<i64: 256, 3>}, {pipeline_mode = #tpu.pipeline_mode<synchronous>, transform_indices = @transform_1, window_bounds = array<i64: 3, 64>}, {transform_indices = @transform_2, window_bounds = array<i64: 256, 128>}]} {
    %c0 = arith.constant 0 : index
    %c0_0 = arith.constant 0 : index
    %0 = vector.load %arg1[%c0, %c0_0] : memref<256x3xf32, #tpu.memory_space<vmem>>, vector<256x3xf32>
    %c0_1 = arith.constant 0 : index
    %c0_2 = arith.constant 0 : index
    %1 = vector.load %arg2[%c0_1, %c0_2] : memref<3x64xf32, #tpu.memory_space<vmem>>, vector<3x64xf32>
    %2 = vector.extract_strided_slice %0 {offsets = [0, 0], sizes = [256, 1], strides = [1, 1]} : vector<256x3xf32> to vector<256x1xf32>
    %3 = vector.extract_strided_slice %1 {offsets = [0, 0], sizes = [1, 64], strides = [1, 1]} : vector<3x64xf32> to vector<1x64xf32>
    %4 = vector.broadcast %2 : vector<256x1xf32> to vector<256x64xf32>
    %5 = vector.broadcast %3 : vector<1x64xf32> to vector<256x64xf32>
    %6 = arith.mulf %4, %5 : vector<256x64xf32>
    %7 = vector.extract_strided_slice %0 {offsets = [0, 1], sizes = [256, 1], strides = [1, 1]} : vector<256x3xf32> to vector<256x1xf32>
    %8 = vector.extract_strided_slice %1 {offsets = [1, 0], sizes = [1, 64], strides = [1, 1]} : vector<3x64xf32> to vector<1x64xf32>
    %9 = vector.broadcast %7 : vector<256x1xf32> to vector<256x64xf32>
    %10 = vector.broadcast %8 : vector<1x64xf32> to vector<256x64xf32>
    %11 = arith.mulf %9, %10 : vector<256x64xf32>
    %12 = arith.addf %6, %11 : vector<256x64xf32>
    %13 = vector.extract_strided_slice %0 {offsets = [0, 2], sizes = [256, 1], strides = [1, 1]} : vector<256x3xf32> to vector<256x1xf32>
    %14 = vector.extract_strided_slice %1 {offsets = [2, 0], sizes = [1, 64], strides = [1, 1]} : vector<3x64xf32> to vector<1x64xf32>
    %15 = vector.broadcast %13 : vector<256x1xf32> to vector<256x64xf32>
    %16 = vector.broadcast %14 : vector<1x64xf32> to vector<256x64xf32>
    %17 = arith.mulf %15, %16 : vector<256x64xf32>
    %18 = arith.addf %12, %17 : vector<256x64xf32>
    %19 = math.sin %18 : vector<256x64xf32>
    %c0_3 = arith.constant 0 : index
    %c0_4 = arith.constant 0 : index
    %20 = vector.load %arg3[%c0_3, %c0_4] : memref<256x128xf32, #tpu.memory_space<vmem>>, vector<256x64xf32>
    tpu.vector_store %arg3[%c0_3, %c0_4], %19 {strides = array<i32>} : memref<256x128xf32, #tpu.memory_space<vmem>>, vector<256x64xf32>,
    %21 = math.cos %18 : vector<256x64xf32>
    %c0_5 = arith.constant 0 : index
    %c64 = arith.constant 64 : index
    %22 = vector.load %arg3[%c0_5, %c64] : memref<256x128xf32, #tpu.memory_space<vmem>>, vector<256x64xf32>
    tpu.vector_store %arg3[%c0_5, %c64], %21 {strides = array<i32>} : memref<256x128xf32, #tpu.memory_space<vmem>>, vector<256x64xf32>,
    return
  }
  func.func @transform_0(%arg0: i32) -> (i32, i32) {
    %c0_i32 = arith.constant 0 : i32
    %c0_i32_0 = arith.constant 0 : i32
    return %arg0, %c0_i32 : i32, i32
  }
  func.func @transform_1(%arg0: i32) -> (i32, i32) {
    %c0_i32 = arith.constant 0 : i32
    %c0_i32_0 = arith.constant 0 : i32
    %c0_i32_1 = arith.constant 0 : i32
    return %c0_i32, %c0_i32_0 : i32, i32
  }
  func.func @transform_2(%arg0: i32) -> (i32, i32) {
    %c0_i32 = arith.constant 0 : i32
    %c0_i32_0 = arith.constant 0 : i32
    return %arg0, %c0_i32 : i32, i32
  }
}

</mosaic_0001>

<llo_original>
// kernel: tpu_custom_call.1
$region0: #{tpu_custom_call.1}
  #allocation0 [shape = 'u32[]', space=smem, size = 0x4, offset = 0x4, fixed_abs, tag = 'smem constant byte address 0x4 - core index']
  #allocation1 [shape = 'u32[144,128]{1,0:T(1,128)}', space=vmem, size = 0x12000, scoped, tag = 'internal scratch']
  %s0 = inlined_call_operand.vmem [shape: f32[512,3], index: 0, kind: input, shape index: {}]
  %s1 = inlined_call_operand.vmem [shape: f32[3,64], index: 1, kind: input, shape index: {}]
  %s2 = inlined_call_operand.hbm [shape: f32[512,128], index: 2, kind: output, shape index: {}]
  %s3 = sld [smem:[#allocation0]]
  $region41: #{tpu_custom_call.1} parent=0
    _
  %s5 = ssub.s32 1, %s3
  %s6 = scalar_select 0, %s5, %s3
  $region1: #{tpu_custom_call.1} parent=0
    #allocation2 [shape = 'u8[262144]{0}', space=vmem, size = 0x40000, scoped, tag = 'output window, operand 0']
    #allocation3 [shape = 's32[2]{0}', space=sflag, size = 0x8, scoped, tag = 'scoped memory for tpu_custom_call.1']
    %7 = vsyncpa [#allocation3], 0
    %s8 = scalar_lea.sflag [#allocation3], 1
    %9 = vsyncpa %s8, 0
    loop: start=0, step=1, limit=4
    $region2: #{tpu_custom_call.1} parent=1 // loop_pre_header
      _
    $region3: #{tpu_custom_call.1} parent=1 // loop_header
      %s11 = sphi 0, %s15
      %p12 = scmp.ge.s32.totalorder %s11, 4
      %s21 = sphi 0, %s23
      %s24 = sphi 0, %s21
      %s25 = sphi 0, %s24
      %s41 = sphi 0, %s25
      %s45 = sphi 0, %s45
      %s47 = sphi 0, %s45
      %s48 = sphi 0, %s47
      %s62 = sphi 0, %s48
      %s68 = sphi 0, %s70
      %s71 = sphi 0, %s68
      %s72 = sphi 0, %s71
      %s88 = sphi 0, %s72
    $region4: #{tpu_custom_call.1} parent=1 // loop_header_branch
      %14 = sbr.rel (%p12) target = $region8
    $region5: #{tpu_custom_call.1} parent=1 // loop_body
      %s16 = ssub.s32 %s11, 1
      %s17 = ssub.s32 %s11, 2
      %s18 = sadd.s32 %s11, 1
      %s19 = ssub.s32 %s11, %s18
      %p20 = scmp.eq.s32.totalorder %s19, 0
      %s22 = sadd.s32 %s21, 1
      %s23 = scalar_select %p20, %s21, %s22
      %p26 = pneg %p20
      %p27 = scmp.eq.s32.totalorder %s11, 1
      %p28 = por %p26, %p27
      %p29 = scmp.ne.s32.totalorder %s21, %s24
      %p30 = scmp.eq.s32.totalorder %s11, 0
      %p31 = por %p29, %p30
      %p32 = scmp.ne.s32.totalorder %s21, %s24
      %p33 = scmp.eq.s32.totalorder %s16, 1
      %p34 = por %p32, %p33
      %p35 = scmp.ne.s32.totalorder %s24, %s25
      %p36 = scmp.eq.s32.totalorder %s16, 0
      %p37 = por %p35, %p36
      %p38 = scmp.ne.s32.totalorder %s24, %s25
      %p39 = scmp.eq.s32.totalorder %s17, 1
      %p40 = por %p38, %p39
      %p42 = scmp.ne.s32.totalorder %s25, %s41
      %p43 = scmp.eq.s32.totalorder %s17, 0
      %p44 = por %p42, %p43
      %s46 = sadd.s32 %s45, 1
      %p49 = scmp.eq.s32.totalorder %s11, 1
      %p50 = scmp.ne.s32.totalorder %s45, %s47
      %p51 = scmp.eq.s32.totalorder %s11, 0
      %p52 = por %p50, %p51
      %p53 = scmp.ne.s32.totalorder %s45, %s47
      %p54 = scmp.eq.s32.totalorder %s16, 1
      %p55 = por %p53, %p54
      %p56 = scmp.ne.s32.totalorder %s47, %s48
      %p57 = scmp.eq.s32.totalorder %s16, 0
      %p58 = por %p56, %p57
      %p59 = scmp.ne.s32.totalorder %s47, %s48
      %p60 = scmp.eq.s32.totalorder %s17, 1
      %p61 = por %p59, %p60
      %p63 = scmp.ne.s32.totalorder %s48, %s62
      %p64 = scmp.eq.s32.totalorder %s17, 0
      %p65 = por %p63, %p64
      %s66 = ssub.s32 %s11, %s18
      %p67 = scmp.eq.s32.totalorder %s66, 0
      %s69 = sadd.s32 %s68, 1
      %s70 = scalar_select %p67, %s68, %s69
      %p73 = pneg %p67
      %p74 = scmp.eq.s32.totalorder %s11, 1
      %p75 = por %p73, %p74
      %p76 = scmp.ne.s32.totalorder %s68, %s71
      %p77 = scmp.eq.s32.totalorder %s11, 0
      %p78 = por %p76, %p77
      %p79 = scmp.ne.s32.totalorder %s68, %s71
      %p80 = scmp.eq.s32.totalorder %s16, 1
      %p81 = por %p79, %p80
      %p82 = scmp.ne.s32.totalorder %s71, %s72
      %p83 = scmp.eq.s32.totalorder %s16, 0
      %p84 = por %p82, %p83
      %p85 = scmp.ne.s32.totalorder %s71, %s72
      %p86 = scmp.eq.s32.totalorder %s17, 1
      %p87 = por %p85, %p86
      %p89 = scmp.ne.s32.totalorder %s72, %s88
      %p90 = scmp.eq.s32.totalorder %s17, 0
      %p91 = por %p89, %p90
      %p92 = scmp.le.s32.totalorder 1, %s11
      %p93 = scmp.lt.s32.totalorder %s11, 3
      %p94 = pnand %p92, %p93
      %p95 = pneg %p94
      // Predicated region
      $region9: #{tpu_custom_call.1} parent=5 // pred_check
        _
      $region10: #{tpu_custom_call.1} parent=5 // pred_check_branch
        %97 = sbr.rel (%p94) target = $region12
      $region11: #{tpu_custom_call.1} parent=5 // pred_region
        %s98 = ssub.s32 %s11, 1
        // Predicated region
        $region13: #{tpu_custom_call.1} parent=11 // pred_check
          %p99 = pneg %p58
        $region14: #{tpu_custom_call.1} parent=11 // pred_check_branch
          %101 = sbr.rel (%p99) target = $region16
        $region15: #{tpu_custom_call.1} parent=11 // pred_region
          _
        $region16: #{tpu_custom_call.1} parent=11 // pred_fallthru
          _
      $region12: #{tpu_custom_call.1} parent=5 // pred_fallthru
        _
      %p102 = scmp.lt.s32.totalorder %s11, 2
      // Predicated region
      $region17: #{tpu_custom_call.1} parent=5 // pred_check
        %p103 = pneg %p102
      $region18: #{tpu_custom_call.1} parent=5 // pred_check_branch
        %105 = sbr.rel (%p103) target = $region20
      $region19: #{tpu_custom_call.1} parent=5 // pred_region
        // Predicated region
        $region21: #{tpu_custom_call.1} parent=19 // pred_check
          %p106 = pneg %p31
        $region22: #{tpu_custom_call.1} parent=19 // pred_check_branch
          %108 = sbr.rel (%p106) target = $region24
        $region23: #{tpu_custom_call.1} parent=19 // pred_region
          %s109 = smul.u32 32, %s11
          %p110 = scmp.lt.s32.totalorder %s109, 63
          %s111 = scalar_select %p110, %s109, 63
          %s112 = smul.addr %s111, 8
          %s113 = scalar_lea.vmem %s0, %s112
          %s114 = smul.u32 32, %s11
        $region24: #{tpu_custom_call.1} parent=19 // pred_fallthru
          _
      $region20: #{tpu_custom_call.1} parent=5 // pred_fallthru
        _
      %p115 = scmp.le.s32.totalorder 1, %s11
      %p116 = scmp.lt.s32.totalorder %s11, 3
      %p117 = pnand %p115, %p116
      %p118 = pneg %p117
      // Predicated region
      $region25: #{tpu_custom_call.1} parent=5 // pred_check
        _
      $region26: #{tpu_custom_call.1} parent=5 // pred_check_branch
        %120 = sbr.rel (%p117) target = $region28
      $region27: #{tpu_custom_call.1} parent=5 // pred_region
        %s121 = ssub.s32 %s11, 1
        %s122 = smul.u32 32, %s16
        %p123 = scmp.lt.s32.totalorder %s122, 63
        %s124 = scalar_select %p123, %s122, 63
        %s125 = smul.addr %s124, 8
        %s126 = scalar_lea.vmem %s0, %s125
        %p127 = pneg %p37
        %p128 = pneg %p34
        %p129 = pneg %p58
        %p130 = pneg %p55
        %p131 = pneg %p84
        %p132 = pneg %p81
        %s133 = sand.u32 %s71, 1
        %s134 = scalar_lea.sflag [#allocation3], %s133
        %s135 = sand.u32 %s71, 1
        %s136 = smul.addr %s135, 256
        %s137 = scalar_lea.vmem [#allocation2], %s136
        %s138 = smul.u32 32, %s16
        %p139 = scmp.lt.s32.totalorder %s138, 63
        %s140 = scalar_select %p139, %s138, 63
        %s141 = smul.addr %s140, 8
        %s142 = scalar_lea.vmem %s0, %s141
        %s143 = smul.u32 32, %s16
        %s144 = smul.u32 32, %s16
        %v145 = vld [vmem:[%s142] sm:$0xff]
        %v146 = vld [vmem:[%s142 + $0x8] sm:$0xff]
        %v147 = vld [vmem:[%s142 + $0x10] sm:$0xff]
        %v148 = vld [vmem:[%s142 + $0x18] sm:$0xff]
        %v149 = vld [vmem:[%s142 + $0x20] sm:$0xff]
        %v150 = vld [vmem:[%s142 + $0x28] sm:$0xff]
        %v151 = vld [vmem:[%s142 + $0x30] sm:$0xff]
        %v152 = vld [vmem:[%s142 + $0x38] sm:$0xff]
        %v153 = vld [vmem:[%s142 + $0x40] sm:$0xff]
        %v154 = vld [vmem:[%s142 + $0x48] sm:$0xff]
        %v155 = vld [vmem:[%s142 + $0x50] sm:$0xff]
        %v156 = vld [vmem:[%s142 + $0x58] sm:$0xff]
        %v157 = vld [vmem:[%s142 + $0x60] sm:$0xff]
        %v158 = vld [vmem:[%s142 + $0x68] sm:$0xff]
        %v159 = vld [vmem:[%s142 + $0x70] sm:$0xff]
        %v160 = vld [vmem:[%s142 + $0x78] sm:$0xff]
        %v161 = vld [vmem:[%s142 + $0x80] sm:$0xff]
        %v162 = vld [vmem:[%s142 + $0x88] sm:$0xff]
        %v163 = vld [vmem:[%s142 + $0x90] sm:$0xff]
        %v164 = vld [vmem:[%s142 + $0x98] sm:$0xff]
        %v165 = vld [vmem:[%s142 + $0xa0] sm:$0xff]
        %v166 = vld [vmem:[%s142 + $0xa8] sm:$0xff]
        %v167 = vld [vmem:[%s142 + $0xb0] sm:$0xff]
        %v168 = vld [vmem:[%s142 + $0xb8] sm:$0xff]
        %v169 = vld [vmem:[%s142 + $0xc0] sm:$0xff]
        %v170 = vld [vmem:[%s142 + $0xc8] sm:$0xff]
        %v171 = vld [vmem:[%s142 + $0xd0] sm:$0xff]
        %v172 = vld [vmem:[%s142 + $0xd8] sm:$0xff]
        %v173 = vld [vmem:[%s142 + $0xe0] sm:$0xff]
        %v174 = vld [vmem:[%s142 + $0xe8] sm:$0xff]
        %v175 = vld [vmem:[%s142 + $0xf0] sm:$0xff]
        %v176 = vld [vmem:[%s142 + $0xf8] sm:$0xff]
        %v177 = vld [vmem:[%s1] sm:$0x7]
        %179 = vset.pattern.permute.xlu0 0
        %180 = vperm.xlu0 %179, %v145
        %v181 = vpop.permute.xlu0 %180
        %184 = vset.pattern.permute.xlu0 0
        %185 = vperm.xlu0 %184, %v146
        %v186 = vpop.permute.xlu0 %185
        %189 = vset.pattern.permute.xlu0 0
        %190 = vperm.xlu0 %189, %v147
        %v191 = vpop.permute.xlu0 %190
        %194 = vset.pattern.permute.xlu0 0
        %195 = vperm.xlu0 %194, %v148
        %v196 = vpop.permute.xlu0 %195
        %199 = vset.pattern.permute.xlu0 0
        %200 = vperm.xlu0 %199, %v149
        %v201 = vpop.permute.xlu0 %200
        %204 = vset.pattern.permute.xlu0 0
        %205 = vperm.xlu0 %204, %v150
        %v206 = vpop.permute.xlu0 %205
        %209 = vset.pattern.permute.xlu0 0
        %210 = vperm.xlu0 %209, %v151
        %v211 = vpop.permute.xlu0 %210
        %214 = vset.pattern.permute.xlu0 0
        %215 = vperm.xlu0 %214, %v152
        %v216 = vpop.permute.xlu0 %215
        %219 = vset.pattern.permute.xlu0 0
        %220 = vperm.xlu0 %219, %v153
        %v221 = vpop.permute.xlu0 %220
        %224 = vset.pattern.permute.xlu0 0
        %225 = vperm.xlu0 %224, %v154
        %v226 = vpop.permute.xlu0 %225
        %229 = vset.pattern.permute.xlu0 0
        %230 = vperm.xlu0 %229, %v155
        %v231 = vpop.permute.xlu0 %230
        %234 = vset.pattern.permute.xlu0 0
        %235 = vperm.xlu0 %234, %v156
        %v236 = vpop.permute.xlu0 %235
        %239 = vset.pattern.permute.xlu0 0
        %240 = vperm.xlu0 %239, %v157
        %v241 = vpop.permute.xlu0 %240
        %244 = vset.pattern.permute.xlu0 0
        %245 = vperm.xlu0 %244, %v158
        %v246 = vpop.permute.xlu0 %245
        %249 = vset.pattern.permute.xlu0 0
        %250 = vperm.xlu0 %249, %v159
        %v251 = vpop.permute.xlu0 %250
        %254 = vset.pattern.permute.xlu0 0
        %255 = vperm.xlu0 %254, %v160
        %v256 = vpop.permute.xlu0 %255
        %259 = vset.pattern.permute.xlu0 0
        %260 = vperm.xlu0 %259, %v161
        %v261 = vpop.permute.xlu0 %260
        %264 = vset.pattern.permute.xlu0 0
        %265 = vperm.xlu0 %264, %v162
        %v266 = vpop.permute.xlu0 %265
        %269 = vset.pattern.permute.xlu0 0
        %270 = vperm.xlu0 %269, %v163
        %v271 = vpop.permute.xlu0 %270
        %274 = vset.pattern.permute.xlu0 0
        %275 = vperm.xlu0 %274, %v164
        %v276 = vpop.permute.xlu0 %275
        %279 = vset.pattern.permute.xlu0 0
        %280 = vperm.xlu0 %279, %v165
        %v281 = vpop.permute.xlu0 %280
        %284 = vset.pattern.permute.xlu0 0
        %285 = vperm.xlu0 %284, %v166
        %v286 = vpop.permute.xlu0 %285
        %289 = vset.pattern.permute.xlu0 0
        %290 = vperm.xlu0 %289, %v167
        %v291 = vpop.permute.xlu0 %290
        %294 = vset.pattern.permute.xlu0 0
        %295 = vperm.xlu0 %294, %v168
        %v296 = vpop.permute.xlu0 %295
        %299 = vset.pattern.permute.xlu0 0
        %300 = vperm.xlu0 %299, %v169
        %v301 = vpop.permute.xlu0 %300
        %304 = vset.pattern.permute.xlu0 0
        %305 = vperm.xlu0 %304, %v170
        %v306 = vpop.permute.xlu0 %305
        %309 = vset.pattern.permute.xlu0 0
        %310 = vperm.xlu0 %309, %v171
        %v311 = vpop.permute.xlu0 %310
        %314 = vset.pattern.permute.xlu0 0
        %315 = vperm.xlu0 %314, %v172
        %v316 = vpop.permute.xlu0 %315
        %319 = vset.pattern.permute.xlu0 0
        %320 = vperm.xlu0 %319, %v173
        %v321 = vpop.permute.xlu0 %320
        %324 = vset.pattern.permute.xlu0 0
        %325 = vperm.xlu0 %324, %v174
        %v326 = vpop.permute.xlu0 %325
        %329 = vset.pattern.permute.xlu0 0
        %330 = vperm.xlu0 %329, %v175
        %v331 = vpop.permute.xlu0 %330
        %334 = vset.pattern.permute.xlu0 0
        %335 = vperm.xlu0 %334, %v176
        %v336 = vpop.permute.xlu0 %335
        %v338 = vlaneseq
        %v339 = vshrl.u32 %v338, 7
        %v340 = vsub.s32 0, %v339
        %v341 = vrot.slane %v177, %v340
        %v342 = vmul.f32 %v181, %v341
        %v343 = vmul.f32 %v186, %v341
        %v344 = vmul.f32 %v191, %v341
        %v345 = vmul.f32 %v196, %v341
        %v346 = vmul.f32 %v201, %v341
        %v347 = vmul.f32 %v206, %v341
        %v348 = vmul.f32 %v211, %v341
        %v349 = vmul.f32 %v216, %v341
        %v350 = vmul.f32 %v221, %v341
        %v351 = vmul.f32 %v226, %v341
        %v352 = vmul.f32 %v231, %v341
        %v353 = vmul.f32 %v236, %v341
        %v354 = vmul.f32 %v241, %v341
        %v355 = vmul.f32 %v246, %v341
        %v356 = vmul.f32 %v251, %v341
        %v357 = vmul.f32 %v256, %v341
        %v358 = vmul.f32 %v261, %v341
        %v359 = vmul.f32 %v266, %v341
        %v360 = vmul.f32 %v271, %v341
        %v361 = vmul.f32 %v276, %v341
        %v362 = vmul.f32 %v281, %v341
        %v363 = vmul.f32 %v286, %v341
        %v364 = vmul.f32 %v291, %v341
        %v365 = vmul.f32 %v296, %v341
        %v366 = vmul.f32 %v301, %v341
        %v367 = vmul.f32 %v306, %v341
        %v368 = vmul.f32 %v311, %v341
        %v369 = vmul.f32 %v316, %v341
        %v370 = vmul.f32 %v321, %v341
        %v371 = vmul.f32 %v326, %v341
        %v372 = vmul.f32 %v331, %v341
        %v373 = vmul.f32 %v336, %v341
        %374 = vset.pattern.permute.xlu0 1
        %375 = vperm.xlu0 %374, %v145
        %v376 = vpop.permute.xlu0 %375
        %378 = vset.pattern.permute.xlu0 1
        %379 = vperm.xlu0 %378, %v146
        %v380 = vpop.permute.xlu0 %379
        %382 = vset.pattern.permute.xlu0 1
        %383 = vperm.xlu0 %382, %v147
        %v384 = vpop.permute.xlu0 %383
        %386 = vset.pattern.permute.xlu0 1
        %387 = vperm.xlu0 %386, %v148
        %v388 = vpop.permute.xlu0 %387
        %390 = vset.pattern.permute.xlu0 1
        %391 = vperm.xlu0 %390, %v149
        %v392 = vpop.permute.xlu0 %391
        %394 = vset.pattern.permute.xlu0 1
        %395 = vperm.xlu0 %394, %v150
        %v396 = vpop.permute.xlu0 %395
        %398 = vset.pattern.permute.xlu0 1
        %399 = vperm.xlu0 %398, %v151
        %v400 = vpop.permute.xlu0 %399
        %402 = vset.pattern.permute.xlu0 1
        %403 = vperm.xlu0 %402, %v152
        %v404 = vpop.permute.xlu0 %403
        %406 = vset.pattern.permute.xlu0 1
        %407 = vperm.xlu0 %406, %v153
        %v408 = vpop.permute.xlu0 %407
        %410 = vset.pattern.permute.xlu0 1
        %411 = vperm.xlu0 %410, %v154
        %v412 = vpop.permute.xlu0 %411
        %414 = vset.pattern.permute.xlu0 1
        %415 = vperm.xlu0 %414, %v155
        %v416 = vpop.permute.xlu0 %415
        %418 = vset.pattern.permute.xlu0 1
        %419 = vperm.xlu0 %418, %v156
        %v420 = vpop.permute.xlu0 %419
        %422 = vset.pattern.permute.xlu0 1
        %423 = vperm.xlu0 %422, %v157
        %v424 = vpop.permute.xlu0 %423
        %426 = vset.pattern.permute.xlu0 1
        %427 = vperm.xlu0 %426, %v158
        %v428 = vpop.permute.xlu0 %427
        %430 = vset.pattern.permute.xlu0 1
        %431 = vperm.xlu0 %430, %v159
        %v432 = vpop.permute.xlu0 %431
        %434 = vset.pattern.permute.xlu0 1
        %435 = vperm.xlu0 %434, %v160
        %v436 = vpop.permute.xlu0 %435
        %438 = vset.pattern.permute.xlu0 1
        %439 = vperm.xlu0 %438, %v161
        %v440 = vpop.permute.xlu0 %439
        %442 = vset.pattern.permute.xlu0 1
        %443 = vperm.xlu0 %442, %v162
        %v444 = vpop.permute.xlu0 %443
        %446 = vset.pattern.permute.xlu0 1
        %447 = vperm.xlu0 %446, %v163
        %v448 = vpop.permute.xlu0 %447
        %450 = vset.pattern.permute.xlu0 1
        %451 = vperm.xlu0 %450, %v164
        %v452 = vpop.permute.xlu0 %451
        %454 = vset.pattern.permute.xlu0 1
        %455 = vperm.xlu0 %454, %v165
        %v456 = vpop.permute.xlu0 %455
        %458 = vset.pattern.permute.xlu0 1
        %459 = vperm.xlu0 %458, %v166
        %v460 = vpop.permute.xlu0 %459
        %462 = vset.pattern.permute.xlu0 1
        %463 = vperm.xlu0 %462, %v167
        %v464 = vpop.permute.xlu0 %463
        %466 = vset.pattern.permute.xlu0 1
        %467 = vperm.xlu0 %466, %v168
        %v468 = vpop.permute.xlu0 %467
        %470 = vset.pattern.permute.xlu0 1
        %471 = vperm.xlu0 %470, %v169
        %v472 = vpop.permute.xlu0 %471
        %474 = vset.pattern.permute.xlu0 1
        %475 = vperm.xlu0 %474, %v170
        %v476 = vpop.permute.xlu0 %475
        %478 = vset.pattern.permute.xlu0 1
        %479 = vperm.xlu0 %478, %v171
        %v480 = vpop.permute.xlu0 %479
        %482 = vset.pattern.permute.xlu0 1
        %483 = vperm.xlu0 %482, %v172
        %v484 = vpop.permute.xlu0 %483
        %486 = vset.pattern.permute.xlu0 1
        %487 = vperm.xlu0 %486, %v173
        %v488 = vpop.permute.xlu0 %487
        %490 = vset.pattern.permute.xlu0 1
        %491 = vperm.xlu0 %490, %v174
        %v492 = vpop.permute.xlu0 %491
        %494 = vset.pattern.permute.xlu0 1
        %495 = vperm.xlu0 %494, %v175
        %v496 = vpop.permute.xlu0 %495
        %498 = vset.pattern.permute.xlu0 1
        %499 = vperm.xlu0 %498, %v176
        %v500 = vpop.permute.xlu0 %499
        %v502 = vlaneseq
        %v503 = vshrl.u32 %v502, 7
        %v504 = vsub.s32 1, %v503
        %v505 = vrot.slane %v177, %v504
        %v506 = vmul.f32 %v376, %v505
        %v507 = vmul.f32 %v380, %v505
        %v508 = vmul.f32 %v384, %v505
        %v509 = vmul.f32 %v388, %v505
        %v510 = vmul.f32 %v392, %v505
        %v511 = vmul.f32 %v396, %v505
        %v512 = vmul.f32 %v400, %v505
        %v513 = vmul.f32 %v404, %v505
        %v514 = vmul.f32 %v408, %v505
        %v515 = vmul.f32 %v412, %v505
        %v516 = vmul.f32 %v416, %v505
        %v517 = vmul.f32 %v420, %v505
        %v518 = vmul.f32 %v424, %v505
        %v519 = vmul.f32 %v428, %v505
        %v520 = vmul.f32 %v432, %v505
        %v521 = vmul.f32 %v436, %v505
        %v522 = vmul.f32 %v440, %v505
        %v523 = vmul.f32 %v444, %v505
        %v524 = vmul.f32 %v448, %v505
        %v525 = vmul.f32 %v452, %v505
        %v526 = vmul.f32 %v456, %v505
        %v527 = vmul.f32 %v460, %v505
        %v528 = vmul.f32 %v464, %v505
        %v529 = vmul.f32 %v468, %v505
        %v530 = vmul.f32 %v472, %v505
        %v531 = vmul.f32 %v476, %v505
        %v532 = vmul.f32 %v480, %v505
        %v533 = vmul.f32 %v484, %v505
        %v534 = vmul.f32 %v488, %v505
        %v535 = vmul.f32 %v492, %v505
        %v536 = vmul.f32 %v496, %v505
        %v537 = vmul.f32 %v500, %v505
        %v538 = vadd.f32 %v342, %v506
        %v539 = vadd.f32 %v343, %v507
        %v540 = vadd.f32 %v344, %v508
        %v541 = vadd.f32 %v345, %v509
        %v542 = vadd.f32 %v346, %v510
        %v543 = vadd.f32 %v347, %v511
        %v544 = vadd.f32 %v348, %v512
        %v545 = vadd.f32 %v349, %v513
        %v546 = vadd.f32 %v350, %v514
        %v547 = vadd.f32 %v351, %v515
        %v548 = vadd.f32 %v352, %v516
        %v549 = vadd.f32 %v353, %v517
        %v550 = vadd.f32 %v354, %v518
        %v551 = vadd.f32 %v355, %v519
        %v552 = vadd.f32 %v356, %v520
        %v553 = vadd.f32 %v357, %v521
        %v554 = vadd.f32 %v358, %v522
        %v555 = vadd.f32 %v359, %v523
        %v556 = vadd.f32 %v360, %v524
        %v557 = vadd.f32 %v361, %v525
        %v558 = vadd.f32 %v362, %v526
        %v559 = vadd.f32 %v363, %v527
        %v560 = vadd.f32 %v364, %v528
        %v561 = vadd.f32 %v365, %v529
        %v562 = vadd.f32 %v366, %v530
        %v563 = vadd.f32 %v367, %v531
        %v564 = vadd.f32 %v368, %v532
        %v565 = vadd.f32 %v369, %v533
        %v566 = vadd.f32 %v370, %v534
        %v567 = vadd.f32 %v371, %v535
        %v568 = vadd.f32 %v372, %v536
        %v569 = vadd.f32 %v373, %v537
        %570 = vset.pattern.permute.xlu0 2
        %571 = vperm.xlu0 %570, %v145
        %v572 = vpop.permute.xlu0 %571
        %574 = vset.pattern.permute.xlu0 2
        %575 = vperm.xlu0 %574, %v146
        %v576 = vpop.permute.xlu0 %575
        %578 = vset.pattern.permute.xlu0 2
        %579 = vperm.xlu0 %578, %v147
        %v580 = vpop.permute.xlu0 %579
        %582 = vset.pattern.permute.xlu0 2
        %583 = vperm.xlu0 %582, %v148
        %v584 = vpop.permute.xlu0 %583
        %586 = vset.pattern.permute.xlu0 2
        %587 = vperm.xlu0 %586, %v149
        %v588 = vpop.permute.xlu0 %587
        %590 = vset.pattern.permute.xlu0 2
        %591 = vperm.xlu0 %590, %v150
        %v592 = vpop.permute.xlu0 %591
        %594 = vset.pattern.permute.xlu0 2
        %595 = vperm.xlu0 %594, %v151
        %v596 = vpop.permute.xlu0 %595
        %598 = vset.pattern.permute.xlu0 2
        %599 = vperm.xlu0 %598, %v152
        %v600 = vpop.permute.xlu0 %599
        %602 = vset.pattern.permute.xlu0 2
        %603 = vperm.xlu0 %602, %v153
        %v604 = vpop.permute.xlu0 %603
        %606 = vset.pattern.permute.xlu0 2
        %607 = vperm.xlu0 %606, %v154
        %v608 = vpop.permute.xlu0 %607
        %610 = vset.pattern.permute.xlu0 2
        %611 = vperm.xlu0 %610, %v155
        %v612 = vpop.permute.xlu0 %611
        %614 = vset.pattern.permute.xlu0 2
        %615 = vperm.xlu0 %614, %v156
        %v616 = vpop.permute.xlu0 %615
        %618 = vset.pattern.permute.xlu0 2
        %619 = vperm.xlu0 %618, %v157
        %v620 = vpop.permute.xlu0 %619
        %622 = vset.pattern.permute.xlu0 2
        %623 = vperm.xlu0 %622, %v158
        %v624 = vpop.permute.xlu0 %623
        %626 = vset.pattern.permute.xlu0 2
        %627 = vperm.xlu0 %626, %v159
        %v628 = vpop.permute.xlu0 %627
        %630 = vset.pattern.permute.xlu0 2
        %631 = vperm.xlu0 %630, %v160
        %v632 = vpop.permute.xlu0 %631
        %634 = vset.pattern.permute.xlu0 2
        %635 = vperm.xlu0 %634, %v161
        %v636 = vpop.permute.xlu0 %635
        %638 = vset.pattern.permute.xlu0 2
        %639 = vperm.xlu0 %638, %v162
        %v640 = vpop.permute.xlu0 %639
        %642 = vset.pattern.permute.xlu0 2
        %643 = vperm.xlu0 %642, %v163
        %v644 = vpop.permute.xlu0 %643
        %646 = vset.pattern.permute.xlu0 2
        %647 = vperm.xlu0 %646, %v164
        %v648 = vpop.permute.xlu0 %647
        %650 = vset.pattern.permute.xlu0 2
        %651 = vperm.xlu0 %650, %v165
        %v652 = vpop.permute.xlu0 %651
        %654 = vset.pattern.permute.xlu0 2
        %655 = vperm.xlu0 %654, %v166
        %v656 = vpop.permute.xlu0 %655
        %658 = vset.pattern.permute.xlu0 2
        %659 = vperm.xlu0 %658, %v167
        %v660 = vpop.permute.xlu0 %659
        %662 = vset.pattern.permute.xlu0 2
        %663 = vperm.xlu0 %662, %v168
        %v664 = vpop.permute.xlu0 %663
        %666 = vset.pattern.permute.xlu0 2
        %667 = vperm.xlu0 %666, %v169
        %v668 = vpop.permute.xlu0 %667
        %670 = vset.pattern.permute.xlu0 2
        %671 = vperm.xlu0 %670, %v170
        %v672 = vpop.permute.xlu0 %671
        %674 = vset.pattern.permute.xlu0 2
        %675 = vperm.xlu0 %674, %v171
        %v676 = vpop.permute.xlu0 %675
        %678 = vset.pattern.permute.xlu0 2
        %679 = vperm.xlu0 %678, %v172
        %v680 = vpop.permute.xlu0 %679
        %682 = vset.pattern.permute.xlu0 2
        %683 = vperm.xlu0 %682, %v173
        %v684 = vpop.permute.xlu0 %683
        %686 = vset.pattern.permute.xlu0 2
        %687 = vperm.xlu0 %686, %v174
        %v688 = vpop.permute.xlu0 %687
        %690 = vset.pattern.permute.xlu0 2
        %691 = vperm.xlu0 %690, %v175
        %v692 = vpop.permute.xlu0 %691
        %694 = vset.pattern.permute.xlu0 2
        %695 = vperm.xlu0 %694, %v176
        %v696 = vpop.permute.xlu0 %695
        %v698 = vlaneseq
        %v699 = vshrl.u32 %v698, 7
        %v700 = vsub.s32 2, %v699
        %v701 = vrot.slane %v177, %v700
        %v702 = vmul.f32 %v572, %v701
        %v703 = vmul.f32 %v576, %v701
        %v704 = vmul.f32 %v580, %v701
        %v705 = vmul.f32 %v584, %v701
        %v706 = vmul.f32 %v588, %v701
        %v707 = vmul.f32 %v592, %v701
        %v708 = vmul.f32 %v596, %v701
        %v709 = vmul.f32 %v600, %v701
        %v710 = vmul.f32 %v604, %v701
        %v711 = vmul.f32 %v608, %v701
        %v712 = vmul.f32 %v612, %v701
        %v713 = vmul.f32 %v616, %v701
        %v714 = vmul.f32 %v620, %v701
        %v715 = vmul.f32 %v624, %v701
        %v716 = vmul.f32 %v628, %v701
        %v717 = vmul.f32 %v632, %v701
        %v718 = vmul.f32 %v636, %v701
        %v719 = vmul.f32 %v640, %v701
        %v720 = vmul.f32 %v644, %v701
        %v721 = vmul.f32 %v648, %v701
        %v722 = vmul.f32 %v652, %v701
        %v723 = vmul.f32 %v656, %v701
        %v724 = vmul.f32 %v660, %v701
        %v725 = vmul.f32 %v664, %v701
        %v726 = vmul.f32 %v668, %v701
        %v727 = vmul.f32 %v672, %v701
        %v728 = vmul.f32 %v676, %v701
        %v729 = vmul.f32 %v680, %v701
        %v730 = vmul.f32 %v684, %v701
        %v731 = vmul.f32 %v688, %v701
        %v732 = vmul.f32 %v692, %v701
        %v733 = vmul.f32 %v696, %v701
        %v734 = vadd.f32 %v538, %v702
        %v735 = vadd.f32 %v539, %v703
        %v736 = vadd.f32 %v540, %v704
        %v737 = vadd.f32 %v541, %v705
        %v738 = vadd.f32 %v542, %v706
        %v739 = vadd.f32 %v543, %v707
        %v740 = vadd.f32 %v544, %v708
        %v741 = vadd.f32 %v545, %v709
        %v742 = vadd.f32 %v546, %v710
        %v743 = vadd.f32 %v547, %v711
        %v744 = vadd.f32 %v548, %v712
        %v745 = vadd.f32 %v549, %v713
        %v746 = vadd.f32 %v550, %v714
        %v747 = vadd.f32 %v551, %v715
        %v748 = vadd.f32 %v552, %v716
        %v749 = vadd.f32 %v553, %v717
        %v750 = vadd.f32 %v554, %v718
        %v751 = vadd.f32 %v555, %v719
        %v752 = vadd.f32 %v556, %v720
        %v753 = vadd.f32 %v557, %v721
        %v754 = vadd.f32 %v558, %v722
        %v755 = vadd.f32 %v559, %v723
        %v756 = vadd.f32 %v560, %v724
        %v757 = vadd.f32 %v561, %v725
        %v758 = vadd.f32 %v562, %v726
        %v759 = vadd.f32 %v563, %v727
        %v760 = vadd.f32 %v564, %v728
        %v761 = vadd.f32 %v565, %v729
        %v762 = vadd.f32 %v566, %v730
        %v763 = vadd.f32 %v567, %v731
        %v764 = vadd.f32 %v568, %v732
        %v765 = vadd.f32 %v569, %v733
        %v766 = vand.u32 2147483647, %v734
        %vm767 = vcmp.le.f32.partialorder %v766, 0.7853982
        %vm768 = vcmp.lt.s32.totalorder %v734, 0
        %v769 = vand.u32 %v734, 2139095040
        %v770 = vshrl.u32 %v769, 23
        %v771 = vsub.s32 %v770, 127
        %v772 = vand.u32 2147483647, %v734
        %v773 = vand.u32 %v772, 8388607
        %v774 = vor.u32 %v773, 8388608
        %v775 = vsub.s32 0, %v774
        %v776 = vadd.s32 %v771, 1
        %vm777 = vcmp.gt.s32.totalorder %v776, 0
        %v778 = vsel %vm777, %v776, 0
        %v779 = vshrl.u32 %v778, 5
        %v780 = vand.u32 %v778, 31
        %v781 = vsub.s32 32, %v780
        %v782 = vshrl.u32 683565275, %v781
        %v783 = vshll.u32 683565275, %v780
        %v784 = vshrl.u32 2475754826, %v781
        %v785 = vor.u32 %v783, %v784
        %v786 = vshll.u32 2475754826, %v780
        %v787 = vshrl.u32 2131351028, %v781
        %v788 = vor.u32 %v786, %v787
        %v789 = vshll.u32 2131351028, %v780
        %v790 = vshrl.u32 2102212464, %v781
        %v791 = vor.u32 %v789, %v790
        %v792 = vshll.u32 2102212464, %v780
        %v793 = vshrl.u32 920167782, %v781
        %v794 = vor.u32 %v792, %v793
        %v795 = vshll.u32 920167782, %v780
        %v796 = vshrl.u32 1326507024, %v781
        %v797 = vor.u32 %v795, %v796
        %vm798 = vcmp.lt.s32.totalorder %v779, 1
        %vm799 = vcmp.lt.s32.totalorder %v779, 2
        %vm800 = vcmp.lt.s32.totalorder %v779, 3
        %vm801 = vcmp.lt.s32.totalorder %v779, 4
        %v802 = vsel %vm798, %v782, %v785
        %v803 = vsel %vm801, %v791, 2102212464
        %v804 = vsel %vm800, %v788, %v803
        %v805 = vsel %vm799, %v802, %v804
        %v806 = vsel %vm798, %v785, %v788
        %v807 = vsel %vm801, %v794, 920167782
        %v808 = vsel %vm800, %v791, %v807
        %v809 = vsel %vm799, %v806, %v808
        %v810 = vsel %vm798, %v788, %v791
        %v811 = vsel %vm801, %v797, 1326507024
        %v812 = vsel %vm800, %v794, %v811
        %v813 = vsel %vm799, %v810, %v812
        %v814 = vshll.u32 %v774, 8
        %v815 = vmul.u32.u64.compose %v814, %v813
        %v816 = vextract.low.u32 %v815
        %v817 = vextract.high.u32 %v815
        %v818 = vmul.u32.u64.compose %v814, %v809
        %v819 = vextract.low.u32 %v818
        %v820 = vextract.high.u32 %v818
        %v821 = vmul.u32 %v814, %v805
        %v822 = vadd.s32 %v817, %v819
        %vm823 = vc.u32 %v817, %v819
        %v824 = vadd.s32 %v820, 1
        %v825 = vsel %vm823, %v824, %v820
        %v826 = vadd.s32 %v821, %v825
        %v827 = vadd.s32 %v826, 536870912
        %v828 = vshrl.u32 %v827, 30
        %v829 = vshll.u32 %v828, 30
        %v830 = vsub.s32 %v826, %v829
        %vm831 = vcmp.lt.s32.totalorder %v830, 0
        %v832 = vsub.s32 0, %v830
        %v833 = vsel %vm831, %v832, %v830
        %v834 = vclz %v833
        %v835 = vsub.s32 %v834, 2
        %vm836 = vcmp.gt.s32.totalorder 0, %v835
        %v837 = vsel %vm836, 0, %v835
        %v838 = vsub.s32 32, %v837
        %v839 = vshll.u32 %v830, %v837
        %v840 = vshrl.u32 %v822, %v838
        %v841 = vor.u32 %v839, %v840
        %v842 = vsub.s32 4294967266, %v837
        %v843 = vadd.s32 %v842, 127
        %v844 = vshll.u32 %v843, 23
        %v845 = vor.u32 4788187, %v844
        %v846 = vand.u32 2147483647, %v845
        %v848 = vcvt.s32.f32 %v841
        %v849 = vmul.f32 %v848, %v846
        %v850 = vxor.u32 %v849, 2147483648
        %v851 = vsel %vm768, %v850, %v849
        %v852 = vsub.s32 4, %v828
        %v853 = vsel %vm768, %v852, %v828
        %v854 = vsel %vm767, %v734, %v851
        %v855 = vsel %vm767, 0, %v853
        %v856 = vcosq.f32.pop %v854
        %v857 = vsinq.f32.pop %v854
        %vm858 = vweird.f32 %v734
        %v859 = vadd.s32 %v855, 3
        %v860 = vand.u32 %v859, 3
        %vm861 = vcmp.lt.s32.totalorder %v860, 2
        %vm862 = vcmp.eq.s32.totalorder %v860, 0
        %v863 = vxor.u32 %v857, 2147483648
        %v864 = vsel %vm862, %v856, %v863
        %vm865 = vcmp.eq.s32.totalorder %v860, 2
        %v866 = vxor.u32 %v856, 2147483648
        %v867 = vsel %vm865, %v866, %v857
        %v868 = vsel %vm861, %v864, %v867
        %v869 = vsel %vm858, nan, %v868
        %v870 = vand.u32 2147483647, %v735
        %vm871 = vcmp.le.f32.partialorder %v870, 0.7853982
        %vm872 = vcmp.lt.s32.totalorder %v735, 0
        %v873 = vand.u32 %v735, 2139095040
        %v874 = vshrl.u32 %v873, 23
        %v875 = vsub.s32 %v874, 127
        %v876 = vand.u32 2147483647, %v735
        %v877 = vand.u32 %v876, 8388607
        %v878 = vor.u32 %v877, 8388608
        %v879 = vsub.s32 0, %v878
        %v880 = vadd.s32 %v875, 1
        %vm881 = vcmp.gt.s32.totalorder %v880, 0
        %v882 = vsel %vm881, %v880, 0
        %v883 = vshrl.u32 %v882, 5
        %v884 = vand.u32 %v882, 31
        %v885 = vsub.s32 32, %v884
        %v886 = vshrl.u32 683565275, %v885
        %v887 = vshll.u32 683565275, %v884
        %v888 = vshrl.u32 2475754826, %v885
        %v889 = vor.u32 %v887, %v888
        %v890 = vshll.u32 2475754826, %v884
        %v891 = vshrl.u32 2131351028, %v885
        %v892 = vor.u32 %v890, %v891
        %v893 = vshll.u32 2131351028, %v884
        %v894 = vshrl.u32 2102212464, %v885
        %v895 = vor.u32 %v893, %v894
        %v896 = vshll.u32 2102212464, %v884
        %v897 = vshrl.u32 920167782, %v885
        %v898 = vor.u32 %v896, %v897
        %v899 = vshll.u32 920167782, %v884
        %v900 = vshrl.u32 1326507024, %v885
        %v901 = vor.u32 %v899, %v900
        %vm902 = vcmp.lt.s32.totalorder %v883, 1
        %vm903 = vcmp.lt.s32.totalorder %v883, 2
        %vm904 = vcmp.lt.s32.totalorder %v883, 3
        %vm905 = vcmp.lt.s32.totalorder %v883, 4
        %v906 = vsel %vm902, %v886, %v889
        %v907 = vsel %vm905, %v895, 2102212464
        %v908 = vsel %vm904, %v892, %v907
        %v909 = vsel %vm903, %v906, %v908
        %v910 = vsel %vm902, %v889, %v892
        %v911 = vsel %vm905, %v898, 920167782
        %v912 = vsel %vm904, %v895, %v911
        %v913 = vsel %vm903, %v910, %v912
        %v914 = vsel %vm902, %v892, %v895
        %v915 = vsel %vm905, %v901, 1326507024
        %v916 = vsel %vm904, %v898, %v915
        %v917 = vsel %vm903, %v914, %v916
        %v918 = vshll.u32 %v878, 8
        %v919 = vmul.u32.u64.compose %v918, %v917
        %v920 = vextract.low.u32 %v919
        %v921 = vextract.high.u32 %v919
        %v922 = vmul.u32.u64.compose %v918, %v913
        %v923 = vextract.low.u32 %v922
        %v924 = vextract.high.u32 %v922
        %v925 = vmul.u32 %v918, %v909
        %v926 = vadd.s32 %v921, %v923
        %vm927 = vc.u32 %v921, %v923
        %v928 = vadd.s32 %v924, 1
        %v929 = vsel %vm927, %v928, %v924
        %v930 = vadd.s32 %v925, %v929
        %v931 = vadd.s32 %v930, 536870912
        %v932 = vshrl.u32 %v931, 30
        %v933 = vshll.u32 %v932, 30
        %v934 = vsub.s32 %v930, %v933
        %vm935 = vcmp.lt.s32.totalorder %v934, 0
        %v936 = vsub.s32 0, %v934
        %v937 = vsel %vm935, %v936, %v934
        %v938 = vclz %v937
        %v939 = vsub.s32 %v938, 2
        %vm940 = vcmp.gt.s32.totalorder 0, %v939
        %v941 = vsel %vm940, 0, %v939
        %v942 = vsub.s32 32, %v941
        %v943 = vshll.u32 %v934, %v941
        %v944 = vshrl.u32 %v926, %v942
        %v945 = vor.u32 %v943, %v944
        %v946 = vsub.s32 4294967266, %v941
        %v947 = vadd.s32 %v946, 127
        %v948 = vshll.u32 %v947, 23
        %v949 = vor.u32 4788187, %v948
        %v950 = vand.u32 2147483647, %v949
        %v952 = vcvt.s32.f32 %v945
        %v953 = vmul.f32 %v952, %v950
        %v954 = vxor.u32 %v953, 2147483648
        %v955 = vsel %vm872, %v954, %v953
        %v956 = vsub.s32 4, %v932
        %v957 = vsel %vm872, %v956, %v932
        %v958 = vsel %vm871, %v735, %v955
        %v959 = vsel %vm871, 0, %v957
        %v960 = vcosq.f32.pop %v958
        %v961 = vsinq.f32.pop %v958
        %vm962 = vweird.f32 %v735
        %v963 = vadd.s32 %v959, 3
        %v964 = vand.u32 %v963, 3
        %vm965 = vcmp.lt.s32.totalorder %v964, 2
        %vm966 = vcmp.eq.s32.totalorder %v964, 0
        %v967 = vxor.u32 %v961, 2147483648
        %v968 = vsel %vm966, %v960, %v967
        %vm969 = vcmp.eq.s32.totalorder %v964, 2
        %v970 = vxor.u32 %v960, 2147483648
        %v971 = vsel %vm969, %v970, %v961
        %v972 = vsel %vm965, %v968, %v971
        %v973 = vsel %vm962, nan, %v972
        %v974 = vand.u32 2147483647, %v736
        %vm975 = vcmp.le.f32.partialorder %v974, 0.7853982
        %vm976 = vcmp.lt.s32.totalorder %v736, 0
        %v977 = vand.u32 %v736, 2139095040
        %v978 = vshrl.u32 %v977, 23
        %v979 = vsub.s32 %v978, 127
        %v980 = vand.u32 2147483647, %v736
        %v981 = vand.u32 %v980, 8388607
        %v982 = vor.u32 %v981, 8388608
        %v983 = vsub.s32 0, %v982
        %v984 = vadd.s32 %v979, 1
        %vm985 = vcmp.gt.s32.totalorder %v984, 0
        %v986 = vsel %vm985, %v984, 0
        %v987 = vshrl.u32 %v986, 5
        %v988 = vand.u32 %v986, 31
        %v989 = vsub.s32 32, %v988
        %v990 = vshrl.u32 683565275, %v989
        %v991 = vshll.u32 683565275, %v988
        %v992 = vshrl.u32 2475754826, %v989
        %v993 = vor.u32 %v991, %v992
        %v994 = vshll.u32 2475754826, %v988
        %v995 = vshrl.u32 2131351028, %v989
        %v996 = vor.u32 %v994, %v995
        %v997 = vshll.u32 2131351028, %v988
        %v998 = vshrl.u32 2102212464, %v989
        %v999 = vor.u32 %v997, %v998
        %v1000 = vshll.u32 2102212464, %v988
        %v1001 = vshrl.u32 920167782, %v989
        %v1002 = vor.u32 %v1000, %v1001
        %v1003 = vshll.u32 920167782, %v988
        %v1004 = vshrl.u32 1326507024, %v989
        %v1005 = vor.u32 %v1003, %v1004
        %vm1006 = vcmp.lt.s32.totalorder %v987, 1
        %vm1007 = vcmp.lt.s32.totalorder %v987, 2
        %vm1008 = vcmp.lt.s32.totalorder %v987, 3
        %vm1009 = vcmp.lt.s32.totalorder %v987, 4
        %v1010 = vsel %vm1006, %v990, %v993
        %v1011 = vsel %vm1009, %v999, 2102212464
        %v1012 = vsel %vm1008, %v996, %v1011
        %v1013 = vsel %vm1007, %v1010, %v1012
        %v1014 = vsel %vm1006, %v993, %v996
        %v1015 = vsel %vm1009, %v1002, 920167782
        %v1016 = vsel %vm1008, %v999, %v1015
        %v1017 = vsel %vm1007, %v1014, %v1016
        %v1018 = vsel %vm1006, %v996, %v999
        %v1019 = vsel %vm1009, %v1005, 1326507024
        %v1020 = vsel %vm1008, %v1002, %v1019
        %v1021 = vsel %vm1007, %v1018, %v1020
        %v1022 = vshll.u32 %v982, 8
        %v1023 = vmul.u32.u64.compose %v1022, %v1021
        %v1024 = vextract.low.u32 %v1023
        %v1025 = vextract.high.u32 %v1023
        %v1026 = vmul.u32.u64.compose %v1022, %v1017
        %v1027 = vextract.low.u32 %v1026
        %v1028 = vextract.high.u32 %v1026
        %v1029 = vmul.u32 %v1022, %v1013
        %v1030 = vadd.s32 %v1025, %v1027
        %vm1031 = vc.u32 %v1025, %v1027
        %v1032 = vadd.s32 %v1028, 1
        %v1033 = vsel %vm1031, %v1032, %v1028
        %v1034 = vadd.s32 %v1029, %v1033
        %v1035 = vadd.s32 %v1034, 536870912
        %v1036 = vshrl.u32 %v1035, 30
        %v1037 = vshll.u32 %v1036, 30
        %v1038 = vsub.s32 %v1034, %v1037
        %vm1039 = vcmp.lt.s32.totalorder %v1038, 0
        %v1040 = vsub.s32 0, %v1038
        %v1041 = vsel %vm1039, %v1040, %v1038
        %v1042 = vclz %v1041
        %v1043 = vsub.s32 %v1042, 2
        %vm1044 = vcmp.gt.s32.totalorder 0, %v1043
        %v1045 = vsel %vm1044, 0, %v1043
        %v1046 = vsub.s32 32, %v1045
        %v1047 = vshll.u32 %v1038, %v1045
        %v1048 = vshrl.u32 %v1030, %v1046
        %v1049 = vor.u32 %v1047, %v1048
        %v1050 = vsub.s32 4294967266, %v1045
        %v1051 = vadd.s32 %v1050, 127
        %v1052 = vshll.u32 %v1051, 23
        %v1053 = vor.u32 4788187, %v1052
        %v1054 = vand.u32 2147483647, %v1053
        %v1056 = vcvt.s32.f32 %v1049
        %v1057 = vmul.f32 %v1056, %v1054
        %v1058 = vxor.u32 %v1057, 2147483648
        %v1059 = vsel %vm976, %v1058, %v1057
        %v1060 = vsub.s32 4, %v1036
        %v1061 = vsel %vm976, %v1060, %v1036
        %v1062 = vsel %vm975, %v736, %v1059
        %v1063 = vsel %vm975, 0, %v1061
        %v1064 = vcosq.f32.pop %v1062
        %v1065 = vsinq.f32.pop %v1062
        %vm1066 = vweird.f32 %v736
        %v1067 = vadd.s32 %v1063, 3
        %v1068 = vand.u32 %v1067, 3
        %vm1069 = vcmp.lt.s32.totalorder %v1068, 2
        %vm1070 = vcmp.eq.s32.totalorder %v1068, 0
        %v1071 = vxor.u32 %v1065, 2147483648
        %v1072 = vsel %vm1070, %v1064, %v1071
        %vm1073 = vcmp.eq.s32.totalorder %v1068, 2
        %v1074 = vxor.u32 %v1064, 2147483648
        %v1075 = vsel %vm1073, %v1074, %v1065
        %v1076 = vsel %vm1069, %v1072, %v1075
        %v1077 = vsel %vm1066, nan, %v1076
        %v1078 = vand.u32 2147483647, %v737
        %vm1079 = vcmp.le.f32.partialorder %v1078, 0.7853982
        %vm1080 = vcmp.lt.s32.totalorder %v737, 0
        %v1081 = vand.u32 %v737, 2139095040
        %v1082 = vshrl.u32 %v1081, 23
        %v1083 = vsub.s32 %v1082, 127
        %v1084 = vand.u32 2147483647, %v737
        %v1085 = vand.u32 %v1084, 8388607
        %v1086 = vor.u32 %v1085, 8388608
        %v1087 = vsub.s32 0, %v1086
        %v1088 = vadd.s32 %v1083, 1
        %vm1089 = vcmp.gt.s32.totalorder %v1088, 0
        %v1090 = vsel %vm1089, %v1088, 0
        %v1091 = vshrl.u32 %v1090, 5
        %v1092 = vand.u32 %v1090, 31
        %v1093 = vsub.s32 32, %v1092
        %v1094 = vshrl.u32 683565275, %v1093
        %v1095 = vshll.u32 683565275, %v1092
        %v1096 = vshrl.u32 2475754826, %v1093
        %v1097 = vor.u32 %v1095, %v1096
        %v1098 = vshll.u32 2475754826, %v1092
        %v1099 = vshrl.u32 2131351028, %v1093
        %v1100 = vor.u32 %v1098, %v1099
        %v1101 = vshll.u32 2131351028, %v1092
        %v1102 = vshrl.u32 2102212464, %v1093
        %v1103 = vor.u32 %v1101, %v1102
        %v1104 = vshll.u32 2102212464, %v1092
        %v1105 = vshrl.u32 920167782, %v1093
        %v1106 = vor.u32 %v1104, %v1105
        %v1107 = vshll.u32 920167782, %v1092
        %v1108 = vshrl.u32 1326507024, %v1093
        %v1109 = vor.u32 %v1107, %v1108
        %vm1110 = vcmp.lt.s32.totalorder %v1091, 1
        %vm1111 = vcmp.lt.s32.totalorder %v1091, 2
        %vm1112 = vcmp.lt.s32.totalorder %v1091, 3
        %vm1113 = vcmp.lt.s32.totalorder %v1091, 4
        %v1114 = vsel %vm1110, %v1094, %v1097
        %v1115 = vsel %vm1113, %v1103, 2102212464
        %v1116 = vsel %vm1112, %v1100, %v1115
        %v1117 = vsel %vm1111, %v1114, %v1116
        %v1118 = vsel %vm1110, %v1097, %v1100
        %v1119 = vsel %vm1113, %v1106, 920167782
        %v1120 = vsel %vm1112, %v1103, %v1119
        %v1121 = vsel %vm1111, %v1118, %v1120
        %v1122 = vsel %vm1110, %v1100, %v1103
        %v1123 = vsel %vm1113, %v1109, 1326507024
        %v1124 = vsel %vm1112, %v1106, %v1123
        %v1125 = vsel %vm1111, %v1122, %v1124
        %v1126 = vshll.u32 %v1086, 8
        %v1127 = vmul.u32.u64.compose %v1126, %v1125
        %v1128 = vextract.low.u32 %v1127
        %v1129 = vextract.high.u32 %v1127
        %v1130 = vmul.u32.u64.compose %v1126, %v1121
        %v1131 = vextract.low.u32 %v1130
        %v1132 = vextract.high.u32 %v1130
        %v1133 = vmul.u32 %v1126, %v1117
        %v1134 = vadd.s32 %v1129, %v1131
        %vm1135 = vc.u32 %v1129, %v1131
        %v1136 = vadd.s32 %v1132, 1
        %v1137 = vsel %vm1135, %v1136, %v1132
        %v1138 = vadd.s32 %v1133, %v1137
        %v1139 = vadd.s32 %v1138, 536870912
        %v1140 = vshrl.u32 %v1139, 30
        %v1141 = vshll.u32 %v1140, 30
        %v1142 = vsub.s32 %v1138, %v1141
        %vm1143 = vcmp.lt.s32.totalorder %v1142, 0
        %v1144 = vsub.s32 0, %v1142
        %v1145 = vsel %vm1143, %v1144, %v1142
        %v1146 = vclz %v1145
        %v1147 = vsub.s32 %v1146, 2
        %vm1148 = vcmp.gt.s32.totalorder 0, %v1147
        %v1149 = vsel %vm1148, 0, %v1147
        %v1150 = vsub.s32 32, %v1149
        %v1151 = vshll.u32 %v1142, %v1149
        %v1152 = vshrl.u32 %v1134, %v1150
        %v1153 = vor.u32 %v1151, %v1152
        %v1154 = vsub.s32 4294967266, %v1149
        %v1155 = vadd.s32 %v1154, 127
        %v1156 = vshll.u32 %v1155, 23
        %v1157 = vor.u32 4788187, %v1156
        %v1158 = vand.u32 2147483647, %v1157
        %v1160 = vcvt.s32.f32 %v1153
        %v1161 = vmul.f32 %v1160, %v1158
        %v1162 = vxor.u32 %v1161, 2147483648
        %v1163 = vsel %vm1080, %v1162, %v1161
        %v1164 = vsub.s32 4, %v1140
        %v1165 = vsel %vm1080, %v1164, %v1140
        %v1166 = vsel %vm1079, %v737, %v1163
        %v1167 = vsel %vm1079, 0, %v1165
        %v1168 = vcosq.f32.pop %v1166
        %v1169 = vsinq.f32.pop %v1166
        %vm1170 = vweird.f32 %v737
        %v1171 = vadd.s32 %v1167, 3
        %v1172 = vand.u32 %v1171, 3
        %vm1173 = vcmp.lt.s32.totalorder %v1172, 2
        %vm1174 = vcmp.eq.s32.totalorder %v1172, 0
        %v1175 = vxor.u32 %v1169, 2147483648
        %v1176 = vsel %vm1174, %v1168, %v1175
        %vm1177 = vcmp.eq.s32.totalorder %v1172, 2
        %v1178 = vxor.u32 %v1168, 2147483648
        %v1179 = vsel %vm1177, %v1178, %v1169
        %v1180 = vsel %vm1173, %v1176, %v1179
        %v1181 = vsel %vm1170, nan, %v1180
        %v1182 = vand.u32 2147483647, %v738
        %vm1183 = vcmp.le.f32.partialorder %v1182, 0.7853982
        %vm1184 = vcmp.lt.s32.totalorder %v738, 0
        %v1185 = vand.u32 %v738, 2139095040
        %v1186 = vshrl.u32 %v1185, 23
        %v1187 = vsub.s32 %v1186, 127
        %v1188 = vand.u32 2147483647, %v738
        %v1189 = vand.u32 %v1188, 8388607
        %v1190 = vor.u32 %v1189, 8388608
        %v1191 = vsub.s32 0, %v1190
        %v1192 = vadd.s32 %v1187, 1
        %vm1193 = vcmp.gt.s32.totalorder %v1192, 0
        %v1194 = vsel %vm1193, %v1192, 0
        %v1195 = vshrl.u32 %v1194, 5
        %v1196 = vand.u32 %v1194, 31
        %v1197 = vsub.s32 32, %v1196
        %v1198 = vshrl.u32 683565275, %v1197
        %v1199 = vshll.u32 683565275, %v1196
        %v1200 = vshrl.u32 2475754826, %v1197
        %v1201 = vor.u32 %v1199, %v1200
        %v1202 = vshll.u32 2475754826, %v1196
        %v1203 = vshrl.u32 2131351028, %v1197
        %v1204 = vor.u32 %v1202, %v1203
        %v1205 = vshll.u32 2131351028, %v1196
        %v1206 = vshrl.u32 2102212464, %v1197
        %v1207 = vor.u32 %v1205, %v1206
        %v1208 = vshll.u32 2102212464, %v1196
        %v1209 = vshrl.u32 920167782, %v1197
        %v1210 = vor.u32 %v1208, %v1209
        %v1211 = vshll.u32 920167782, %v1196
        %v1212 = vshrl.u32 1326507024, %v1197
        %v1213 = vor.u32 %v1211, %v1212
        %vm1214 = vcmp.lt.s32.totalorder %v1195, 1
        %vm1215 = vcmp.lt.s32.totalorder %v1195, 2
        %vm1216 = vcmp.lt.s32.totalorder %v1195, 3
        %vm1217 = vcmp.lt.s32.totalorder %v1195, 4
        %v1218 = vsel %vm1214, %v1198, %v1201
        %v1219 = vsel %vm1217, %v1207, 2102212464
        %v1220 = vsel %vm1216, %v1204, %v1219
        %v1221 = vsel %vm1215, %v1218, %v1220
        %v1222 = vsel %vm1214, %v1201, %v1204
        %v1223 = vsel %vm1217, %v1210, 920167782
        %v1224 = vsel %vm1216, %v1207, %v1223
        %v1225 = vsel %vm1215, %v1222, %v1224
        %v1226 = vsel %vm1214, %v1204, %v1207
        %v1227 = vsel %vm1217, %v1213, 1326507024
        %v1228 = vsel %vm1216, %v1210, %v1227
        %v1229 = vsel %vm1215, %v1226, %v1228
        %v1230 = vshll.u32 %v1190, 8
        %v1231 = vmul.u32.u64.compose %v1230, %v1229
        %v1232 = vextract.low.u32 %v1231
        %v1233 = vextract.high.u32 %v1231
        %v1234 = vmul.u32.u64.compose %v1230, %v1225
        %v1235 = vextract.low.u32 %v1234
        %v1236 = vextract.high.u32 %v1234
        %v1237 = vmul.u32 %v1230, %v1221
        %v1238 = vadd.s32 %v1233, %v1235
        %vm1239 = vc.u32 %v1233, %v1235
        %v1240 = vadd.s32 %v1236, 1
        %v1241 = vsel %vm1239, %v1240, %v1236
        %v1242 = vadd.s32 %v1237, %v1241
        %v1243 = vadd.s32 %v1242, 536870912
        %v1244 = vshrl.u32 %v1243, 30
        %v1245 = vshll.u32 %v1244, 30
        %v1246 = vsub.s32 %v1242, %v1245
        %vm1247 = vcmp.lt.s32.totalorder %v1246, 0
        %v1248 = vsub.s32 0, %v1246
        %v1249 = vsel %vm1247, %v1248, %v1246
        %v1250 = vclz %v1249
        %v1251 = vsub.s32 %v1250, 2
        %vm1252 = vcmp.gt.s32.totalorder 0, %v1251
        %v1253 = vsel %vm1252, 0, %v1251
        %v1254 = vsub.s32 32, %v1253
        %v1255 = vshll.u32 %v1246, %v1253
        %v1256 = vshrl.u32 %v1238, %v1254
        %v1257 = vor.u32 %v1255, %v1256
        %v1258 = vsub.s32 4294967266, %v1253
        %v1259 = vadd.s32 %v1258, 127
        %v1260 = vshll.u32 %v1259, 23
        %v1261 = vor.u32 4788187, %v1260
        %v1262 = vand.u32 2147483647, %v1261
        %v1264 = vcvt.s32.f32 %v1257
        %v1265 = vmul.f32 %v1264, %v1262
        %v1266 = vxor.u32 %v1265, 2147483648
        %v1267 = vsel %vm1184, %v1266, %v1265
        %v1268 = vsub.s32 4, %v1244
        %v1269 = vsel %vm1184, %v1268, %v1244
        %v1270 = vsel %vm1183, %v738, %v1267
        %v1271 = vsel %vm1183, 0, %v1269
        %v1272 = vcosq.f32.pop %v1270
        %v1273 = vsinq.f32.pop %v1270
        %vm1274 = vweird.f32 %v738
        %v1275 = vadd.s32 %v1271, 3
        %v1276 = vand.u32 %v1275, 3
        %vm1277 = vcmp.lt.s32.totalorder %v1276, 2
        %vm1278 = vcmp.eq.s32.totalorder %v1276, 0
        %v1279 = vxor.u32 %v1273, 2147483648
        %v1280 = vsel %vm1278, %v1272, %v1279
        %vm1281 = vcmp.eq.s32.totalorder %v1276, 2
        %v1282 = vxor.u32 %v1272, 2147483648
        %v1283 = vsel %vm1281, %v1282, %v1273
        %v1284 = vsel %vm1277, %v1280, %v1283
        %v1285 = vsel %vm1274, nan, %v1284
        %v1286 = vand.u32 2147483647, %v739
        %vm1287 = vcmp.le.f32.partialorder %v1286, 0.7853982
        %vm1288 = vcmp.lt.s32.totalorder %v739, 0
        %v1289 = vand.u32 %v739, 2139095040
        %v1290 = vshrl.u32 %v1289, 23
        %v1291 = vsub.s32 %v1290, 127
        %v1292 = vand.u32 2147483647, %v739
        %v1293 = vand.u32 %v1292, 8388607
        %v1294 = vor.u32 %v1293, 8388608
        %v1295 = vsub.s32 0, %v1294
        %v1296 = vadd.s32 %v1291, 1
        %vm1297 = vcmp.gt.s32.totalorder %v1296, 0
        %v1298 = vsel %vm1297, %v1296, 0
        %v1299 = vshrl.u32 %v1298, 5
        %v1300 = vand.u32 %v1298, 31
        %v1301 = vsub.s32 32, %v1300
        %v1302 = vshrl.u32 683565275, %v1301
        %v1303 = vshll.u32 683565275, %v1300
        %v1304 = vshrl.u32 2475754826, %v1301
        %v1305 = vor.u32 %v1303, %v1304
        %v1306 = vshll.u32 2475754826, %v1300
        %v1307 = vshrl.u32 2131351028, %v1301
        %v1308 = vor.u32 %v1306, %v1307
        %v1309 = vshll.u32 2131351028, %v1300
        %v1310 = vshrl.u32 2102212464, %v1301
        %v1311 = vor.u32 %v1309, %v1310
        %v1312 = vshll.u32 2102212464, %v1300
        %v1313 = vshrl.u32 920167782, %v1301
        %v1314 = vor.u32 %v1312, %v1313
        %v1315 = vshll.u32 920167782, %v1300
        %v1316 = vshrl.u32 1326507024, %v1301
        %v1317 = vor.u32 %v1315, %v1316
        %vm1318 = vcmp.lt.s32.totalorder %v1299, 1
        %vm1319 = vcmp.lt.s32.totalorder %v1299, 2
        %vm1320 = vcmp.lt.s32.totalorder %v1299, 3
        %vm1321 = vcmp.lt.s32.totalorder %v1299, 4
        %v1322 = vsel %vm1318, %v1302, %v1305
        %v1323 = vsel %vm1321, %v1311, 2102212464
        %v1324 = vsel %vm1320, %v1308, %v1323
        %v1325 = vsel %vm1319, %v1322, %v1324
        %v1326 = vsel %vm1318, %v1305, %v1308
        %v1327 = vsel %vm1321, %v1314, 920167782
        %v1328 = vsel %vm1320, %v1311, %v1327
        %v1329 = vsel %vm1319, %v1326, %v1328
        %v1330 = vsel %vm1318, %v1308, %v1311
        %v1331 = vsel %vm1321, %v1317, 1326507024
        %v1332 = vsel %vm1320, %v1314, %v1331
        %v1333 = vsel %vm1319, %v1330, %v1332
        %v1334 = vshll.u32 %v1294, 8
        %v1335 = vmul.u32.u64.compose %v1334, %v1333
        %v1336 = vextract.low.u32 %v1335
        %v1337 = vextract.high.u32 %v1335
        %v1338 = vmul.u32.u64.compose %v1334, %v1329
        %v1339 = vextract.low.u32 %v1338
        %v1340 = vextract.high.u32 %v1338
        %v1341 = vmul.u32 %v1334, %v1325
        %v1342 = vadd.s32 %v1337, %v1339
        %vm1343 = vc.u32 %v1337, %v1339
        %v1344 = vadd.s32 %v1340, 1
        %v1345 = vsel %vm1343, %v1344, %v1340
        %v1346 = vadd.s32 %v1341, %v1345
        %v1347 = vadd.s32 %v1346, 536870912
        %v1348 = vshrl.u32 %v1347, 30
        %v1349 = vshll.u32 %v1348, 30
        %v1350 = vsub.s32 %v1346, %v1349
        %vm1351 = vcmp.lt.s32.totalorder %v1350, 0
        %v1352 = vsub.s32 0, %v1350
        %v1353 = vsel %vm1351, %v1352, %v1350
        %v1354 = vclz %v1353
        %v1355 = vsub.s32 %v1354, 2
        %vm1356 = vcmp.gt.s32.totalorder 0, %v1355
        %v1357 = vsel %vm1356, 0, %v1355
        %v1358 = vsub.s32 32, %v1357
        %v1359 = vshll.u32 %v1350, %v1357
        %v1360 = vshrl.u32 %v1342, %v1358
        %v1361 = vor.u32 %v1359, %v1360
        %v1362 = vsub.s32 4294967266, %v1357
        %v1363 = vadd.s32 %v1362, 127
        %v1364 = vshll.u32 %v1363, 23
        %v1365 = vor.u32 4788187, %v1364
        %v1366 = vand.u32 2147483647, %v1365
        %v1368 = vcvt.s32.f32 %v1361
        %v1369 = vmul.f32 %v1368, %v1366
        %v1370 = vxor.u32 %v1369, 2147483648
        %v1371 = vsel %vm1288, %v1370, %v1369
        %v1372 = vsub.s32 4, %v1348
        %v1373 = vsel %vm1288, %v1372, %v1348
        %v1374 = vsel %vm1287, %v739, %v1371
        %v1375 = vsel %vm1287, 0, %v1373
        %v1376 = vcosq.f32.pop %v1374
        %v1377 = vsinq.f32.pop %v1374
        %vm1378 = vweird.f32 %v739
        %v1379 = vadd.s32 %v1375, 3
        %v1380 = vand.u32 %v1379, 3
        %vm1381 = vcmp.lt.s32.totalorder %v1380, 2
        %vm1382 = vcmp.eq.s32.totalorder %v1380, 0
        %v1383 = vxor.u32 %v1377, 2147483648
        %v1384 = vsel %vm1382, %v1376, %v1383
        %vm1385 = vcmp.eq.s32.totalorder %v1380, 2
        %v1386 = vxor.u32 %v1376, 2147483648
        %v1387 = vsel %vm1385, %v1386, %v1377
        %v1388 = vsel %vm1381, %v1384, %v1387
        %v1389 = vsel %vm1378, nan, %v1388
        %v1390 = vand.u32 2147483647, %v740
        %vm1391 = vcmp.le.f32.partialorder %v1390, 0.7853982
        %vm1392 = vcmp.lt.s32.totalorder %v740, 0
        %v1393 = vand.u32 %v740, 2139095040
        %v1394 = vshrl.u32 %v1393, 23
        %v1395 = vsub.s32 %v1394, 127
        %v1396 = vand.u32 2147483647, %v740
        %v1397 = vand.u32 %v1396, 8388607
        %v1398 = vor.u32 %v1397, 8388608
        %v1399 = vsub.s32 0, %v1398
        %v1400 = vadd.s32 %v1395, 1
        %vm1401 = vcmp.gt.s32.totalorder %v1400, 0
        %v1402 = vsel %vm1401, %v1400, 0
        %v1403 = vshrl.u32 %v1402, 5
        %v1404 = vand.u32 %v1402, 31
        %v1405 = vsub.s32 32, %v1404
        %v1406 = vshrl.u32 683565275, %v1405
        %v1407 = vshll.u32 683565275, %v1404
        %v1408 = vshrl.u32 2475754826, %v1405
        %v1409 = vor.u32 %v1407, %v1408
        %v1410 = vshll.u32 2475754826, %v1404
        %v1411 = vshrl.u32 2131351028, %v1405
        %v1412 = vor.u32 %v1410, %v1411
        %v1413 = vshll.u32 2131351028, %v1404
        %v1414 = vshrl.u32 2102212464, %v1405
        %v1415 = vor.u32 %v1413, %v1414
        %v1416 = vshll.u32 2102212464, %v1404
        %v1417 = vshrl.u32 920167782, %v1405
        %v1418 = vor.u32 %v1416, %v1417
        %v1419 = vshll.u32 920167782, %v1404
        %v1420 = vshrl.u32 1326507024, %v1405
        %v1421 = vor.u32 %v1419, %v1420
        %vm1422 = vcmp.lt.s32.totalorder %v1403, 1
        %vm1423 = vcmp.lt.s32.totalorder %v1403, 2
        %vm1424 = vcmp.lt.s32.totalorder %v1403, 3
        %vm1425 = vcmp.lt.s32.totalorder %v1403, 4
        %v1426 = vsel %vm1422, %v1406, %v1409
        %v1427 = vsel %vm1425, %v1415, 2102212464
        %v1428 = vsel %vm1424, %v1412, %v1427
        %v1429 = vsel %vm1423, %v1426, %v1428
        %v1430 = vsel %vm1422, %v1409, %v1412
        %v1431 = vsel %vm1425, %v1418, 920167782
        %v1432 = vsel %vm1424, %v1415, %v1431
        %v1433 = vsel %vm1423, %v1430, %v1432
        %v1434 = vsel %vm1422, %v1412, %v1415
        %v1435 = vsel %vm1425, %v1421, 1326507024
        %v1436 = vsel %vm1424, %v1418, %v1435
        %v1437 = vsel %vm1423, %v1434, %v1436
        %v1438 = vshll.u32 %v1398, 8
        %v1439 = vmul.u32.u64.compose %v1438, %v1437
        %v1440 = vextract.low.u32 %v1439
        %v1441 = vextract.high.u32 %v1439
        %v1442 = vmul.u32.u64.compose %v1438, %v1433
        %v1443 = vextract.low.u32 %v1442
        %v1444 = vextract.high.u32 %v1442
        %v1445 = vmul.u32 %v1438, %v1429
        %v1446 = vadd.s32 %v1441, %v1443
        %vm1447 = vc.u32 %v1441, %v1443
        %v1448 = vadd.s32 %v1444, 1
        %v1449 = vsel %vm1447, %v1448, %v1444
        %v1450 = vadd.s32 %v1445, %v1449
        %v1451 = vadd.s32 %v1450, 536870912
        %v1452 = vshrl.u32 %v1451, 30
        %v1453 = vshll.u32 %v1452, 30
        %v1454 = vsub.s32 %v1450, %v1453
        %vm1455 = vcmp.lt.s32.totalorder %v1454, 0
        %v1456 = vsub.s32 0, %v1454
        %v1457 = vsel %vm1455, %v1456, %v1454
        %v1458 = vclz %v1457
        %v1459 = vsub.s32 %v1458, 2
        %vm1460 = vcmp.gt.s32.totalorder 0, %v1459
        %v1461 = vsel %vm1460, 0, %v1459
        %v1462 = vsub.s32 32, %v1461
        %v1463 = vshll.u32 %v1454, %v1461
        %v1464 = vshrl.u32 %v1446, %v1462
        %v1465 = vor.u32 %v1463, %v1464
        %v1466 = vsub.s32 4294967266, %v1461
        %v1467 = vadd.s32 %v1466, 127
        %v1468 = vshll.u32 %v1467, 23
        %v1469 = vor.u32 4788187, %v1468
        %v1470 = vand.u32 2147483647, %v1469
        %v1472 = vcvt.s32.f32 %v1465
        %v1473 = vmul.f32 %v1472, %v1470
        %v1474 = vxor.u32 %v1473, 2147483648
        %v1475 = vsel %vm1392, %v1474, %v1473
        %v1476 = vsub.s32 4, %v1452
        %v1477 = vsel %vm1392, %v1476, %v1452
        %v1478 = vsel %vm1391, %v740, %v1475
        %v1479 = vsel %vm1391, 0, %v1477
        %v1480 = vcosq.f32.pop %v1478
        %v1481 = vsinq.f32.pop %v1478
        %vm1482 = vweird.f32 %v740
        %v1483 = vadd.s32 %v1479, 3
        %v1484 = vand.u32 %v1483, 3
        %vm1485 = vcmp.lt.s32.totalorder %v1484, 2
        %vm1486 = vcmp.eq.s32.totalorder %v1484, 0
        %v1487 = vxor.u32 %v1481, 2147483648
        %v1488 = vsel %vm1486, %v1480, %v1487
        %vm1489 = vcmp.eq.s32.totalorder %v1484, 2
        %v1490 = vxor.u32 %v1480, 2147483648
        %v1491 = vsel %vm1489, %v1490, %v1481
        %v1492 = vsel %vm1485, %v1488, %v1491
        %v1493 = vsel %vm1482, nan, %v1492
        %v1494 = vand.u32 2147483647, %v741
        %vm1495 = vcmp.le.f32.partialorder %v1494, 0.7853982
        %vm1496 = vcmp.lt.s32.totalorder %v741, 0
        %v1497 = vand.u32 %v741, 2139095040
        %v1498 = vshrl.u32 %v1497, 23
        %v1499 = vsub.s32 %v1498, 127
        %v1500 = vand.u32 2147483647, %v741
        %v1501 = vand.u32 %v1500, 8388607
        %v1502 = vor.u32 %v1501, 8388608
        %v1503 = vsub.s32 0, %v1502
        %v1504 = vadd.s32 %v1499, 1
        %vm1505 = vcmp.gt.s32.totalorder %v1504, 0
        %v1506 = vsel %vm1505, %v1504, 0
        %v1507 = vshrl.u32 %v1506, 5
        %v1508 = vand.u32 %v1506, 31
        %v1509 = vsub.s32 32, %v1508
        %v1510 = vshrl.u32 683565275, %v1509
        %v1511 = vshll.u32 683565275, %v1508
        %v1512 = vshrl.u32 2475754826, %v1509
        %v1513 = vor.u32 %v1511, %v1512
        %v1514 = vshll.u32 2475754826, %v1508
        %v1515 = vshrl.u32 2131351028, %v1509
        %v1516 = vor.u32 %v1514, %v1515
        %v1517 = vshll.u32 2131351028, %v1508
        %v1518 = vshrl.u32 2102212464, %v1509
        %v1519 = vor.u32 %v1517, %v1518
        %v1520 = vshll.u32 2102212464, %v1508
        %v1521 = vshrl.u32 920167782, %v1509
        %v1522 = vor.u32 %v1520, %v1521
        %v1523 = vshll.u32 920167782, %v1508
        %v1524 = vshrl.u32 1326507024, %v1509
        %v1525 = vor.u32 %v1523, %v1524
        %vm1526 = vcmp.lt.s32.totalorder %v1507, 1
        %vm1527 = vcmp.lt.s32.totalorder %v1507, 2
        %vm1528 = vcmp.lt.s32.totalorder %v1507, 3
        %vm1529 = vcmp.lt.s32.totalorder %v1507, 4
        %v1530 = vsel %vm1526, %v1510, %v1513
        %v1531 = vsel %vm1529, %v1519, 2102212464
        %v1532 = vsel %vm1528, %v1516, %v1531
        %v1533 = vsel %vm1527, %v1530, %v1532
        %v1534 = vsel %vm1526, %v1513, %v1516
        %v1535 = vsel %vm1529, %v1522, 920167782
        %v1536 = vsel %vm1528, %v1519, %v1535
        %v1537 = vsel %vm1527, %v1534, %v1536
        %v1538 = vsel %vm1526, %v1516, %v1519
        %v1539 = vsel %vm1529, %v1525, 1326507024
        %v1540 = vsel %vm1528, %v1522, %v1539
        %v1541 = vsel %vm1527, %v1538, %v1540
        %v1542 = vshll.u32 %v1502, 8
        %v1543 = vmul.u32.u64.compose %v1542, %v1541
        %v1544 = vextract.low.u32 %v1543
        %v1545 = vextract.high.u32 %v1543
        %v1546 = vmul.u32.u64.compose %v1542, %v1537
        %v1547 = vextract.low.u32 %v1546
        %v1548 = vextract.high.u32 %v1546
        %v1549 = vmul.u32 %v1542, %v1533
        %v1550 = vadd.s32 %v1545, %v1547
        %vm1551 = vc.u32 %v1545, %v1547
        %v1552 = vadd.s32 %v1548, 1
        %v1553 = vsel %vm1551, %v1552, %v1548
        %v1554 = vadd.s32 %v1549, %v1553
        %v1555 = vadd.s32 %v1554, 536870912
        %v1556 = vshrl.u32 %v1555, 30
        %v1557 = vshll.u32 %v1556, 30
        %v1558 = vsub.s32 %v1554, %v1557
        %vm1559 = vcmp.lt.s32.totalorder %v1558, 0
        %v1560 = vsub.s32 0, %v1558
        %v1561 = vsel %vm1559, %v1560, %v1558
        %v1562 = vclz %v1561
        %v1563 = vsub.s32 %v1562, 2
        %vm1564 = vcmp.gt.s32.totalorder 0, %v1563
        %v1565 = vsel %vm1564, 0, %v1563
        %v1566 = vsub.s32 32, %v1565
        %v1567 = vshll.u32 %v1558, %v1565
        %v1568 = vshrl.u32 %v1550, %v1566
        %v1569 = vor.u32 %v1567, %v1568
        %v1570 = vsub.s32 4294967266, %v1565
        %v1571 = vadd.s32 %v1570, 127
        %v1572 = vshll.u32 %v1571, 23
        %v1573 = vor.u32 4788187, %v1572
        %v1574 = vand.u32 2147483647, %v1573
        %v1576 = vcvt.s32.f32 %v1569
        %v1577 = vmul.f32 %v1576, %v1574
        %v1578 = vxor.u32 %v1577, 2147483648
        %v1579 = vsel %vm1496, %v1578, %v1577
        %v1580 = vsub.s32 4, %v1556
        %v1581 = vsel %vm1496, %v1580, %v1556
        %v1582 = vsel %vm1495, %v741, %v1579
        %v1583 = vsel %vm1495, 0, %v1581
        %v1584 = vcosq.f32.pop %v1582
        %v1585 = vsinq.f32.pop %v1582
        %vm1586 = vweird.f32 %v741
        %v1587 = vadd.s32 %v1583, 3
        %v1588 = vand.u32 %v1587, 3
        %vm1589 = vcmp.lt.s32.totalorder %v1588, 2
        %vm1590 = vcmp.eq.s32.totalorder %v1588, 0
        %v1591 = vxor.u32 %v1585, 2147483648
        %v1592 = vsel %vm1590, %v1584, %v1591
        %vm1593 = vcmp.eq.s32.totalorder %v1588, 2
        %v1594 = vxor.u32 %v1584, 2147483648
        %v1595 = vsel %vm1593, %v1594, %v1585
        %v1596 = vsel %vm1589, %v1592, %v1595
        %v1597 = vsel %vm1586, nan, %v1596
        %v1598 = vand.u32 2147483647, %v742
        %vm1599 = vcmp.le.f32.partialorder %v1598, 0.7853982
        %vm1600 = vcmp.lt.s32.totalorder %v742, 0
        %v1601 = vand.u32 %v742, 2139095040
        %v1602 = vshrl.u32 %v1601, 23
        %v1603 = vsub.s32 %v1602, 127
        %v1604 = vand.u32 2147483647, %v742
        %v1605 = vand.u32 %v1604, 8388607
        %v1606 = vor.u32 %v1605, 8388608
        %v1607 = vsub.s32 0, %v1606
        %v1608 = vadd.s32 %v1603, 1
        %vm1609 = vcmp.gt.s32.totalorder %v1608, 0
        %v1610 = vsel %vm1609, %v1608, 0
        %v1611 = vshrl.u32 %v1610, 5
        %v1612 = vand.u32 %v1610, 31
        %v1613 = vsub.s32 32, %v1612
        %v1614 = vshrl.u32 683565275, %v1613
        %v1615 = vshll.u32 683565275, %v1612
        %v1616 = vshrl.u32 2475754826, %v1613
        %v1617 = vor.u32 %v1615, %v1616
        %v1618 = vshll.u32 2475754826, %v1612
        %v1619 = vshrl.u32 2131351028, %v1613
        %v1620 = vor.u32 %v1618, %v1619
        %v1621 = vshll.u32 2131351028, %v1612
        %v1622 = vshrl.u32 2102212464, %v1613
        %v1623 = vor.u32 %v1621, %v1622
        %v1624 = vshll.u32 2102212464, %v1612
        %v1625 = vshrl.u32 920167782, %v1613
        %v1626 = vor.u32 %v1624, %v1625
        %v1627 = vshll.u32 920167782, %v1612
        %v1628 = vshrl.u32 1326507024, %v1613
        %v1629 = vor.u32 %v1627, %v1628
        %vm1630 = vcmp.lt.s32.totalorder %v1611, 1
        %vm1631 = vcmp.lt.s32.totalorder %v1611, 2
        %vm1632 = vcmp.lt.s32.totalorder %v1611, 3
        %vm1633 = vcmp.lt.s32.totalorder %v1611, 4
        %v1634 = vsel %vm1630, %v1614, %v1617
        %v1635 = vsel %vm1633, %v1623, 2102212464
        %v1636 = vsel %vm1632, %v1620, %v1635
        %v1637 = vsel %vm1631, %v1634, %v1636
        %v1638 = vsel %vm1630, %v1617, %v1620
        %v1639 = vsel %vm1633, %v1626, 920167782
        %v1640 = vsel %vm1632, %v1623, %v1639
        %v1641 = vsel %vm1631, %v1638, %v1640
        %v1642 = vsel %vm1630, %v1620, %v1623
        %v1643 = vsel %vm1633, %v1629, 1326507024
        %v1644 = vsel %vm1632, %v1626, %v1643
        %v1645 = vsel %vm1631, %v1642, %v1644
        %v1646 = vshll.u32 %v1606, 8
        %v1647 = vmul.u32.u64.compose %v1646, %v1645
        %v1648 = vextract.low.u32 %v1647
        %v1649 = vextract.high.u32 %v1647
        %v1650 = vmul.u32.u64.compose %v1646, %v1641
        %v1651 = vextract.low.u32 %v1650
        %v1652 = vextract.high.u32 %v1650
        %v1653 = vmul.u32 %v1646, %v1637
        %v1654 = vadd.s32 %v1649, %v1651
        %vm1655 = vc.u32 %v1649, %v1651
        %v1656 = vadd.s32 %v1652, 1
        %v1657 = vsel %vm1655, %v1656, %v1652
        %v1658 = vadd.s32 %v1653, %v1657
        %v1659 = vadd.s32 %v1658, 536870912
        %v1660 = vshrl.u32 %v1659, 30
        %v1661 = vshll.u32 %v1660, 30
        %v1662 = vsub.s32 %v1658, %v1661
        %vm1663 = vcmp.lt.s32.totalorder %v1662, 0
        %v1664 = vsub.s32 0, %v1662
        %v1665 = vsel %vm1663, %v1664, %v1662
        %v1666 = vclz %v1665
        %v1667 = vsub.s32 %v1666, 2
        %vm1668 = vcmp.gt.s32.totalorder 0, %v1667
        %v1669 = vsel %vm1668, 0, %v1667
        %v1670 = vsub.s32 32, %v1669
        %v1671 = vshll.u32 %v1662, %v1669
        %v1672 = vshrl.u32 %v1654, %v1670
        %v1673 = vor.u32 %v1671, %v1672
        %v1674 = vsub.s32 4294967266, %v1669
        %v1675 = vadd.s32 %v1674, 127
        %v1676 = vshll.u32 %v1675, 23
        %v1677 = vor.u32 4788187, %v1676
        %v1678 = vand.u32 2147483647, %v1677
        %v1680 = vcvt.s32.f32 %v1673
        %v1681 = vmul.f32 %v1680, %v1678
        %v1682 = vxor.u32 %v1681, 2147483648
        %v1683 = vsel %vm1600, %v1682, %v1681
        %v1684 = vsub.s32 4, %v1660
        %v1685 = vsel %vm1600, %v1684, %v1660
        %v1686 = vsel %vm1599, %v742, %v1683
        %v1687 = vsel %vm1599, 0, %v1685
        %v1688 = vcosq.f32.pop %v1686
        %v1689 = vsinq.f32.pop %v1686
        %vm1690 = vweird.f32 %v742
        %v1691 = vadd.s32 %v1687, 3
        %v1692 = vand.u32 %v1691, 3
        %vm1693 = vcmp.lt.s32.totalorder %v1692, 2
        %vm1694 = vcmp.eq.s32.totalorder %v1692, 0
        %v1695 = vxor.u32 %v1689, 2147483648
        %v1696 = vsel %vm1694, %v1688, %v1695
        %vm1697 = vcmp.eq.s32.totalorder %v1692, 2
        %v1698 = vxor.u32 %v1688, 2147483648
        %v1699 = vsel %vm1697, %v1698, %v1689
        %v1700 = vsel %vm1693, %v1696, %v1699
        %v1701 = vsel %vm1690, nan, %v1700
        %v1702 = vand.u32 2147483647, %v743
        %vm1703 = vcmp.le.f32.partialorder %v1702, 0.7853982
        %vm1704 = vcmp.lt.s32.totalorder %v743, 0
        %v1705 = vand.u32 %v743, 2139095040
        %v1706 = vshrl.u32 %v1705, 23
        %v1707 = vsub.s32 %v1706, 127
        %v1708 = vand.u32 2147483647, %v743
        %v1709 = vand.u32 %v1708, 8388607
        %v1710 = vor.u32 %v1709, 8388608
        %v1711 = vsub.s32 0, %v1710
        %v1712 = vadd.s32 %v1707, 1
        %vm1713 = vcmp.gt.s32.totalorder %v1712, 0
        %v1714 = vsel %vm1713, %v1712, 0
        %v1715 = vshrl.u32 %v1714, 5
        %v1716 = vand.u32 %v1714, 31
        %v1717 = vsub.s32 32, %v1716
        %v1718 = vshrl.u32 683565275, %v1717
        %v1719 = vshll.u32 683565275, %v1716
        %v1720 = vshrl.u32 2475754826, %v1717
        %v1721 = vor.u32 %v1719, %v1720
        %v1722 = vshll.u32 2475754826, %v1716
        %v1723 = vshrl.u32 2131351028, %v1717
        %v1724 = vor.u32 %v1722, %v1723
        %v1725 = vshll.u32 2131351028, %v1716
        %v1726 = vshrl.u32 2102212464, %v1717
        %v1727 = vor.u32 %v1725, %v1726
        %v1728 = vshll.u32 2102212464, %v1716
        %v1729 = vshrl.u32 920167782, %v1717
        %v1730 = vor.u32 %v1728, %v1729
        %v1731 = vshll.u32 920167782, %v1716
        %v1732 = vshrl.u32 1326507024, %v1717
        %v1733 = vor.u32 %v1731, %v1732
        %vm1734 = vcmp.lt.s32.totalorder %v1715, 1
        %vm1735 = vcmp.lt.s32.totalorder %v1715, 2
        %vm1736 = vcmp.lt.s32.totalorder %v1715, 3
        %vm1737 = vcmp.lt.s32.totalorder %v1715, 4
        %v1738 = vsel %vm1734, %v1718, %v1721
        %v1739 = vsel %vm1737, %v1727, 2102212464
        %v1740 = vsel %vm1736, %v1724, %v1739
        %v1741 = vsel %vm1735, %v1738, %v1740
        %v1742 = vsel %vm1734, %v1721, %v1724
        %v1743 = vsel %vm1737, %v1730, 920167782
        %v1744 = vsel %vm1736, %v1727, %v1743
        %v1745 = vsel %vm1735, %v1742, %v1744
        %v1746 = vsel %vm1734, %v1724, %v1727
        %v1747 = vsel %vm1737, %v1733, 1326507024
        %v1748 = vsel %vm1736, %v1730, %v1747
        %v1749 = vsel %vm1735, %v1746, %v1748
        %v1750 = vshll.u32 %v1710, 8
        %v1751 = vmul.u32.u64.compose %v1750, %v1749
        %v1752 = vextract.low.u32 %v1751
        %v1753 = vextract.high.u32 %v1751
        %v1754 = vmul.u32.u64.compose %v1750, %v1745
        %v1755 = vextract.low.u32 %v1754
        %v1756 = vextract.high.u32 %v1754
        %v1757 = vmul.u32 %v1750, %v1741
        %v1758 = vadd.s32 %v1753, %v1755
        %vm1759 = vc.u32 %v1753, %v1755
        %v1760 = vadd.s32 %v1756, 1
        %v1761 = vsel %vm1759, %v1760, %v1756
        %v1762 = vadd.s32 %v1757, %v1761
        %v1763 = vadd.s32 %v1762, 536870912
        %v1764 = vshrl.u32 %v1763, 30
        %v1765 = vshll.u32 %v1764, 30
        %v1766 = vsub.s32 %v1762, %v1765
        %vm1767 = vcmp.lt.s32.totalorder %v1766, 0
        %v1768 = vsub.s32 0, %v1766
        %v1769 = vsel %vm1767, %v1768, %v1766
        %v1770 = vclz %v1769
        %v1771 = vsub.s32 %v1770, 2
        %vm1772 = vcmp.gt.s32.totalorder 0, %v1771
        %v1773 = vsel %vm1772, 0, %v1771
        %v1774 = vsub.s32 32, %v1773
        %v1775 = vshll.u32 %v1766, %v1773
        %v1776 = vshrl.u32 %v1758, %v1774
        %v1777 = vor.u32 %v1775, %v1776
        %v1778 = vsub.s32 4294967266, %v1773
        %v1779 = vadd.s32 %v1778, 127
        %v1780 = vshll.u32 %v1779, 23
        %v1781 = vor.u32 4788187, %v1780
        %v1782 = vand.u32 2147483647, %v1781
        %v1784 = vcvt.s32.f32 %v1777
        %v1785 = vmul.f32 %v1784, %v1782
        %v1786 = vxor.u32 %v1785, 2147483648
        %v1787 = vsel %vm1704, %v1786, %v1785
        %v1788 = vsub.s32 4, %v1764
        %v1789 = vsel %vm1704, %v1788, %v1764
        %v1790 = vsel %vm1703, %v743, %v1787
        %v1791 = vsel %vm1703, 0, %v1789
        %v1792 = vcosq.f32.pop %v1790
        %v1793 = vsinq.f32.pop %v1790
        %vm1794 = vweird.f32 %v743
        %v1795 = vadd.s32 %v1791, 3
        %v1796 = vand.u32 %v1795, 3
        %vm1797 = vcmp.lt.s32.totalorder %v1796, 2
        %vm1798 = vcmp.eq.s32.totalorder %v1796, 0
        %v1799 = vxor.u32 %v1793, 2147483648
        %v1800 = vsel %vm1798, %v1792, %v1799
        %vm1801 = vcmp.eq.s32.totalorder %v1796, 2
        %v1802 = vxor.u32 %v1792, 2147483648
        %v1803 = vsel %vm1801, %v1802, %v1793
        %v1804 = vsel %vm1797, %v1800, %v1803
        %v1805 = vsel %vm1794, nan, %v1804
        %v1806 = vand.u32 2147483647, %v744
        %vm1807 = vcmp.le.f32.partialorder %v1806, 0.7853982
        %vm1808 = vcmp.lt.s32.totalorder %v744, 0
        %v1809 = vand.u32 %v744, 2139095040
        %v1810 = vshrl.u32 %v1809, 23
        %v1811 = vsub.s32 %v1810, 127
        %v1812 = vand.u32 2147483647, %v744
        %v1813 = vand.u32 %v1812, 8388607
        %v1814 = vor.u32 %v1813, 8388608
        %v1815 = vsub.s32 0, %v1814
        %v1816 = vadd.s32 %v1811, 1
        %vm1817 = vcmp.gt.s32.totalorder %v1816, 0
        %v1818 = vsel %vm1817, %v1816, 0
        %v1819 = vshrl.u32 %v1818, 5
        %v1820 = vand.u32 %v1818, 31
        %v1821 = vsub.s32 32, %v1820
        %v1822 = vshrl.u32 683565275, %v1821
        %v1823 = vshll.u32 683565275, %v1820
        %v1824 = vshrl.u32 2475754826, %v1821
        %v1825 = vor.u32 %v1823, %v1824
        %v1826 = vshll.u32 2475754826, %v1820
        %v1827 = vshrl.u32 2131351028, %v1821
        %v1828 = vor.u32 %v1826, %v1827
        %v1829 = vshll.u32 2131351028, %v1820
        %v1830 = vshrl.u32 2102212464, %v1821
        %v1831 = vor.u32 %v1829, %v1830
        %v1832 = vshll.u32 2102212464, %v1820
        %v1833 = vshrl.u32 920167782, %v1821
        %v1834 = vor.u32 %v1832, %v1833
        %v1835 = vshll.u32 920167782, %v1820
        %v1836 = vshrl.u32 1326507024, %v1821
        %v1837 = vor.u32 %v1835, %v1836
        %vm1838 = vcmp.lt.s32.totalorder %v1819, 1
        %vm1839 = vcmp.lt.s32.totalorder %v1819, 2
        %vm1840 = vcmp.lt.s32.totalorder %v1819, 3
        %vm1841 = vcmp.lt.s32.totalorder %v1819, 4
        %v1842 = vsel %vm1838, %v1822, %v1825
        %v1843 = vsel %vm1841, %v1831, 2102212464
        %v1844 = vsel %vm1840, %v1828, %v1843
        %v1845 = vsel %vm1839, %v1842, %v1844
        %v1846 = vsel %vm1838, %v1825, %v1828
        %v1847 = vsel %vm1841, %v1834, 920167782
        %v1848 = vsel %vm1840, %v1831, %v1847
        %v1849 = vsel %vm1839, %v1846, %v1848
        %v1850 = vsel %vm1838, %v1828, %v1831
        %v1851 = vsel %vm1841, %v1837, 1326507024
        %v1852 = vsel %vm1840, %v1834, %v1851
        %v1853 = vsel %vm1839, %v1850, %v1852
        %v1854 = vshll.u32 %v1814, 8
        %v1855 = vmul.u32.u64.compose %v1854, %v1853
        %v1856 = vextract.low.u32 %v1855
        %v1857 = vextract.high.u32 %v1855
        %v1858 = vmul.u32.u64.compose %v1854, %v1849
        %v1859 = vextract.low.u32 %v1858
        %v1860 = vextract.high.u32 %v1858
        %v1861 = vmul.u32 %v1854, %v1845
        %v1862 = vadd.s32 %v1857, %v1859
        %vm1863 = vc.u32 %v1857, %v1859
        %v1864 = vadd.s32 %v1860, 1
        %v1865 = vsel %vm1863, %v1864, %v1860
        %v1866 = vadd.s32 %v1861, %v1865
        %v1867 = vadd.s32 %v1866, 536870912
        %v1868 = vshrl.u32 %v1867, 30
        %v1869 = vshll.u32 %v1868, 30
        %v1870 = vsub.s32 %v1866, %v1869
        %vm1871 = vcmp.lt.s32.totalorder %v1870, 0
        %v1872 = vsub.s32 0, %v1870
        %v1873 = vsel %vm1871, %v1872, %v1870
        %v1874 = vclz %v1873
        %v1875 = vsub.s32 %v1874, 2
        %vm1876 = vcmp.gt.s32.totalorder 0, %v1875
        %v1877 = vsel %vm1876, 0, %v1875
        %v1878 = vsub.s32 32, %v1877
        %v1879 = vshll.u32 %v1870, %v1877
        %v1880 = vshrl.u32 %v1862, %v1878
        %v1881 = vor.u32 %v1879, %v1880
        %v1882 = vsub.s32 4294967266, %v1877
        %v1883 = vadd.s32 %v1882, 127
        %v1884 = vshll.u32 %v1883, 23
        %v1885 = vor.u32 4788187, %v1884
        %v1886 = vand.u32 2147483647, %v1885
        %v1888 = vcvt.s32.f32 %v1881
        %v1889 = vmul.f32 %v1888, %v1886
        %v1890 = vxor.u32 %v1889, 2147483648
        %v1891 = vsel %vm1808, %v1890, %v1889
        %v1892 = vsub.s32 4, %v1868
        %v1893 = vsel %vm1808, %v1892, %v1868
        %v1894 = vsel %vm1807, %v744, %v1891
        %v1895 = vsel %vm1807, 0, %v1893
        %v1896 = vcosq.f32.pop %v1894
        %v1897 = vsinq.f32.pop %v1894
        %vm1898 = vweird.f32 %v744
        %v1899 = vadd.s32 %v1895, 3
        %v1900 = vand.u32 %v1899, 3
        %vm1901 = vcmp.lt.s32.totalorder %v1900, 2
        %vm1902 = vcmp.eq.s32.totalorder %v1900, 0
        %v1903 = vxor.u32 %v1897, 2147483648
        %v1904 = vsel %vm1902, %v1896, %v1903
        %vm1905 = vcmp.eq.s32.totalorder %v1900, 2
        %v1906 = vxor.u32 %v1896, 2147483648
        %v1907 = vsel %vm1905, %v1906, %v1897
        %v1908 = vsel %vm1901, %v1904, %v1907
        %v1909 = vsel %vm1898, nan, %v1908
        %v1910 = vand.u32 2147483647, %v745
        %vm1911 = vcmp.le.f32.partialorder %v1910, 0.7853982
        %vm1912 = vcmp.lt.s32.totalorder %v745, 0
        %v1913 = vand.u32 %v745, 2139095040
        %v1914 = vshrl.u32 %v1913, 23
        %v1915 = vsub.s32 %v1914, 127
        %v1916 = vand.u32 2147483647, %v745
        %v1917 = vand.u32 %v1916, 8388607
        %v1918 = vor.u32 %v1917, 8388608
        %v1919 = vsub.s32 0, %v1918
        %v1920 = vadd.s32 %v1915, 1
        %vm1921 = vcmp.gt.s32.totalorder %v1920, 0
        %v1922 = vsel %vm1921, %v1920, 0
        %v1923 = vshrl.u32 %v1922, 5
        %v1924 = vand.u32 %v1922, 31
        %v1925 = vsub.s32 32, %v1924
        %v1926 = vshrl.u32 683565275, %v1925
        %v1927 = vshll.u32 683565275, %v1924
        %v1928 = vshrl.u32 2475754826, %v1925
        %v1929 = vor.u32 %v1927, %v1928
        %v1930 = vshll.u32 2475754826, %v1924
        %v1931 = vshrl.u32 2131351028, %v1925
        %v1932 = vor.u32 %v1930, %v1931
        %v1933 = vshll.u32 2131351028, %v1924
        %v1934 = vshrl.u32 2102212464, %v1925
        %v1935 = vor.u32 %v1933, %v1934
        %v1936 = vshll.u32 2102212464, %v1924
        %v1937 = vshrl.u32 920167782, %v1925
        %v1938 = vor.u32 %v1936, %v1937
        %v1939 = vshll.u32 920167782, %v1924
        %v1940 = vshrl.u32 1326507024, %v1925
        %v1941 = vor.u32 %v1939, %v1940
        %vm1942 = vcmp.lt.s32.totalorder %v1923, 1
        %vm1943 = vcmp.lt.s32.totalorder %v1923, 2
        %vm1944 = vcmp.lt.s32.totalorder %v1923, 3
        %vm1945 = vcmp.lt.s32.totalorder %v1923, 4
        %v1946 = vsel %vm1942, %v1926, %v1929
        %v1947 = vsel %vm1945, %v1935, 2102212464
        %v1948 = vsel %vm1944, %v1932, %v1947
        %v1949 = vsel %vm1943, %v1946, %v1948
        %v1950 = vsel %vm1942, %v1929, %v1932
        %v1951 = vsel %vm1945, %v1938, 920167782
        %v1952 = vsel %vm1944, %v1935, %v1951
        %v1953 = vsel %vm1943, %v1950, %v1952
        %v1954 = vsel %vm1942, %v1932, %v1935
        %v1955 = vsel %vm1945, %v1941, 1326507024
        %v1956 = vsel %vm1944, %v1938, %v1955
        %v1957 = vsel %vm1943, %v1954, %v1956
        %v1958 = vshll.u32 %v1918, 8
        %v1959 = vmul.u32.u64.compose %v1958, %v1957
        %v1960 = vextract.low.u32 %v1959
        %v1961 = vextract.high.u32 %v1959
        %v1962 = vmul.u32.u64.compose %v1958, %v1953
        %v1963 = vextract.low.u32 %v1962
        %v1964 = vextract.high.u32 %v1962
        %v1965 = vmul.u32 %v1958, %v1949
        %v1966 = vadd.s32 %v1961, %v1963
        %vm1967 = vc.u32 %v1961, %v1963
        %v1968 = vadd.s32 %v1964, 1
        %v1969 = vsel %vm1967, %v1968, %v1964
        %v1970 = vadd.s32 %v1965, %v1969
        %v1971 = vadd.s32 %v1970, 536870912
        %v1972 = vshrl.u32 %v1971, 30
        %v1973 = vshll.u32 %v1972, 30
        %v1974 = vsub.s32 %v1970, %v1973
        %vm1975 = vcmp.lt.s32.totalorder %v1974, 0
        %v1976 = vsub.s32 0, %v1974
        %v1977 = vsel %vm1975, %v1976, %v1974
        %v1978 = vclz %v1977
        %v1979 = vsub.s32 %v1978, 2
        %vm1980 = vcmp.gt.s32.totalorder 0, %v1979
        %v1981 = vsel %vm1980, 0, %v1979
        %v1982 = vsub.s32 32, %v1981
        %v1983 = vshll.u32 %v1974, %v1981
        %v1984 = vshrl.u32 %v1966, %v1982
        %v1985 = vor.u32 %v1983, %v1984
        %v1986 = vsub.s32 4294967266, %v1981
        %v1987 = vadd.s32 %v1986, 127
        %v1988 = vshll.u32 %v1987, 23
        %v1989 = vor.u32 4788187, %v1988
        %v1990 = vand.u32 2147483647, %v1989
        %v1992 = vcvt.s32.f32 %v1985
        %v1993 = vmul.f32 %v1992, %v1990
        %v1994 = vxor.u32 %v1993, 2147483648
        %v1995 = vsel %vm1912, %v1994, %v1993
        %v1996 = vsub.s32 4, %v1972
        %v1997 = vsel %vm1912, %v1996, %v1972
        %v1998 = vsel %vm1911, %v745, %v1995
        %v1999 = vsel %vm1911, 0, %v1997
        %v2000 = vcosq.f32.pop %v1998
        %v2001 = vsinq.f32.pop %v1998
        %vm2002 = vweird.f32 %v745
        %v2003 = vadd.s32 %v1999, 3
        %v2004 = vand.u32 %v2003, 3
        %vm2005 = vcmp.lt.s32.totalorder %v2004, 2
        %vm2006 = vcmp.eq.s32.totalorder %v2004, 0
        %v2007 = vxor.u32 %v2001, 2147483648
        %v2008 = vsel %vm2006, %v2000, %v2007
        %vm2009 = vcmp.eq.s32.totalorder %v2004, 2
        %v2010 = vxor.u32 %v2000, 2147483648
        %v2011 = vsel %vm2009, %v2010, %v2001
        %v2012 = vsel %vm2005, %v2008, %v2011
        %v2013 = vsel %vm2002, nan, %v2012
        %v2014 = vand.u32 2147483647, %v746
        %vm2015 = vcmp.le.f32.partialorder %v2014, 0.7853982
        %vm2016 = vcmp.lt.s32.totalorder %v746, 0
        %v2017 = vand.u32 %v746, 2139095040
        %v2018 = vshrl.u32 %v2017, 23
        %v2019 = vsub.s32 %v2018, 127
        %v2020 = vand.u32 2147483647, %v746
        %v2021 = vand.u32 %v2020, 8388607
        %v2022 = vor.u32 %v2021, 8388608
        %v2023 = vsub.s32 0, %v2022
        %v2024 = vadd.s32 %v2019, 1
        %vm2025 = vcmp.gt.s32.totalorder %v2024, 0
        %v2026 = vsel %vm2025, %v2024, 0
        %v2027 = vshrl.u32 %v2026, 5
        %v2028 = vand.u32 %v2026, 31
        %v2029 = vsub.s32 32, %v2028
        %v2030 = vshrl.u32 683565275, %v2029
        %v2031 = vshll.u32 683565275, %v2028
        %v2032 = vshrl.u32 2475754826, %v2029
        %v2033 = vor.u32 %v2031, %v2032
        %v2034 = vshll.u32 2475754826, %v2028
        %v2035 = vshrl.u32 2131351028, %v2029
        %v2036 = vor.u32 %v2034, %v2035
        %v2037 = vshll.u32 2131351028, %v2028
        %v2038 = vshrl.u32 2102212464, %v2029
        %v2039 = vor.u32 %v2037, %v2038
        %v2040 = vshll.u32 2102212464, %v2028
        %v2041 = vshrl.u32 920167782, %v2029
        %v2042 = vor.u32 %v2040, %v2041
        %v2043 = vshll.u32 920167782, %v2028
        %v2044 = vshrl.u32 1326507024, %v2029
        %v2045 = vor.u32 %v2043, %v2044
        %vm2046 = vcmp.lt.s32.totalorder %v2027, 1
        %vm2047 = vcmp.lt.s32.totalorder %v2027, 2
        %vm2048 = vcmp.lt.s32.totalorder %v2027, 3
        %vm2049 = vcmp.lt.s32.totalorder %v2027, 4
        %v2050 = vsel %vm2046, %v2030, %v2033
        %v2051 = vsel %vm2049, %v2039, 2102212464
        %v2052 = vsel %vm2048, %v2036, %v2051
        %v2053 = vsel %vm2047, %v2050, %v2052
        %v2054 = vsel %vm2046, %v2033, %v2036
        %v2055 = vsel %vm2049, %v2042, 920167782
        %v2056 = vsel %vm2048, %v2039, %v2055
        %v2057 = vsel %vm2047, %v2054, %v2056
        %v2058 = vsel %vm2046, %v2036, %v2039
        %v2059 = vsel %vm2049, %v2045, 1326507024
        %v2060 = vsel %vm2048, %v2042, %v2059
        %v2061 = vsel %vm2047, %v2058, %v2060
        %v2062 = vshll.u32 %v2022, 8
        %v2063 = vmul.u32.u64.compose %v2062, %v2061
        %v2064 = vextract.low.u32 %v2063
        %v2065 = vextract.high.u32 %v2063
        %v2066 = vmul.u32.u64.compose %v2062, %v2057
        %v2067 = vextract.low.u32 %v2066
        %v2068 = vextract.high.u32 %v2066
        %v2069 = vmul.u32 %v2062, %v2053
        %v2070 = vadd.s32 %v2065, %v2067
        %vm2071 = vc.u32 %v2065, %v2067
        %v2072 = vadd.s32 %v2068, 1
        %v2073 = vsel %vm2071, %v2072, %v2068
        %v2074 = vadd.s32 %v2069, %v2073
        %v2075 = vadd.s32 %v2074, 536870912
        %v2076 = vshrl.u32 %v2075, 30
        %v2077 = vshll.u32 %v2076, 30
        %v2078 = vsub.s32 %v2074, %v2077
        %vm2079 = vcmp.lt.s32.totalorder %v2078, 0
        %v2080 = vsub.s32 0, %v2078
        %v2081 = vsel %vm2079, %v2080, %v2078
        %v2082 = vclz %v2081
        %v2083 = vsub.s32 %v2082, 2
        %vm2084 = vcmp.gt.s32.totalorder 0, %v2083
        %v2085 = vsel %vm2084, 0, %v2083
        %v2086 = vsub.s32 32, %v2085
        %v2087 = vshll.u32 %v2078, %v2085
        %v2088 = vshrl.u32 %v2070, %v2086
        %v2089 = vor.u32 %v2087, %v2088
        %v2090 = vsub.s32 4294967266, %v2085
        %v2091 = vadd.s32 %v2090, 127
        %v2092 = vshll.u32 %v2091, 23
        %v2093 = vor.u32 4788187, %v2092
        %v2094 = vand.u32 2147483647, %v2093
        %v2096 = vcvt.s32.f32 %v2089
        %v2097 = vmul.f32 %v2096, %v2094
        %v2098 = vxor.u32 %v2097, 2147483648
        %v2099 = vsel %vm2016, %v2098, %v2097
        %v2100 = vsub.s32 4, %v2076
        %v2101 = vsel %vm2016, %v2100, %v2076
        %v2102 = vsel %vm2015, %v746, %v2099
        %v2103 = vsel %vm2015, 0, %v2101
        %v2104 = vcosq.f32.pop %v2102
        %v2105 = vsinq.f32.pop %v2102
        %vm2106 = vweird.f32 %v746
        %v2107 = vadd.s32 %v2103, 3
        %v2108 = vand.u32 %v2107, 3
        %vm2109 = vcmp.lt.s32.totalorder %v2108, 2
        %vm2110 = vcmp.eq.s32.totalorder %v2108, 0
        %v2111 = vxor.u32 %v2105, 2147483648
        %v2112 = vsel %vm2110, %v2104, %v2111
        %vm2113 = vcmp.eq.s32.totalorder %v2108, 2
        %v2114 = vxor.u32 %v2104, 2147483648
        %v2115 = vsel %vm2113, %v2114, %v2105
        %v2116 = vsel %vm2109, %v2112, %v2115
        %v2117 = vsel %vm2106, nan, %v2116
        %v2118 = vand.u32 2147483647, %v747
        %vm2119 = vcmp.le.f32.partialorder %v2118, 0.7853982
        %vm2120 = vcmp.lt.s32.totalorder %v747, 0
        %v2121 = vand.u32 %v747, 2139095040
        %v2122 = vshrl.u32 %v2121, 23
        %v2123 = vsub.s32 %v2122, 127
        %v2124 = vand.u32 2147483647, %v747
        %v2125 = vand.u32 %v2124, 8388607
        %v2126 = vor.u32 %v2125, 8388608
        %v2127 = vsub.s32 0, %v2126
        %v2128 = vadd.s32 %v2123, 1
        %vm2129 = vcmp.gt.s32.totalorder %v2128, 0
        %v2130 = vsel %vm2129, %v2128, 0
        %v2131 = vshrl.u32 %v2130, 5
        %v2132 = vand.u32 %v2130, 31
        %v2133 = vsub.s32 32, %v2132
        %v2134 = vshrl.u32 683565275, %v2133
        %v2135 = vshll.u32 683565275, %v2132
        %v2136 = vshrl.u32 2475754826, %v2133
        %v2137 = vor.u32 %v2135, %v2136
        %v2138 = vshll.u32 2475754826, %v2132
        %v2139 = vshrl.u32 2131351028, %v2133
        %v2140 = vor.u32 %v2138, %v2139
        %v2141 = vshll.u32 2131351028, %v2132
        %v2142 = vshrl.u32 2102212464, %v2133
        %v2143 = vor.u32 %v2141, %v2142
        %v2144 = vshll.u32 2102212464, %v2132
        %v2145 = vshrl.u32 920167782, %v2133
        %v2146 = vor.u32 %v2144, %v2145
        %v2147 = vshll.u32 920167782, %v2132
        %v2148 = vshrl.u32 1326507024, %v2133
        %v2149 = vor.u32 %v2147, %v2148
        %vm2150 = vcmp.lt.s32.totalorder %v2131, 1
        %vm2151 = vcmp.lt.s32.totalorder %v2131, 2
        %vm2152 = vcmp.lt.s32.totalorder %v2131, 3
        %vm2153 = vcmp.lt.s32.totalorder %v2131, 4
        %v2154 = vsel %vm2150, %v2134, %v2137
        %v2155 = vsel %vm2153, %v2143, 2102212464
        %v2156 = vsel %vm2152, %v2140, %v2155
        %v2157 = vsel %vm2151, %v2154, %v2156
        %v2158 = vsel %vm2150, %v2137, %v2140
        %v2159 = vsel %vm2153, %v2146, 920167782
        %v2160 = vsel %vm2152, %v2143, %v2159
        %v2161 = vsel %vm2151, %v2158, %v2160
        %v2162 = vsel %vm2150, %v2140, %v2143
        %v2163 = vsel %vm2153, %v2149, 1326507024
        %v2164 = vsel %vm2152, %v2146, %v2163
        %v2165 = vsel %vm2151, %v2162, %v2164
        %v2166 = vshll.u32 %v2126, 8
        %v2167 = vmul.u32.u64.compose %v2166, %v2165
        %v2168 = vextract.low.u32 %v2167
        %v2169 = vextract.high.u32 %v2167
        %v2170 = vmul.u32.u64.compose %v2166, %v2161
        %v2171 = vextract.low.u32 %v2170
        %v2172 = vextract.high.u32 %v2170
        %v2173 = vmul.u32 %v2166, %v2157
        %v2174 = vadd.s32 %v2169, %v2171
        %vm2175 = vc.u32 %v2169, %v2171
        %v2176 = vadd.s32 %v2172, 1
        %v2177 = vsel %vm2175, %v2176, %v2172
        %v2178 = vadd.s32 %v2173, %v2177
        %v2179 = vadd.s32 %v2178, 536870912
        %v2180 = vshrl.u32 %v2179, 30
        %v2181 = vshll.u32 %v2180, 30
        %v2182 = vsub.s32 %v2178, %v2181
        %vm2183 = vcmp.lt.s32.totalorder %v2182, 0
        %v2184 = vsub.s32 0, %v2182
        %v2185 = vsel %vm2183, %v2184, %v2182
        %v2186 = vclz %v2185
        %v2187 = vsub.s32 %v2186, 2
        %vm2188 = vcmp.gt.s32.totalorder 0, %v2187
        %v2189 = vsel %vm2188, 0, %v2187
        %v2190 = vsub.s32 32, %v2189
        %v2191 = vshll.u32 %v2182, %v2189
        %v2192 = vshrl.u32 %v2174, %v2190
        %v2193 = vor.u32 %v2191, %v2192
        %v2194 = vsub.s32 4294967266, %v2189
        %v2195 = vadd.s32 %v2194, 127
        %v2196 = vshll.u32 %v2195, 23
        %v2197 = vor.u32 4788187, %v2196
        %v2198 = vand.u32 2147483647, %v2197
        %v2200 = vcvt.s32.f32 %v2193
        %v2201 = vmul.f32 %v2200, %v2198
        %v2202 = vxor.u32 %v2201, 2147483648
        %v2203 = vsel %vm2120, %v2202, %v2201
        %v2204 = vsub.s32 4, %v2180
        %v2205 = vsel %vm2120, %v2204, %v2180
        %v2206 = vsel %vm2119, %v747, %v2203
        %v2207 = vsel %vm2119, 0, %v2205
        %v2208 = vcosq.f32.pop %v2206
        %v2209 = vsinq.f32.pop %v2206
        %vm2210 = vweird.f32 %v747
        %v2211 = vadd.s32 %v2207, 3
        %v2212 = vand.u32 %v2211, 3
        %vm2213 = vcmp.lt.s32.totalorder %v2212, 2
        %vm2214 = vcmp.eq.s32.totalorder %v2212, 0
        %v2215 = vxor.u32 %v2209, 2147483648
        %v2216 = vsel %vm2214, %v2208, %v2215
        %vm2217 = vcmp.eq.s32.totalorder %v2212, 2
        %v2218 = vxor.u32 %v2208, 2147483648
        %v2219 = vsel %vm2217, %v2218, %v2209
        %v2220 = vsel %vm2213, %v2216, %v2219
        %v2221 = vsel %vm2210, nan, %v2220
        %v2222 = vand.u32 2147483647, %v748
        %vm2223 = vcmp.le.f32.partialorder %v2222, 0.7853982
        %vm2224 = vcmp.lt.s32.totalorder %v748, 0
        %v2225 = vand.u32 %v748, 2139095040
        %v2226 = vshrl.u32 %v2225, 23
        %v2227 = vsub.s32 %v2226, 127
        %v2228 = vand.u32 2147483647, %v748
        %v2229 = vand.u32 %v2228, 8388607
        %v2230 = vor.u32 %v2229, 8388608
        %v2231 = vsub.s32 0, %v2230
        %v2232 = vadd.s32 %v2227, 1
        %vm2233 = vcmp.gt.s32.totalorder %v2232, 0
        %v2234 = vsel %vm2233, %v2232, 0
        %v2235 = vshrl.u32 %v2234, 5
        %v2236 = vand.u32 %v2234, 31
        %v2237 = vsub.s32 32, %v2236
        %v2238 = vshrl.u32 683565275, %v2237
        %v2239 = vshll.u32 683565275, %v2236
        %v2240 = vshrl.u32 2475754826, %v2237
        %v2241 = vor.u32 %v2239, %v2240
        %v2242 = vshll.u32 2475754826, %v2236
        %v2243 = vshrl.u32 2131351028, %v2237
        %v2244 = vor.u32 %v2242, %v2243
        %v2245 = vshll.u32 2131351028, %v2236
        %v2246 = vshrl.u32 2102212464, %v2237
        %v2247 = vor.u32 %v2245, %v2246
        %v2248 = vshll.u32 2102212464, %v2236
        %v2249 = vshrl.u32 920167782, %v2237
        %v2250 = vor.u32 %v2248, %v2249
        %v2251 = vshll.u32 920167782, %v2236
        %v2252 = vshrl.u32 1326507024, %v2237
        %v2253 = vor.u32 %v2251, %v2252
        %vm2254 = vcmp.lt.s32.totalorder %v2235, 1
        %vm2255 = vcmp.lt.s32.totalorder %v2235, 2
        %vm2256 = vcmp.lt.s32.totalorder %v2235, 3
        %vm2257 = vcmp.lt.s32.totalorder %v2235, 4
        %v2258 = vsel %vm2254, %v2238, %v2241
        %v2259 = vsel %vm2257, %v2247, 2102212464
        %v2260 = vsel %vm2256, %v2244, %v2259
        %v2261 = vsel %vm2255, %v2258, %v2260
        %v2262 = vsel %vm2254, %v2241, %v2244
        %v2263 = vsel %vm2257, %v2250, 920167782
        %v2264 = vsel %vm2256, %v2247, %v2263
        %v2265 = vsel %vm2255, %v2262, %v2264
        %v2266 = vsel %vm2254, %v2244, %v2247
        %v2267 = vsel %vm2257, %v2253, 1326507024
        %v2268 = vsel %vm2256, %v2250, %v2267
        %v2269 = vsel %vm2255, %v2266, %v2268
        %v2270 = vshll.u32 %v2230, 8
        %v2271 = vmul.u32.u64.compose %v2270, %v2269
        %v2272 = vextract.low.u32 %v2271
        %v2273 = vextract.high.u32 %v2271
        %v2274 = vmul.u32.u64.compose %v2270, %v2265
        %v2275 = vextract.low.u32 %v2274
        %v2276 = vextract.high.u32 %v2274
        %v2277 = vmul.u32 %v2270, %v2261
        %v2278 = vadd.s32 %v2273, %v2275
        %vm2279 = vc.u32 %v2273, %v2275
        %v2280 = vadd.s32 %v2276, 1
        %v2281 = vsel %vm2279, %v2280, %v2276
        %v2282 = vadd.s32 %v2277, %v2281
        %v2283 = vadd.s32 %v2282, 536870912
        %v2284 = vshrl.u32 %v2283, 30
        %v2285 = vshll.u32 %v2284, 30
        %v2286 = vsub.s32 %v2282, %v2285
        %vm2287 = vcmp.lt.s32.totalorder %v2286, 0
        %v2288 = vsub.s32 0, %v2286
        %v2289 = vsel %vm2287, %v2288, %v2286
        %v2290 = vclz %v2289
        %v2291 = vsub.s32 %v2290, 2
        %vm2292 = vcmp.gt.s32.totalorder 0, %v2291
        %v2293 = vsel %vm2292, 0, %v2291
        %v2294 = vsub.s32 32, %v2293
        %v2295 = vshll.u32 %v2286, %v2293
        %v2296 = vshrl.u32 %v2278, %v2294
        %v2297 = vor.u32 %v2295, %v2296
        %v2298 = vsub.s32 4294967266, %v2293
        %v2299 = vadd.s32 %v2298, 127
        %v2300 = vshll.u32 %v2299, 23
        %v2301 = vor.u32 4788187, %v2300
        %v2302 = vand.u32 2147483647, %v2301
        %v2304 = vcvt.s32.f32 %v2297
        %v2305 = vmul.f32 %v2304, %v2302
        %v2306 = vxor.u32 %v2305, 2147483648
        %v2307 = vsel %vm2224, %v2306, %v2305
        %v2308 = vsub.s32 4, %v2284
        %v2309 = vsel %vm2224, %v2308, %v2284
        %v2310 = vsel %vm2223, %v748, %v2307
        %v2311 = vsel %vm2223, 0, %v2309
        %v2312 = vcosq.f32.pop %v2310
        %v2313 = vsinq.f32.pop %v2310
        %vm2314 = vweird.f32 %v748
        %v2315 = vadd.s32 %v2311, 3
        %v2316 = vand.u32 %v2315, 3
        %vm2317 = vcmp.lt.s32.totalorder %v2316, 2
        %vm2318 = vcmp.eq.s32.totalorder %v2316, 0
        %v2319 = vxor.u32 %v2313, 2147483648
        %v2320 = vsel %vm2318, %v2312, %v2319
        %vm2321 = vcmp.eq.s32.totalorder %v2316, 2
        %v2322 = vxor.u32 %v2312, 2147483648
        %v2323 = vsel %vm2321, %v2322, %v2313
        %v2324 = vsel %vm2317, %v2320, %v2323
        %v2325 = vsel %vm2314, nan, %v2324
        %v2326 = vand.u32 2147483647, %v749
        %vm2327 = vcmp.le.f32.partialorder %v2326, 0.7853982
        %vm2328 = vcmp.lt.s32.totalorder %v749, 0
        %v2329 = vand.u32 %v749, 2139095040
        %v2330 = vshrl.u32 %v2329, 23
        %v2331 = vsub.s32 %v2330, 127
        %v2332 = vand.u32 2147483647, %v749
        %v2333 = vand.u32 %v2332, 8388607
        %v2334 = vor.u32 %v2333, 8388608
        %v2335 = vsub.s32 0, %v2334
        %v2336 = vadd.s32 %v2331, 1
        %vm2337 = vcmp.gt.s32.totalorder %v2336, 0
        %v2338 = vsel %vm2337, %v2336, 0
        %v2339 = vshrl.u32 %v2338, 5
        %v2340 = vand.u32 %v2338, 31
        %v2341 = vsub.s32 32, %v2340
        %v2342 = vshrl.u32 683565275, %v2341
        %v2343 = vshll.u32 683565275, %v2340
        %v2344 = vshrl.u32 2475754826, %v2341
        %v2345 = vor.u32 %v2343, %v2344
        %v2346 = vshll.u32 2475754826, %v2340
        %v2347 = vshrl.u32 2131351028, %v2341
        %v2348 = vor.u32 %v2346, %v2347
        %v2349 = vshll.u32 2131351028, %v2340
        %v2350 = vshrl.u32 2102212464, %v2341
        %v2351 = vor.u32 %v2349, %v2350
        %v2352 = vshll.u32 2102212464, %v2340
        %v2353 = vshrl.u32 920167782, %v2341
        %v2354 = vor.u32 %v2352, %v2353
        %v2355 = vshll.u32 920167782, %v2340
        %v2356 = vshrl.u32 1326507024, %v2341
        %v2357 = vor.u32 %v2355, %v2356
        %vm2358 = vcmp.lt.s32.totalorder %v2339, 1
        %vm2359 = vcmp.lt.s32.totalorder %v2339, 2
        %vm2360 = vcmp.lt.s32.totalorder %v2339, 3
        %vm2361 = vcmp.lt.s32.totalorder %v2339, 4
        %v2362 = vsel %vm2358, %v2342, %v2345
        %v2363 = vsel %vm2361, %v2351, 2102212464
        %v2364 = vsel %vm2360, %v2348, %v2363
        %v2365 = vsel %vm2359, %v2362, %v2364
        %v2366 = vsel %vm2358, %v2345, %v2348
        %v2367 = vsel %vm2361, %v2354, 920167782
        %v2368 = vsel %vm2360, %v2351, %v2367
        %v2369 = vsel %vm2359, %v2366, %v2368
        %v2370 = vsel %vm2358, %v2348, %v2351
        %v2371 = vsel %vm2361, %v2357, 1326507024
        %v2372 = vsel %vm2360, %v2354, %v2371
        %v2373 = vsel %vm2359, %v2370, %v2372
        %v2374 = vshll.u32 %v2334, 8
        %v2375 = vmul.u32.u64.compose %v2374, %v2373
        %v2376 = vextract.low.u32 %v2375
        %v2377 = vextract.high.u32 %v2375
        %v2378 = vmul.u32.u64.compose %v2374, %v2369
        %v2379 = vextract.low.u32 %v2378
        %v2380 = vextract.high.u32 %v2378
        %v2381 = vmul.u32 %v2374, %v2365
        %v2382 = vadd.s32 %v2377, %v2379
        %vm2383 = vc.u32 %v2377, %v2379
        %v2384 = vadd.s32 %v2380, 1
        %v2385 = vsel %vm2383, %v2384, %v2380
        %v2386 = vadd.s32 %v2381, %v2385
        %v2387 = vadd.s32 %v2386, 536870912
        %v2388 = vshrl.u32 %v2387, 30
        %v2389 = vshll.u32 %v2388, 30
        %v2390 = vsub.s32 %v2386, %v2389
        %vm2391 = vcmp.lt.s32.totalorder %v2390, 0
        %v2392 = vsub.s32 0, %v2390
        %v2393 = vsel %vm2391, %v2392, %v2390
        %v2394 = vclz %v2393
        %v2395 = vsub.s32 %v2394, 2
        %vm2396 = vcmp.gt.s32.totalorder 0, %v2395
        %v2397 = vsel %vm2396, 0, %v2395
        %v2398 = vsub.s32 32, %v2397
        %v2399 = vshll.u32 %v2390, %v2397
        %v2400 = vshrl.u32 %v2382, %v2398
        %v2401 = vor.u32 %v2399, %v2400
        %v2402 = vsub.s32 4294967266, %v2397
        %v2403 = vadd.s32 %v2402, 127
        %v2404 = vshll.u32 %v2403, 23
        %v2405 = vor.u32 4788187, %v2404
        %v2406 = vand.u32 2147483647, %v2405
        %v2408 = vcvt.s32.f32 %v2401
        %v2409 = vmul.f32 %v2408, %v2406
        %v2410 = vxor.u32 %v2409, 2147483648
        %v2411 = vsel %vm2328, %v2410, %v2409
        %v2412 = vsub.s32 4, %v2388
        %v2413 = vsel %vm2328, %v2412, %v2388
        %v2414 = vsel %vm2327, %v749, %v2411
        %v2415 = vsel %vm2327, 0, %v2413
        %v2416 = vcosq.f32.pop %v2414
        %v2417 = vsinq.f32.pop %v2414
        %vm2418 = vweird.f32 %v749
        %v2419 = vadd.s32 %v2415, 3
        %v2420 = vand.u32 %v2419, 3
        %vm2421 = vcmp.lt.s32.totalorder %v2420, 2
        %vm2422 = vcmp.eq.s32.totalorder %v2420, 0
        %v2423 = vxor.u32 %v2417, 2147483648
        %v2424 = vsel %vm2422, %v2416, %v2423
        %vm2425 = vcmp.eq.s32.totalorder %v2420, 2
        %v2426 = vxor.u32 %v2416, 2147483648
        %v2427 = vsel %vm2425, %v2426, %v2417
        %v2428 = vsel %vm2421, %v2424, %v2427
        %v2429 = vsel %vm2418, nan, %v2428
        %v2430 = vand.u32 2147483647, %v750
        %vm2431 = vcmp.le.f32.partialorder %v2430, 0.7853982
        %vm2432 = vcmp.lt.s32.totalorder %v750, 0
        %v2433 = vand.u32 %v750, 2139095040
        %v2434 = vshrl.u32 %v2433, 23
        %v2435 = vsub.s32 %v2434, 127
        %v2436 = vand.u32 2147483647, %v750
        %v2437 = vand.u32 %v2436, 8388607
        %v2438 = vor.u32 %v2437, 8388608
        %v2439 = vsub.s32 0, %v2438
        %v2440 = vadd.s32 %v2435, 1
        %vm2441 = vcmp.gt.s32.totalorder %v2440, 0
        %v2442 = vsel %vm2441, %v2440, 0
        %v2443 = vshrl.u32 %v2442, 5
        %v2444 = vand.u32 %v2442, 31
        %v2445 = vsub.s32 32, %v2444
        %v2446 = vshrl.u32 683565275, %v2445
        %v2447 = vshll.u32 683565275, %v2444
        %v2448 = vshrl.u32 2475754826, %v2445
        %v2449 = vor.u32 %v2447, %v2448
        %v2450 = vshll.u32 2475754826, %v2444
        %v2451 = vshrl.u32 2131351028, %v2445
        %v2452 = vor.u32 %v2450, %v2451
        %v2453 = vshll.u32 2131351028, %v2444
        %v2454 = vshrl.u32 2102212464, %v2445
        %v2455 = vor.u32 %v2453, %v2454
        %v2456 = vshll.u32 2102212464, %v2444
        %v2457 = vshrl.u32 920167782, %v2445
        %v2458 = vor.u32 %v2456, %v2457
        %v2459 = vshll.u32 920167782, %v2444
        %v2460 = vshrl.u32 1326507024, %v2445
        %v2461 = vor.u32 %v2459, %v2460
        %vm2462 = vcmp.lt.s32.totalorder %v2443, 1
        %vm2463 = vcmp.lt.s32.totalorder %v2443, 2
        %vm2464 = vcmp.lt.s32.totalorder %v2443, 3
        %vm2465 = vcmp.lt.s32.totalorder %v2443, 4
        %v2466 = vsel %vm2462, %v2446, %v2449
        %v2467 = vsel %vm2465, %v2455, 2102212464
        %v2468 = vsel %vm2464, %v2452, %v2467
        %v2469 = vsel %vm2463, %v2466, %v2468
        %v2470 = vsel %vm2462, %v2449, %v2452
        %v2471 = vsel %vm2465, %v2458, 920167782
        %v2472 = vsel %vm2464, %v2455, %v2471
        %v2473 = vsel %vm2463, %v2470, %v2472
        %v2474 = vsel %vm2462, %v2452, %v2455
        %v2475 = vsel %vm2465, %v2461, 1326507024
        %v2476 = vsel %vm2464, %v2458, %v2475
        %v2477 = vsel %vm2463, %v2474, %v2476
        %v2478 = vshll.u32 %v2438, 8
        %v2479 = vmul.u32.u64.compose %v2478, %v2477
        %v2480 = vextract.low.u32 %v2479
        %v2481 = vextract.high.u32 %v2479
        %v2482 = vmul.u32.u64.compose %v2478, %v2473
        %v2483 = vextract.low.u32 %v2482
        %v2484 = vextract.high.u32 %v2482
        %v2485 = vmul.u32 %v2478, %v2469
        %v2486 = vadd.s32 %v2481, %v2483
        %vm2487 = vc.u32 %v2481, %v2483
        %v2488 = vadd.s32 %v2484, 1
        %v2489 = vsel %vm2487, %v2488, %v2484
        %v2490 = vadd.s32 %v2485, %v2489
        %v2491 = vadd.s32 %v2490, 536870912
        %v2492 = vshrl.u32 %v2491, 30
        %v2493 = vshll.u32 %v2492, 30
        %v2494 = vsub.s32 %v2490, %v2493
        %vm2495 = vcmp.lt.s32.totalorder %v2494, 0
        %v2496 = vsub.s32 0, %v2494
        %v2497 = vsel %vm2495, %v2496, %v2494
        %v2498 = vclz %v2497
        %v2499 = vsub.s32 %v2498, 2
        %vm2500 = vcmp.gt.s32.totalorder 0, %v2499
        %v2501 = vsel %vm2500, 0, %v2499
        %v2502 = vsub.s32 32, %v2501
        %v2503 = vshll.u32 %v2494, %v2501
        %v2504 = vshrl.u32 %v2486, %v2502
        %v2505 = vor.u32 %v2503, %v2504
        %v2506 = vsub.s32 4294967266, %v2501
        %v2507 = vadd.s32 %v2506, 127
        %v2508 = vshll.u32 %v2507, 23
        %v2509 = vor.u32 4788187, %v2508
        %v2510 = vand.u32 2147483647, %v2509
        %v2512 = vcvt.s32.f32 %v2505
        %v2513 = vmul.f32 %v2512, %v2510
        %v2514 = vxor.u32 %v2513, 2147483648
        %v2515 = vsel %vm2432, %v2514, %v2513
        %v2516 = vsub.s32 4, %v2492
        %v2517 = vsel %vm2432, %v2516, %v2492
        %v2518 = vsel %vm2431, %v750, %v2515
        %v2519 = vsel %vm2431, 0, %v2517
        %v2520 = vcosq.f32.pop %v2518
        %v2521 = vsinq.f32.pop %v2518
        %vm2522 = vweird.f32 %v750
        %v2523 = vadd.s32 %v2519, 3
        %v2524 = vand.u32 %v2523, 3
        %vm2525 = vcmp.lt.s32.totalorder %v2524, 2
        %vm2526 = vcmp.eq.s32.totalorder %v2524, 0
        %v2527 = vxor.u32 %v2521, 2147483648
        %v2528 = vsel %vm2526, %v2520, %v2527
        %vm2529 = vcmp.eq.s32.totalorder %v2524, 2
        %v2530 = vxor.u32 %v2520, 2147483648
        %v2531 = vsel %vm2529, %v2530, %v2521
        %v2532 = vsel %vm2525, %v2528, %v2531
        %v2533 = vsel %vm2522, nan, %v2532
        %v2534 = vand.u32 2147483647, %v751
        %vm2535 = vcmp.le.f32.partialorder %v2534, 0.7853982
        %vm2536 = vcmp.lt.s32.totalorder %v751, 0
        %v2537 = vand.u32 %v751, 2139095040
        %v2538 = vshrl.u32 %v2537, 23
        %v2539 = vsub.s32 %v2538, 127
        %v2540 = vand.u32 2147483647, %v751
        %v2541 = vand.u32 %v2540, 8388607
        %v2542 = vor.u32 %v2541, 8388608
        %v2543 = vsub.s32 0, %v2542
        %v2544 = vadd.s32 %v2539, 1
        %vm2545 = vcmp.gt.s32.totalorder %v2544, 0
        %v2546 = vsel %vm2545, %v2544, 0
        %v2547 = vshrl.u32 %v2546, 5
        %v2548 = vand.u32 %v2546, 31
        %v2549 = vsub.s32 32, %v2548
        %v2550 = vshrl.u32 683565275, %v2549
        %v2551 = vshll.u32 683565275, %v2548
        %v2552 = vshrl.u32 2475754826, %v2549
        %v2553 = vor.u32 %v2551, %v2552
        %v2554 = vshll.u32 2475754826, %v2548
        %v2555 = vshrl.u32 2131351028, %v2549
        %v2556 = vor.u32 %v2554, %v2555
        %v2557 = vshll.u32 2131351028, %v2548
        %v2558 = vshrl.u32 2102212464, %v2549
        %v2559 = vor.u32 %v2557, %v2558
        %v2560 = vshll.u32 2102212464, %v2548
        %v2561 = vshrl.u32 920167782, %v2549
        %v2562 = vor.u32 %v2560, %v2561
        %v2563 = vshll.u32 920167782, %v2548
        %v2564 = vshrl.u32 1326507024, %v2549
        %v2565 = vor.u32 %v2563, %v2564
        %vm2566 = vcmp.lt.s32.totalorder %v2547, 1
        %vm2567 = vcmp.lt.s32.totalorder %v2547, 2
        %vm2568 = vcmp.lt.s32.totalorder %v2547, 3
        %vm2569 = vcmp.lt.s32.totalorder %v2547, 4
        %v2570 = vsel %vm2566, %v2550, %v2553
        %v2571 = vsel %vm2569, %v2559, 2102212464
        %v2572 = vsel %vm2568, %v2556, %v2571
        %v2573 = vsel %vm2567, %v2570, %v2572
        %v2574 = vsel %vm2566, %v2553, %v2556
        %v2575 = vsel %vm2569, %v2562, 920167782
        %v2576 = vsel %vm2568, %v2559, %v2575
        %v2577 = vsel %vm2567, %v2574, %v2576
        %v2578 = vsel %vm2566, %v2556, %v2559
        %v2579 = vsel %vm2569, %v2565, 1326507024
        %v2580 = vsel %vm2568, %v2562, %v2579
        %v2581 = vsel %vm2567, %v2578, %v2580
        %v2582 = vshll.u32 %v2542, 8
        %v2583 = vmul.u32.u64.compose %v2582, %v2581
        %v2584 = vextract.low.u32 %v2583
        %v2585 = vextract.high.u32 %v2583
        %v2586 = vmul.u32.u64.compose %v2582, %v2577
        %v2587 = vextract.low.u32 %v2586
        %v2588 = vextract.high.u32 %v2586
        %v2589 = vmul.u32 %v2582, %v2573
        %v2590 = vadd.s32 %v2585, %v2587
        %vm2591 = vc.u32 %v2585, %v2587
        %v2592 = vadd.s32 %v2588, 1
        %v2593 = vsel %vm2591, %v2592, %v2588
        %v2594 = vadd.s32 %v2589, %v2593
        %v2595 = vadd.s32 %v2594, 536870912
        %v2596 = vshrl.u32 %v2595, 30
        %v2597 = vshll.u32 %v2596, 30
        %v2598 = vsub.s32 %v2594, %v2597
        %vm2599 = vcmp.lt.s32.totalorder %v2598, 0
        %v2600 = vsub.s32 0, %v2598
        %v2601 = vsel %vm2599, %v2600, %v2598
        %v2602 = vclz %v2601
        %v2603 = vsub.s32 %v2602, 2
        %vm2604 = vcmp.gt.s32.totalorder 0, %v2603
        %v2605 = vsel %vm2604, 0, %v2603
        %v2606 = vsub.s32 32, %v2605
        %v2607 = vshll.u32 %v2598, %v2605
        %v2608 = vshrl.u32 %v2590, %v2606
        %v2609 = vor.u32 %v2607, %v2608
        %v2610 = vsub.s32 4294967266, %v2605
        %v2611 = vadd.s32 %v2610, 127
        %v2612 = vshll.u32 %v2611, 23
        %v2613 = vor.u32 4788187, %v2612
        %v2614 = vand.u32 2147483647, %v2613
        %v2616 = vcvt.s32.f32 %v2609
        %v2617 = vmul.f32 %v2616, %v2614
        %v2618 = vxor.u32 %v2617, 2147483648
        %v2619 = vsel %vm2536, %v2618, %v2617
        %v2620 = vsub.s32 4, %v2596
        %v2621 = vsel %vm2536, %v2620, %v2596
        %v2622 = vsel %vm2535, %v751, %v2619
        %v2623 = vsel %vm2535, 0, %v2621
        %v2624 = vcosq.f32.pop %v2622
        %v2625 = vsinq.f32.pop %v2622
        %vm2626 = vweird.f32 %v751
        %v2627 = vadd.s32 %v2623, 3
        %v2628 = vand.u32 %v2627, 3
        %vm2629 = vcmp.lt.s32.totalorder %v2628, 2
        %vm2630 = vcmp.eq.s32.totalorder %v2628, 0
        %v2631 = vxor.u32 %v2625, 2147483648
        %v2632 = vsel %vm2630, %v2624, %v2631
        %vm2633 = vcmp.eq.s32.totalorder %v2628, 2
        %v2634 = vxor.u32 %v2624, 2147483648
        %v2635 = vsel %vm2633, %v2634, %v2625
        %v2636 = vsel %vm2629, %v2632, %v2635
        %v2637 = vsel %vm2626, nan, %v2636
        %v2638 = vand.u32 2147483647, %v752
        %vm2639 = vcmp.le.f32.partialorder %v2638, 0.7853982
        %vm2640 = vcmp.lt.s32.totalorder %v752, 0
        %v2641 = vand.u32 %v752, 2139095040
        %v2642 = vshrl.u32 %v2641, 23
        %v2643 = vsub.s32 %v2642, 127
        %v2644 = vand.u32 2147483647, %v752
        %v2645 = vand.u32 %v2644, 8388607
        %v2646 = vor.u32 %v2645, 8388608
        %v2647 = vsub.s32 0, %v2646
        %v2648 = vadd.s32 %v2643, 1
        %vm2649 = vcmp.gt.s32.totalorder %v2648, 0
        %v2650 = vsel %vm2649, %v2648, 0
        %v2651 = vshrl.u32 %v2650, 5
        %v2652 = vand.u32 %v2650, 31
        %v2653 = vsub.s32 32, %v2652
        %v2654 = vshrl.u32 683565275, %v2653
        %v2655 = vshll.u32 683565275, %v2652
        %v2656 = vshrl.u32 2475754826, %v2653
        %v2657 = vor.u32 %v2655, %v2656
        %v2658 = vshll.u32 2475754826, %v2652
        %v2659 = vshrl.u32 2131351028, %v2653
        %v2660 = vor.u32 %v2658, %v2659
        %v2661 = vshll.u32 2131351028, %v2652
        %v2662 = vshrl.u32 2102212464, %v2653
        %v2663 = vor.u32 %v2661, %v2662
        %v2664 = vshll.u32 2102212464, %v2652
        %v2665 = vshrl.u32 920167782, %v2653
        %v2666 = vor.u32 %v2664, %v2665
        %v2667 = vshll.u32 920167782, %v2652
        %v2668 = vshrl.u32 1326507024, %v2653
        %v2669 = vor.u32 %v2667, %v2668
        %vm2670 = vcmp.lt.s32.totalorder %v2651, 1
        %vm2671 = vcmp.lt.s32.totalorder %v2651, 2
        %vm2672 = vcmp.lt.s32.totalorder %v2651, 3
        %vm2673 = vcmp.lt.s32.totalorder %v2651, 4
        %v2674 = vsel %vm2670, %v2654, %v2657
        %v2675 = vsel %vm2673, %v2663, 2102212464
        %v2676 = vsel %vm2672, %v2660, %v2675
        %v2677 = vsel %vm2671, %v2674, %v2676
        %v2678 = vsel %vm2670, %v2657, %v2660
        %v2679 = vsel %vm2673, %v2666, 920167782
        %v2680 = vsel %vm2672, %v2663, %v2679
        %v2681 = vsel %vm2671, %v2678, %v2680
        %v2682 = vsel %vm2670, %v2660, %v2663
        %v2683 = vsel %vm2673, %v2669, 1326507024
        %v2684 = vsel %vm2672, %v2666, %v2683
        %v2685 = vsel %vm2671, %v2682, %v2684
        %v2686 = vshll.u32 %v2646, 8
        %v2687 = vmul.u32.u64.compose %v2686, %v2685
        %v2688 = vextract.low.u32 %v2687
        %v2689 = vextract.high.u32 %v2687
        %v2690 = vmul.u32.u64.compose %v2686, %v2681
        %v2691 = vextract.low.u32 %v2690
        %v2692 = vextract.high.u32 %v2690
        %v2693 = vmul.u32 %v2686, %v2677
        %v2694 = vadd.s32 %v2689, %v2691
        %vm2695 = vc.u32 %v2689, %v2691
        %v2696 = vadd.s32 %v2692, 1
        %v2697 = vsel %vm2695, %v2696, %v2692
        %v2698 = vadd.s32 %v2693, %v2697
        %v2699 = vadd.s32 %v2698, 536870912
        %v2700 = vshrl.u32 %v2699, 30
        %v2701 = vshll.u32 %v2700, 30
        %v2702 = vsub.s32 %v2698, %v2701
        %vm2703 = vcmp.lt.s32.totalorder %v2702, 0
        %v2704 = vsub.s32 0, %v2702
        %v2705 = vsel %vm2703, %v2704, %v2702
        %v2706 = vclz %v2705
        %v2707 = vsub.s32 %v2706, 2
        %vm2708 = vcmp.gt.s32.totalorder 0, %v2707
        %v2709 = vsel %vm2708, 0, %v2707
        %v2710 = vsub.s32 32, %v2709
        %v2711 = vshll.u32 %v2702, %v2709
        %v2712 = vshrl.u32 %v2694, %v2710
        %v2713 = vor.u32 %v2711, %v2712
        %v2714 = vsub.s32 4294967266, %v2709
        %v2715 = vadd.s32 %v2714, 127
        %v2716 = vshll.u32 %v2715, 23
        %v2717 = vor.u32 4788187, %v2716
        %v2718 = vand.u32 2147483647, %v2717
        %v2720 = vcvt.s32.f32 %v2713
        %v2721 = vmul.f32 %v2720, %v2718
        %v2722 = vxor.u32 %v2721, 2147483648
        %v2723 = vsel %vm2640, %v2722, %v2721
        %v2724 = vsub.s32 4, %v2700
        %v2725 = vsel %vm2640, %v2724, %v2700
        %v2726 = vsel %vm2639, %v752, %v2723
        %v2727 = vsel %vm2639, 0, %v2725
        %v2728 = vcosq.f32.pop %v2726
        %v2729 = vsinq.f32.pop %v2726
        %vm2730 = vweird.f32 %v752
        %v2731 = vadd.s32 %v2727, 3
        %v2732 = vand.u32 %v2731, 3
        %vm2733 = vcmp.lt.s32.totalorder %v2732, 2
        %vm2734 = vcmp.eq.s32.totalorder %v2732, 0
        %v2735 = vxor.u32 %v2729, 2147483648
        %v2736 = vsel %vm2734, %v2728, %v2735
        %vm2737 = vcmp.eq.s32.totalorder %v2732, 2
        %v2738 = vxor.u32 %v2728, 2147483648
        %v2739 = vsel %vm2737, %v2738, %v2729
        %v2740 = vsel %vm2733, %v2736, %v2739
        %v2741 = vsel %vm2730, nan, %v2740
        %v2742 = vand.u32 2147483647, %v753
        %vm2743 = vcmp.le.f32.partialorder %v2742, 0.7853982
        %vm2744 = vcmp.lt.s32.totalorder %v753, 0
        %v2745 = vand.u32 %v753, 2139095040
        %v2746 = vshrl.u32 %v2745, 23
        %v2747 = vsub.s32 %v2746, 127
        %v2748 = vand.u32 2147483647, %v753
        %v2749 = vand.u32 %v2748, 8388607
        %v2750 = vor.u32 %v2749, 8388608
        %v2751 = vsub.s32 0, %v2750
        %v2752 = vadd.s32 %v2747, 1
        %vm2753 = vcmp.gt.s32.totalorder %v2752, 0
        %v2754 = vsel %vm2753, %v2752, 0
        %v2755 = vshrl.u32 %v2754, 5
        %v2756 = vand.u32 %v2754, 31
        %v2757 = vsub.s32 32, %v2756
        %v2758 = vshrl.u32 683565275, %v2757
        %v2759 = vshll.u32 683565275, %v2756
        %v2760 = vshrl.u32 2475754826, %v2757
        %v2761 = vor.u32 %v2759, %v2760
        %v2762 = vshll.u32 2475754826, %v2756
        %v2763 = vshrl.u32 2131351028, %v2757
        %v2764 = vor.u32 %v2762, %v2763
        %v2765 = vshll.u32 2131351028, %v2756
        %v2766 = vshrl.u32 2102212464, %v2757
        %v2767 = vor.u32 %v2765, %v2766
        %v2768 = vshll.u32 2102212464, %v2756
        %v2769 = vshrl.u32 920167782, %v2757
        %v2770 = vor.u32 %v2768, %v2769
        %v2771 = vshll.u32 920167782, %v2756
        %v2772 = vshrl.u32 1326507024, %v2757
        %v2773 = vor.u32 %v2771, %v2772
        %vm2774 = vcmp.lt.s32.totalorder %v2755, 1
        %vm2775 = vcmp.lt.s32.totalorder %v2755, 2
        %vm2776 = vcmp.lt.s32.totalorder %v2755, 3
        %vm2777 = vcmp.lt.s32.totalorder %v2755, 4
        %v2778 = vsel %vm2774, %v2758, %v2761
        %v2779 = vsel %vm2777, %v2767, 2102212464
        %v2780 = vsel %vm2776, %v2764, %v2779
        %v2781 = vsel %vm2775, %v2778, %v2780
        %v2782 = vsel %vm2774, %v2761, %v2764
        %v2783 = vsel %vm2777, %v2770, 920167782
        %v2784 = vsel %vm2776, %v2767, %v2783
        %v2785 = vsel %vm2775, %v2782, %v2784
        %v2786 = vsel %vm2774, %v2764, %v2767
        %v2787 = vsel %vm2777, %v2773, 1326507024
        %v2788 = vsel %vm2776, %v2770, %v2787
        %v2789 = vsel %vm2775, %v2786, %v2788
        %v2790 = vshll.u32 %v2750, 8
        %v2791 = vmul.u32.u64.compose %v2790, %v2789
        %v2792 = vextract.low.u32 %v2791
        %v2793 = vextract.high.u32 %v2791
        %v2794 = vmul.u32.u64.compose %v2790, %v2785
        %v2795 = vextract.low.u32 %v2794
        %v2796 = vextract.high.u32 %v2794
        %v2797 = vmul.u32 %v2790, %v2781
        %v2798 = vadd.s32 %v2793, %v2795
        %vm2799 = vc.u32 %v2793, %v2795
        %v2800 = vadd.s32 %v2796, 1
        %v2801 = vsel %vm2799, %v2800, %v2796
        %v2802 = vadd.s32 %v2797, %v2801
        %v2803 = vadd.s32 %v2802, 536870912
        %v2804 = vshrl.u32 %v2803, 30
        %v2805 = vshll.u32 %v2804, 30
        %v2806 = vsub.s32 %v2802, %v2805
        %vm2807 = vcmp.lt.s32.totalorder %v2806, 0
        %v2808 = vsub.s32 0, %v2806
        %v2809 = vsel %vm2807, %v2808, %v2806
        %v2810 = vclz %v2809
        %v2811 = vsub.s32 %v2810, 2
        %vm2812 = vcmp.gt.s32.totalorder 0, %v2811
        %v2813 = vsel %vm2812, 0, %v2811
        %v2814 = vsub.s32 32, %v2813
        %v2815 = vshll.u32 %v2806, %v2813
        %v2816 = vshrl.u32 %v2798, %v2814
        %v2817 = vor.u32 %v2815, %v2816
        %v2818 = vsub.s32 4294967266, %v2813
        %v2819 = vadd.s32 %v2818, 127
        %v2820 = vshll.u32 %v2819, 23
        %v2821 = vor.u32 4788187, %v2820
        %v2822 = vand.u32 2147483647, %v2821
        %v2824 = vcvt.s32.f32 %v2817
        %v2825 = vmul.f32 %v2824, %v2822
        %v2826 = vxor.u32 %v2825, 2147483648
        %v2827 = vsel %vm2744, %v2826, %v2825
        %v2828 = vsub.s32 4, %v2804
        %v2829 = vsel %vm2744, %v2828, %v2804
        %v2830 = vsel %vm2743, %v753, %v2827
        %v2831 = vsel %vm2743, 0, %v2829
        %v2832 = vcosq.f32.pop %v2830
        %v2833 = vsinq.f32.pop %v2830
        %vm2834 = vweird.f32 %v753
        %v2835 = vadd.s32 %v2831, 3
        %v2836 = vand.u32 %v2835, 3
        %vm2837 = vcmp.lt.s32.totalorder %v2836, 2
        %vm2838 = vcmp.eq.s32.totalorder %v2836, 0
        %v2839 = vxor.u32 %v2833, 2147483648
        %v2840 = vsel %vm2838, %v2832, %v2839
        %vm2841 = vcmp.eq.s32.totalorder %v2836, 2
        %v2842 = vxor.u32 %v2832, 2147483648
        %v2843 = vsel %vm2841, %v2842, %v2833
        %v2844 = vsel %vm2837, %v2840, %v2843
        %v2845 = vsel %vm2834, nan, %v2844
        %v2846 = vand.u32 2147483647, %v754
        %vm2847 = vcmp.le.f32.partialorder %v2846, 0.7853982
        %vm2848 = vcmp.lt.s32.totalorder %v754, 0
        %v2849 = vand.u32 %v754, 2139095040
        %v2850 = vshrl.u32 %v2849, 23
        %v2851 = vsub.s32 %v2850, 127
        %v2852 = vand.u32 2147483647, %v754
        %v2853 = vand.u32 %v2852, 8388607
        %v2854 = vor.u32 %v2853, 8388608
        %v2855 = vsub.s32 0, %v2854
        %v2856 = vadd.s32 %v2851, 1
        %vm2857 = vcmp.gt.s32.totalorder %v2856, 0
        %v2858 = vsel %vm2857, %v2856, 0
        %v2859 = vshrl.u32 %v2858, 5
        %v2860 = vand.u32 %v2858, 31
        %v2861 = vsub.s32 32, %v2860
        %v2862 = vshrl.u32 683565275, %v2861
        %v2863 = vshll.u32 683565275, %v2860
        %v2864 = vshrl.u32 2475754826, %v2861
        %v2865 = vor.u32 %v2863, %v2864
        %v2866 = vshll.u32 2475754826, %v2860
        %v2867 = vshrl.u32 2131351028, %v2861
        %v2868 = vor.u32 %v2866, %v2867
        %v2869 = vshll.u32 2131351028, %v2860
        %v2870 = vshrl.u32 2102212464, %v2861
        %v2871 = vor.u32 %v2869, %v2870
        %v2872 = vshll.u32 2102212464, %v2860
        %v2873 = vshrl.u32 920167782, %v2861
        %v2874 = vor.u32 %v2872, %v2873
        %v2875 = vshll.u32 920167782, %v2860
        %v2876 = vshrl.u32 1326507024, %v2861
        %v2877 = vor.u32 %v2875, %v2876
        %vm2878 = vcmp.lt.s32.totalorder %v2859, 1
        %vm2879 = vcmp.lt.s32.totalorder %v2859, 2
        %vm2880 = vcmp.lt.s32.totalorder %v2859, 3
        %vm2881 = vcmp.lt.s32.totalorder %v2859, 4
        %v2882 = vsel %vm2878, %v2862, %v2865
        %v2883 = vsel %vm2881, %v2871, 2102212464
        %v2884 = vsel %vm2880, %v2868, %v2883
        %v2885 = vsel %vm2879, %v2882, %v2884
        %v2886 = vsel %vm2878, %v2865, %v2868
        %v2887 = vsel %vm2881, %v2874, 920167782
        %v2888 = vsel %vm2880, %v2871, %v2887
        %v2889 = vsel %vm2879, %v2886, %v2888
        %v2890 = vsel %vm2878, %v2868, %v2871
        %v2891 = vsel %vm2881, %v2877, 1326507024
        %v2892 = vsel %vm2880, %v2874, %v2891
        %v2893 = vsel %vm2879, %v2890, %v2892
        %v2894 = vshll.u32 %v2854, 8
        %v2895 = vmul.u32.u64.compose %v2894, %v2893
        %v2896 = vextract.low.u32 %v2895
        %v2897 = vextract.high.u32 %v2895
        %v2898 = vmul.u32.u64.compose %v2894, %v2889
        %v2899 = vextract.low.u32 %v2898
        %v2900 = vextract.high.u32 %v2898
        %v2901 = vmul.u32 %v2894, %v2885
        %v2902 = vadd.s32 %v2897, %v2899
        %vm2903 = vc.u32 %v2897, %v2899
        %v2904 = vadd.s32 %v2900, 1
        %v2905 = vsel %vm2903, %v2904, %v2900
        %v2906 = vadd.s32 %v2901, %v2905
        %v2907 = vadd.s32 %v2906, 536870912
        %v2908 = vshrl.u32 %v2907, 30
        %v2909 = vshll.u32 %v2908, 30
        %v2910 = vsub.s32 %v2906, %v2909
        %vm2911 = vcmp.lt.s32.totalorder %v2910, 0
        %v2912 = vsub.s32 0, %v2910
        %v2913 = vsel %vm2911, %v2912, %v2910
        %v2914 = vclz %v2913
        %v2915 = vsub.s32 %v2914, 2
        %vm2916 = vcmp.gt.s32.totalorder 0, %v2915
        %v2917 = vsel %vm2916, 0, %v2915
        %v2918 = vsub.s32 32, %v2917
        %v2919 = vshll.u32 %v2910, %v2917
        %v2920 = vshrl.u32 %v2902, %v2918
        %v2921 = vor.u32 %v2919, %v2920
        %v2922 = vsub.s32 4294967266, %v2917
        %v2923 = vadd.s32 %v2922, 127
        %v2924 = vshll.u32 %v2923, 23
        %v2925 = vor.u32 4788187, %v2924
        %v2926 = vand.u32 2147483647, %v2925
        %v2928 = vcvt.s32.f32 %v2921
        %v2929 = vmul.f32 %v2928, %v2926
        %v2930 = vxor.u32 %v2929, 2147483648
        %v2931 = vsel %vm2848, %v2930, %v2929
        %v2932 = vsub.s32 4, %v2908
        %v2933 = vsel %vm2848, %v2932, %v2908
        %v2934 = vsel %vm2847, %v754, %v2931
        %v2935 = vsel %vm2847, 0, %v2933
        %v2936 = vcosq.f32.pop %v2934
        %v2937 = vsinq.f32.pop %v2934
        %vm2938 = vweird.f32 %v754
        %v2939 = vadd.s32 %v2935, 3
        %v2940 = vand.u32 %v2939, 3
        %vm2941 = vcmp.lt.s32.totalorder %v2940, 2
        %vm2942 = vcmp.eq.s32.totalorder %v2940, 0
        %v2943 = vxor.u32 %v2937, 2147483648
        %v2944 = vsel %vm2942, %v2936, %v2943
        %vm2945 = vcmp.eq.s32.totalorder %v2940, 2
        %v2946 = vxor.u32 %v2936, 2147483648
        %v2947 = vsel %vm2945, %v2946, %v2937
        %v2948 = vsel %vm2941, %v2944, %v2947
        %v2949 = vsel %vm2938, nan, %v2948
        %v2950 = vand.u32 2147483647, %v755
        %vm2951 = vcmp.le.f32.partialorder %v2950, 0.7853982
        %vm2952 = vcmp.lt.s32.totalorder %v755, 0
        %v2953 = vand.u32 %v755, 2139095040
        %v2954 = vshrl.u32 %v2953, 23
        %v2955 = vsub.s32 %v2954, 127
        %v2956 = vand.u32 2147483647, %v755
        %v2957 = vand.u32 %v2956, 8388607
        %v2958 = vor.u32 %v2957, 8388608
        %v2959 = vsub.s32 0, %v2958
        %v2960 = vadd.s32 %v2955, 1
        %vm2961 = vcmp.gt.s32.totalorder %v2960, 0
        %v2962 = vsel %vm2961, %v2960, 0
        %v2963 = vshrl.u32 %v2962, 5
        %v2964 = vand.u32 %v2962, 31
        %v2965 = vsub.s32 32, %v2964
        %v2966 = vshrl.u32 683565275, %v2965
        %v2967 = vshll.u32 683565275, %v2964
        %v2968 = vshrl.u32 2475754826, %v2965
        %v2969 = vor.u32 %v2967, %v2968
        %v2970 = vshll.u32 2475754826, %v2964
        %v2971 = vshrl.u32 2131351028, %v2965
        %v2972 = vor.u32 %v2970, %v2971
        %v2973 = vshll.u32 2131351028, %v2964
        %v2974 = vshrl.u32 2102212464, %v2965
        %v2975 = vor.u32 %v2973, %v2974
        %v2976 = vshll.u32 2102212464, %v2964
        %v2977 = vshrl.u32 920167782, %v2965
        %v2978 = vor.u32 %v2976, %v2977
        %v2979 = vshll.u32 920167782, %v2964
        %v2980 = vshrl.u32 1326507024, %v2965
        %v2981 = vor.u32 %v2979, %v2980
        %vm2982 = vcmp.lt.s32.totalorder %v2963, 1
        %vm2983 = vcmp.lt.s32.totalorder %v2963, 2
        %vm2984 = vcmp.lt.s32.totalorder %v2963, 3
        %vm2985 = vcmp.lt.s32.totalorder %v2963, 4
        %v2986 = vsel %vm2982, %v2966, %v2969
        %v2987 = vsel %vm2985, %v2975, 2102212464
        %v2988 = vsel %vm2984, %v2972, %v2987
        %v2989 = vsel %vm2983, %v2986, %v2988
        %v2990 = vsel %vm2982, %v2969, %v2972
        %v2991 = vsel %vm2985, %v2978, 920167782
        %v2992 = vsel %vm2984, %v2975, %v2991
        %v2993 = vsel %vm2983, %v2990, %v2992
        %v2994 = vsel %vm2982, %v2972, %v2975
        %v2995 = vsel %vm2985, %v2981, 1326507024
        %v2996 = vsel %vm2984, %v2978, %v2995
        %v2997 = vsel %vm2983, %v2994, %v2996
        %v2998 = vshll.u32 %v2958, 8
        %v2999 = vmul.u32.u64.compose %v2998, %v2997
        %v3000 = vextract.low.u32 %v2999
        %v3001 = vextract.high.u32 %v2999
        %v3002 = vmul.u32.u64.compose %v2998, %v2993
        %v3003 = vextract.low.u32 %v3002
        %v3004 = vextract.high.u32 %v3002
        %v3005 = vmul.u32 %v2998, %v2989
        %v3006 = vadd.s32 %v3001, %v3003
        %vm3007 = vc.u32 %v3001, %v3003
        %v3008 = vadd.s32 %v3004, 1
        %v3009 = vsel %vm3007, %v3008, %v3004
        %v3010 = vadd.s32 %v3005, %v3009
        %v3011 = vadd.s32 %v3010, 536870912
        %v3012 = vshrl.u32 %v3011, 30
        %v3013 = vshll.u32 %v3012, 30
        %v3014 = vsub.s32 %v3010, %v3013
        %vm3015 = vcmp.lt.s32.totalorder %v3014, 0
        %v3016 = vsub.s32 0, %v3014
        %v3017 = vsel %vm3015, %v3016, %v3014
        %v3018 = vclz %v3017
        %v3019 = vsub.s32 %v3018, 2
        %vm3020 = vcmp.gt.s32.totalorder 0, %v3019
        %v3021 = vsel %vm3020, 0, %v3019
        %v3022 = vsub.s32 32, %v3021
        %v3023 = vshll.u32 %v3014, %v3021
        %v3024 = vshrl.u32 %v3006, %v3022
        %v3025 = vor.u32 %v3023, %v3024
        %v3026 = vsub.s32 4294967266, %v3021
        %v3027 = vadd.s32 %v3026, 127
        %v3028 = vshll.u32 %v3027, 23
        %v3029 = vor.u32 4788187, %v3028
        %v3030 = vand.u32 2147483647, %v3029
        %v3032 = vcvt.s32.f32 %v3025
        %v3033 = vmul.f32 %v3032, %v3030
        %v3034 = vxor.u32 %v3033, 2147483648
        %v3035 = vsel %vm2952, %v3034, %v3033
        %v3036 = vsub.s32 4, %v3012
        %v3037 = vsel %vm2952, %v3036, %v3012
        %v3038 = vsel %vm2951, %v755, %v3035
        %v3039 = vsel %vm2951, 0, %v3037
        %v3040 = vcosq.f32.pop %v3038
        %v3041 = vsinq.f32.pop %v3038
        %vm3042 = vweird.f32 %v755
        %v3043 = vadd.s32 %v3039, 3
        %v3044 = vand.u32 %v3043, 3
        %vm3045 = vcmp.lt.s32.totalorder %v3044, 2
        %vm3046 = vcmp.eq.s32.totalorder %v3044, 0
        %v3047 = vxor.u32 %v3041, 2147483648
        %v3048 = vsel %vm3046, %v3040, %v3047
        %vm3049 = vcmp.eq.s32.totalorder %v3044, 2
        %v3050 = vxor.u32 %v3040, 2147483648
        %v3051 = vsel %vm3049, %v3050, %v3041
        %v3052 = vsel %vm3045, %v3048, %v3051
        %v3053 = vsel %vm3042, nan, %v3052
        %v3054 = vand.u32 2147483647, %v756
        %vm3055 = vcmp.le.f32.partialorder %v3054, 0.7853982
        %vm3056 = vcmp.lt.s32.totalorder %v756, 0
        %v3057 = vand.u32 %v756, 2139095040
        %v3058 = vshrl.u32 %v3057, 23
        %v3059 = vsub.s32 %v3058, 127
        %v3060 = vand.u32 2147483647, %v756
        %v3061 = vand.u32 %v3060, 8388607
        %v3062 = vor.u32 %v3061, 8388608
        %v3063 = vsub.s32 0, %v3062
        %v3064 = vadd.s32 %v3059, 1
        %vm3065 = vcmp.gt.s32.totalorder %v3064, 0
        %v3066 = vsel %vm3065, %v3064, 0
        %v3067 = vshrl.u32 %v3066, 5
        %v3068 = vand.u32 %v3066, 31
        %v3069 = vsub.s32 32, %v3068
        %v3070 = vshrl.u32 683565275, %v3069
        %v3071 = vshll.u32 683565275, %v3068
        %v3072 = vshrl.u32 2475754826, %v3069
        %v3073 = vor.u32 %v3071, %v3072
        %v3074 = vshll.u32 2475754826, %v3068
        %v3075 = vshrl.u32 2131351028, %v3069
        %v3076 = vor.u32 %v3074, %v3075
        %v3077 = vshll.u32 2131351028, %v3068
        %v3078 = vshrl.u32 2102212464, %v3069
        %v3079 = vor.u32 %v3077, %v3078
        %v3080 = vshll.u32 2102212464, %v3068
        %v3081 = vshrl.u32 920167782, %v3069
        %v3082 = vor.u32 %v3080, %v3081
        %v3083 = vshll.u32 920167782, %v3068
        %v3084 = vshrl.u32 1326507024, %v3069
        %v3085 = vor.u32 %v3083, %v3084
        %vm3086 = vcmp.lt.s32.totalorder %v3067, 1
        %vm3087 = vcmp.lt.s32.totalorder %v3067, 2
        %vm3088 = vcmp.lt.s32.totalorder %v3067, 3
        %vm3089 = vcmp.lt.s32.totalorder %v3067, 4
        %v3090 = vsel %vm3086, %v3070, %v3073
        %v3091 = vsel %vm3089, %v3079, 2102212464
        %v3092 = vsel %vm3088, %v3076, %v3091
        %v3093 = vsel %vm3087, %v3090, %v3092
        %v3094 = vsel %vm3086, %v3073, %v3076
        %v3095 = vsel %vm3089, %v3082, 920167782
        %v3096 = vsel %vm3088, %v3079, %v3095
        %v3097 = vsel %vm3087, %v3094, %v3096
        %v3098 = vsel %vm3086, %v3076, %v3079
        %v3099 = vsel %vm3089, %v3085, 1326507024
        %v3100 = vsel %vm3088, %v3082, %v3099
        %v3101 = vsel %vm3087, %v3098, %v3100
        %v3102 = vshll.u32 %v3062, 8
        %v3103 = vmul.u32.u64.compose %v3102, %v3101
        %v3104 = vextract.low.u32 %v3103
        %v3105 = vextract.high.u32 %v3103
        %v3106 = vmul.u32.u64.compose %v3102, %v3097
        %v3107 = vextract.low.u32 %v3106
        %v3108 = vextract.high.u32 %v3106
        %v3109 = vmul.u32 %v3102, %v3093
        %v3110 = vadd.s32 %v3105, %v3107
        %vm3111 = vc.u32 %v3105, %v3107
        %v3112 = vadd.s32 %v3108, 1
        %v3113 = vsel %vm3111, %v3112, %v3108
        %v3114 = vadd.s32 %v3109, %v3113
        %v3115 = vadd.s32 %v3114, 536870912
        %v3116 = vshrl.u32 %v3115, 30
        %v3117 = vshll.u32 %v3116, 30
        %v3118 = vsub.s32 %v3114, %v3117
        %vm3119 = vcmp.lt.s32.totalorder %v3118, 0
        %v3120 = vsub.s32 0, %v3118
        %v3121 = vsel %vm3119, %v3120, %v3118
        %v3122 = vclz %v3121
        %v3123 = vsub.s32 %v3122, 2
        %vm3124 = vcmp.gt.s32.totalorder 0, %v3123
        %v3125 = vsel %vm3124, 0, %v3123
        %v3126 = vsub.s32 32, %v3125
        %v3127 = vshll.u32 %v3118, %v3125
        %v3128 = vshrl.u32 %v3110, %v3126
        %v3129 = vor.u32 %v3127, %v3128
        %v3130 = vsub.s32 4294967266, %v3125
        %v3131 = vadd.s32 %v3130, 127
        %v3132 = vshll.u32 %v3131, 23
        %v3133 = vor.u32 4788187, %v3132
        %v3134 = vand.u32 2147483647, %v3133
        %v3136 = vcvt.s32.f32 %v3129
        %v3137 = vmul.f32 %v3136, %v3134
        %v3138 = vxor.u32 %v3137, 2147483648
        %v3139 = vsel %vm3056, %v3138, %v3137
        %v3140 = vsub.s32 4, %v3116
        %v3141 = vsel %vm3056, %v3140, %v3116
        %v3142 = vsel %vm3055, %v756, %v3139
        %v3143 = vsel %vm3055, 0, %v3141
        %v3144 = vcosq.f32.pop %v3142
        %v3145 = vsinq.f32.pop %v3142
        %vm3146 = vweird.f32 %v756
        %v3147 = vadd.s32 %v3143, 3
        %v3148 = vand.u32 %v3147, 3
        %vm3149 = vcmp.lt.s32.totalorder %v3148, 2
        %vm3150 = vcmp.eq.s32.totalorder %v3148, 0
        %v3151 = vxor.u32 %v3145, 2147483648
        %v3152 = vsel %vm3150, %v3144, %v3151
        %vm3153 = vcmp.eq.s32.totalorder %v3148, 2
        %v3154 = vxor.u32 %v3144, 2147483648
        %v3155 = vsel %vm3153, %v3154, %v3145
        %v3156 = vsel %vm3149, %v3152, %v3155
        %v3157 = vsel %vm3146, nan, %v3156
        %v3158 = vand.u32 2147483647, %v757
        %vm3159 = vcmp.le.f32.partialorder %v3158, 0.7853982
        %vm3160 = vcmp.lt.s32.totalorder %v757, 0
        %v3161 = vand.u32 %v757, 2139095040
        %v3162 = vshrl.u32 %v3161, 23
        %v3163 = vsub.s32 %v3162, 127
        %v3164 = vand.u32 2147483647, %v757
        %v3165 = vand.u32 %v3164, 8388607
        %v3166 = vor.u32 %v3165, 8388608
        %v3167 = vsub.s32 0, %v3166
        %v3168 = vadd.s32 %v3163, 1
        %vm3169 = vcmp.gt.s32.totalorder %v3168, 0
        %v3170 = vsel %vm3169, %v3168, 0
        %v3171 = vshrl.u32 %v3170, 5
        %v3172 = vand.u32 %v3170, 31
        %v3173 = vsub.s32 32, %v3172
        %v3174 = vshrl.u32 683565275, %v3173
        %v3175 = vshll.u32 683565275, %v3172
        %v3176 = vshrl.u32 2475754826, %v3173
        %v3177 = vor.u32 %v3175, %v3176
        %v3178 = vshll.u32 2475754826, %v3172
        %v3179 = vshrl.u32 2131351028, %v3173
        %v3180 = vor.u32 %v3178, %v3179
        %v3181 = vshll.u32 2131351028, %v3172
        %v3182 = vshrl.u32 2102212464, %v3173
        %v3183 = vor.u32 %v3181, %v3182
        %v3184 = vshll.u32 2102212464, %v3172
        %v3185 = vshrl.u32 920167782, %v3173
        %v3186 = vor.u32 %v3184, %v3185
        %v3187 = vshll.u32 920167782, %v3172
        %v3188 = vshrl.u32 1326507024, %v3173
        %v3189 = vor.u32 %v3187, %v3188
        %vm3190 = vcmp.lt.s32.totalorder %v3171, 1
        %vm3191 = vcmp.lt.s32.totalorder %v3171, 2
        %vm3192 = vcmp.lt.s32.totalorder %v3171, 3
        %vm3193 = vcmp.lt.s32.totalorder %v3171, 4
        %v3194 = vsel %vm3190, %v3174, %v3177
        %v3195 = vsel %vm3193, %v3183, 2102212464
        %v3196 = vsel %vm3192, %v3180, %v3195
        %v3197 = vsel %vm3191, %v3194, %v3196
        %v3198 = vsel %vm3190, %v3177, %v3180
        %v3199 = vsel %vm3193, %v3186, 920167782
        %v3200 = vsel %vm3192, %v3183, %v3199
        %v3201 = vsel %vm3191, %v3198, %v3200
        %v3202 = vsel %vm3190, %v3180, %v3183
        %v3203 = vsel %vm3193, %v3189, 1326507024
        %v3204 = vsel %vm3192, %v3186, %v3203
        %v3205 = vsel %vm3191, %v3202, %v3204
        %v3206 = vshll.u32 %v3166, 8
        %v3207 = vmul.u32.u64.compose %v3206, %v3205
        %v3208 = vextract.low.u32 %v3207
        %v3209 = vextract.high.u32 %v3207
        %v3210 = vmul.u32.u64.compose %v3206, %v3201
        %v3211 = vextract.low.u32 %v3210
        %v3212 = vextract.high.u32 %v3210
        %v3213 = vmul.u32 %v3206, %v3197
        %v3214 = vadd.s32 %v3209, %v3211
        %vm3215 = vc.u32 %v3209, %v3211
        %v3216 = vadd.s32 %v3212, 1
        %v3217 = vsel %vm3215, %v3216, %v3212
        %v3218 = vadd.s32 %v3213, %v3217
        %v3219 = vadd.s32 %v3218, 536870912
        %v3220 = vshrl.u32 %v3219, 30
        %v3221 = vshll.u32 %v3220, 30
        %v3222 = vsub.s32 %v3218, %v3221
        %vm3223 = vcmp.lt.s32.totalorder %v3222, 0
        %v3224 = vsub.s32 0, %v3222
        %v3225 = vsel %vm3223, %v3224, %v3222
        %v3226 = vclz %v3225
        %v3227 = vsub.s32 %v3226, 2
        %vm3228 = vcmp.gt.s32.totalorder 0, %v3227
        %v3229 = vsel %vm3228, 0, %v3227
        %v3230 = vsub.s32 32, %v3229
        %v3231 = vshll.u32 %v3222, %v3229
        %v3232 = vshrl.u32 %v3214, %v3230
        %v3233 = vor.u32 %v3231, %v3232
        %v3234 = vsub.s32 4294967266, %v3229
        %v3235 = vadd.s32 %v3234, 127
        %v3236 = vshll.u32 %v3235, 23
        %v3237 = vor.u32 4788187, %v3236
        %v3238 = vand.u32 2147483647, %v3237
        %v3240 = vcvt.s32.f32 %v3233
        %v3241 = vmul.f32 %v3240, %v3238
        %v3242 = vxor.u32 %v3241, 2147483648
        %v3243 = vsel %vm3160, %v3242, %v3241
        %v3244 = vsub.s32 4, %v3220
        %v3245 = vsel %vm3160, %v3244, %v3220
        %v3246 = vsel %vm3159, %v757, %v3243
        %v3247 = vsel %vm3159, 0, %v3245
        %v3248 = vcosq.f32.pop %v3246
        %v3249 = vsinq.f32.pop %v3246
        %vm3250 = vweird.f32 %v757
        %v3251 = vadd.s32 %v3247, 3
        %v3252 = vand.u32 %v3251, 3
        %vm3253 = vcmp.lt.s32.totalorder %v3252, 2
        %vm3254 = vcmp.eq.s32.totalorder %v3252, 0
        %v3255 = vxor.u32 %v3249, 2147483648
        %v3256 = vsel %vm3254, %v3248, %v3255
        %vm3257 = vcmp.eq.s32.totalorder %v3252, 2
        %v3258 = vxor.u32 %v3248, 2147483648
        %v3259 = vsel %vm3257, %v3258, %v3249
        %v3260 = vsel %vm3253, %v3256, %v3259
        %v3261 = vsel %vm3250, nan, %v3260
        %v3262 = vand.u32 2147483647, %v758
        %vm3263 = vcmp.le.f32.partialorder %v3262, 0.7853982
        %vm3264 = vcmp.lt.s32.totalorder %v758, 0
        %v3265 = vand.u32 %v758, 2139095040
        %v3266 = vshrl.u32 %v3265, 23
        %v3267 = vsub.s32 %v3266, 127
        %v3268 = vand.u32 2147483647, %v758
        %v3269 = vand.u32 %v3268, 8388607
        %v3270 = vor.u32 %v3269, 8388608
        %v3271 = vsub.s32 0, %v3270
        %v3272 = vadd.s32 %v3267, 1
        %vm3273 = vcmp.gt.s32.totalorder %v3272, 0
        %v3274 = vsel %vm3273, %v3272, 0
        %v3275 = vshrl.u32 %v3274, 5
        %v3276 = vand.u32 %v3274, 31
        %v3277 = vsub.s32 32, %v3276
        %v3278 = vshrl.u32 683565275, %v3277
        %v3279 = vshll.u32 683565275, %v3276
        %v3280 = vshrl.u32 2475754826, %v3277
        %v3281 = vor.u32 %v3279, %v3280
        %v3282 = vshll.u32 2475754826, %v3276
        %v3283 = vshrl.u32 2131351028, %v3277
        %v3284 = vor.u32 %v3282, %v3283
        %v3285 = vshll.u32 2131351028, %v3276
        %v3286 = vshrl.u32 2102212464, %v3277
        %v3287 = vor.u32 %v3285, %v3286
        %v3288 = vshll.u32 2102212464, %v3276
        %v3289 = vshrl.u32 920167782, %v3277
        %v3290 = vor.u32 %v3288, %v3289
        %v3291 = vshll.u32 920167782, %v3276
        %v3292 = vshrl.u32 1326507024, %v3277
        %v3293 = vor.u32 %v3291, %v3292
        %vm3294 = vcmp.lt.s32.totalorder %v3275, 1
        %vm3295 = vcmp.lt.s32.totalorder %v3275, 2
        %vm3296 = vcmp.lt.s32.totalorder %v3275, 3
        %vm3297 = vcmp.lt.s32.totalorder %v3275, 4
        %v3298 = vsel %vm3294, %v3278, %v3281
        %v3299 = vsel %vm3297, %v3287, 2102212464
        %v3300 = vsel %vm3296, %v3284, %v3299
        %v3301 = vsel %vm3295, %v3298, %v3300
        %v3302 = vsel %vm3294, %v3281, %v3284
        %v3303 = vsel %vm3297, %v3290, 920167782
        %v3304 = vsel %vm3296, %v3287, %v3303
        %v3305 = vsel %vm3295, %v3302, %v3304
        %v3306 = vsel %vm3294, %v3284, %v3287
        %v3307 = vsel %vm3297, %v3293, 1326507024
        %v3308 = vsel %vm3296, %v3290, %v3307
        %v3309 = vsel %vm3295, %v3306, %v3308
        %v3310 = vshll.u32 %v3270, 8
        %v3311 = vmul.u32.u64.compose %v3310, %v3309
        %v3312 = vextract.low.u32 %v3311
        %v3313 = vextract.high.u32 %v3311
        %v3314 = vmul.u32.u64.compose %v3310, %v3305
        %v3315 = vextract.low.u32 %v3314
        %v3316 = vextract.high.u32 %v3314
        %v3317 = vmul.u32 %v3310, %v3301
        %v3318 = vadd.s32 %v3313, %v3315
        %vm3319 = vc.u32 %v3313, %v3315
        %v3320 = vadd.s32 %v3316, 1
        %v3321 = vsel %vm3319, %v3320, %v3316
        %v3322 = vadd.s32 %v3317, %v3321
        %v3323 = vadd.s32 %v3322, 536870912
        %v3324 = vshrl.u32 %v3323, 30
        %v3325 = vshll.u32 %v3324, 30
        %v3326 = vsub.s32 %v3322, %v3325
        %vm3327 = vcmp.lt.s32.totalorder %v3326, 0
        %v3328 = vsub.s32 0, %v3326
        %v3329 = vsel %vm3327, %v3328, %v3326
        %v3330 = vclz %v3329
        %v3331 = vsub.s32 %v3330, 2
        %vm3332 = vcmp.gt.s32.totalorder 0, %v3331
        %v3333 = vsel %vm3332, 0, %v3331
        %v3334 = vsub.s32 32, %v3333
        %v3335 = vshll.u32 %v3326, %v3333
        %v3336 = vshrl.u32 %v3318, %v3334
        %v3337 = vor.u32 %v3335, %v3336
        %v3338 = vsub.s32 4294967266, %v3333
        %v3339 = vadd.s32 %v3338, 127
        %v3340 = vshll.u32 %v3339, 23
        %v3341 = vor.u32 4788187, %v3340
        %v3342 = vand.u32 2147483647, %v3341
        %v3344 = vcvt.s32.f32 %v3337
        %v3345 = vmul.f32 %v3344, %v3342
        %v3346 = vxor.u32 %v3345, 2147483648
        %v3347 = vsel %vm3264, %v3346, %v3345
        %v3348 = vsub.s32 4, %v3324
        %v3349 = vsel %vm3264, %v3348, %v3324
        %v3350 = vsel %vm3263, %v758, %v3347
        %v3351 = vsel %vm3263, 0, %v3349
        %v3352 = vcosq.f32.pop %v3350
        %v3353 = vsinq.f32.pop %v3350
        %vm3354 = vweird.f32 %v758
        %v3355 = vadd.s32 %v3351, 3
        %v3356 = vand.u32 %v3355, 3
        %vm3357 = vcmp.lt.s32.totalorder %v3356, 2
        %vm3358 = vcmp.eq.s32.totalorder %v3356, 0
        %v3359 = vxor.u32 %v3353, 2147483648
        %v3360 = vsel %vm3358, %v3352, %v3359
        %vm3361 = vcmp.eq.s32.totalorder %v3356, 2
        %v3362 = vxor.u32 %v3352, 2147483648
        %v3363 = vsel %vm3361, %v3362, %v3353
        %v3364 = vsel %vm3357, %v3360, %v3363
        %v3365 = vsel %vm3354, nan, %v3364
        %v3366 = vand.u32 2147483647, %v759
        %vm3367 = vcmp.le.f32.partialorder %v3366, 0.7853982
        %vm3368 = vcmp.lt.s32.totalorder %v759, 0
        %v3369 = vand.u32 %v759, 2139095040
        %v3370 = vshrl.u32 %v3369, 23
        %v3371 = vsub.s32 %v3370, 127
        %v3372 = vand.u32 2147483647, %v759
        %v3373 = vand.u32 %v3372, 8388607
        %v3374 = vor.u32 %v3373, 8388608
        %v3375 = vsub.s32 0, %v3374
        %v3376 = vadd.s32 %v3371, 1
        %vm3377 = vcmp.gt.s32.totalorder %v3376, 0
        %v3378 = vsel %vm3377, %v3376, 0
        %v3379 = vshrl.u32 %v3378, 5
        %v3380 = vand.u32 %v3378, 31
        %v3381 = vsub.s32 32, %v3380
        %v3382 = vshrl.u32 683565275, %v3381
        %v3383 = vshll.u32 683565275, %v3380
        %v3384 = vshrl.u32 2475754826, %v3381
        %v3385 = vor.u32 %v3383, %v3384
        %v3386 = vshll.u32 2475754826, %v3380
        %v3387 = vshrl.u32 2131351028, %v3381
        %v3388 = vor.u32 %v3386, %v3387
        %v3389 = vshll.u32 2131351028, %v3380
        %v3390 = vshrl.u32 2102212464, %v3381
        %v3391 = vor.u32 %v3389, %v3390
        %v3392 = vshll.u32 2102212464, %v3380
        %v3393 = vshrl.u32 920167782, %v3381
        %v3394 = vor.u32 %v3392, %v3393
        %v3395 = vshll.u32 920167782, %v3380
        %v3396 = vshrl.u32 1326507024, %v3381
        %v3397 = vor.u32 %v3395, %v3396
        %vm3398 = vcmp.lt.s32.totalorder %v3379, 1
        %vm3399 = vcmp.lt.s32.totalorder %v3379, 2
        %vm3400 = vcmp.lt.s32.totalorder %v3379, 3
        %vm3401 = vcmp.lt.s32.totalorder %v3379, 4
        %v3402 = vsel %vm3398, %v3382, %v3385
        %v3403 = vsel %vm3401, %v3391, 2102212464
        %v3404 = vsel %vm3400, %v3388, %v3403
        %v3405 = vsel %vm3399, %v3402, %v3404
        %v3406 = vsel %vm3398, %v3385, %v3388
        %v3407 = vsel %vm3401, %v3394, 920167782
        %v3408 = vsel %vm3400, %v3391, %v3407
        %v3409 = vsel %vm3399, %v3406, %v3408
        %v3410 = vsel %vm3398, %v3388, %v3391
        %v3411 = vsel %vm3401, %v3397, 1326507024
        %v3412 = vsel %vm3400, %v3394, %v3411
        %v3413 = vsel %vm3399, %v3410, %v3412
        %v3414 = vshll.u32 %v3374, 8
        %v3415 = vmul.u32.u64.compose %v3414, %v3413
        %v3416 = vextract.low.u32 %v3415
        %v3417 = vextract.high.u32 %v3415
        %v3418 = vmul.u32.u64.compose %v3414, %v3409
        %v3419 = vextract.low.u32 %v3418
        %v3420 = vextract.high.u32 %v3418
        %v3421 = vmul.u32 %v3414, %v3405
        %v3422 = vadd.s32 %v3417, %v3419
        %vm3423 = vc.u32 %v3417, %v3419
        %v3424 = vadd.s32 %v3420, 1
        %v3425 = vsel %vm3423, %v3424, %v3420
        %v3426 = vadd.s32 %v3421, %v3425
        %v3427 = vadd.s32 %v3426, 536870912
        %v3428 = vshrl.u32 %v3427, 30
        %v3429 = vshll.u32 %v3428, 30
        %v3430 = vsub.s32 %v3426, %v3429
        %vm3431 = vcmp.lt.s32.totalorder %v3430, 0
        %v3432 = vsub.s32 0, %v3430
        %v3433 = vsel %vm3431, %v3432, %v3430
        %v3434 = vclz %v3433
        %v3435 = vsub.s32 %v3434, 2
        %vm3436 = vcmp.gt.s32.totalorder 0, %v3435
        %v3437 = vsel %vm3436, 0, %v3435
        %v3438 = vsub.s32 32, %v3437
        %v3439 = vshll.u32 %v3430, %v3437
        %v3440 = vshrl.u32 %v3422, %v3438
        %v3441 = vor.u32 %v3439, %v3440
        %v3442 = vsub.s32 4294967266, %v3437
        %v3443 = vadd.s32 %v3442, 127
        %v3444 = vshll.u32 %v3443, 23
        %v3445 = vor.u32 4788187, %v3444
        %v3446 = vand.u32 2147483647, %v3445
        %v3448 = vcvt.s32.f32 %v3441
        %v3449 = vmul.f32 %v3448, %v3446
        %v3450 = vxor.u32 %v3449, 2147483648
        %v3451 = vsel %vm3368, %v3450, %v3449
        %v3452 = vsub.s32 4, %v3428
        %v3453 = vsel %vm3368, %v3452, %v3428
        %v3454 = vsel %vm3367, %v759, %v3451
        %v3455 = vsel %vm3367, 0, %v3453
        %v3456 = vcosq.f32.pop %v3454
        %v3457 = vsinq.f32.pop %v3454
        %vm3458 = vweird.f32 %v759
        %v3459 = vadd.s32 %v3455, 3
        %v3460 = vand.u32 %v3459, 3
        %vm3461 = vcmp.lt.s32.totalorder %v3460, 2
        %vm3462 = vcmp.eq.s32.totalorder %v3460, 0
        %v3463 = vxor.u32 %v3457, 2147483648
        %v3464 = vsel %vm3462, %v3456, %v3463
        %vm3465 = vcmp.eq.s32.totalorder %v3460, 2
        %v3466 = vxor.u32 %v3456, 2147483648
        %v3467 = vsel %vm3465, %v3466, %v3457
        %v3468 = vsel %vm3461, %v3464, %v3467
        %v3469 = vsel %vm3458, nan, %v3468
        %v3470 = vand.u32 2147483647, %v760
        %vm3471 = vcmp.le.f32.partialorder %v3470, 0.7853982
        %vm3472 = vcmp.lt.s32.totalorder %v760, 0
        %v3473 = vand.u32 %v760, 2139095040
        %v3474 = vshrl.u32 %v3473, 23
        %v3475 = vsub.s32 %v3474, 127
        %v3476 = vand.u32 2147483647, %v760
        %v3477 = vand.u32 %v3476, 8388607
        %v3478 = vor.u32 %v3477, 8388608
        %v3479 = vsub.s32 0, %v3478
        %v3480 = vadd.s32 %v3475, 1
        %vm3481 = vcmp.gt.s32.totalorder %v3480, 0
        %v3482 = vsel %vm3481, %v3480, 0
        %v3483 = vshrl.u32 %v3482, 5
        %v3484 = vand.u32 %v3482, 31
        %v3485 = vsub.s32 32, %v3484
        %v3486 = vshrl.u32 683565275, %v3485
        %v3487 = vshll.u32 683565275, %v3484
        %v3488 = vshrl.u32 2475754826, %v3485
        %v3489 = vor.u32 %v3487, %v3488
        %v3490 = vshll.u32 2475754826, %v3484
        %v3491 = vshrl.u32 2131351028, %v3485
        %v3492 = vor.u32 %v3490, %v3491
        %v3493 = vshll.u32 2131351028, %v3484
        %v3494 = vshrl.u32 2102212464, %v3485
        %v3495 = vor.u32 %v3493, %v3494
        %v3496 = vshll.u32 2102212464, %v3484
        %v3497 = vshrl.u32 920167782, %v3485
        %v3498 = vor.u32 %v3496, %v3497
        %v3499 = vshll.u32 920167782, %v3484
        %v3500 = vshrl.u32 1326507024, %v3485
        %v3501 = vor.u32 %v3499, %v3500
        %vm3502 = vcmp.lt.s32.totalorder %v3483, 1
        %vm3503 = vcmp.lt.s32.totalorder %v3483, 2
        %vm3504 = vcmp.lt.s32.totalorder %v3483, 3
        %vm3505 = vcmp.lt.s32.totalorder %v3483, 4
        %v3506 = vsel %vm3502, %v3486, %v3489
        %v3507 = vsel %vm3505, %v3495, 2102212464
        %v3508 = vsel %vm3504, %v3492, %v3507
        %v3509 = vsel %vm3503, %v3506, %v3508
        %v3510 = vsel %vm3502, %v3489, %v3492
        %v3511 = vsel %vm3505, %v3498, 920167782
        %v3512 = vsel %vm3504, %v3495, %v3511
        %v3513 = vsel %vm3503, %v3510, %v3512
        %v3514 = vsel %vm3502, %v3492, %v3495
        %v3515 = vsel %vm3505, %v3501, 1326507024
        %v3516 = vsel %vm3504, %v3498, %v3515
        %v3517 = vsel %vm3503, %v3514, %v3516
        %v3518 = vshll.u32 %v3478, 8
        %v3519 = vmul.u32.u64.compose %v3518, %v3517
        %v3520 = vextract.low.u32 %v3519
        %v3521 = vextract.high.u32 %v3519
        %v3522 = vmul.u32.u64.compose %v3518, %v3513
        %v3523 = vextract.low.u32 %v3522
        %v3524 = vextract.high.u32 %v3522
        %v3525 = vmul.u32 %v3518, %v3509
        %v3526 = vadd.s32 %v3521, %v3523
        %vm3527 = vc.u32 %v3521, %v3523
        %v3528 = vadd.s32 %v3524, 1
        %v3529 = vsel %vm3527, %v3528, %v3524
        %v3530 = vadd.s32 %v3525, %v3529
        %v3531 = vadd.s32 %v3530, 536870912
        %v3532 = vshrl.u32 %v3531, 30
        %v3533 = vshll.u32 %v3532, 30
        %v3534 = vsub.s32 %v3530, %v3533
        %vm3535 = vcmp.lt.s32.totalorder %v3534, 0
        %v3536 = vsub.s32 0, %v3534
        %v3537 = vsel %vm3535, %v3536, %v3534
        %v3538 = vclz %v3537
        %v3539 = vsub.s32 %v3538, 2
        %vm3540 = vcmp.gt.s32.totalorder 0, %v3539
        %v3541 = vsel %vm3540, 0, %v3539
        %v3542 = vsub.s32 32, %v3541
        %v3543 = vshll.u32 %v3534, %v3541
        %v3544 = vshrl.u32 %v3526, %v3542
        %v3545 = vor.u32 %v3543, %v3544
        %v3546 = vsub.s32 4294967266, %v3541
        %v3547 = vadd.s32 %v3546, 127
        %v3548 = vshll.u32 %v3547, 23
        %v3549 = vor.u32 4788187, %v3548
        %v3550 = vand.u32 2147483647, %v3549
        %v3552 = vcvt.s32.f32 %v3545
        %v3553 = vmul.f32 %v3552, %v3550
        %v3554 = vxor.u32 %v3553, 2147483648
        %v3555 = vsel %vm3472, %v3554, %v3553
        %v3556 = vsub.s32 4, %v3532
        %v3557 = vsel %vm3472, %v3556, %v3532
        %v3558 = vsel %vm3471, %v760, %v3555
        %v3559 = vsel %vm3471, 0, %v3557
        %v3560 = vcosq.f32.pop %v3558
        %v3561 = vsinq.f32.pop %v3558
        %vm3562 = vweird.f32 %v760
        %v3563 = vadd.s32 %v3559, 3
        %v3564 = vand.u32 %v3563, 3
        %vm3565 = vcmp.lt.s32.totalorder %v3564, 2
        %vm3566 = vcmp.eq.s32.totalorder %v3564, 0
        %v3567 = vxor.u32 %v3561, 2147483648
        %v3568 = vsel %vm3566, %v3560, %v3567
        %vm3569 = vcmp.eq.s32.totalorder %v3564, 2
        %v3570 = vxor.u32 %v3560, 2147483648
        %v3571 = vsel %vm3569, %v3570, %v3561
        %v3572 = vsel %vm3565, %v3568, %v3571
        %v3573 = vsel %vm3562, nan, %v3572
        %v3574 = vand.u32 2147483647, %v761
        %vm3575 = vcmp.le.f32.partialorder %v3574, 0.7853982
        %vm3576 = vcmp.lt.s32.totalorder %v761, 0
        %v3577 = vand.u32 %v761, 2139095040
        %v3578 = vshrl.u32 %v3577, 23
        %v3579 = vsub.s32 %v3578, 127
        %v3580 = vand.u32 2147483647, %v761
        %v3581 = vand.u32 %v3580, 8388607
        %v3582 = vor.u32 %v3581, 8388608
        %v3583 = vsub.s32 0, %v3582
        %v3584 = vadd.s32 %v3579, 1
        %vm3585 = vcmp.gt.s32.totalorder %v3584, 0
        %v3586 = vsel %vm3585, %v3584, 0
        %v3587 = vshrl.u32 %v3586, 5
        %v3588 = vand.u32 %v3586, 31
        %v3589 = vsub.s32 32, %v3588
        %v3590 = vshrl.u32 683565275, %v3589
        %v3591 = vshll.u32 683565275, %v3588
        %v3592 = vshrl.u32 2475754826, %v3589
        %v3593 = vor.u32 %v3591, %v3592
        %v3594 = vshll.u32 2475754826, %v3588
        %v3595 = vshrl.u32 2131351028, %v3589
        %v3596 = vor.u32 %v3594, %v3595
        %v3597 = vshll.u32 2131351028, %v3588
        %v3598 = vshrl.u32 2102212464, %v3589
        %v3599 = vor.u32 %v3597, %v3598
        %v3600 = vshll.u32 2102212464, %v3588
        %v3601 = vshrl.u32 920167782, %v3589
        %v3602 = vor.u32 %v3600, %v3601
        %v3603 = vshll.u32 920167782, %v3588
        %v3604 = vshrl.u32 1326507024, %v3589
        %v3605 = vor.u32 %v3603, %v3604
        %vm3606 = vcmp.lt.s32.totalorder %v3587, 1
        %vm3607 = vcmp.lt.s32.totalorder %v3587, 2
        %vm3608 = vcmp.lt.s32.totalorder %v3587, 3
        %vm3609 = vcmp.lt.s32.totalorder %v3587, 4
        %v3610 = vsel %vm3606, %v3590, %v3593
        %v3611 = vsel %vm3609, %v3599, 2102212464
        %v3612 = vsel %vm3608, %v3596, %v3611
        %v3613 = vsel %vm3607, %v3610, %v3612
        %v3614 = vsel %vm3606, %v3593, %v3596
        %v3615 = vsel %vm3609, %v3602, 920167782
        %v3616 = vsel %vm3608, %v3599, %v3615
        %v3617 = vsel %vm3607, %v3614, %v3616
        %v3618 = vsel %vm3606, %v3596, %v3599
        %v3619 = vsel %vm3609, %v3605, 1326507024
        %v3620 = vsel %vm3608, %v3602, %v3619
        %v3621 = vsel %vm3607, %v3618, %v3620
        %v3622 = vshll.u32 %v3582, 8
        %v3623 = vmul.u32.u64.compose %v3622, %v3621
        %v3624 = vextract.low.u32 %v3623
        %v3625 = vextract.high.u32 %v3623
        %v3626 = vmul.u32.u64.compose %v3622, %v3617
        %v3627 = vextract.low.u32 %v3626
        %v3628 = vextract.high.u32 %v3626
        %v3629 = vmul.u32 %v3622, %v3613
        %v3630 = vadd.s32 %v3625, %v3627
        %vm3631 = vc.u32 %v3625, %v3627
        %v3632 = vadd.s32 %v3628, 1
        %v3633 = vsel %vm3631, %v3632, %v3628
        %v3634 = vadd.s32 %v3629, %v3633
        %v3635 = vadd.s32 %v3634, 536870912
        %v3636 = vshrl.u32 %v3635, 30
        %v3637 = vshll.u32 %v3636, 30
        %v3638 = vsub.s32 %v3634, %v3637
        %vm3639 = vcmp.lt.s32.totalorder %v3638, 0
        %v3640 = vsub.s32 0, %v3638
        %v3641 = vsel %vm3639, %v3640, %v3638
        %v3642 = vclz %v3641
        %v3643 = vsub.s32 %v3642, 2
        %vm3644 = vcmp.gt.s32.totalorder 0, %v3643
        %v3645 = vsel %vm3644, 0, %v3643
        %v3646 = vsub.s32 32, %v3645
        %v3647 = vshll.u32 %v3638, %v3645
        %v3648 = vshrl.u32 %v3630, %v3646
        %v3649 = vor.u32 %v3647, %v3648
        %v3650 = vsub.s32 4294967266, %v3645
        %v3651 = vadd.s32 %v3650, 127
        %v3652 = vshll.u32 %v3651, 23
        %v3653 = vor.u32 4788187, %v3652
        %v3654 = vand.u32 2147483647, %v3653
        %v3656 = vcvt.s32.f32 %v3649
        %v3657 = vmul.f32 %v3656, %v3654
        %v3658 = vxor.u32 %v3657, 2147483648
        %v3659 = vsel %vm3576, %v3658, %v3657
        %v3660 = vsub.s32 4, %v3636
        %v3661 = vsel %vm3576, %v3660, %v3636
        %v3662 = vsel %vm3575, %v761, %v3659
        %v3663 = vsel %vm3575, 0, %v3661
        %v3664 = vcosq.f32.pop %v3662
        %v3665 = vsinq.f32.pop %v3662
        %vm3666 = vweird.f32 %v761
        %v3667 = vadd.s32 %v3663, 3
        %v3668 = vand.u32 %v3667, 3
        %vm3669 = vcmp.lt.s32.totalorder %v3668, 2
        %vm3670 = vcmp.eq.s32.totalorder %v3668, 0
        %v3671 = vxor.u32 %v3665, 2147483648
        %v3672 = vsel %vm3670, %v3664, %v3671
        %vm3673 = vcmp.eq.s32.totalorder %v3668, 2
        %v3674 = vxor.u32 %v3664, 2147483648
        %v3675 = vsel %vm3673, %v3674, %v3665
        %v3676 = vsel %vm3669, %v3672, %v3675
        %v3677 = vsel %vm3666, nan, %v3676
        %v3678 = vand.u32 2147483647, %v762
        %vm3679 = vcmp.le.f32.partialorder %v3678, 0.7853982
        %vm3680 = vcmp.lt.s32.totalorder %v762, 0
        %v3681 = vand.u32 %v762, 2139095040
        %v3682 = vshrl.u32 %v3681, 23
        %v3683 = vsub.s32 %v3682, 127
        %v3684 = vand.u32 2147483647, %v762
        %v3685 = vand.u32 %v3684, 8388607
        %v3686 = vor.u32 %v3685, 8388608
        %v3687 = vsub.s32 0, %v3686
        %v3688 = vadd.s32 %v3683, 1
        %vm3689 = vcmp.gt.s32.totalorder %v3688, 0
        %v3690 = vsel %vm3689, %v3688, 0
        %v3691 = vshrl.u32 %v3690, 5
        %v3692 = vand.u32 %v3690, 31
        %v3693 = vsub.s32 32, %v3692
        %v3694 = vshrl.u32 683565275, %v3693
        %v3695 = vshll.u32 683565275, %v3692
        %v3696 = vshrl.u32 2475754826, %v3693
        %v3697 = vor.u32 %v3695, %v3696
        %v3698 = vshll.u32 2475754826, %v3692
        %v3699 = vshrl.u32 2131351028, %v3693
        %v3700 = vor.u32 %v3698, %v3699
        %v3701 = vshll.u32 2131351028, %v3692
        %v3702 = vshrl.u32 2102212464, %v3693
        %v3703 = vor.u32 %v3701, %v3702
        %v3704 = vshll.u32 2102212464, %v3692
        %v3705 = vshrl.u32 920167782, %v3693
        %v3706 = vor.u32 %v3704, %v3705
        %v3707 = vshll.u32 920167782, %v3692
        %v3708 = vshrl.u32 1326507024, %v3693
        %v3709 = vor.u32 %v3707, %v3708
        %vm3710 = vcmp.lt.s32.totalorder %v3691, 1
        %vm3711 = vcmp.lt.s32.totalorder %v3691, 2
        %vm3712 = vcmp.lt.s32.totalorder %v3691, 3
        %vm3713 = vcmp.lt.s32.totalorder %v3691, 4
        %v3714 = vsel %vm3710, %v3694, %v3697
        %v3715 = vsel %vm3713, %v3703, 2102212464
        %v3716 = vsel %vm3712, %v3700, %v3715
        %v3717 = vsel %vm3711, %v3714, %v3716
        %v3718 = vsel %vm3710, %v3697, %v3700
        %v3719 = vsel %vm3713, %v3706, 920167782
        %v3720 = vsel %vm3712, %v3703, %v3719
        %v3721 = vsel %vm3711, %v3718, %v3720
        %v3722 = vsel %vm3710, %v3700, %v3703
        %v3723 = vsel %vm3713, %v3709, 1326507024
        %v3724 = vsel %vm3712, %v3706, %v3723
        %v3725 = vsel %vm3711, %v3722, %v3724
        %v3726 = vshll.u32 %v3686, 8
        %v3727 = vmul.u32.u64.compose %v3726, %v3725
        %v3728 = vextract.low.u32 %v3727
        %v3729 = vextract.high.u32 %v3727
        %v3730 = vmul.u32.u64.compose %v3726, %v3721
        %v3731 = vextract.low.u32 %v3730
        %v3732 = vextract.high.u32 %v3730
        %v3733 = vmul.u32 %v3726, %v3717
        %v3734 = vadd.s32 %v3729, %v3731
        %vm3735 = vc.u32 %v3729, %v3731
        %v3736 = vadd.s32 %v3732, 1
        %v3737 = vsel %vm3735, %v3736, %v3732
        %v3738 = vadd.s32 %v3733, %v3737
        %v3739 = vadd.s32 %v3738, 536870912
        %v3740 = vshrl.u32 %v3739, 30
        %v3741 = vshll.u32 %v3740, 30
        %v3742 = vsub.s32 %v3738, %v3741
        %vm3743 = vcmp.lt.s32.totalorder %v3742, 0
        %v3744 = vsub.s32 0, %v3742
        %v3745 = vsel %vm3743, %v3744, %v3742
        %v3746 = vclz %v3745
        %v3747 = vsub.s32 %v3746, 2
        %vm3748 = vcmp.gt.s32.totalorder 0, %v3747
        %v3749 = vsel %vm3748, 0, %v3747
        %v3750 = vsub.s32 32, %v3749
        %v3751 = vshll.u32 %v3742, %v3749
        %v3752 = vshrl.u32 %v3734, %v3750
        %v3753 = vor.u32 %v3751, %v3752
        %v3754 = vsub.s32 4294967266, %v3749
        %v3755 = vadd.s32 %v3754, 127
        %v3756 = vshll.u32 %v3755, 23
        %v3757 = vor.u32 4788187, %v3756
        %v3758 = vand.u32 2147483647, %v3757
        %v3760 = vcvt.s32.f32 %v3753
        %v3761 = vmul.f32 %v3760, %v3758
        %v3762 = vxor.u32 %v3761, 2147483648
        %v3763 = vsel %vm3680, %v3762, %v3761
        %v3764 = vsub.s32 4, %v3740
        %v3765 = vsel %vm3680, %v3764, %v3740
        %v3766 = vsel %vm3679, %v762, %v3763
        %v3767 = vsel %vm3679, 0, %v3765
        %v3768 = vcosq.f32.pop %v3766
        %v3769 = vsinq.f32.pop %v3766
        %vm3770 = vweird.f32 %v762
        %v3771 = vadd.s32 %v3767, 3
        %v3772 = vand.u32 %v3771, 3
        %vm3773 = vcmp.lt.s32.totalorder %v3772, 2
        %vm3774 = vcmp.eq.s32.totalorder %v3772, 0
        %v3775 = vxor.u32 %v3769, 2147483648
        %v3776 = vsel %vm3774, %v3768, %v3775
        %vm3777 = vcmp.eq.s32.totalorder %v3772, 2
        %v3778 = vxor.u32 %v3768, 2147483648
        %v3779 = vsel %vm3777, %v3778, %v3769
        %v3780 = vsel %vm3773, %v3776, %v3779
        %v3781 = vsel %vm3770, nan, %v3780
        %v3782 = vand.u32 2147483647, %v763
        %vm3783 = vcmp.le.f32.partialorder %v3782, 0.7853982
        %vm3784 = vcmp.lt.s32.totalorder %v763, 0
        %v3785 = vand.u32 %v763, 2139095040
        %v3786 = vshrl.u32 %v3785, 23
        %v3787 = vsub.s32 %v3786, 127
        %v3788 = vand.u32 2147483647, %v763
        %v3789 = vand.u32 %v3788, 8388607
        %v3790 = vor.u32 %v3789, 8388608
        %v3791 = vsub.s32 0, %v3790
        %v3792 = vadd.s32 %v3787, 1
        %vm3793 = vcmp.gt.s32.totalorder %v3792, 0
        %v3794 = vsel %vm3793, %v3792, 0
        %v3795 = vshrl.u32 %v3794, 5
        %v3796 = vand.u32 %v3794, 31
        %v3797 = vsub.s32 32, %v3796
        %v3798 = vshrl.u32 683565275, %v3797
        %v3799 = vshll.u32 683565275, %v3796
        %v3800 = vshrl.u32 2475754826, %v3797
        %v3801 = vor.u32 %v3799, %v3800
        %v3802 = vshll.u32 2475754826, %v3796
        %v3803 = vshrl.u32 2131351028, %v3797
        %v3804 = vor.u32 %v3802, %v3803
        %v3805 = vshll.u32 2131351028, %v3796
        %v3806 = vshrl.u32 2102212464, %v3797
        %v3807 = vor.u32 %v3805, %v3806
        %v3808 = vshll.u32 2102212464, %v3796
        %v3809 = vshrl.u32 920167782, %v3797
        %v3810 = vor.u32 %v3808, %v3809
        %v3811 = vshll.u32 920167782, %v3796
        %v3812 = vshrl.u32 1326507024, %v3797
        %v3813 = vor.u32 %v3811, %v3812
        %vm3814 = vcmp.lt.s32.totalorder %v3795, 1
        %vm3815 = vcmp.lt.s32.totalorder %v3795, 2
        %vm3816 = vcmp.lt.s32.totalorder %v3795, 3
        %vm3817 = vcmp.lt.s32.totalorder %v3795, 4
        %v3818 = vsel %vm3814, %v3798, %v3801
        %v3819 = vsel %vm3817, %v3807, 2102212464
        %v3820 = vsel %vm3816, %v3804, %v3819
        %v3821 = vsel %vm3815, %v3818, %v3820
        %v3822 = vsel %vm3814, %v3801, %v3804
        %v3823 = vsel %vm3817, %v3810, 920167782
        %v3824 = vsel %vm3816, %v3807, %v3823
        %v3825 = vsel %vm3815, %v3822, %v3824
        %v3826 = vsel %vm3814, %v3804, %v3807
        %v3827 = vsel %vm3817, %v3813, 1326507024
        %v3828 = vsel %vm3816, %v3810, %v3827
        %v3829 = vsel %vm3815, %v3826, %v3828
        %v3830 = vshll.u32 %v3790, 8
        %v3831 = vmul.u32.u64.compose %v3830, %v3829
        %v3832 = vextract.low.u32 %v3831
        %v3833 = vextract.high.u32 %v3831
        %v3834 = vmul.u32.u64.compose %v3830, %v3825
        %v3835 = vextract.low.u32 %v3834
        %v3836 = vextract.high.u32 %v3834
        %v3837 = vmul.u32 %v3830, %v3821
        %v3838 = vadd.s32 %v3833, %v3835
        %vm3839 = vc.u32 %v3833, %v3835
        %v3840 = vadd.s32 %v3836, 1
        %v3841 = vsel %vm3839, %v3840, %v3836
        %v3842 = vadd.s32 %v3837, %v3841
        %v3843 = vadd.s32 %v3842, 536870912
        %v3844 = vshrl.u32 %v3843, 30
        %v3845 = vshll.u32 %v3844, 30
        %v3846 = vsub.s32 %v3842, %v3845
        %vm3847 = vcmp.lt.s32.totalorder %v3846, 0
        %v3848 = vsub.s32 0, %v3846
        %v3849 = vsel %vm3847, %v3848, %v3846
        %v3850 = vclz %v3849
        %v3851 = vsub.s32 %v3850, 2
        %vm3852 = vcmp.gt.s32.totalorder 0, %v3851
        %v3853 = vsel %vm3852, 0, %v3851
        %v3854 = vsub.s32 32, %v3853
        %v3855 = vshll.u32 %v3846, %v3853
        %v3856 = vshrl.u32 %v3838, %v3854
        %v3857 = vor.u32 %v3855, %v3856
        %v3858 = vsub.s32 4294967266, %v3853
        %v3859 = vadd.s32 %v3858, 127
        %v3860 = vshll.u32 %v3859, 23
        %v3861 = vor.u32 4788187, %v3860
        %v3862 = vand.u32 2147483647, %v3861
        %v3864 = vcvt.s32.f32 %v3857
        %v3865 = vmul.f32 %v3864, %v3862
        %v3866 = vxor.u32 %v3865, 2147483648
        %v3867 = vsel %vm3784, %v3866, %v3865
        %v3868 = vsub.s32 4, %v3844
        %v3869 = vsel %vm3784, %v3868, %v3844
        %v3870 = vsel %vm3783, %v763, %v3867
        %v3871 = vsel %vm3783, 0, %v3869
        %v3872 = vcosq.f32.pop %v3870
        %v3873 = vsinq.f32.pop %v3870
        %vm3874 = vweird.f32 %v763
        %v3875 = vadd.s32 %v3871, 3
        %v3876 = vand.u32 %v3875, 3
        %vm3877 = vcmp.lt.s32.totalorder %v3876, 2
        %vm3878 = vcmp.eq.s32.totalorder %v3876, 0
        %v3879 = vxor.u32 %v3873, 2147483648
        %v3880 = vsel %vm3878, %v3872, %v3879
        %vm3881 = vcmp.eq.s32.totalorder %v3876, 2
        %v3882 = vxor.u32 %v3872, 2147483648
        %v3883 = vsel %vm3881, %v3882, %v3873
        %v3884 = vsel %vm3877, %v3880, %v3883
        %v3885 = vsel %vm3874, nan, %v3884
        %v3886 = vand.u32 2147483647, %v764
        %vm3887 = vcmp.le.f32.partialorder %v3886, 0.7853982
        %vm3888 = vcmp.lt.s32.totalorder %v764, 0
        %v3889 = vand.u32 %v764, 2139095040
        %v3890 = vshrl.u32 %v3889, 23
        %v3891 = vsub.s32 %v3890, 127
        %v3892 = vand.u32 2147483647, %v764
        %v3893 = vand.u32 %v3892, 8388607
        %v3894 = vor.u32 %v3893, 8388608
        %v3895 = vsub.s32 0, %v3894
        %v3896 = vadd.s32 %v3891, 1
        %vm3897 = vcmp.gt.s32.totalorder %v3896, 0
        %v3898 = vsel %vm3897, %v3896, 0
        %v3899 = vshrl.u32 %v3898, 5
        %v3900 = vand.u32 %v3898, 31
        %v3901 = vsub.s32 32, %v3900
        %v3902 = vshrl.u32 683565275, %v3901
        %v3903 = vshll.u32 683565275, %v3900
        %v3904 = vshrl.u32 2475754826, %v3901
        %v3905 = vor.u32 %v3903, %v3904
        %v3906 = vshll.u32 2475754826, %v3900
        %v3907 = vshrl.u32 2131351028, %v3901
        %v3908 = vor.u32 %v3906, %v3907
        %v3909 = vshll.u32 2131351028, %v3900
        %v3910 = vshrl.u32 2102212464, %v3901
        %v3911 = vor.u32 %v3909, %v3910
        %v3912 = vshll.u32 2102212464, %v3900
        %v3913 = vshrl.u32 920167782, %v3901
        %v3914 = vor.u32 %v3912, %v3913
        %v3915 = vshll.u32 920167782, %v3900
        %v3916 = vshrl.u32 1326507024, %v3901
        %v3917 = vor.u32 %v3915, %v3916
        %vm3918 = vcmp.lt.s32.totalorder %v3899, 1
        %vm3919 = vcmp.lt.s32.totalorder %v3899, 2
        %vm3920 = vcmp.lt.s32.totalorder %v3899, 3
        %vm3921 = vcmp.lt.s32.totalorder %v3899, 4
        %v3922 = vsel %vm3918, %v3902, %v3905
        %v3923 = vsel %vm3921, %v3911, 2102212464
        %v3924 = vsel %vm3920, %v3908, %v3923
        %v3925 = vsel %vm3919, %v3922, %v3924
        %v3926 = vsel %vm3918, %v3905, %v3908
        %v3927 = vsel %vm3921, %v3914, 920167782
        %v3928 = vsel %vm3920, %v3911, %v3927
        %v3929 = vsel %vm3919, %v3926, %v3928
        %v3930 = vsel %vm3918, %v3908, %v3911
        %v3931 = vsel %vm3921, %v3917, 1326507024
        %v3932 = vsel %vm3920, %v3914, %v3931
        %v3933 = vsel %vm3919, %v3930, %v3932
        %v3934 = vshll.u32 %v3894, 8
        %v3935 = vmul.u32.u64.compose %v3934, %v3933
        %v3936 = vextract.low.u32 %v3935
        %v3937 = vextract.high.u32 %v3935
        %v3938 = vmul.u32.u64.compose %v3934, %v3929
        %v3939 = vextract.low.u32 %v3938
        %v3940 = vextract.high.u32 %v3938
        %v3941 = vmul.u32 %v3934, %v3925
        %v3942 = vadd.s32 %v3937, %v3939
        %vm3943 = vc.u32 %v3937, %v3939
        %v3944 = vadd.s32 %v3940, 1
        %v3945 = vsel %vm3943, %v3944, %v3940
        %v3946 = vadd.s32 %v3941, %v3945
        %v3947 = vadd.s32 %v3946, 536870912
        %v3948 = vshrl.u32 %v3947, 30
        %v3949 = vshll.u32 %v3948, 30
        %v3950 = vsub.s32 %v3946, %v3949
        %vm3951 = vcmp.lt.s32.totalorder %v3950, 0
        %v3952 = vsub.s32 0, %v3950
        %v3953 = vsel %vm3951, %v3952, %v3950
        %v3954 = vclz %v3953
        %v3955 = vsub.s32 %v3954, 2
        %vm3956 = vcmp.gt.s32.totalorder 0, %v3955
        %v3957 = vsel %vm3956, 0, %v3955
        %v3958 = vsub.s32 32, %v3957
        %v3959 = vshll.u32 %v3950, %v3957
        %v3960 = vshrl.u32 %v3942, %v3958
        %v3961 = vor.u32 %v3959, %v3960
        %v3962 = vsub.s32 4294967266, %v3957
        %v3963 = vadd.s32 %v3962, 127
        %v3964 = vshll.u32 %v3963, 23
        %v3965 = vor.u32 4788187, %v3964
        %v3966 = vand.u32 2147483647, %v3965
        %v3968 = vcvt.s32.f32 %v3961
        %v3969 = vmul.f32 %v3968, %v3966
        %v3970 = vxor.u32 %v3969, 2147483648
        %v3971 = vsel %vm3888, %v3970, %v3969
        %v3972 = vsub.s32 4, %v3948
        %v3973 = vsel %vm3888, %v3972, %v3948
        %v3974 = vsel %vm3887, %v764, %v3971
        %v3975 = vsel %vm3887, 0, %v3973
        %v3976 = vcosq.f32.pop %v3974
        %v3977 = vsinq.f32.pop %v3974
        %vm3978 = vweird.f32 %v764
        %v3979 = vadd.s32 %v3975, 3
        %v3980 = vand.u32 %v3979, 3
        %vm3981 = vcmp.lt.s32.totalorder %v3980, 2
        %vm3982 = vcmp.eq.s32.totalorder %v3980, 0
        %v3983 = vxor.u32 %v3977, 2147483648
        %v3984 = vsel %vm3982, %v3976, %v3983
        %vm3985 = vcmp.eq.s32.totalorder %v3980, 2
        %v3986 = vxor.u32 %v3976, 2147483648
        %v3987 = vsel %vm3985, %v3986, %v3977
        %v3988 = vsel %vm3981, %v3984, %v3987
        %v3989 = vsel %vm3978, nan, %v3988
        %v3990 = vand.u32 2147483647, %v765
        %vm3991 = vcmp.le.f32.partialorder %v3990, 0.7853982
        %vm3992 = vcmp.lt.s32.totalorder %v765, 0
        %v3993 = vand.u32 %v765, 2139095040
        %v3994 = vshrl.u32 %v3993, 23
        %v3995 = vsub.s32 %v3994, 127
        %v3996 = vand.u32 2147483647, %v765
        %v3997 = vand.u32 %v3996, 8388607
        %v3998 = vor.u32 %v3997, 8388608
        %v3999 = vsub.s32 0, %v3998
        %v4000 = vadd.s32 %v3995, 1
        %vm4001 = vcmp.gt.s32.totalorder %v4000, 0
        %v4002 = vsel %vm4001, %v4000, 0
        %v4003 = vshrl.u32 %v4002, 5
        %v4004 = vand.u32 %v4002, 31
        %v4005 = vsub.s32 32, %v4004
        %v4006 = vshrl.u32 683565275, %v4005
        %v4007 = vshll.u32 683565275, %v4004
        %v4008 = vshrl.u32 2475754826, %v4005
        %v4009 = vor.u32 %v4007, %v4008
        %v4010 = vshll.u32 2475754826, %v4004
        %v4011 = vshrl.u32 2131351028, %v4005
        %v4012 = vor.u32 %v4010, %v4011
        %v4013 = vshll.u32 2131351028, %v4004
        %v4014 = vshrl.u32 2102212464, %v4005
        %v4015 = vor.u32 %v4013, %v4014
        %v4016 = vshll.u32 2102212464, %v4004
        %v4017 = vshrl.u32 920167782, %v4005
        %v4018 = vor.u32 %v4016, %v4017
        %v4019 = vshll.u32 920167782, %v4004
        %v4020 = vshrl.u32 1326507024, %v4005
        %v4021 = vor.u32 %v4019, %v4020
        %vm4022 = vcmp.lt.s32.totalorder %v4003, 1
        %vm4023 = vcmp.lt.s32.totalorder %v4003, 2
        %vm4024 = vcmp.lt.s32.totalorder %v4003, 3
        %vm4025 = vcmp.lt.s32.totalorder %v4003, 4
        %v4026 = vsel %vm4022, %v4006, %v4009
        %v4027 = vsel %vm4025, %v4015, 2102212464
        %v4028 = vsel %vm4024, %v4012, %v4027
        %v4029 = vsel %vm4023, %v4026, %v4028
        %v4030 = vsel %vm4022, %v4009, %v4012
        %v4031 = vsel %vm4025, %v4018, 920167782
        %v4032 = vsel %vm4024, %v4015, %v4031
        %v4033 = vsel %vm4023, %v4030, %v4032
        %v4034 = vsel %vm4022, %v4012, %v4015
        %v4035 = vsel %vm4025, %v4021, 1326507024
        %v4036 = vsel %vm4024, %v4018, %v4035
        %v4037 = vsel %vm4023, %v4034, %v4036
        %v4038 = vshll.u32 %v3998, 8
        %v4039 = vmul.u32.u64.compose %v4038, %v4037
        %v4040 = vextract.low.u32 %v4039
        %v4041 = vextract.high.u32 %v4039
        %v4042 = vmul.u32.u64.compose %v4038, %v4033
        %v4043 = vextract.low.u32 %v4042
        %v4044 = vextract.high.u32 %v4042
        %v4045 = vmul.u32 %v4038, %v4029
        %v4046 = vadd.s32 %v4041, %v4043
        %vm4047 = vc.u32 %v4041, %v4043
        %v4048 = vadd.s32 %v4044, 1
        %v4049 = vsel %vm4047, %v4048, %v4044
        %v4050 = vadd.s32 %v4045, %v4049
        %v4051 = vadd.s32 %v4050, 536870912
        %v4052 = vshrl.u32 %v4051, 30
        %v4053 = vshll.u32 %v4052, 30
        %v4054 = vsub.s32 %v4050, %v4053
        %vm4055 = vcmp.lt.s32.totalorder %v4054, 0
        %v4056 = vsub.s32 0, %v4054
        %v4057 = vsel %vm4055, %v4056, %v4054
        %v4058 = vclz %v4057
        %v4059 = vsub.s32 %v4058, 2
        %vm4060 = vcmp.gt.s32.totalorder 0, %v4059
        %v4061 = vsel %vm4060, 0, %v4059
        %v4062 = vsub.s32 32, %v4061
        %v4063 = vshll.u32 %v4054, %v4061
        %v4064 = vshrl.u32 %v4046, %v4062
        %v4065 = vor.u32 %v4063, %v4064
        %v4066 = vsub.s32 4294967266, %v4061
        %v4067 = vadd.s32 %v4066, 127
        %v4068 = vshll.u32 %v4067, 23
        %v4069 = vor.u32 4788187, %v4068
        %v4070 = vand.u32 2147483647, %v4069
        %v4072 = vcvt.s32.f32 %v4065
        %v4073 = vmul.f32 %v4072, %v4070
        %v4074 = vxor.u32 %v4073, 2147483648
        %v4075 = vsel %vm3992, %v4074, %v4073
        %v4076 = vsub.s32 4, %v4052
        %v4077 = vsel %vm3992, %v4076, %v4052
        %v4078 = vsel %vm3991, %v765, %v4075
        %v4079 = vsel %vm3991, 0, %v4077
        %v4080 = vcosq.f32.pop %v4078
        %v4081 = vsinq.f32.pop %v4078
        %vm4082 = vweird.f32 %v765
        %v4083 = vadd.s32 %v4079, 3
        %v4084 = vand.u32 %v4083, 3
        %vm4085 = vcmp.lt.s32.totalorder %v4084, 2
        %vm4086 = vcmp.eq.s32.totalorder %v4084, 0
        %v4087 = vxor.u32 %v4081, 2147483648
        %v4088 = vsel %vm4086, %v4080, %v4087
        %vm4089 = vcmp.eq.s32.totalorder %v4084, 2
        %v4090 = vxor.u32 %v4080, 2147483648
        %v4091 = vsel %vm4089, %v4090, %v4081
        %v4092 = vsel %vm4085, %v4088, %v4091
        %v4093 = vsel %vm4082, nan, %v4092
        %vm4094 = vcmask 523264
        %4095 = vst.msk [vmem:[%s137] sm:$0xff] %vm4094, %v869
        %4096 = vst.msk [vmem:[%s137 + $0x8] sm:$0xff] %vm4094, %v973
        %4097 = vst.msk [vmem:[%s137 + $0x10] sm:$0xff] %vm4094, %v1077
        %4098 = vst.msk [vmem:[%s137 + $0x18] sm:$0xff] %vm4094, %v1181
        %4099 = vst.msk [vmem:[%s137 + $0x20] sm:$0xff] %vm4094, %v1285
        %4100 = vst.msk [vmem:[%s137 + $0x28] sm:$0xff] %vm4094, %v1389
        %4101 = vst.msk [vmem:[%s137 + $0x30] sm:$0xff] %vm4094, %v1493
        %4102 = vst.msk [vmem:[%s137 + $0x38] sm:$0xff] %vm4094, %v1597
        %4103 = vst.msk [vmem:[%s137 + $0x40] sm:$0xff] %vm4094, %v1701
        %4104 = vst.msk [vmem:[%s137 + $0x48] sm:$0xff] %vm4094, %v1805
        %4105 = vst.msk [vmem:[%s137 + $0x50] sm:$0xff] %vm4094, %v1909
        %4106 = vst.msk [vmem:[%s137 + $0x58] sm:$0xff] %vm4094, %v2013
        %4107 = vst.msk [vmem:[%s137 + $0x60] sm:$0xff] %vm4094, %v2117
        %4108 = vst.msk [vmem:[%s137 + $0x68] sm:$0xff] %vm4094, %v2221
        %4109 = vst.msk [vmem:[%s137 + $0x70] sm:$0xff] %vm4094, %v2325
        %4110 = vst.msk [vmem:[%s137 + $0x78] sm:$0xff] %vm4094, %v2429
        %4111 = vst.msk [vmem:[%s137 + $0x80] sm:$0xff] %vm4094, %v2533
        %4112 = vst.msk [vmem:[%s137 + $0x88] sm:$0xff] %vm4094, %v2637
        %4113 = vst.msk [vmem:[%s137 + $0x90] sm:$0xff] %vm4094, %v2741
        %4114 = vst.msk [vmem:[%s137 + $0x98] sm:$0xff] %vm4094, %v2845
        %4115 = vst.msk [vmem:[%s137 + $0xa0] sm:$0xff] %vm4094, %v2949
        %4116 = vst.msk [vmem:[%s137 + $0xa8] sm:$0xff] %vm4094, %v3053
        %4117 = vst.msk [vmem:[%s137 + $0xb0] sm:$0xff] %vm4094, %v3157
        %4118 = vst.msk [vmem:[%s137 + $0xb8] sm:$0xff] %vm4094, %v3261
        %4119 = vst.msk [vmem:[%s137 + $0xc0] sm:$0xff] %vm4094, %v3365
        %4120 = vst.msk [vmem:[%s137 + $0xc8] sm:$0xff] %vm4094, %v3469
        %4121 = vst.msk [vmem:[%s137 + $0xd0] sm:$0xff] %vm4094, %v3573
        %4122 = vst.msk [vmem:[%s137 + $0xd8] sm:$0xff] %vm4094, %v3677
        %4123 = vst.msk [vmem:[%s137 + $0xe0] sm:$0xff] %vm4094, %v3781
        %4124 = vst.msk [vmem:[%s137 + $0xe8] sm:$0xff] %vm4094, %v3885
        %4125 = vst.msk [vmem:[%s137 + $0xf0] sm:$0xff] %vm4094, %v3989
        %4126 = vst.msk [vmem:[%s137 + $0xf8] sm:$0xff] %vm4094, %v4093
        %v4127 = vand.u32 2147483647, %v734
        %vm4128 = vcmp.le.f32.partialorder %v4127, 0.7853982
        %vm4129 = vcmp.lt.s32.totalorder %v734, 0
        %v4130 = vand.u32 %v734, 2139095040
        %v4131 = vshrl.u32 %v4130, 23
        %v4132 = vsub.s32 %v4131, 127
        %v4133 = vand.u32 2147483647, %v734
        %v4134 = vand.u32 %v4133, 8388607
        %v4135 = vor.u32 %v4134, 8388608
        %v4136 = vsub.s32 0, %v4135
        %v4137 = vadd.s32 %v4132, 1
        %vm4138 = vcmp.gt.s32.totalorder %v4137, 0
        %v4139 = vsel %vm4138, %v4137, 0
        %v4140 = vshrl.u32 %v4139, 5
        %v4141 = vand.u32 %v4139, 31
        %v4142 = vsub.s32 32, %v4141
        %v4143 = vshrl.u32 683565275, %v4142
        %v4144 = vshll.u32 683565275, %v4141
        %v4145 = vshrl.u32 2475754826, %v4142
        %v4146 = vor.u32 %v4144, %v4145
        %v4147 = vshll.u32 2475754826, %v4141
        %v4148 = vshrl.u32 2131351028, %v4142
        %v4149 = vor.u32 %v4147, %v4148
        %v4150 = vshll.u32 2131351028, %v4141
        %v4151 = vshrl.u32 2102212464, %v4142
        %v4152 = vor.u32 %v4150, %v4151
        %v4153 = vshll.u32 2102212464, %v4141
        %v4154 = vshrl.u32 920167782, %v4142
        %v4155 = vor.u32 %v4153, %v4154
        %v4156 = vshll.u32 920167782, %v4141
        %v4157 = vshrl.u32 1326507024, %v4142
        %v4158 = vor.u32 %v4156, %v4157
        %vm4159 = vcmp.lt.s32.totalorder %v4140, 1
        %vm4160 = vcmp.lt.s32.totalorder %v4140, 2
        %vm4161 = vcmp.lt.s32.totalorder %v4140, 3
        %vm4162 = vcmp.lt.s32.totalorder %v4140, 4
        %v4163 = vsel %vm4159, %v4143, %v4146
        %v4164 = vsel %vm4162, %v4152, 2102212464
        %v4165 = vsel %vm4161, %v4149, %v4164
        %v4166 = vsel %vm4160, %v4163, %v4165
        %v4167 = vsel %vm4159, %v4146, %v4149
        %v4168 = vsel %vm4162, %v4155, 920167782
        %v4169 = vsel %vm4161, %v4152, %v4168
        %v4170 = vsel %vm4160, %v4167, %v4169
        %v4171 = vsel %vm4159, %v4149, %v4152
        %v4172 = vsel %vm4162, %v4158, 1326507024
        %v4173 = vsel %vm4161, %v4155, %v4172
        %v4174 = vsel %vm4160, %v4171, %v4173
        %v4175 = vshll.u32 %v4135, 8
        %v4176 = vmul.u32.u64.compose %v4175, %v4174
        %v4177 = vextract.low.u32 %v4176
        %v4178 = vextract.high.u32 %v4176
        %v4179 = vmul.u32.u64.compose %v4175, %v4170
        %v4180 = vextract.low.u32 %v4179
        %v4181 = vextract.high.u32 %v4179
        %v4182 = vmul.u32 %v4175, %v4166
        %v4183 = vadd.s32 %v4178, %v4180
        %vm4184 = vc.u32 %v4178, %v4180
        %v4185 = vadd.s32 %v4181, 1
        %v4186 = vsel %vm4184, %v4185, %v4181
        %v4187 = vadd.s32 %v4182, %v4186
        %v4188 = vadd.s32 %v4187, 536870912
        %v4189 = vshrl.u32 %v4188, 30
        %v4190 = vshll.u32 %v4189, 30
        %v4191 = vsub.s32 %v4187, %v4190
        %vm4192 = vcmp.lt.s32.totalorder %v4191, 0
        %v4193 = vsub.s32 0, %v4191
        %v4194 = vsel %vm4192, %v4193, %v4191
        %v4195 = vclz %v4194
        %v4196 = vsub.s32 %v4195, 2
        %vm4197 = vcmp.gt.s32.totalorder 0, %v4196
        %v4198 = vsel %vm4197, 0, %v4196
        %v4199 = vsub.s32 32, %v4198
        %v4200 = vshll.u32 %v4191, %v4198
        %v4201 = vshrl.u32 %v4183, %v4199
        %v4202 = vor.u32 %v4200, %v4201
        %v4203 = vsub.s32 4294967266, %v4198
        %v4204 = vadd.s32 %v4203, 127
        %v4205 = vshll.u32 %v4204, 23
        %v4206 = vor.u32 4788187, %v4205
        %v4207 = vand.u32 2147483647, %v4206
        %v4209 = vcvt.s32.f32 %v4202
        %v4210 = vmul.f32 %v4209, %v4207
        %v4211 = vxor.u32 %v4210, 2147483648
        %v4212 = vsel %vm4129, %v4211, %v4210
        %v4213 = vsub.s32 4, %v4189
        %v4214 = vsel %vm4129, %v4213, %v4189
        %v4215 = vsel %vm4128, %v734, %v4212
        %v4216 = vsel %vm4128, 0, %v4214
        %v4217 = vcosq.f32.pop %v4215
        %v4218 = vsinq.f32.pop %v4215
        %vm4219 = vweird.f32 %v734
        %v4220 = vand.u32 %v4216, 3
        %vm4221 = vcmp.lt.s32.totalorder %v4220, 2
        %vm4222 = vcmp.eq.s32.totalorder %v4220, 0
        %v4223 = vxor.u32 %v4218, 2147483648
        %v4224 = vsel %vm4222, %v4217, %v4223
        %vm4225 = vcmp.eq.s32.totalorder %v4220, 2
        %v4226 = vxor.u32 %v4217, 2147483648
        %v4227 = vsel %vm4225, %v4226, %v4218
        %v4228 = vsel %vm4221, %v4224, %v4227
        %v4229 = vsel %vm4219, nan, %v4228
        %v4230 = vand.u32 2147483647, %v735
        %vm4231 = vcmp.le.f32.partialorder %v4230, 0.7853982
        %vm4232 = vcmp.lt.s32.totalorder %v735, 0
        %v4233 = vand.u32 %v735, 2139095040
        %v4234 = vshrl.u32 %v4233, 23
        %v4235 = vsub.s32 %v4234, 127
        %v4236 = vand.u32 2147483647, %v735
        %v4237 = vand.u32 %v4236, 8388607
        %v4238 = vor.u32 %v4237, 8388608
        %v4239 = vsub.s32 0, %v4238
        %v4240 = vadd.s32 %v4235, 1
        %vm4241 = vcmp.gt.s32.totalorder %v4240, 0
        %v4242 = vsel %vm4241, %v4240, 0
        %v4243 = vshrl.u32 %v4242, 5
        %v4244 = vand.u32 %v4242, 31
        %v4245 = vsub.s32 32, %v4244
        %v4246 = vshrl.u32 683565275, %v4245
        %v4247 = vshll.u32 683565275, %v4244
        %v4248 = vshrl.u32 2475754826, %v4245
        %v4249 = vor.u32 %v4247, %v4248
        %v4250 = vshll.u32 2475754826, %v4244
        %v4251 = vshrl.u32 2131351028, %v4245
        %v4252 = vor.u32 %v4250, %v4251
        %v4253 = vshll.u32 2131351028, %v4244
        %v4254 = vshrl.u32 2102212464, %v4245
        %v4255 = vor.u32 %v4253, %v4254
        %v4256 = vshll.u32 2102212464, %v4244
        %v4257 = vshrl.u32 920167782, %v4245
        %v4258 = vor.u32 %v4256, %v4257
        %v4259 = vshll.u32 920167782, %v4244
        %v4260 = vshrl.u32 1326507024, %v4245
        %v4261 = vor.u32 %v4259, %v4260
        %vm4262 = vcmp.lt.s32.totalorder %v4243, 1
        %vm4263 = vcmp.lt.s32.totalorder %v4243, 2
        %vm4264 = vcmp.lt.s32.totalorder %v4243, 3
        %vm4265 = vcmp.lt.s32.totalorder %v4243, 4
        %v4266 = vsel %vm4262, %v4246, %v4249
        %v4267 = vsel %vm4265, %v4255, 2102212464
        %v4268 = vsel %vm4264, %v4252, %v4267
        %v4269 = vsel %vm4263, %v4266, %v4268
        %v4270 = vsel %vm4262, %v4249, %v4252
        %v4271 = vsel %vm4265, %v4258, 920167782
        %v4272 = vsel %vm4264, %v4255, %v4271
        %v4273 = vsel %vm4263, %v4270, %v4272
        %v4274 = vsel %vm4262, %v4252, %v4255
        %v4275 = vsel %vm4265, %v4261, 1326507024
        %v4276 = vsel %vm4264, %v4258, %v4275
        %v4277 = vsel %vm4263, %v4274, %v4276
        %v4278 = vshll.u32 %v4238, 8
        %v4279 = vmul.u32.u64.compose %v4278, %v4277
        %v4280 = vextract.low.u32 %v4279
        %v4281 = vextract.high.u32 %v4279
        %v4282 = vmul.u32.u64.compose %v4278, %v4273
        %v4283 = vextract.low.u32 %v4282
        %v4284 = vextract.high.u32 %v4282
        %v4285 = vmul.u32 %v4278, %v4269
        %v4286 = vadd.s32 %v4281, %v4283
        %vm4287 = vc.u32 %v4281, %v4283
        %v4288 = vadd.s32 %v4284, 1
        %v4289 = vsel %vm4287, %v4288, %v4284
        %v4290 = vadd.s32 %v4285, %v4289
        %v4291 = vadd.s32 %v4290, 536870912
        %v4292 = vshrl.u32 %v4291, 30
        %v4293 = vshll.u32 %v4292, 30
        %v4294 = vsub.s32 %v4290, %v4293
        %vm4295 = vcmp.lt.s32.totalorder %v4294, 0
        %v4296 = vsub.s32 0, %v4294
        %v4297 = vsel %vm4295, %v4296, %v4294
        %v4298 = vclz %v4297
        %v4299 = vsub.s32 %v4298, 2
        %vm4300 = vcmp.gt.s32.totalorder 0, %v4299
        %v4301 = vsel %vm4300, 0, %v4299
        %v4302 = vsub.s32 32, %v4301
        %v4303 = vshll.u32 %v4294, %v4301
        %v4304 = vshrl.u32 %v4286, %v4302
        %v4305 = vor.u32 %v4303, %v4304
        %v4306 = vsub.s32 4294967266, %v4301
        %v4307 = vadd.s32 %v4306, 127
        %v4308 = vshll.u32 %v4307, 23
        %v4309 = vor.u32 4788187, %v4308
        %v4310 = vand.u32 2147483647, %v4309
        %v4312 = vcvt.s32.f32 %v4305
        %v4313 = vmul.f32 %v4312, %v4310
        %v4314 = vxor.u32 %v4313, 2147483648
        %v4315 = vsel %vm4232, %v4314, %v4313
        %v4316 = vsub.s32 4, %v4292
        %v4317 = vsel %vm4232, %v4316, %v4292
        %v4318 = vsel %vm4231, %v735, %v4315
        %v4319 = vsel %vm4231, 0, %v4317
        %v4320 = vcosq.f32.pop %v4318
        %v4321 = vsinq.f32.pop %v4318
        %vm4322 = vweird.f32 %v735
        %v4323 = vand.u32 %v4319, 3
        %vm4324 = vcmp.lt.s32.totalorder %v4323, 2
        %vm4325 = vcmp.eq.s32.totalorder %v4323, 0
        %v4326 = vxor.u32 %v4321, 2147483648
        %v4327 = vsel %vm4325, %v4320, %v4326
        %vm4328 = vcmp.eq.s32.totalorder %v4323, 2
        %v4329 = vxor.u32 %v4320, 2147483648
        %v4330 = vsel %vm4328, %v4329, %v4321
        %v4331 = vsel %vm4324, %v4327, %v4330
        %v4332 = vsel %vm4322, nan, %v4331
        %v4333 = vand.u32 2147483647, %v736
        %vm4334 = vcmp.le.f32.partialorder %v4333, 0.7853982
        %vm4335 = vcmp.lt.s32.totalorder %v736, 0
        %v4336 = vand.u32 %v736, 2139095040
        %v4337 = vshrl.u32 %v4336, 23
        %v4338 = vsub.s32 %v4337, 127
        %v4339 = vand.u32 2147483647, %v736
        %v4340 = vand.u32 %v4339, 8388607
        %v4341 = vor.u32 %v4340, 8388608
        %v4342 = vsub.s32 0, %v4341
        %v4343 = vadd.s32 %v4338, 1
        %vm4344 = vcmp.gt.s32.totalorder %v4343, 0
        %v4345 = vsel %vm4344, %v4343, 0
        %v4346 = vshrl.u32 %v4345, 5
        %v4347 = vand.u32 %v4345, 31
        %v4348 = vsub.s32 32, %v4347
        %v4349 = vshrl.u32 683565275, %v4348
        %v4350 = vshll.u32 683565275, %v4347
        %v4351 = vshrl.u32 2475754826, %v4348
        %v4352 = vor.u32 %v4350, %v4351
        %v4353 = vshll.u32 2475754826, %v4347
        %v4354 = vshrl.u32 2131351028, %v4348
        %v4355 = vor.u32 %v4353, %v4354
        %v4356 = vshll.u32 2131351028, %v4347
        %v4357 = vshrl.u32 2102212464, %v4348
        %v4358 = vor.u32 %v4356, %v4357
        %v4359 = vshll.u32 2102212464, %v4347
        %v4360 = vshrl.u32 920167782, %v4348
        %v4361 = vor.u32 %v4359, %v4360
        %v4362 = vshll.u32 920167782, %v4347
        %v4363 = vshrl.u32 1326507024, %v4348
        %v4364 = vor.u32 %v4362, %v4363
        %vm4365 = vcmp.lt.s32.totalorder %v4346, 1
        %vm4366 = vcmp.lt.s32.totalorder %v4346, 2
        %vm4367 = vcmp.lt.s32.totalorder %v4346, 3
        %vm4368 = vcmp.lt.s32.totalorder %v4346, 4
        %v4369 = vsel %vm4365, %v4349, %v4352
        %v4370 = vsel %vm4368, %v4358, 2102212464
        %v4371 = vsel %vm4367, %v4355, %v4370
        %v4372 = vsel %vm4366, %v4369, %v4371
        %v4373 = vsel %vm4365, %v4352, %v4355
        %v4374 = vsel %vm4368, %v4361, 920167782
        %v4375 = vsel %vm4367, %v4358, %v4374
        %v4376 = vsel %vm4366, %v4373, %v4375
        %v4377 = vsel %vm4365, %v4355, %v4358
        %v4378 = vsel %vm4368, %v4364, 1326507024
        %v4379 = vsel %vm4367, %v4361, %v4378
        %v4380 = vsel %vm4366, %v4377, %v4379
        %v4381 = vshll.u32 %v4341, 8
        %v4382 = vmul.u32.u64.compose %v4381, %v4380
        %v4383 = vextract.low.u32 %v4382
        %v4384 = vextract.high.u32 %v4382
        %v4385 = vmul.u32.u64.compose %v4381, %v4376
        %v4386 = vextract.low.u32 %v4385
        %v4387 = vextract.high.u32 %v4385
        %v4388 = vmul.u32 %v4381, %v4372
        %v4389 = vadd.s32 %v4384, %v4386
        %vm4390 = vc.u32 %v4384, %v4386
        %v4391 = vadd.s32 %v4387, 1
        %v4392 = vsel %vm4390, %v4391, %v4387
        %v4393 = vadd.s32 %v4388, %v4392
        %v4394 = vadd.s32 %v4393, 536870912
        %v4395 = vshrl.u32 %v4394, 30
        %v4396 = vshll.u32 %v4395, 30
        %v4397 = vsub.s32 %v4393, %v4396
        %vm4398 = vcmp.lt.s32.totalorder %v4397, 0
        %v4399 = vsub.s32 0, %v4397
        %v4400 = vsel %vm4398, %v4399, %v4397
        %v4401 = vclz %v4400
        %v4402 = vsub.s32 %v4401, 2
        %vm4403 = vcmp.gt.s32.totalorder 0, %v4402
        %v4404 = vsel %vm4403, 0, %v4402
        %v4405 = vsub.s32 32, %v4404
        %v4406 = vshll.u32 %v4397, %v4404
        %v4407 = vshrl.u32 %v4389, %v4405
        %v4408 = vor.u32 %v4406, %v4407
        %v4409 = vsub.s32 4294967266, %v4404
        %v4410 = vadd.s32 %v4409, 127
        %v4411 = vshll.u32 %v4410, 23
        %v4412 = vor.u32 4788187, %v4411
        %v4413 = vand.u32 2147483647, %v4412
        %v4415 = vcvt.s32.f32 %v4408
        %v4416 = vmul.f32 %v4415, %v4413
        %v4417 = vxor.u32 %v4416, 2147483648
        %v4418 = vsel %vm4335, %v4417, %v4416
        %v4419 = vsub.s32 4, %v4395
        %v4420 = vsel %vm4335, %v4419, %v4395
        %v4421 = vsel %vm4334, %v736, %v4418
        %v4422 = vsel %vm4334, 0, %v4420
        %v4423 = vcosq.f32.pop %v4421
        %v4424 = vsinq.f32.pop %v4421
        %vm4425 = vweird.f32 %v736
        %v4426 = vand.u32 %v4422, 3
        %vm4427 = vcmp.lt.s32.totalorder %v4426, 2
        %vm4428 = vcmp.eq.s32.totalorder %v4426, 0
        %v4429 = vxor.u32 %v4424, 2147483648
        %v4430 = vsel %vm4428, %v4423, %v4429
        %vm4431 = vcmp.eq.s32.totalorder %v4426, 2
        %v4432 = vxor.u32 %v4423, 2147483648
        %v4433 = vsel %vm4431, %v4432, %v4424
        %v4434 = vsel %vm4427, %v4430, %v4433
        %v4435 = vsel %vm4425, nan, %v4434
        %v4436 = vand.u32 2147483647, %v737
        %vm4437 = vcmp.le.f32.partialorder %v4436, 0.7853982
        %vm4438 = vcmp.lt.s32.totalorder %v737, 0
        %v4439 = vand.u32 %v737, 2139095040
        %v4440 = vshrl.u32 %v4439, 23
        %v4441 = vsub.s32 %v4440, 127
        %v4442 = vand.u32 2147483647, %v737
        %v4443 = vand.u32 %v4442, 8388607
        %v4444 = vor.u32 %v4443, 8388608
        %v4445 = vsub.s32 0, %v4444
        %v4446 = vadd.s32 %v4441, 1
        %vm4447 = vcmp.gt.s32.totalorder %v4446, 0
        %v4448 = vsel %vm4447, %v4446, 0
        %v4449 = vshrl.u32 %v4448, 5
        %v4450 = vand.u32 %v4448, 31
        %v4451 = vsub.s32 32, %v4450
        %v4452 = vshrl.u32 683565275, %v4451
        %v4453 = vshll.u32 683565275, %v4450
        %v4454 = vshrl.u32 2475754826, %v4451
        %v4455 = vor.u32 %v4453, %v4454
        %v4456 = vshll.u32 2475754826, %v4450
        %v4457 = vshrl.u32 2131351028, %v4451
        %v4458 = vor.u32 %v4456, %v4457
        %v4459 = vshll.u32 2131351028, %v4450
        %v4460 = vshrl.u32 2102212464, %v4451
        %v4461 = vor.u32 %v4459, %v4460
        %v4462 = vshll.u32 2102212464, %v4450
        %v4463 = vshrl.u32 920167782, %v4451
        %v4464 = vor.u32 %v4462, %v4463
        %v4465 = vshll.u32 920167782, %v4450
        %v4466 = vshrl.u32 1326507024, %v4451
        %v4467 = vor.u32 %v4465, %v4466
        %vm4468 = vcmp.lt.s32.totalorder %v4449, 1
        %vm4469 = vcmp.lt.s32.totalorder %v4449, 2
        %vm4470 = vcmp.lt.s32.totalorder %v4449, 3
        %vm4471 = vcmp.lt.s32.totalorder %v4449, 4
        %v4472 = vsel %vm4468, %v4452, %v4455
        %v4473 = vsel %vm4471, %v4461, 2102212464
        %v4474 = vsel %vm4470, %v4458, %v4473
        %v4475 = vsel %vm4469, %v4472, %v4474
        %v4476 = vsel %vm4468, %v4455, %v4458
        %v4477 = vsel %vm4471, %v4464, 920167782
        %v4478 = vsel %vm4470, %v4461, %v4477
        %v4479 = vsel %vm4469, %v4476, %v4478
        %v4480 = vsel %vm4468, %v4458, %v4461
        %v4481 = vsel %vm4471, %v4467, 1326507024
        %v4482 = vsel %vm4470, %v4464, %v4481
        %v4483 = vsel %vm4469, %v4480, %v4482
        %v4484 = vshll.u32 %v4444, 8
        %v4485 = vmul.u32.u64.compose %v4484, %v4483
        %v4486 = vextract.low.u32 %v4485
        %v4487 = vextract.high.u32 %v4485
        %v4488 = vmul.u32.u64.compose %v4484, %v4479
        %v4489 = vextract.low.u32 %v4488
        %v4490 = vextract.high.u32 %v4488
        %v4491 = vmul.u32 %v4484, %v4475
        %v4492 = vadd.s32 %v4487, %v4489
        %vm4493 = vc.u32 %v4487, %v4489
        %v4494 = vadd.s32 %v4490, 1
        %v4495 = vsel %vm4493, %v4494, %v4490
        %v4496 = vadd.s32 %v4491, %v4495
        %v4497 = vadd.s32 %v4496, 536870912
        %v4498 = vshrl.u32 %v4497, 30
        %v4499 = vshll.u32 %v4498, 30
        %v4500 = vsub.s32 %v4496, %v4499
        %vm4501 = vcmp.lt.s32.totalorder %v4500, 0
        %v4502 = vsub.s32 0, %v4500
        %v4503 = vsel %vm4501, %v4502, %v4500
        %v4504 = vclz %v4503
        %v4505 = vsub.s32 %v4504, 2
        %vm4506 = vcmp.gt.s32.totalorder 0, %v4505
        %v4507 = vsel %vm4506, 0, %v4505
        %v4508 = vsub.s32 32, %v4507
        %v4509 = vshll.u32 %v4500, %v4507
        %v4510 = vshrl.u32 %v4492, %v4508
        %v4511 = vor.u32 %v4509, %v4510
        %v4512 = vsub.s32 4294967266, %v4507
        %v4513 = vadd.s32 %v4512, 127
        %v4514 = vshll.u32 %v4513, 23
        %v4515 = vor.u32 4788187, %v4514
        %v4516 = vand.u32 2147483647, %v4515
        %v4518 = vcvt.s32.f32 %v4511
        %v4519 = vmul.f32 %v4518, %v4516
        %v4520 = vxor.u32 %v4519, 2147483648
        %v4521 = vsel %vm4438, %v4520, %v4519
        %v4522 = vsub.s32 4, %v4498
        %v4523 = vsel %vm4438, %v4522, %v4498
        %v4524 = vsel %vm4437, %v737, %v4521
        %v4525 = vsel %vm4437, 0, %v4523
        %v4526 = vcosq.f32.pop %v4524
        %v4527 = vsinq.f32.pop %v4524
        %vm4528 = vweird.f32 %v737
        %v4529 = vand.u32 %v4525, 3
        %vm4530 = vcmp.lt.s32.totalorder %v4529, 2
        %vm4531 = vcmp.eq.s32.totalorder %v4529, 0
        %v4532 = vxor.u32 %v4527, 2147483648
        %v4533 = vsel %vm4531, %v4526, %v4532
        %vm4534 = vcmp.eq.s32.totalorder %v4529, 2
        %v4535 = vxor.u32 %v4526, 2147483648
        %v4536 = vsel %vm4534, %v4535, %v4527
        %v4537 = vsel %vm4530, %v4533, %v4536
        %v4538 = vsel %vm4528, nan, %v4537
        %v4539 = vand.u32 2147483647, %v738
        %vm4540 = vcmp.le.f32.partialorder %v4539, 0.7853982
        %vm4541 = vcmp.lt.s32.totalorder %v738, 0
        %v4542 = vand.u32 %v738, 2139095040
        %v4543 = vshrl.u32 %v4542, 23
        %v4544 = vsub.s32 %v4543, 127
        %v4545 = vand.u32 2147483647, %v738
        %v4546 = vand.u32 %v4545, 8388607
        %v4547 = vor.u32 %v4546, 8388608
        %v4548 = vsub.s32 0, %v4547
        %v4549 = vadd.s32 %v4544, 1
        %vm4550 = vcmp.gt.s32.totalorder %v4549, 0
        %v4551 = vsel %vm4550, %v4549, 0
        %v4552 = vshrl.u32 %v4551, 5
        %v4553 = vand.u32 %v4551, 31
        %v4554 = vsub.s32 32, %v4553
        %v4555 = vshrl.u32 683565275, %v4554
        %v4556 = vshll.u32 683565275, %v4553
        %v4557 = vshrl.u32 2475754826, %v4554
        %v4558 = vor.u32 %v4556, %v4557
        %v4559 = vshll.u32 2475754826, %v4553
        %v4560 = vshrl.u32 2131351028, %v4554
        %v4561 = vor.u32 %v4559, %v4560
        %v4562 = vshll.u32 2131351028, %v4553
        %v4563 = vshrl.u32 2102212464, %v4554
        %v4564 = vor.u32 %v4562, %v4563
        %v4565 = vshll.u32 2102212464, %v4553
        %v4566 = vshrl.u32 920167782, %v4554
        %v4567 = vor.u32 %v4565, %v4566
        %v4568 = vshll.u32 920167782, %v4553
        %v4569 = vshrl.u32 1326507024, %v4554
        %v4570 = vor.u32 %v4568, %v4569
        %vm4571 = vcmp.lt.s32.totalorder %v4552, 1
        %vm4572 = vcmp.lt.s32.totalorder %v4552, 2
        %vm4573 = vcmp.lt.s32.totalorder %v4552, 3
        %vm4574 = vcmp.lt.s32.totalorder %v4552, 4
        %v4575 = vsel %vm4571, %v4555, %v4558
        %v4576 = vsel %vm4574, %v4564, 2102212464
        %v4577 = vsel %vm4573, %v4561, %v4576
        %v4578 = vsel %vm4572, %v4575, %v4577
        %v4579 = vsel %vm4571, %v4558, %v4561
        %v4580 = vsel %vm4574, %v4567, 920167782
        %v4581 = vsel %vm4573, %v4564, %v4580
        %v4582 = vsel %vm4572, %v4579, %v4581
        %v4583 = vsel %vm4571, %v4561, %v4564
        %v4584 = vsel %vm4574, %v4570, 1326507024
        %v4585 = vsel %vm4573, %v4567, %v4584
        %v4586 = vsel %vm4572, %v4583, %v4585
        %v4587 = vshll.u32 %v4547, 8
        %v4588 = vmul.u32.u64.compose %v4587, %v4586
        %v4589 = vextract.low.u32 %v4588
        %v4590 = vextract.high.u32 %v4588
        %v4591 = vmul.u32.u64.compose %v4587, %v4582
        %v4592 = vextract.low.u32 %v4591
        %v4593 = vextract.high.u32 %v4591
        %v4594 = vmul.u32 %v4587, %v4578
        %v4595 = vadd.s32 %v4590, %v4592
        %vm4596 = vc.u32 %v4590, %v4592
        %v4597 = vadd.s32 %v4593, 1
        %v4598 = vsel %vm4596, %v4597, %v4593
        %v4599 = vadd.s32 %v4594, %v4598
        %v4600 = vadd.s32 %v4599, 536870912
        %v4601 = vshrl.u32 %v4600, 30
        %v4602 = vshll.u32 %v4601, 30
        %v4603 = vsub.s32 %v4599, %v4602
        %vm4604 = vcmp.lt.s32.totalorder %v4603, 0
        %v4605 = vsub.s32 0, %v4603
        %v4606 = vsel %vm4604, %v4605, %v4603
        %v4607 = vclz %v4606
        %v4608 = vsub.s32 %v4607, 2
        %vm4609 = vcmp.gt.s32.totalorder 0, %v4608
        %v4610 = vsel %vm4609, 0, %v4608
        %v4611 = vsub.s32 32, %v4610
        %v4612 = vshll.u32 %v4603, %v4610
        %v4613 = vshrl.u32 %v4595, %v4611
        %v4614 = vor.u32 %v4612, %v4613
        %v4615 = vsub.s32 4294967266, %v4610
        %v4616 = vadd.s32 %v4615, 127
        %v4617 = vshll.u32 %v4616, 23
        %v4618 = vor.u32 4788187, %v4617
        %v4619 = vand.u32 2147483647, %v4618
        %v4621 = vcvt.s32.f32 %v4614
        %v4622 = vmul.f32 %v4621, %v4619
        %v4623 = vxor.u32 %v4622, 2147483648
        %v4624 = vsel %vm4541, %v4623, %v4622
        %v4625 = vsub.s32 4, %v4601
        %v4626 = vsel %vm4541, %v4625, %v4601
        %v4627 = vsel %vm4540, %v738, %v4624
        %v4628 = vsel %vm4540, 0, %v4626
        %v4629 = vcosq.f32.pop %v4627
        %v4630 = vsinq.f32.pop %v4627
        %vm4631 = vweird.f32 %v738
        %v4632 = vand.u32 %v4628, 3
        %vm4633 = vcmp.lt.s32.totalorder %v4632, 2
        %vm4634 = vcmp.eq.s32.totalorder %v4632, 0
        %v4635 = vxor.u32 %v4630, 2147483648
        %v4636 = vsel %vm4634, %v4629, %v4635
        %vm4637 = vcmp.eq.s32.totalorder %v4632, 2
        %v4638 = vxor.u32 %v4629, 2147483648
        %v4639 = vsel %vm4637, %v4638, %v4630
        %v4640 = vsel %vm4633, %v4636, %v4639
        %v4641 = vsel %vm4631, nan, %v4640
        %v4642 = vand.u32 2147483647, %v739
        %vm4643 = vcmp.le.f32.partialorder %v4642, 0.7853982
        %vm4644 = vcmp.lt.s32.totalorder %v739, 0
        %v4645 = vand.u32 %v739, 2139095040
        %v4646 = vshrl.u32 %v4645, 23
        %v4647 = vsub.s32 %v4646, 127
        %v4648 = vand.u32 2147483647, %v739
        %v4649 = vand.u32 %v4648, 8388607
        %v4650 = vor.u32 %v4649, 8388608
        %v4651 = vsub.s32 0, %v4650
        %v4652 = vadd.s32 %v4647, 1
        %vm4653 = vcmp.gt.s32.totalorder %v4652, 0
        %v4654 = vsel %vm4653, %v4652, 0
        %v4655 = vshrl.u32 %v4654, 5
        %v4656 = vand.u32 %v4654, 31
        %v4657 = vsub.s32 32, %v4656
        %v4658 = vshrl.u32 683565275, %v4657
        %v4659 = vshll.u32 683565275, %v4656
        %v4660 = vshrl.u32 2475754826, %v4657
        %v4661 = vor.u32 %v4659, %v4660
        %v4662 = vshll.u32 2475754826, %v4656
        %v4663 = vshrl.u32 2131351028, %v4657
        %v4664 = vor.u32 %v4662, %v4663
        %v4665 = vshll.u32 2131351028, %v4656
        %v4666 = vshrl.u32 2102212464, %v4657
        %v4667 = vor.u32 %v4665, %v4666
        %v4668 = vshll.u32 2102212464, %v4656
        %v4669 = vshrl.u32 920167782, %v4657
        %v4670 = vor.u32 %v4668, %v4669
        %v4671 = vshll.u32 920167782, %v4656
        %v4672 = vshrl.u32 1326507024, %v4657
        %v4673 = vor.u32 %v4671, %v4672
        %vm4674 = vcmp.lt.s32.totalorder %v4655, 1
        %vm4675 = vcmp.lt.s32.totalorder %v4655, 2
        %vm4676 = vcmp.lt.s32.totalorder %v4655, 3
        %vm4677 = vcmp.lt.s32.totalorder %v4655, 4
        %v4678 = vsel %vm4674, %v4658, %v4661
        %v4679 = vsel %vm4677, %v4667, 2102212464
        %v4680 = vsel %vm4676, %v4664, %v4679
        %v4681 = vsel %vm4675, %v4678, %v4680
        %v4682 = vsel %vm4674, %v4661, %v4664
        %v4683 = vsel %vm4677, %v4670, 920167782
        %v4684 = vsel %vm4676, %v4667, %v4683
        %v4685 = vsel %vm4675, %v4682, %v4684
        %v4686 = vsel %vm4674, %v4664, %v4667
        %v4687 = vsel %vm4677, %v4673, 1326507024
        %v4688 = vsel %vm4676, %v4670, %v4687
        %v4689 = vsel %vm4675, %v4686, %v4688
        %v4690 = vshll.u32 %v4650, 8
        %v4691 = vmul.u32.u64.compose %v4690, %v4689
        %v4692 = vextract.low.u32 %v4691
        %v4693 = vextract.high.u32 %v4691
        %v4694 = vmul.u32.u64.compose %v4690, %v4685
        %v4695 = vextract.low.u32 %v4694
        %v4696 = vextract.high.u32 %v4694
        %v4697 = vmul.u32 %v4690, %v4681
        %v4698 = vadd.s32 %v4693, %v4695
        %vm4699 = vc.u32 %v4693, %v4695
        %v4700 = vadd.s32 %v4696, 1
        %v4701 = vsel %vm4699, %v4700, %v4696
        %v4702 = vadd.s32 %v4697, %v4701
        %v4703 = vadd.s32 %v4702, 536870912
        %v4704 = vshrl.u32 %v4703, 30
        %v4705 = vshll.u32 %v4704, 30
        %v4706 = vsub.s32 %v4702, %v4705
        %vm4707 = vcmp.lt.s32.totalorder %v4706, 0
        %v4708 = vsub.s32 0, %v4706
        %v4709 = vsel %vm4707, %v4708, %v4706
        %v4710 = vclz %v4709
        %v4711 = vsub.s32 %v4710, 2
        %vm4712 = vcmp.gt.s32.totalorder 0, %v4711
        %v4713 = vsel %vm4712, 0, %v4711
        %v4714 = vsub.s32 32, %v4713
        %v4715 = vshll.u32 %v4706, %v4713
        %v4716 = vshrl.u32 %v4698, %v4714
        %v4717 = vor.u32 %v4715, %v4716
        %v4718 = vsub.s32 4294967266, %v4713
        %v4719 = vadd.s32 %v4718, 127
        %v4720 = vshll.u32 %v4719, 23
        %v4721 = vor.u32 4788187, %v4720
        %v4722 = vand.u32 2147483647, %v4721
        %v4724 = vcvt.s32.f32 %v4717
        %v4725 = vmul.f32 %v4724, %v4722
        %v4726 = vxor.u32 %v4725, 2147483648
        %v4727 = vsel %vm4644, %v4726, %v4725
        %v4728 = vsub.s32 4, %v4704
        %v4729 = vsel %vm4644, %v4728, %v4704
        %v4730 = vsel %vm4643, %v739, %v4727
        %v4731 = vsel %vm4643, 0, %v4729
        %v4732 = vcosq.f32.pop %v4730
        %v4733 = vsinq.f32.pop %v4730
        %vm4734 = vweird.f32 %v739
        %v4735 = vand.u32 %v4731, 3
        %vm4736 = vcmp.lt.s32.totalorder %v4735, 2
        %vm4737 = vcmp.eq.s32.totalorder %v4735, 0
        %v4738 = vxor.u32 %v4733, 2147483648
        %v4739 = vsel %vm4737, %v4732, %v4738
        %vm4740 = vcmp.eq.s32.totalorder %v4735, 2
        %v4741 = vxor.u32 %v4732, 2147483648
        %v4742 = vsel %vm4740, %v4741, %v4733
        %v4743 = vsel %vm4736, %v4739, %v4742
        %v4744 = vsel %vm4734, nan, %v4743
        %v4745 = vand.u32 2147483647, %v740
        %vm4746 = vcmp.le.f32.partialorder %v4745, 0.7853982
        %vm4747 = vcmp.lt.s32.totalorder %v740, 0
        %v4748 = vand.u32 %v740, 2139095040
        %v4749 = vshrl.u32 %v4748, 23
        %v4750 = vsub.s32 %v4749, 127
        %v4751 = vand.u32 2147483647, %v740
        %v4752 = vand.u32 %v4751, 8388607
        %v4753 = vor.u32 %v4752, 8388608
        %v4754 = vsub.s32 0, %v4753
        %v4755 = vadd.s32 %v4750, 1
        %vm4756 = vcmp.gt.s32.totalorder %v4755, 0
        %v4757 = vsel %vm4756, %v4755, 0
        %v4758 = vshrl.u32 %v4757, 5
        %v4759 = vand.u32 %v4757, 31
        %v4760 = vsub.s32 32, %v4759
        %v4761 = vshrl.u32 683565275, %v4760
        %v4762 = vshll.u32 683565275, %v4759
        %v4763 = vshrl.u32 2475754826, %v4760
        %v4764 = vor.u32 %v4762, %v4763
        %v4765 = vshll.u32 2475754826, %v4759
        %v4766 = vshrl.u32 2131351028, %v4760
        %v4767 = vor.u32 %v4765, %v4766
        %v4768 = vshll.u32 2131351028, %v4759
        %v4769 = vshrl.u32 2102212464, %v4760
        %v4770 = vor.u32 %v4768, %v4769
        %v4771 = vshll.u32 2102212464, %v4759
        %v4772 = vshrl.u32 920167782, %v4760
        %v4773 = vor.u32 %v4771, %v4772
        %v4774 = vshll.u32 920167782, %v4759
        %v4775 = vshrl.u32 1326507024, %v4760
        %v4776 = vor.u32 %v4774, %v4775
        %vm4777 = vcmp.lt.s32.totalorder %v4758, 1
        %vm4778 = vcmp.lt.s32.totalorder %v4758, 2
        %vm4779 = vcmp.lt.s32.totalorder %v4758, 3
        %vm4780 = vcmp.lt.s32.totalorder %v4758, 4
        %v4781 = vsel %vm4777, %v4761, %v4764
        %v4782 = vsel %vm4780, %v4770, 2102212464
        %v4783 = vsel %vm4779, %v4767, %v4782
        %v4784 = vsel %vm4778, %v4781, %v4783
        %v4785 = vsel %vm4777, %v4764, %v4767
        %v4786 = vsel %vm4780, %v4773, 920167782
        %v4787 = vsel %vm4779, %v4770, %v4786
        %v4788 = vsel %vm4778, %v4785, %v4787
        %v4789 = vsel %vm4777, %v4767, %v4770
        %v4790 = vsel %vm4780, %v4776, 1326507024
        %v4791 = vsel %vm4779, %v4773, %v4790
        %v4792 = vsel %vm4778, %v4789, %v4791
        %v4793 = vshll.u32 %v4753, 8
        %v4794 = vmul.u32.u64.compose %v4793, %v4792
        %v4795 = vextract.low.u32 %v4794
        %v4796 = vextract.high.u32 %v4794
        %v4797 = vmul.u32.u64.compose %v4793, %v4788
        %v4798 = vextract.low.u32 %v4797
        %v4799 = vextract.high.u32 %v4797
        %v4800 = vmul.u32 %v4793, %v4784
        %v4801 = vadd.s32 %v4796, %v4798
        %vm4802 = vc.u32 %v4796, %v4798
        %v4803 = vadd.s32 %v4799, 1
        %v4804 = vsel %vm4802, %v4803, %v4799
        %v4805 = vadd.s32 %v4800, %v4804
        %v4806 = vadd.s32 %v4805, 536870912
        %v4807 = vshrl.u32 %v4806, 30
        %v4808 = vshll.u32 %v4807, 30
        %v4809 = vsub.s32 %v4805, %v4808
        %vm4810 = vcmp.lt.s32.totalorder %v4809, 0
        %v4811 = vsub.s32 0, %v4809
        %v4812 = vsel %vm4810, %v4811, %v4809
        %v4813 = vclz %v4812
        %v4814 = vsub.s32 %v4813, 2
        %vm4815 = vcmp.gt.s32.totalorder 0, %v4814
        %v4816 = vsel %vm4815, 0, %v4814
        %v4817 = vsub.s32 32, %v4816
        %v4818 = vshll.u32 %v4809, %v4816
        %v4819 = vshrl.u32 %v4801, %v4817
        %v4820 = vor.u32 %v4818, %v4819
        %v4821 = vsub.s32 4294967266, %v4816
        %v4822 = vadd.s32 %v4821, 127
        %v4823 = vshll.u32 %v4822, 23
        %v4824 = vor.u32 4788187, %v4823
        %v4825 = vand.u32 2147483647, %v4824
        %v4827 = vcvt.s32.f32 %v4820
        %v4828 = vmul.f32 %v4827, %v4825
        %v4829 = vxor.u32 %v4828, 2147483648
        %v4830 = vsel %vm4747, %v4829, %v4828
        %v4831 = vsub.s32 4, %v4807
        %v4832 = vsel %vm4747, %v4831, %v4807
        %v4833 = vsel %vm4746, %v740, %v4830
        %v4834 = vsel %vm4746, 0, %v4832
        %v4835 = vcosq.f32.pop %v4833
        %v4836 = vsinq.f32.pop %v4833
        %vm4837 = vweird.f32 %v740
        %v4838 = vand.u32 %v4834, 3
        %vm4839 = vcmp.lt.s32.totalorder %v4838, 2
        %vm4840 = vcmp.eq.s32.totalorder %v4838, 0
        %v4841 = vxor.u32 %v4836, 2147483648
        %v4842 = vsel %vm4840, %v4835, %v4841
        %vm4843 = vcmp.eq.s32.totalorder %v4838, 2
        %v4844 = vxor.u32 %v4835, 2147483648
        %v4845 = vsel %vm4843, %v4844, %v4836
        %v4846 = vsel %vm4839, %v4842, %v4845
        %v4847 = vsel %vm4837, nan, %v4846
        %v4848 = vand.u32 2147483647, %v741
        %vm4849 = vcmp.le.f32.partialorder %v4848, 0.7853982
        %vm4850 = vcmp.lt.s32.totalorder %v741, 0
        %v4851 = vand.u32 %v741, 2139095040
        %v4852 = vshrl.u32 %v4851, 23
        %v4853 = vsub.s32 %v4852, 127
        %v4854 = vand.u32 2147483647, %v741
        %v4855 = vand.u32 %v4854, 8388607
        %v4856 = vor.u32 %v4855, 8388608
        %v4857 = vsub.s32 0, %v4856
        %v4858 = vadd.s32 %v4853, 1
        %vm4859 = vcmp.gt.s32.totalorder %v4858, 0
        %v4860 = vsel %vm4859, %v4858, 0
        %v4861 = vshrl.u32 %v4860, 5
        %v4862 = vand.u32 %v4860, 31
        %v4863 = vsub.s32 32, %v4862
        %v4864 = vshrl.u32 683565275, %v4863
        %v4865 = vshll.u32 683565275, %v4862
        %v4866 = vshrl.u32 2475754826, %v4863
        %v4867 = vor.u32 %v4865, %v4866
        %v4868 = vshll.u32 2475754826, %v4862
        %v4869 = vshrl.u32 2131351028, %v4863
        %v4870 = vor.u32 %v4868, %v4869
        %v4871 = vshll.u32 2131351028, %v4862
        %v4872 = vshrl.u32 2102212464, %v4863
        %v4873 = vor.u32 %v4871, %v4872
        %v4874 = vshll.u32 2102212464, %v4862
        %v4875 = vshrl.u32 920167782, %v4863
        %v4876 = vor.u32 %v4874, %v4875
        %v4877 = vshll.u32 920167782, %v4862
        %v4878 = vshrl.u32 1326507024, %v4863
        %v4879 = vor.u32 %v4877, %v4878
        %vm4880 = vcmp.lt.s32.totalorder %v4861, 1
        %vm4881 = vcmp.lt.s32.totalorder %v4861, 2
        %vm4882 = vcmp.lt.s32.totalorder %v4861, 3
        %vm4883 = vcmp.lt.s32.totalorder %v4861, 4
        %v4884 = vsel %vm4880, %v4864, %v4867
        %v4885 = vsel %vm4883, %v4873, 2102212464
        %v4886 = vsel %vm4882, %v4870, %v4885
        %v4887 = vsel %vm4881, %v4884, %v4886
        %v4888 = vsel %vm4880, %v4867, %v4870
        %v4889 = vsel %vm4883, %v4876, 920167782
        %v4890 = vsel %vm4882, %v4873, %v4889
        %v4891 = vsel %vm4881, %v4888, %v4890
        %v4892 = vsel %vm4880, %v4870, %v4873
        %v4893 = vsel %vm4883, %v4879, 1326507024
        %v4894 = vsel %vm4882, %v4876, %v4893
        %v4895 = vsel %vm4881, %v4892, %v4894
        %v4896 = vshll.u32 %v4856, 8
        %v4897 = vmul.u32.u64.compose %v4896, %v4895
        %v4898 = vextract.low.u32 %v4897
        %v4899 = vextract.high.u32 %v4897
        %v4900 = vmul.u32.u64.compose %v4896, %v4891
        %v4901 = vextract.low.u32 %v4900
        %v4902 = vextract.high.u32 %v4900
        %v4903 = vmul.u32 %v4896, %v4887
        %v4904 = vadd.s32 %v4899, %v4901
        %vm4905 = vc.u32 %v4899, %v4901
        %v4906 = vadd.s32 %v4902, 1
        %v4907 = vsel %vm4905, %v4906, %v4902
        %v4908 = vadd.s32 %v4903, %v4907
        %v4909 = vadd.s32 %v4908, 536870912
        %v4910 = vshrl.u32 %v4909, 30
        %v4911 = vshll.u32 %v4910, 30
        %v4912 = vsub.s32 %v4908, %v4911
        %vm4913 = vcmp.lt.s32.totalorder %v4912, 0
        %v4914 = vsub.s32 0, %v4912
        %v4915 = vsel %vm4913, %v4914, %v4912
        %v4916 = vclz %v4915
        %v4917 = vsub.s32 %v4916, 2
        %vm4918 = vcmp.gt.s32.totalorder 0, %v4917
        %v4919 = vsel %vm4918, 0, %v4917
        %v4920 = vsub.s32 32, %v4919
        %v4921 = vshll.u32 %v4912, %v4919
        %v4922 = vshrl.u32 %v4904, %v4920
        %v4923 = vor.u32 %v4921, %v4922
        %v4924 = vsub.s32 4294967266, %v4919
        %v4925 = vadd.s32 %v4924, 127
        %v4926 = vshll.u32 %v4925, 23
        %v4927 = vor.u32 4788187, %v4926
        %v4928 = vand.u32 2147483647, %v4927
        %v4930 = vcvt.s32.f32 %v4923
        %v4931 = vmul.f32 %v4930, %v4928
        %v4932 = vxor.u32 %v4931, 2147483648
        %v4933 = vsel %vm4850, %v4932, %v4931
        %v4934 = vsub.s32 4, %v4910
        %v4935 = vsel %vm4850, %v4934, %v4910
        %v4936 = vsel %vm4849, %v741, %v4933
        %v4937 = vsel %vm4849, 0, %v4935
        %v4938 = vcosq.f32.pop %v4936
        %v4939 = vsinq.f32.pop %v4936
        %vm4940 = vweird.f32 %v741
        %v4941 = vand.u32 %v4937, 3
        %vm4942 = vcmp.lt.s32.totalorder %v4941, 2
        %vm4943 = vcmp.eq.s32.totalorder %v4941, 0
        %v4944 = vxor.u32 %v4939, 2147483648
        %v4945 = vsel %vm4943, %v4938, %v4944
        %vm4946 = vcmp.eq.s32.totalorder %v4941, 2
        %v4947 = vxor.u32 %v4938, 2147483648
        %v4948 = vsel %vm4946, %v4947, %v4939
        %v4949 = vsel %vm4942, %v4945, %v4948
        %v4950 = vsel %vm4940, nan, %v4949
        %v4951 = vand.u32 2147483647, %v742
        %vm4952 = vcmp.le.f32.partialorder %v4951, 0.7853982
        %vm4953 = vcmp.lt.s32.totalorder %v742, 0
        %v4954 = vand.u32 %v742, 2139095040
        %v4955 = vshrl.u32 %v4954, 23
        %v4956 = vsub.s32 %v4955, 127
        %v4957 = vand.u32 2147483647, %v742
        %v4958 = vand.u32 %v4957, 8388607
        %v4959 = vor.u32 %v4958, 8388608
        %v4960 = vsub.s32 0, %v4959
        %v4961 = vadd.s32 %v4956, 1
        %vm4962 = vcmp.gt.s32.totalorder %v4961, 0
        %v4963 = vsel %vm4962, %v4961, 0
        %v4964 = vshrl.u32 %v4963, 5
        %v4965 = vand.u32 %v4963, 31
        %v4966 = vsub.s32 32, %v4965
        %v4967 = vshrl.u32 683565275, %v4966
        %v4968 = vshll.u32 683565275, %v4965
        %v4969 = vshrl.u32 2475754826, %v4966
        %v4970 = vor.u32 %v4968, %v4969
        %v4971 = vshll.u32 2475754826, %v4965
        %v4972 = vshrl.u32 2131351028, %v4966
        %v4973 = vor.u32 %v4971, %v4972
        %v4974 = vshll.u32 2131351028, %v4965
        %v4975 = vshrl.u32 2102212464, %v4966
        %v4976 = vor.u32 %v4974, %v4975
        %v4977 = vshll.u32 2102212464, %v4965
        %v4978 = vshrl.u32 920167782, %v4966
        %v4979 = vor.u32 %v4977, %v4978
        %v4980 = vshll.u32 920167782, %v4965
        %v4981 = vshrl.u32 1326507024, %v4966
        %v4982 = vor.u32 %v4980, %v4981
        %vm4983 = vcmp.lt.s32.totalorder %v4964, 1
        %vm4984 = vcmp.lt.s32.totalorder %v4964, 2
        %vm4985 = vcmp.lt.s32.totalorder %v4964, 3
        %vm4986 = vcmp.lt.s32.totalorder %v4964, 4
        %v4987 = vsel %vm4983, %v4967, %v4970
        %v4988 = vsel %vm4986, %v4976, 2102212464
        %v4989 = vsel %vm4985, %v4973, %v4988
        %v4990 = vsel %vm4984, %v4987, %v4989
        %v4991 = vsel %vm4983, %v4970, %v4973
        %v4992 = vsel %vm4986, %v4979, 920167782
        %v4993 = vsel %vm4985, %v4976, %v4992
        %v4994 = vsel %vm4984, %v4991, %v4993
        %v4995 = vsel %vm4983, %v4973, %v4976
        %v4996 = vsel %vm4986, %v4982, 1326507024
        %v4997 = vsel %vm4985, %v4979, %v4996
        %v4998 = vsel %vm4984, %v4995, %v4997
        %v4999 = vshll.u32 %v4959, 8
        %v5000 = vmul.u32.u64.compose %v4999, %v4998
        %v5001 = vextract.low.u32 %v5000
        %v5002 = vextract.high.u32 %v5000
        %v5003 = vmul.u32.u64.compose %v4999, %v4994
        %v5004 = vextract.low.u32 %v5003
        %v5005 = vextract.high.u32 %v5003
        %v5006 = vmul.u32 %v4999, %v4990
        %v5007 = vadd.s32 %v5002, %v5004
        %vm5008 = vc.u32 %v5002, %v5004
        %v5009 = vadd.s32 %v5005, 1
        %v5010 = vsel %vm5008, %v5009, %v5005
        %v5011 = vadd.s32 %v5006, %v5010
        %v5012 = vadd.s32 %v5011, 536870912
        %v5013 = vshrl.u32 %v5012, 30
        %v5014 = vshll.u32 %v5013, 30
        %v5015 = vsub.s32 %v5011, %v5014
        %vm5016 = vcmp.lt.s32.totalorder %v5015, 0
        %v5017 = vsub.s32 0, %v5015
        %v5018 = vsel %vm5016, %v5017, %v5015
        %v5019 = vclz %v5018
        %v5020 = vsub.s32 %v5019, 2
        %vm5021 = vcmp.gt.s32.totalorder 0, %v5020
        %v5022 = vsel %vm5021, 0, %v5020
        %v5023 = vsub.s32 32, %v5022
        %v5024 = vshll.u32 %v5015, %v5022
        %v5025 = vshrl.u32 %v5007, %v5023
        %v5026 = vor.u32 %v5024, %v5025
        %v5027 = vsub.s32 4294967266, %v5022
        %v5028 = vadd.s32 %v5027, 127
        %v5029 = vshll.u32 %v5028, 23
        %v5030 = vor.u32 4788187, %v5029
        %v5031 = vand.u32 2147483647, %v5030
        %v5033 = vcvt.s32.f32 %v5026
        %v5034 = vmul.f32 %v5033, %v5031
        %v5035 = vxor.u32 %v5034, 2147483648
        %v5036 = vsel %vm4953, %v5035, %v5034
        %v5037 = vsub.s32 4, %v5013
        %v5038 = vsel %vm4953, %v5037, %v5013
        %v5039 = vsel %vm4952, %v742, %v5036
        %v5040 = vsel %vm4952, 0, %v5038
        %v5041 = vcosq.f32.pop %v5039
        %v5042 = vsinq.f32.pop %v5039
        %vm5043 = vweird.f32 %v742
        %v5044 = vand.u32 %v5040, 3
        %vm5045 = vcmp.lt.s32.totalorder %v5044, 2
        %vm5046 = vcmp.eq.s32.totalorder %v5044, 0
        %v5047 = vxor.u32 %v5042, 2147483648
        %v5048 = vsel %vm5046, %v5041, %v5047
        %vm5049 = vcmp.eq.s32.totalorder %v5044, 2
        %v5050 = vxor.u32 %v5041, 2147483648
        %v5051 = vsel %vm5049, %v5050, %v5042
        %v5052 = vsel %vm5045, %v5048, %v5051
        %v5053 = vsel %vm5043, nan, %v5052
        %v5054 = vand.u32 2147483647, %v743
        %vm5055 = vcmp.le.f32.partialorder %v5054, 0.7853982
        %vm5056 = vcmp.lt.s32.totalorder %v743, 0
        %v5057 = vand.u32 %v743, 2139095040
        %v5058 = vshrl.u32 %v5057, 23
        %v5059 = vsub.s32 %v5058, 127
        %v5060 = vand.u32 2147483647, %v743
        %v5061 = vand.u32 %v5060, 8388607
        %v5062 = vor.u32 %v5061, 8388608
        %v5063 = vsub.s32 0, %v5062
        %v5064 = vadd.s32 %v5059, 1
        %vm5065 = vcmp.gt.s32.totalorder %v5064, 0
        %v5066 = vsel %vm5065, %v5064, 0
        %v5067 = vshrl.u32 %v5066, 5
        %v5068 = vand.u32 %v5066, 31
        %v5069 = vsub.s32 32, %v5068
        %v5070 = vshrl.u32 683565275, %v5069
        %v5071 = vshll.u32 683565275, %v5068
        %v5072 = vshrl.u32 2475754826, %v5069
        %v5073 = vor.u32 %v5071, %v5072
        %v5074 = vshll.u32 2475754826, %v5068
        %v5075 = vshrl.u32 2131351028, %v5069
        %v5076 = vor.u32 %v5074, %v5075
        %v5077 = vshll.u32 2131351028, %v5068
        %v5078 = vshrl.u32 2102212464, %v5069
        %v5079 = vor.u32 %v5077, %v5078
        %v5080 = vshll.u32 2102212464, %v5068
        %v5081 = vshrl.u32 920167782, %v5069
        %v5082 = vor.u32 %v5080, %v5081
        %v5083 = vshll.u32 920167782, %v5068
        %v5084 = vshrl.u32 1326507024, %v5069
        %v5085 = vor.u32 %v5083, %v5084
        %vm5086 = vcmp.lt.s32.totalorder %v5067, 1
        %vm5087 = vcmp.lt.s32.totalorder %v5067, 2
        %vm5088 = vcmp.lt.s32.totalorder %v5067, 3
        %vm5089 = vcmp.lt.s32.totalorder %v5067, 4
        %v5090 = vsel %vm5086, %v5070, %v5073
        %v5091 = vsel %vm5089, %v5079, 2102212464
        %v5092 = vsel %vm5088, %v5076, %v5091
        %v5093 = vsel %vm5087, %v5090, %v5092
        %v5094 = vsel %vm5086, %v5073, %v5076
        %v5095 = vsel %vm5089, %v5082, 920167782
        %v5096 = vsel %vm5088, %v5079, %v5095
        %v5097 = vsel %vm5087, %v5094, %v5096
        %v5098 = vsel %vm5086, %v5076, %v5079
        %v5099 = vsel %vm5089, %v5085, 1326507024
        %v5100 = vsel %vm5088, %v5082, %v5099
        %v5101 = vsel %vm5087, %v5098, %v5100
        %v5102 = vshll.u32 %v5062, 8
        %v5103 = vmul.u32.u64.compose %v5102, %v5101
        %v5104 = vextract.low.u32 %v5103
        %v5105 = vextract.high.u32 %v5103
        %v5106 = vmul.u32.u64.compose %v5102, %v5097
        %v5107 = vextract.low.u32 %v5106
        %v5108 = vextract.high.u32 %v5106
        %v5109 = vmul.u32 %v5102, %v5093
        %v5110 = vadd.s32 %v5105, %v5107
        %vm5111 = vc.u32 %v5105, %v5107
        %v5112 = vadd.s32 %v5108, 1
        %v5113 = vsel %vm5111, %v5112, %v5108
        %v5114 = vadd.s32 %v5109, %v5113
        %v5115 = vadd.s32 %v5114, 536870912
        %v5116 = vshrl.u32 %v5115, 30
        %v5117 = vshll.u32 %v5116, 30
        %v5118 = vsub.s32 %v5114, %v5117
        %vm5119 = vcmp.lt.s32.totalorder %v5118, 0
        %v5120 = vsub.s32 0, %v5118
        %v5121 = vsel %vm5119, %v5120, %v5118
        %v5122 = vclz %v5121
        %v5123 = vsub.s32 %v5122, 2
        %vm5124 = vcmp.gt.s32.totalorder 0, %v5123
        %v5125 = vsel %vm5124, 0, %v5123
        %v5126 = vsub.s32 32, %v5125
        %v5127 = vshll.u32 %v5118, %v5125
        %v5128 = vshrl.u32 %v5110, %v5126
        %v5129 = vor.u32 %v5127, %v5128
        %v5130 = vsub.s32 4294967266, %v5125
        %v5131 = vadd.s32 %v5130, 127
        %v5132 = vshll.u32 %v5131, 23
        %v5133 = vor.u32 4788187, %v5132
        %v5134 = vand.u32 2147483647, %v5133
        %v5136 = vcvt.s32.f32 %v5129
        %v5137 = vmul.f32 %v5136, %v5134
        %v5138 = vxor.u32 %v5137, 2147483648
        %v5139 = vsel %vm5056, %v5138, %v5137
        %v5140 = vsub.s32 4, %v5116
        %v5141 = vsel %vm5056, %v5140, %v5116
        %v5142 = vsel %vm5055, %v743, %v5139
        %v5143 = vsel %vm5055, 0, %v5141
        %v5144 = vcosq.f32.pop %v5142
        %v5145 = vsinq.f32.pop %v5142
        %vm5146 = vweird.f32 %v743
        %v5147 = vand.u32 %v5143, 3
        %vm5148 = vcmp.lt.s32.totalorder %v5147, 2
        %vm5149 = vcmp.eq.s32.totalorder %v5147, 0
        %v5150 = vxor.u32 %v5145, 2147483648
        %v5151 = vsel %vm5149, %v5144, %v5150
        %vm5152 = vcmp.eq.s32.totalorder %v5147, 2
        %v5153 = vxor.u32 %v5144, 2147483648
        %v5154 = vsel %vm5152, %v5153, %v5145
        %v5155 = vsel %vm5148, %v5151, %v5154
        %v5156 = vsel %vm5146, nan, %v5155
        %v5157 = vand.u32 2147483647, %v744
        %vm5158 = vcmp.le.f32.partialorder %v5157, 0.7853982
        %vm5159 = vcmp.lt.s32.totalorder %v744, 0
        %v5160 = vand.u32 %v744, 2139095040
        %v5161 = vshrl.u32 %v5160, 23
        %v5162 = vsub.s32 %v5161, 127
        %v5163 = vand.u32 2147483647, %v744
        %v5164 = vand.u32 %v5163, 8388607
        %v5165 = vor.u32 %v5164, 8388608
        %v5166 = vsub.s32 0, %v5165
        %v5167 = vadd.s32 %v5162, 1
        %vm5168 = vcmp.gt.s32.totalorder %v5167, 0
        %v5169 = vsel %vm5168, %v5167, 0
        %v5170 = vshrl.u32 %v5169, 5
        %v5171 = vand.u32 %v5169, 31
        %v5172 = vsub.s32 32, %v5171
        %v5173 = vshrl.u32 683565275, %v5172
        %v5174 = vshll.u32 683565275, %v5171
        %v5175 = vshrl.u32 2475754826, %v5172
        %v5176 = vor.u32 %v5174, %v5175
        %v5177 = vshll.u32 2475754826, %v5171
        %v5178 = vshrl.u32 2131351028, %v5172
        %v5179 = vor.u32 %v5177, %v5178
        %v5180 = vshll.u32 2131351028, %v5171
        %v5181 = vshrl.u32 2102212464, %v5172
        %v5182 = vor.u32 %v5180, %v5181
        %v5183 = vshll.u32 2102212464, %v5171
        %v5184 = vshrl.u32 920167782, %v5172
        %v5185 = vor.u32 %v5183, %v5184
        %v5186 = vshll.u32 920167782, %v5171
        %v5187 = vshrl.u32 1326507024, %v5172
        %v5188 = vor.u32 %v5186, %v5187
        %vm5189 = vcmp.lt.s32.totalorder %v5170, 1
        %vm5190 = vcmp.lt.s32.totalorder %v5170, 2
        %vm5191 = vcmp.lt.s32.totalorder %v5170, 3
        %vm5192 = vcmp.lt.s32.totalorder %v5170, 4
        %v5193 = vsel %vm5189, %v5173, %v5176
        %v5194 = vsel %vm5192, %v5182, 2102212464
        %v5195 = vsel %vm5191, %v5179, %v5194
        %v5196 = vsel %vm5190, %v5193, %v5195
        %v5197 = vsel %vm5189, %v5176, %v5179
        %v5198 = vsel %vm5192, %v5185, 920167782
        %v5199 = vsel %vm5191, %v5182, %v5198
        %v5200 = vsel %vm5190, %v5197, %v5199
        %v5201 = vsel %vm5189, %v5179, %v5182
        %v5202 = vsel %vm5192, %v5188, 1326507024
        %v5203 = vsel %vm5191, %v5185, %v5202
        %v5204 = vsel %vm5190, %v5201, %v5203
        %v5205 = vshll.u32 %v5165, 8
        %v5206 = vmul.u32.u64.compose %v5205, %v5204
        %v5207 = vextract.low.u32 %v5206
        %v5208 = vextract.high.u32 %v5206
        %v5209 = vmul.u32.u64.compose %v5205, %v5200
        %v5210 = vextract.low.u32 %v5209
        %v5211 = vextract.high.u32 %v5209
        %v5212 = vmul.u32 %v5205, %v5196
        %v5213 = vadd.s32 %v5208, %v5210
        %vm5214 = vc.u32 %v5208, %v5210
        %v5215 = vadd.s32 %v5211, 1
        %v5216 = vsel %vm5214, %v5215, %v5211
        %v5217 = vadd.s32 %v5212, %v5216
        %v5218 = vadd.s32 %v5217, 536870912
        %v5219 = vshrl.u32 %v5218, 30
        %v5220 = vshll.u32 %v5219, 30
        %v5221 = vsub.s32 %v5217, %v5220
        %vm5222 = vcmp.lt.s32.totalorder %v5221, 0
        %v5223 = vsub.s32 0, %v5221
        %v5224 = vsel %vm5222, %v5223, %v5221
        %v5225 = vclz %v5224
        %v5226 = vsub.s32 %v5225, 2
        %vm5227 = vcmp.gt.s32.totalorder 0, %v5226
        %v5228 = vsel %vm5227, 0, %v5226
        %v5229 = vsub.s32 32, %v5228
        %v5230 = vshll.u32 %v5221, %v5228
        %v5231 = vshrl.u32 %v5213, %v5229
        %v5232 = vor.u32 %v5230, %v5231
        %v5233 = vsub.s32 4294967266, %v5228
        %v5234 = vadd.s32 %v5233, 127
        %v5235 = vshll.u32 %v5234, 23
        %v5236 = vor.u32 4788187, %v5235
        %v5237 = vand.u32 2147483647, %v5236
        %v5239 = vcvt.s32.f32 %v5232
        %v5240 = vmul.f32 %v5239, %v5237
        %v5241 = vxor.u32 %v5240, 2147483648
        %v5242 = vsel %vm5159, %v5241, %v5240
        %v5243 = vsub.s32 4, %v5219
        %v5244 = vsel %vm5159, %v5243, %v5219
        %v5245 = vsel %vm5158, %v744, %v5242
        %v5246 = vsel %vm5158, 0, %v5244
        %v5247 = vcosq.f32.pop %v5245
        %v5248 = vsinq.f32.pop %v5245
        %vm5249 = vweird.f32 %v744
        %v5250 = vand.u32 %v5246, 3
        %vm5251 = vcmp.lt.s32.totalorder %v5250, 2
        %vm5252 = vcmp.eq.s32.totalorder %v5250, 0
        %v5253 = vxor.u32 %v5248, 2147483648
        %v5254 = vsel %vm5252, %v5247, %v5253
        %vm5255 = vcmp.eq.s32.totalorder %v5250, 2
        %v5256 = vxor.u32 %v5247, 2147483648
        %v5257 = vsel %vm5255, %v5256, %v5248
        %v5258 = vsel %vm5251, %v5254, %v5257
        %v5259 = vsel %vm5249, nan, %v5258
        %v5260 = vand.u32 2147483647, %v745
        %vm5261 = vcmp.le.f32.partialorder %v5260, 0.7853982
        %vm5262 = vcmp.lt.s32.totalorder %v745, 0
        %v5263 = vand.u32 %v745, 2139095040
        %v5264 = vshrl.u32 %v5263, 23
        %v5265 = vsub.s32 %v5264, 127
        %v5266 = vand.u32 2147483647, %v745
        %v5267 = vand.u32 %v5266, 8388607
        %v5268 = vor.u32 %v5267, 8388608
        %v5269 = vsub.s32 0, %v5268
        %v5270 = vadd.s32 %v5265, 1
        %vm5271 = vcmp.gt.s32.totalorder %v5270, 0
        %v5272 = vsel %vm5271, %v5270, 0
        %v5273 = vshrl.u32 %v5272, 5
        %v5274 = vand.u32 %v5272, 31
        %v5275 = vsub.s32 32, %v5274
        %v5276 = vshrl.u32 683565275, %v5275
        %v5277 = vshll.u32 683565275, %v5274
        %v5278 = vshrl.u32 2475754826, %v5275
        %v5279 = vor.u32 %v5277, %v5278
        %v5280 = vshll.u32 2475754826, %v5274
        %v5281 = vshrl.u32 2131351028, %v5275
        %v5282 = vor.u32 %v5280, %v5281
        %v5283 = vshll.u32 2131351028, %v5274
        %v5284 = vshrl.u32 2102212464, %v5275
        %v5285 = vor.u32 %v5283, %v5284
        %v5286 = vshll.u32 2102212464, %v5274
        %v5287 = vshrl.u32 920167782, %v5275
        %v5288 = vor.u32 %v5286, %v5287
        %v5289 = vshll.u32 920167782, %v5274
        %v5290 = vshrl.u32 1326507024, %v5275
        %v5291 = vor.u32 %v5289, %v5290
        %vm5292 = vcmp.lt.s32.totalorder %v5273, 1
        %vm5293 = vcmp.lt.s32.totalorder %v5273, 2
        %vm5294 = vcmp.lt.s32.totalorder %v5273, 3
        %vm5295 = vcmp.lt.s32.totalorder %v5273, 4
        %v5296 = vsel %vm5292, %v5276, %v5279
        %v5297 = vsel %vm5295, %v5285, 2102212464
        %v5298 = vsel %vm5294, %v5282, %v5297
        %v5299 = vsel %vm5293, %v5296, %v5298
        %v5300 = vsel %vm5292, %v5279, %v5282
        %v5301 = vsel %vm5295, %v5288, 920167782
        %v5302 = vsel %vm5294, %v5285, %v5301
        %v5303 = vsel %vm5293, %v5300, %v5302
        %v5304 = vsel %vm5292, %v5282, %v5285
        %v5305 = vsel %vm5295, %v5291, 1326507024
        %v5306 = vsel %vm5294, %v5288, %v5305
        %v5307 = vsel %vm5293, %v5304, %v5306
        %v5308 = vshll.u32 %v5268, 8
        %v5309 = vmul.u32.u64.compose %v5308, %v5307
        %v5310 = vextract.low.u32 %v5309
        %v5311 = vextract.high.u32 %v5309
        %v5312 = vmul.u32.u64.compose %v5308, %v5303
        %v5313 = vextract.low.u32 %v5312
        %v5314 = vextract.high.u32 %v5312
        %v5315 = vmul.u32 %v5308, %v5299
        %v5316 = vadd.s32 %v5311, %v5313
        %vm5317 = vc.u32 %v5311, %v5313
        %v5318 = vadd.s32 %v5314, 1
        %v5319 = vsel %vm5317, %v5318, %v5314
        %v5320 = vadd.s32 %v5315, %v5319
        %v5321 = vadd.s32 %v5320, 536870912
        %v5322 = vshrl.u32 %v5321, 30
        %v5323 = vshll.u32 %v5322, 30
        %v5324 = vsub.s32 %v5320, %v5323
        %vm5325 = vcmp.lt.s32.totalorder %v5324, 0
        %v5326 = vsub.s32 0, %v5324
        %v5327 = vsel %vm5325, %v5326, %v5324
        %v5328 = vclz %v5327
        %v5329 = vsub.s32 %v5328, 2
        %vm5330 = vcmp.gt.s32.totalorder 0, %v5329
        %v5331 = vsel %vm5330, 0, %v5329
        %v5332 = vsub.s32 32, %v5331
        %v5333 = vshll.u32 %v5324, %v5331
        %v5334 = vshrl.u32 %v5316, %v5332
        %v5335 = vor.u32 %v5333, %v5334
        %v5336 = vsub.s32 4294967266, %v5331
        %v5337 = vadd.s32 %v5336, 127
        %v5338 = vshll.u32 %v5337, 23
        %v5339 = vor.u32 4788187, %v5338
        %v5340 = vand.u32 2147483647, %v5339
        %v5342 = vcvt.s32.f32 %v5335
        %v5343 = vmul.f32 %v5342, %v5340
        %v5344 = vxor.u32 %v5343, 2147483648
        %v5345 = vsel %vm5262, %v5344, %v5343
        %v5346 = vsub.s32 4, %v5322
        %v5347 = vsel %vm5262, %v5346, %v5322
        %v5348 = vsel %vm5261, %v745, %v5345
        %v5349 = vsel %vm5261, 0, %v5347
        %v5350 = vcosq.f32.pop %v5348
        %v5351 = vsinq.f32.pop %v5348
        %vm5352 = vweird.f32 %v745
        %v5353 = vand.u32 %v5349, 3
        %vm5354 = vcmp.lt.s32.totalorder %v5353, 2
        %vm5355 = vcmp.eq.s32.totalorder %v5353, 0
        %v5356 = vxor.u32 %v5351, 2147483648
        %v5357 = vsel %vm5355, %v5350, %v5356
        %vm5358 = vcmp.eq.s32.totalorder %v5353, 2
        %v5359 = vxor.u32 %v5350, 2147483648
        %v5360 = vsel %vm5358, %v5359, %v5351
        %v5361 = vsel %vm5354, %v5357, %v5360
        %v5362 = vsel %vm5352, nan, %v5361
        %v5363 = vand.u32 2147483647, %v746
        %vm5364 = vcmp.le.f32.partialorder %v5363, 0.7853982
        %vm5365 = vcmp.lt.s32.totalorder %v746, 0
        %v5366 = vand.u32 %v746, 2139095040
        %v5367 = vshrl.u32 %v5366, 23
        %v5368 = vsub.s32 %v5367, 127
        %v5369 = vand.u32 2147483647, %v746
        %v5370 = vand.u32 %v5369, 8388607
        %v5371 = vor.u32 %v5370, 8388608
        %v5372 = vsub.s32 0, %v5371
        %v5373 = vadd.s32 %v5368, 1
        %vm5374 = vcmp.gt.s32.totalorder %v5373, 0
        %v5375 = vsel %vm5374, %v5373, 0
        %v5376 = vshrl.u32 %v5375, 5
        %v5377 = vand.u32 %v5375, 31
        %v5378 = vsub.s32 32, %v5377
        %v5379 = vshrl.u32 683565275, %v5378
        %v5380 = vshll.u32 683565275, %v5377
        %v5381 = vshrl.u32 2475754826, %v5378
        %v5382 = vor.u32 %v5380, %v5381
        %v5383 = vshll.u32 2475754826, %v5377
        %v5384 = vshrl.u32 2131351028, %v5378
        %v5385 = vor.u32 %v5383, %v5384
        %v5386 = vshll.u32 2131351028, %v5377
        %v5387 = vshrl.u32 2102212464, %v5378
        %v5388 = vor.u32 %v5386, %v5387
        %v5389 = vshll.u32 2102212464, %v5377
        %v5390 = vshrl.u32 920167782, %v5378
        %v5391 = vor.u32 %v5389, %v5390
        %v5392 = vshll.u32 920167782, %v5377
        %v5393 = vshrl.u32 1326507024, %v5378
        %v5394 = vor.u32 %v5392, %v5393
        %vm5395 = vcmp.lt.s32.totalorder %v5376, 1
        %vm5396 = vcmp.lt.s32.totalorder %v5376, 2
        %vm5397 = vcmp.lt.s32.totalorder %v5376, 3
        %vm5398 = vcmp.lt.s32.totalorder %v5376, 4
        %v5399 = vsel %vm5395, %v5379, %v5382
        %v5400 = vsel %vm5398, %v5388, 2102212464
        %v5401 = vsel %vm5397, %v5385, %v5400
        %v5402 = vsel %vm5396, %v5399, %v5401
        %v5403 = vsel %vm5395, %v5382, %v5385
        %v5404 = vsel %vm5398, %v5391, 920167782
        %v5405 = vsel %vm5397, %v5388, %v5404
        %v5406 = vsel %vm5396, %v5403, %v5405
        %v5407 = vsel %vm5395, %v5385, %v5388
        %v5408 = vsel %vm5398, %v5394, 1326507024
        %v5409 = vsel %vm5397, %v5391, %v5408
        %v5410 = vsel %vm5396, %v5407, %v5409
        %v5411 = vshll.u32 %v5371, 8
        %v5412 = vmul.u32.u64.compose %v5411, %v5410
        %v5413 = vextract.low.u32 %v5412
        %v5414 = vextract.high.u32 %v5412
        %v5415 = vmul.u32.u64.compose %v5411, %v5406
        %v5416 = vextract.low.u32 %v5415
        %v5417 = vextract.high.u32 %v5415
        %v5418 = vmul.u32 %v5411, %v5402
        %v5419 = vadd.s32 %v5414, %v5416
        %vm5420 = vc.u32 %v5414, %v5416
        %v5421 = vadd.s32 %v5417, 1
        %v5422 = vsel %vm5420, %v5421, %v5417
        %v5423 = vadd.s32 %v5418, %v5422
        %v5424 = vadd.s32 %v5423, 536870912
        %v5425 = vshrl.u32 %v5424, 30
        %v5426 = vshll.u32 %v5425, 30
        %v5427 = vsub.s32 %v5423, %v5426
        %vm5428 = vcmp.lt.s32.totalorder %v5427, 0
        %v5429 = vsub.s32 0, %v5427
        %v5430 = vsel %vm5428, %v5429, %v5427
        %v5431 = vclz %v5430
        %v5432 = vsub.s32 %v5431, 2
        %vm5433 = vcmp.gt.s32.totalorder 0, %v5432
        %v5434 = vsel %vm5433, 0, %v5432
        %v5435 = vsub.s32 32, %v5434
        %v5436 = vshll.u32 %v5427, %v5434
        %v5437 = vshrl.u32 %v5419, %v5435
        %v5438 = vor.u32 %v5436, %v5437
        %v5439 = vsub.s32 4294967266, %v5434
        %v5440 = vadd.s32 %v5439, 127
        %v5441 = vshll.u32 %v5440, 23
        %v5442 = vor.u32 4788187, %v5441
        %v5443 = vand.u32 2147483647, %v5442
        %v5445 = vcvt.s32.f32 %v5438
        %v5446 = vmul.f32 %v5445, %v5443
        %v5447 = vxor.u32 %v5446, 2147483648
        %v5448 = vsel %vm5365, %v5447, %v5446
        %v5449 = vsub.s32 4, %v5425
        %v5450 = vsel %vm5365, %v5449, %v5425
        %v5451 = vsel %vm5364, %v746, %v5448
        %v5452 = vsel %vm5364, 0, %v5450
        %v5453 = vcosq.f32.pop %v5451
        %v5454 = vsinq.f32.pop %v5451
        %vm5455 = vweird.f32 %v746
        %v5456 = vand.u32 %v5452, 3
        %vm5457 = vcmp.lt.s32.totalorder %v5456, 2
        %vm5458 = vcmp.eq.s32.totalorder %v5456, 0
        %v5459 = vxor.u32 %v5454, 2147483648
        %v5460 = vsel %vm5458, %v5453, %v5459
        %vm5461 = vcmp.eq.s32.totalorder %v5456, 2
        %v5462 = vxor.u32 %v5453, 2147483648
        %v5463 = vsel %vm5461, %v5462, %v5454
        %v5464 = vsel %vm5457, %v5460, %v5463
        %v5465 = vsel %vm5455, nan, %v5464
        %v5466 = vand.u32 2147483647, %v747
        %vm5467 = vcmp.le.f32.partialorder %v5466, 0.7853982
        %vm5468 = vcmp.lt.s32.totalorder %v747, 0
        %v5469 = vand.u32 %v747, 2139095040
        %v5470 = vshrl.u32 %v5469, 23
        %v5471 = vsub.s32 %v5470, 127
        %v5472 = vand.u32 2147483647, %v747
        %v5473 = vand.u32 %v5472, 8388607
        %v5474 = vor.u32 %v5473, 8388608
        %v5475 = vsub.s32 0, %v5474
        %v5476 = vadd.s32 %v5471, 1
        %vm5477 = vcmp.gt.s32.totalorder %v5476, 0
        %v5478 = vsel %vm5477, %v5476, 0
        %v5479 = vshrl.u32 %v5478, 5
        %v5480 = vand.u32 %v5478, 31
        %v5481 = vsub.s32 32, %v5480
        %v5482 = vshrl.u32 683565275, %v5481
        %v5483 = vshll.u32 683565275, %v5480
        %v5484 = vshrl.u32 2475754826, %v5481
        %v5485 = vor.u32 %v5483, %v5484
        %v5486 = vshll.u32 2475754826, %v5480
        %v5487 = vshrl.u32 2131351028, %v5481
        %v5488 = vor.u32 %v5486, %v5487
        %v5489 = vshll.u32 2131351028, %v5480
        %v5490 = vshrl.u32 2102212464, %v5481
        %v5491 = vor.u32 %v5489, %v5490
        %v5492 = vshll.u32 2102212464, %v5480
        %v5493 = vshrl.u32 920167782, %v5481
        %v5494 = vor.u32 %v5492, %v5493
        %v5495 = vshll.u32 920167782, %v5480
        %v5496 = vshrl.u32 1326507024, %v5481
        %v5497 = vor.u32 %v5495, %v5496
        %vm5498 = vcmp.lt.s32.totalorder %v5479, 1
        %vm5499 = vcmp.lt.s32.totalorder %v5479, 2
        %vm5500 = vcmp.lt.s32.totalorder %v5479, 3
        %vm5501 = vcmp.lt.s32.totalorder %v5479, 4
        %v5502 = vsel %vm5498, %v5482, %v5485
        %v5503 = vsel %vm5501, %v5491, 2102212464
        %v5504 = vsel %vm5500, %v5488, %v5503
        %v5505 = vsel %vm5499, %v5502, %v5504
        %v5506 = vsel %vm5498, %v5485, %v5488
        %v5507 = vsel %vm5501, %v5494, 920167782
        %v5508 = vsel %vm5500, %v5491, %v5507
        %v5509 = vsel %vm5499, %v5506, %v5508
        %v5510 = vsel %vm5498, %v5488, %v5491
        %v5511 = vsel %vm5501, %v5497, 1326507024
        %v5512 = vsel %vm5500, %v5494, %v5511
        %v5513 = vsel %vm5499, %v5510, %v5512
        %v5514 = vshll.u32 %v5474, 8
        %v5515 = vmul.u32.u64.compose %v5514, %v5513
        %v5516 = vextract.low.u32 %v5515
        %v5517 = vextract.high.u32 %v5515
        %v5518 = vmul.u32.u64.compose %v5514, %v5509
        %v5519 = vextract.low.u32 %v5518
        %v5520 = vextract.high.u32 %v5518
        %v5521 = vmul.u32 %v5514, %v5505
        %v5522 = vadd.s32 %v5517, %v5519
        %vm5523 = vc.u32 %v5517, %v5519
        %v5524 = vadd.s32 %v5520, 1
        %v5525 = vsel %vm5523, %v5524, %v5520
        %v5526 = vadd.s32 %v5521, %v5525
        %v5527 = vadd.s32 %v5526, 536870912
        %v5528 = vshrl.u32 %v5527, 30
        %v5529 = vshll.u32 %v5528, 30
        %v5530 = vsub.s32 %v5526, %v5529
        %vm5531 = vcmp.lt.s32.totalorder %v5530, 0
        %v5532 = vsub.s32 0, %v5530
        %v5533 = vsel %vm5531, %v5532, %v5530
        %v5534 = vclz %v5533
        %v5535 = vsub.s32 %v5534, 2
        %vm5536 = vcmp.gt.s32.totalorder 0, %v5535
        %v5537 = vsel %vm5536, 0, %v5535
        %v5538 = vsub.s32 32, %v5537
        %v5539 = vshll.u32 %v5530, %v5537
        %v5540 = vshrl.u32 %v5522, %v5538
        %v5541 = vor.u32 %v5539, %v5540
        %v5542 = vsub.s32 4294967266, %v5537
        %v5543 = vadd.s32 %v5542, 127
        %v5544 = vshll.u32 %v5543, 23
        %v5545 = vor.u32 4788187, %v5544
        %v5546 = vand.u32 2147483647, %v5545
        %v5548 = vcvt.s32.f32 %v5541
        %v5549 = vmul.f32 %v5548, %v5546
        %v5550 = vxor.u32 %v5549, 2147483648
        %v5551 = vsel %vm5468, %v5550, %v5549
        %v5552 = vsub.s32 4, %v5528
        %v5553 = vsel %vm5468, %v5552, %v5528
        %v5554 = vsel %vm5467, %v747, %v5551
        %v5555 = vsel %vm5467, 0, %v5553
        %v5556 = vcosq.f32.pop %v5554
        %v5557 = vsinq.f32.pop %v5554
        %vm5558 = vweird.f32 %v747
        %v5559 = vand.u32 %v5555, 3
        %vm5560 = vcmp.lt.s32.totalorder %v5559, 2
        %vm5561 = vcmp.eq.s32.totalorder %v5559, 0
        %v5562 = vxor.u32 %v5557, 2147483648
        %v5563 = vsel %vm5561, %v5556, %v5562
        %vm5564 = vcmp.eq.s32.totalorder %v5559, 2
        %v5565 = vxor.u32 %v5556, 2147483648
        %v5566 = vsel %vm5564, %v5565, %v5557
        %v5567 = vsel %vm5560, %v5563, %v5566
        %v5568 = vsel %vm5558, nan, %v5567
        %v5569 = vand.u32 2147483647, %v748
        %vm5570 = vcmp.le.f32.partialorder %v5569, 0.7853982
        %vm5571 = vcmp.lt.s32.totalorder %v748, 0
        %v5572 = vand.u32 %v748, 2139095040
        %v5573 = vshrl.u32 %v5572, 23
        %v5574 = vsub.s32 %v5573, 127
        %v5575 = vand.u32 2147483647, %v748
        %v5576 = vand.u32 %v5575, 8388607
        %v5577 = vor.u32 %v5576, 8388608
        %v5578 = vsub.s32 0, %v5577
        %v5579 = vadd.s32 %v5574, 1
        %vm5580 = vcmp.gt.s32.totalorder %v5579, 0
        %v5581 = vsel %vm5580, %v5579, 0
        %v5582 = vshrl.u32 %v5581, 5
        %v5583 = vand.u32 %v5581, 31
        %v5584 = vsub.s32 32, %v5583
        %v5585 = vshrl.u32 683565275, %v5584
        %v5586 = vshll.u32 683565275, %v5583
        %v5587 = vshrl.u32 2475754826, %v5584
        %v5588 = vor.u32 %v5586, %v5587
        %v5589 = vshll.u32 2475754826, %v5583
        %v5590 = vshrl.u32 2131351028, %v5584
        %v5591 = vor.u32 %v5589, %v5590
        %v5592 = vshll.u32 2131351028, %v5583
        %v5593 = vshrl.u32 2102212464, %v5584
        %v5594 = vor.u32 %v5592, %v5593
        %v5595 = vshll.u32 2102212464, %v5583
        %v5596 = vshrl.u32 920167782, %v5584
        %v5597 = vor.u32 %v5595, %v5596
        %v5598 = vshll.u32 920167782, %v5583
        %v5599 = vshrl.u32 1326507024, %v5584
        %v5600 = vor.u32 %v5598, %v5599
        %vm5601 = vcmp.lt.s32.totalorder %v5582, 1
        %vm5602 = vcmp.lt.s32.totalorder %v5582, 2
        %vm5603 = vcmp.lt.s32.totalorder %v5582, 3
        %vm5604 = vcmp.lt.s32.totalorder %v5582, 4
        %v5605 = vsel %vm5601, %v5585, %v5588
        %v5606 = vsel %vm5604, %v5594, 2102212464
        %v5607 = vsel %vm5603, %v5591, %v5606
        %v5608 = vsel %vm5602, %v5605, %v5607
        %v5609 = vsel %vm5601, %v5588, %v5591
        %v5610 = vsel %vm5604, %v5597, 920167782
        %v5611 = vsel %vm5603, %v5594, %v5610
        %v5612 = vsel %vm5602, %v5609, %v5611
        %v5613 = vsel %vm5601, %v5591, %v5594
        %v5614 = vsel %vm5604, %v5600, 1326507024
        %v5615 = vsel %vm5603, %v5597, %v5614
        %v5616 = vsel %vm5602, %v5613, %v5615
        %v5617 = vshll.u32 %v5577, 8
        %v5618 = vmul.u32.u64.compose %v5617, %v5616
        %v5619 = vextract.low.u32 %v5618
        %v5620 = vextract.high.u32 %v5618
        %v5621 = vmul.u32.u64.compose %v5617, %v5612
        %v5622 = vextract.low.u32 %v5621
        %v5623 = vextract.high.u32 %v5621
        %v5624 = vmul.u32 %v5617, %v5608
        %v5625 = vadd.s32 %v5620, %v5622
        %vm5626 = vc.u32 %v5620, %v5622
        %v5627 = vadd.s32 %v5623, 1
        %v5628 = vsel %vm5626, %v5627, %v5623
        %v5629 = vadd.s32 %v5624, %v5628
        %v5630 = vadd.s32 %v5629, 536870912
        %v5631 = vshrl.u32 %v5630, 30
        %v5632 = vshll.u32 %v5631, 30
        %v5633 = vsub.s32 %v5629, %v5632
        %vm5634 = vcmp.lt.s32.totalorder %v5633, 0
        %v5635 = vsub.s32 0, %v5633
        %v5636 = vsel %vm5634, %v5635, %v5633
        %v5637 = vclz %v5636
        %v5638 = vsub.s32 %v5637, 2
        %vm5639 = vcmp.gt.s32.totalorder 0, %v5638
        %v5640 = vsel %vm5639, 0, %v5638
        %v5641 = vsub.s32 32, %v5640
        %v5642 = vshll.u32 %v5633, %v5640
        %v5643 = vshrl.u32 %v5625, %v5641
        %v5644 = vor.u32 %v5642, %v5643
        %v5645 = vsub.s32 4294967266, %v5640
        %v5646 = vadd.s32 %v5645, 127
        %v5647 = vshll.u32 %v5646, 23
        %v5648 = vor.u32 4788187, %v5647
        %v5649 = vand.u32 2147483647, %v5648
        %v5651 = vcvt.s32.f32 %v5644
        %v5652 = vmul.f32 %v5651, %v5649
        %v5653 = vxor.u32 %v5652, 2147483648
        %v5654 = vsel %vm5571, %v5653, %v5652
        %v5655 = vsub.s32 4, %v5631
        %v5656 = vsel %vm5571, %v5655, %v5631
        %v5657 = vsel %vm5570, %v748, %v5654
        %v5658 = vsel %vm5570, 0, %v5656
        %v5659 = vcosq.f32.pop %v5657
        %v5660 = vsinq.f32.pop %v5657
        %vm5661 = vweird.f32 %v748
        %v5662 = vand.u32 %v5658, 3
        %vm5663 = vcmp.lt.s32.totalorder %v5662, 2
        %vm5664 = vcmp.eq.s32.totalorder %v5662, 0
        %v5665 = vxor.u32 %v5660, 2147483648
        %v5666 = vsel %vm5664, %v5659, %v5665
        %vm5667 = vcmp.eq.s32.totalorder %v5662, 2
        %v5668 = vxor.u32 %v5659, 2147483648
        %v5669 = vsel %vm5667, %v5668, %v5660
        %v5670 = vsel %vm5663, %v5666, %v5669
        %v5671 = vsel %vm5661, nan, %v5670
        %v5672 = vand.u32 2147483647, %v749
        %vm5673 = vcmp.le.f32.partialorder %v5672, 0.7853982
        %vm5674 = vcmp.lt.s32.totalorder %v749, 0
        %v5675 = vand.u32 %v749, 2139095040
        %v5676 = vshrl.u32 %v5675, 23
        %v5677 = vsub.s32 %v5676, 127
        %v5678 = vand.u32 2147483647, %v749
        %v5679 = vand.u32 %v5678, 8388607
        %v5680 = vor.u32 %v5679, 8388608
        %v5681 = vsub.s32 0, %v5680
        %v5682 = vadd.s32 %v5677, 1
        %vm5683 = vcmp.gt.s32.totalorder %v5682, 0
        %v5684 = vsel %vm5683, %v5682, 0
        %v5685 = vshrl.u32 %v5684, 5
        %v5686 = vand.u32 %v5684, 31
        %v5687 = vsub.s32 32, %v5686
        %v5688 = vshrl.u32 683565275, %v5687
        %v5689 = vshll.u32 683565275, %v5686
        %v5690 = vshrl.u32 2475754826, %v5687
        %v5691 = vor.u32 %v5689, %v5690
        %v5692 = vshll.u32 2475754826, %v5686
        %v5693 = vshrl.u32 2131351028, %v5687
        %v5694 = vor.u32 %v5692, %v5693
        %v5695 = vshll.u32 2131351028, %v5686
        %v5696 = vshrl.u32 2102212464, %v5687
        %v5697 = vor.u32 %v5695, %v5696
        %v5698 = vshll.u32 2102212464, %v5686
        %v5699 = vshrl.u32 920167782, %v5687
        %v5700 = vor.u32 %v5698, %v5699
        %v5701 = vshll.u32 920167782, %v5686
        %v5702 = vshrl.u32 1326507024, %v5687
        %v5703 = vor.u32 %v5701, %v5702
        %vm5704 = vcmp.lt.s32.totalorder %v5685, 1
        %vm5705 = vcmp.lt.s32.totalorder %v5685, 2
        %vm5706 = vcmp.lt.s32.totalorder %v5685, 3
        %vm5707 = vcmp.lt.s32.totalorder %v5685, 4
        %v5708 = vsel %vm5704, %v5688, %v5691
        %v5709 = vsel %vm5707, %v5697, 2102212464
        %v5710 = vsel %vm5706, %v5694, %v5709
        %v5711 = vsel %vm5705, %v5708, %v5710
        %v5712 = vsel %vm5704, %v5691, %v5694
        %v5713 = vsel %vm5707, %v5700, 920167782
        %v5714 = vsel %vm5706, %v5697, %v5713
        %v5715 = vsel %vm5705, %v5712, %v5714
        %v5716 = vsel %vm5704, %v5694, %v5697
        %v5717 = vsel %vm5707, %v5703, 1326507024
        %v5718 = vsel %vm5706, %v5700, %v5717
        %v5719 = vsel %vm5705, %v5716, %v5718
        %v5720 = vshll.u32 %v5680, 8
        %v5721 = vmul.u32.u64.compose %v5720, %v5719
        %v5722 = vextract.low.u32 %v5721
        %v5723 = vextract.high.u32 %v5721
        %v5724 = vmul.u32.u64.compose %v5720, %v5715
        %v5725 = vextract.low.u32 %v5724
        %v5726 = vextract.high.u32 %v5724
        %v5727 = vmul.u32 %v5720, %v5711
        %v5728 = vadd.s32 %v5723, %v5725
        %vm5729 = vc.u32 %v5723, %v5725
        %v5730 = vadd.s32 %v5726, 1
        %v5731 = vsel %vm5729, %v5730, %v5726
        %v5732 = vadd.s32 %v5727, %v5731
        %v5733 = vadd.s32 %v5732, 536870912
        %v5734 = vshrl.u32 %v5733, 30
        %v5735 = vshll.u32 %v5734, 30
        %v5736 = vsub.s32 %v5732, %v5735
        %vm5737 = vcmp.lt.s32.totalorder %v5736, 0
        %v5738 = vsub.s32 0, %v5736
        %v5739 = vsel %vm5737, %v5738, %v5736
        %v5740 = vclz %v5739
        %v5741 = vsub.s32 %v5740, 2
        %vm5742 = vcmp.gt.s32.totalorder 0, %v5741
        %v5743 = vsel %vm5742, 0, %v5741
        %v5744 = vsub.s32 32, %v5743
        %v5745 = vshll.u32 %v5736, %v5743
        %v5746 = vshrl.u32 %v5728, %v5744
        %v5747 = vor.u32 %v5745, %v5746
        %v5748 = vsub.s32 4294967266, %v5743
        %v5749 = vadd.s32 %v5748, 127
        %v5750 = vshll.u32 %v5749, 23
        %v5751 = vor.u32 4788187, %v5750
        %v5752 = vand.u32 2147483647, %v5751
        %v5754 = vcvt.s32.f32 %v5747
        %v5755 = vmul.f32 %v5754, %v5752
        %v5756 = vxor.u32 %v5755, 2147483648
        %v5757 = vsel %vm5674, %v5756, %v5755
        %v5758 = vsub.s32 4, %v5734
        %v5759 = vsel %vm5674, %v5758, %v5734
        %v5760 = vsel %vm5673, %v749, %v5757
        %v5761 = vsel %vm5673, 0, %v5759
        %v5762 = vcosq.f32.pop %v5760
        %v5763 = vsinq.f32.pop %v5760
        %vm5764 = vweird.f32 %v749
        %v5765 = vand.u32 %v5761, 3
        %vm5766 = vcmp.lt.s32.totalorder %v5765, 2
        %vm5767 = vcmp.eq.s32.totalorder %v5765, 0
        %v5768 = vxor.u32 %v5763, 2147483648
        %v5769 = vsel %vm5767, %v5762, %v5768
        %vm5770 = vcmp.eq.s32.totalorder %v5765, 2
        %v5771 = vxor.u32 %v5762, 2147483648
        %v5772 = vsel %vm5770, %v5771, %v5763
        %v5773 = vsel %vm5766, %v5769, %v5772
        %v5774 = vsel %vm5764, nan, %v5773
        %v5775 = vand.u32 2147483647, %v750
        %vm5776 = vcmp.le.f32.partialorder %v5775, 0.7853982
        %vm5777 = vcmp.lt.s32.totalorder %v750, 0
        %v5778 = vand.u32 %v750, 2139095040
        %v5779 = vshrl.u32 %v5778, 23
        %v5780 = vsub.s32 %v5779, 127
        %v5781 = vand.u32 2147483647, %v750
        %v5782 = vand.u32 %v5781, 8388607
        %v5783 = vor.u32 %v5782, 8388608
        %v5784 = vsub.s32 0, %v5783
        %v5785 = vadd.s32 %v5780, 1
        %vm5786 = vcmp.gt.s32.totalorder %v5785, 0
        %v5787 = vsel %vm5786, %v5785, 0
        %v5788 = vshrl.u32 %v5787, 5
        %v5789 = vand.u32 %v5787, 31
        %v5790 = vsub.s32 32, %v5789
        %v5791 = vshrl.u32 683565275, %v5790
        %v5792 = vshll.u32 683565275, %v5789
        %v5793 = vshrl.u32 2475754826, %v5790
        %v5794 = vor.u32 %v5792, %v5793
        %v5795 = vshll.u32 2475754826, %v5789
        %v5796 = vshrl.u32 2131351028, %v5790
        %v5797 = vor.u32 %v5795, %v5796
        %v5798 = vshll.u32 2131351028, %v5789
        %v5799 = vshrl.u32 2102212464, %v5790
        %v5800 = vor.u32 %v5798, %v5799
        %v5801 = vshll.u32 2102212464, %v5789
        %v5802 = vshrl.u32 920167782, %v5790
        %v5803 = vor.u32 %v5801, %v5802
        %v5804 = vshll.u32 920167782, %v5789
        %v5805 = vshrl.u32 1326507024, %v5790
        %v5806 = vor.u32 %v5804, %v5805
        %vm5807 = vcmp.lt.s32.totalorder %v5788, 1
        %vm5808 = vcmp.lt.s32.totalorder %v5788, 2
        %vm5809 = vcmp.lt.s32.totalorder %v5788, 3
        %vm5810 = vcmp.lt.s32.totalorder %v5788, 4
        %v5811 = vsel %vm5807, %v5791, %v5794
        %v5812 = vsel %vm5810, %v5800, 2102212464
        %v5813 = vsel %vm5809, %v5797, %v5812
        %v5814 = vsel %vm5808, %v5811, %v5813
        %v5815 = vsel %vm5807, %v5794, %v5797
        %v5816 = vsel %vm5810, %v5803, 920167782
        %v5817 = vsel %vm5809, %v5800, %v5816
        %v5818 = vsel %vm5808, %v5815, %v5817
        %v5819 = vsel %vm5807, %v5797, %v5800
        %v5820 = vsel %vm5810, %v5806, 1326507024
        %v5821 = vsel %vm5809, %v5803, %v5820
        %v5822 = vsel %vm5808, %v5819, %v5821
        %v5823 = vshll.u32 %v5783, 8
        %v5824 = vmul.u32.u64.compose %v5823, %v5822
        %v5825 = vextract.low.u32 %v5824
        %v5826 = vextract.high.u32 %v5824
        %v5827 = vmul.u32.u64.compose %v5823, %v5818
        %v5828 = vextract.low.u32 %v5827
        %v5829 = vextract.high.u32 %v5827
        %v5830 = vmul.u32 %v5823, %v5814
        %v5831 = vadd.s32 %v5826, %v5828
        %vm5832 = vc.u32 %v5826, %v5828
        %v5833 = vadd.s32 %v5829, 1
        %v5834 = vsel %vm5832, %v5833, %v5829
        %v5835 = vadd.s32 %v5830, %v5834
        %v5836 = vadd.s32 %v5835, 536870912
        %v5837 = vshrl.u32 %v5836, 30
        %v5838 = vshll.u32 %v5837, 30
        %v5839 = vsub.s32 %v5835, %v5838
        %vm5840 = vcmp.lt.s32.totalorder %v5839, 0
        %v5841 = vsub.s32 0, %v5839
        %v5842 = vsel %vm5840, %v5841, %v5839
        %v5843 = vclz %v5842
        %v5844 = vsub.s32 %v5843, 2
        %vm5845 = vcmp.gt.s32.totalorder 0, %v5844
        %v5846 = vsel %vm5845, 0, %v5844
        %v5847 = vsub.s32 32, %v5846
        %v5848 = vshll.u32 %v5839, %v5846
        %v5849 = vshrl.u32 %v5831, %v5847
        %v5850 = vor.u32 %v5848, %v5849
        %v5851 = vsub.s32 4294967266, %v5846
        %v5852 = vadd.s32 %v5851, 127
        %v5853 = vshll.u32 %v5852, 23
        %v5854 = vor.u32 4788187, %v5853
        %v5855 = vand.u32 2147483647, %v5854
        %v5857 = vcvt.s32.f32 %v5850
        %v5858 = vmul.f32 %v5857, %v5855
        %v5859 = vxor.u32 %v5858, 2147483648
        %v5860 = vsel %vm5777, %v5859, %v5858
        %v5861 = vsub.s32 4, %v5837
        %v5862 = vsel %vm5777, %v5861, %v5837
        %v5863 = vsel %vm5776, %v750, %v5860
        %v5864 = vsel %vm5776, 0, %v5862
        %v5865 = vcosq.f32.pop %v5863
        %v5866 = vsinq.f32.pop %v5863
        %vm5867 = vweird.f32 %v750
        %v5868 = vand.u32 %v5864, 3
        %vm5869 = vcmp.lt.s32.totalorder %v5868, 2
        %vm5870 = vcmp.eq.s32.totalorder %v5868, 0
        %v5871 = vxor.u32 %v5866, 2147483648
        %v5872 = vsel %vm5870, %v5865, %v5871
        %vm5873 = vcmp.eq.s32.totalorder %v5868, 2
        %v5874 = vxor.u32 %v5865, 2147483648
        %v5875 = vsel %vm5873, %v5874, %v5866
        %v5876 = vsel %vm5869, %v5872, %v5875
        %v5877 = vsel %vm5867, nan, %v5876
        %v5878 = vand.u32 2147483647, %v751
        %vm5879 = vcmp.le.f32.partialorder %v5878, 0.7853982
        %vm5880 = vcmp.lt.s32.totalorder %v751, 0
        %v5881 = vand.u32 %v751, 2139095040
        %v5882 = vshrl.u32 %v5881, 23
        %v5883 = vsub.s32 %v5882, 127
        %v5884 = vand.u32 2147483647, %v751
        %v5885 = vand.u32 %v5884, 8388607
        %v5886 = vor.u32 %v5885, 8388608
        %v5887 = vsub.s32 0, %v5886
        %v5888 = vadd.s32 %v5883, 1
        %vm5889 = vcmp.gt.s32.totalorder %v5888, 0
        %v5890 = vsel %vm5889, %v5888, 0
        %v5891 = vshrl.u32 %v5890, 5
        %v5892 = vand.u32 %v5890, 31
        %v5893 = vsub.s32 32, %v5892
        %v5894 = vshrl.u32 683565275, %v5893
        %v5895 = vshll.u32 683565275, %v5892
        %v5896 = vshrl.u32 2475754826, %v5893
        %v5897 = vor.u32 %v5895, %v5896
        %v5898 = vshll.u32 2475754826, %v5892
        %v5899 = vshrl.u32 2131351028, %v5893
        %v5900 = vor.u32 %v5898, %v5899
        %v5901 = vshll.u32 2131351028, %v5892
        %v5902 = vshrl.u32 2102212464, %v5893
        %v5903 = vor.u32 %v5901, %v5902
        %v5904 = vshll.u32 2102212464, %v5892
        %v5905 = vshrl.u32 920167782, %v5893
        %v5906 = vor.u32 %v5904, %v5905
        %v5907 = vshll.u32 920167782, %v5892
        %v5908 = vshrl.u32 1326507024, %v5893
        %v5909 = vor.u32 %v5907, %v5908
        %vm5910 = vcmp.lt.s32.totalorder %v5891, 1
        %vm5911 = vcmp.lt.s32.totalorder %v5891, 2
        %vm5912 = vcmp.lt.s32.totalorder %v5891, 3
        %vm5913 = vcmp.lt.s32.totalorder %v5891, 4
        %v5914 = vsel %vm5910, %v5894, %v5897
        %v5915 = vsel %vm5913, %v5903, 2102212464
        %v5916 = vsel %vm5912, %v5900, %v5915
        %v5917 = vsel %vm5911, %v5914, %v5916
        %v5918 = vsel %vm5910, %v5897, %v5900
        %v5919 = vsel %vm5913, %v5906, 920167782
        %v5920 = vsel %vm5912, %v5903, %v5919
        %v5921 = vsel %vm5911, %v5918, %v5920
        %v5922 = vsel %vm5910, %v5900, %v5903
        %v5923 = vsel %vm5913, %v5909, 1326507024
        %v5924 = vsel %vm5912, %v5906, %v5923
        %v5925 = vsel %vm5911, %v5922, %v5924
        %v5926 = vshll.u32 %v5886, 8
        %v5927 = vmul.u32.u64.compose %v5926, %v5925
        %v5928 = vextract.low.u32 %v5927
        %v5929 = vextract.high.u32 %v5927
        %v5930 = vmul.u32.u64.compose %v5926, %v5921
        %v5931 = vextract.low.u32 %v5930
        %v5932 = vextract.high.u32 %v5930
        %v5933 = vmul.u32 %v5926, %v5917
        %v5934 = vadd.s32 %v5929, %v5931
        %vm5935 = vc.u32 %v5929, %v5931
        %v5936 = vadd.s32 %v5932, 1
        %v5937 = vsel %vm5935, %v5936, %v5932
        %v5938 = vadd.s32 %v5933, %v5937
        %v5939 = vadd.s32 %v5938, 536870912
        %v5940 = vshrl.u32 %v5939, 30
        %v5941 = vshll.u32 %v5940, 30
        %v5942 = vsub.s32 %v5938, %v5941
        %vm5943 = vcmp.lt.s32.totalorder %v5942, 0
        %v5944 = vsub.s32 0, %v5942
        %v5945 = vsel %vm5943, %v5944, %v5942
        %v5946 = vclz %v5945
        %v5947 = vsub.s32 %v5946, 2
        %vm5948 = vcmp.gt.s32.totalorder 0, %v5947
        %v5949 = vsel %vm5948, 0, %v5947
        %v5950 = vsub.s32 32, %v5949
        %v5951 = vshll.u32 %v5942, %v5949
        %v5952 = vshrl.u32 %v5934, %v5950
        %v5953 = vor.u32 %v5951, %v5952
        %v5954 = vsub.s32 4294967266, %v5949
        %v5955 = vadd.s32 %v5954, 127
        %v5956 = vshll.u32 %v5955, 23
        %v5957 = vor.u32 4788187, %v5956
        %v5958 = vand.u32 2147483647, %v5957
        %v5960 = vcvt.s32.f32 %v5953
        %v5961 = vmul.f32 %v5960, %v5958
        %v5962 = vxor.u32 %v5961, 2147483648
        %v5963 = vsel %vm5880, %v5962, %v5961
        %v5964 = vsub.s32 4, %v5940
        %v5965 = vsel %vm5880, %v5964, %v5940
        %v5966 = vsel %vm5879, %v751, %v5963
        %v5967 = vsel %vm5879, 0, %v5965
        %v5968 = vcosq.f32.pop %v5966
        %v5969 = vsinq.f32.pop %v5966
        %vm5970 = vweird.f32 %v751
        %v5971 = vand.u32 %v5967, 3
        %vm5972 = vcmp.lt.s32.totalorder %v5971, 2
        %vm5973 = vcmp.eq.s32.totalorder %v5971, 0
        %v5974 = vxor.u32 %v5969, 2147483648
        %v5975 = vsel %vm5973, %v5968, %v5974
        %vm5976 = vcmp.eq.s32.totalorder %v5971, 2
        %v5977 = vxor.u32 %v5968, 2147483648
        %v5978 = vsel %vm5976, %v5977, %v5969
        %v5979 = vsel %vm5972, %v5975, %v5978
        %v5980 = vsel %vm5970, nan, %v5979
        %v5981 = vand.u32 2147483647, %v752
        %vm5982 = vcmp.le.f32.partialorder %v5981, 0.7853982
        %vm5983 = vcmp.lt.s32.totalorder %v752, 0
        %v5984 = vand.u32 %v752, 2139095040
        %v5985 = vshrl.u32 %v5984, 23
        %v5986 = vsub.s32 %v5985, 127
        %v5987 = vand.u32 2147483647, %v752
        %v5988 = vand.u32 %v5987, 8388607
        %v5989 = vor.u32 %v5988, 8388608
        %v5990 = vsub.s32 0, %v5989
        %v5991 = vadd.s32 %v5986, 1
        %vm5992 = vcmp.gt.s32.totalorder %v5991, 0
        %v5993 = vsel %vm5992, %v5991, 0
        %v5994 = vshrl.u32 %v5993, 5
        %v5995 = vand.u32 %v5993, 31
        %v5996 = vsub.s32 32, %v5995
        %v5997 = vshrl.u32 683565275, %v5996
        %v5998 = vshll.u32 683565275, %v5995
        %v5999 = vshrl.u32 2475754826, %v5996
        %v6000 = vor.u32 %v5998, %v5999
        %v6001 = vshll.u32 2475754826, %v5995
        %v6002 = vshrl.u32 2131351028, %v5996
        %v6003 = vor.u32 %v6001, %v6002
        %v6004 = vshll.u32 2131351028, %v5995
        %v6005 = vshrl.u32 2102212464, %v5996
        %v6006 = vor.u32 %v6004, %v6005
        %v6007 = vshll.u32 2102212464, %v5995
        %v6008 = vshrl.u32 920167782, %v5996
        %v6009 = vor.u32 %v6007, %v6008
        %v6010 = vshll.u32 920167782, %v5995
        %v6011 = vshrl.u32 1326507024, %v5996
        %v6012 = vor.u32 %v6010, %v6011
        %vm6013 = vcmp.lt.s32.totalorder %v5994, 1
        %vm6014 = vcmp.lt.s32.totalorder %v5994, 2
        %vm6015 = vcmp.lt.s32.totalorder %v5994, 3
        %vm6016 = vcmp.lt.s32.totalorder %v5994, 4
        %v6017 = vsel %vm6013, %v5997, %v6000
        %v6018 = vsel %vm6016, %v6006, 2102212464
        %v6019 = vsel %vm6015, %v6003, %v6018
        %v6020 = vsel %vm6014, %v6017, %v6019
        %v6021 = vsel %vm6013, %v6000, %v6003
        %v6022 = vsel %vm6016, %v6009, 920167782
        %v6023 = vsel %vm6015, %v6006, %v6022
        %v6024 = vsel %vm6014, %v6021, %v6023
        %v6025 = vsel %vm6013, %v6003, %v6006
        %v6026 = vsel %vm6016, %v6012, 1326507024
        %v6027 = vsel %vm6015, %v6009, %v6026
        %v6028 = vsel %vm6014, %v6025, %v6027
        %v6029 = vshll.u32 %v5989, 8
        %v6030 = vmul.u32.u64.compose %v6029, %v6028
        %v6031 = vextract.low.u32 %v6030
        %v6032 = vextract.high.u32 %v6030
        %v6033 = vmul.u32.u64.compose %v6029, %v6024
        %v6034 = vextract.low.u32 %v6033
        %v6035 = vextract.high.u32 %v6033
        %v6036 = vmul.u32 %v6029, %v6020
        %v6037 = vadd.s32 %v6032, %v6034
        %vm6038 = vc.u32 %v6032, %v6034
        %v6039 = vadd.s32 %v6035, 1
        %v6040 = vsel %vm6038, %v6039, %v6035
        %v6041 = vadd.s32 %v6036, %v6040
        %v6042 = vadd.s32 %v6041, 536870912
        %v6043 = vshrl.u32 %v6042, 30
        %v6044 = vshll.u32 %v6043, 30
        %v6045 = vsub.s32 %v6041, %v6044
        %vm6046 = vcmp.lt.s32.totalorder %v6045, 0
        %v6047 = vsub.s32 0, %v6045
        %v6048 = vsel %vm6046, %v6047, %v6045
        %v6049 = vclz %v6048
        %v6050 = vsub.s32 %v6049, 2
        %vm6051 = vcmp.gt.s32.totalorder 0, %v6050
        %v6052 = vsel %vm6051, 0, %v6050
        %v6053 = vsub.s32 32, %v6052
        %v6054 = vshll.u32 %v6045, %v6052
        %v6055 = vshrl.u32 %v6037, %v6053
        %v6056 = vor.u32 %v6054, %v6055
        %v6057 = vsub.s32 4294967266, %v6052
        %v6058 = vadd.s32 %v6057, 127
        %v6059 = vshll.u32 %v6058, 23
        %v6060 = vor.u32 4788187, %v6059
        %v6061 = vand.u32 2147483647, %v6060
        %v6063 = vcvt.s32.f32 %v6056
        %v6064 = vmul.f32 %v6063, %v6061
        %v6065 = vxor.u32 %v6064, 2147483648
        %v6066 = vsel %vm5983, %v6065, %v6064
        %v6067 = vsub.s32 4, %v6043
        %v6068 = vsel %vm5983, %v6067, %v6043
        %v6069 = vsel %vm5982, %v752, %v6066
        %v6070 = vsel %vm5982, 0, %v6068
        %v6071 = vcosq.f32.pop %v6069
        %v6072 = vsinq.f32.pop %v6069
        %vm6073 = vweird.f32 %v752
        %v6074 = vand.u32 %v6070, 3
        %vm6075 = vcmp.lt.s32.totalorder %v6074, 2
        %vm6076 = vcmp.eq.s32.totalorder %v6074, 0
        %v6077 = vxor.u32 %v6072, 2147483648
        %v6078 = vsel %vm6076, %v6071, %v6077
        %vm6079 = vcmp.eq.s32.totalorder %v6074, 2
        %v6080 = vxor.u32 %v6071, 2147483648
        %v6081 = vsel %vm6079, %v6080, %v6072
        %v6082 = vsel %vm6075, %v6078, %v6081
        %v6083 = vsel %vm6073, nan, %v6082
        %v6084 = vand.u32 2147483647, %v753
        %vm6085 = vcmp.le.f32.partialorder %v6084, 0.7853982
        %vm6086 = vcmp.lt.s32.totalorder %v753, 0
        %v6087 = vand.u32 %v753, 2139095040
        %v6088 = vshrl.u32 %v6087, 23
        %v6089 = vsub.s32 %v6088, 127
        %v6090 = vand.u32 2147483647, %v753
        %v6091 = vand.u32 %v6090, 8388607
        %v6092 = vor.u32 %v6091, 8388608
        %v6093 = vsub.s32 0, %v6092
        %v6094 = vadd.s32 %v6089, 1
        %vm6095 = vcmp.gt.s32.totalorder %v6094, 0
        %v6096 = vsel %vm6095, %v6094, 0
        %v6097 = vshrl.u32 %v6096, 5
        %v6098 = vand.u32 %v6096, 31
        %v6099 = vsub.s32 32, %v6098
        %v6100 = vshrl.u32 683565275, %v6099
        %v6101 = vshll.u32 683565275, %v6098
        %v6102 = vshrl.u32 2475754826, %v6099
        %v6103 = vor.u32 %v6101, %v6102
        %v6104 = vshll.u32 2475754826, %v6098
        %v6105 = vshrl.u32 2131351028, %v6099
        %v6106 = vor.u32 %v6104, %v6105
        %v6107 = vshll.u32 2131351028, %v6098
        %v6108 = vshrl.u32 2102212464, %v6099
        %v6109 = vor.u32 %v6107, %v6108
        %v6110 = vshll.u32 2102212464, %v6098
        %v6111 = vshrl.u32 920167782, %v6099
        %v6112 = vor.u32 %v6110, %v6111
        %v6113 = vshll.u32 920167782, %v6098
        %v6114 = vshrl.u32 1326507024, %v6099
        %v6115 = vor.u32 %v6113, %v6114
        %vm6116 = vcmp.lt.s32.totalorder %v6097, 1
        %vm6117 = vcmp.lt.s32.totalorder %v6097, 2
        %vm6118 = vcmp.lt.s32.totalorder %v6097, 3
        %vm6119 = vcmp.lt.s32.totalorder %v6097, 4
        %v6120 = vsel %vm6116, %v6100, %v6103
        %v6121 = vsel %vm6119, %v6109, 2102212464
        %v6122 = vsel %vm6118, %v6106, %v6121
        %v6123 = vsel %vm6117, %v6120, %v6122
        %v6124 = vsel %vm6116, %v6103, %v6106
        %v6125 = vsel %vm6119, %v6112, 920167782
        %v6126 = vsel %vm6118, %v6109, %v6125
        %v6127 = vsel %vm6117, %v6124, %v6126
        %v6128 = vsel %vm6116, %v6106, %v6109
        %v6129 = vsel %vm6119, %v6115, 1326507024
        %v6130 = vsel %vm6118, %v6112, %v6129
        %v6131 = vsel %vm6117, %v6128, %v6130
        %v6132 = vshll.u32 %v6092, 8
        %v6133 = vmul.u32.u64.compose %v6132, %v6131
        %v6134 = vextract.low.u32 %v6133
        %v6135 = vextract.high.u32 %v6133
        %v6136 = vmul.u32.u64.compose %v6132, %v6127
        %v6137 = vextract.low.u32 %v6136
        %v6138 = vextract.high.u32 %v6136
        %v6139 = vmul.u32 %v6132, %v6123
        %v6140 = vadd.s32 %v6135, %v6137
        %vm6141 = vc.u32 %v6135, %v6137
        %v6142 = vadd.s32 %v6138, 1
        %v6143 = vsel %vm6141, %v6142, %v6138
        %v6144 = vadd.s32 %v6139, %v6143
        %v6145 = vadd.s32 %v6144, 536870912
        %v6146 = vshrl.u32 %v6145, 30
        %v6147 = vshll.u32 %v6146, 30
        %v6148 = vsub.s32 %v6144, %v6147
        %vm6149 = vcmp.lt.s32.totalorder %v6148, 0
        %v6150 = vsub.s32 0, %v6148
        %v6151 = vsel %vm6149, %v6150, %v6148
        %v6152 = vclz %v6151
        %v6153 = vsub.s32 %v6152, 2
        %vm6154 = vcmp.gt.s32.totalorder 0, %v6153
        %v6155 = vsel %vm6154, 0, %v6153
        %v6156 = vsub.s32 32, %v6155
        %v6157 = vshll.u32 %v6148, %v6155
        %v6158 = vshrl.u32 %v6140, %v6156
        %v6159 = vor.u32 %v6157, %v6158
        %v6160 = vsub.s32 4294967266, %v6155
        %v6161 = vadd.s32 %v6160, 127
        %v6162 = vshll.u32 %v6161, 23
        %v6163 = vor.u32 4788187, %v6162
        %v6164 = vand.u32 2147483647, %v6163
        %v6166 = vcvt.s32.f32 %v6159
        %v6167 = vmul.f32 %v6166, %v6164
        %v6168 = vxor.u32 %v6167, 2147483648
        %v6169 = vsel %vm6086, %v6168, %v6167
        %v6170 = vsub.s32 4, %v6146
        %v6171 = vsel %vm6086, %v6170, %v6146
        %v6172 = vsel %vm6085, %v753, %v6169
        %v6173 = vsel %vm6085, 0, %v6171
        %v6174 = vcosq.f32.pop %v6172
        %v6175 = vsinq.f32.pop %v6172
        %vm6176 = vweird.f32 %v753
        %v6177 = vand.u32 %v6173, 3
        %vm6178 = vcmp.lt.s32.totalorder %v6177, 2
        %vm6179 = vcmp.eq.s32.totalorder %v6177, 0
        %v6180 = vxor.u32 %v6175, 2147483648
        %v6181 = vsel %vm6179, %v6174, %v6180
        %vm6182 = vcmp.eq.s32.totalorder %v6177, 2
        %v6183 = vxor.u32 %v6174, 2147483648
        %v6184 = vsel %vm6182, %v6183, %v6175
        %v6185 = vsel %vm6178, %v6181, %v6184
        %v6186 = vsel %vm6176, nan, %v6185
        %v6187 = vand.u32 2147483647, %v754
        %vm6188 = vcmp.le.f32.partialorder %v6187, 0.7853982
        %vm6189 = vcmp.lt.s32.totalorder %v754, 0
        %v6190 = vand.u32 %v754, 2139095040
        %v6191 = vshrl.u32 %v6190, 23
        %v6192 = vsub.s32 %v6191, 127
        %v6193 = vand.u32 2147483647, %v754
        %v6194 = vand.u32 %v6193, 8388607
        %v6195 = vor.u32 %v6194, 8388608
        %v6196 = vsub.s32 0, %v6195
        %v6197 = vadd.s32 %v6192, 1
        %vm6198 = vcmp.gt.s32.totalorder %v6197, 0
        %v6199 = vsel %vm6198, %v6197, 0
        %v6200 = vshrl.u32 %v6199, 5
        %v6201 = vand.u32 %v6199, 31
        %v6202 = vsub.s32 32, %v6201
        %v6203 = vshrl.u32 683565275, %v6202
        %v6204 = vshll.u32 683565275, %v6201
        %v6205 = vshrl.u32 2475754826, %v6202
        %v6206 = vor.u32 %v6204, %v6205
        %v6207 = vshll.u32 2475754826, %v6201
        %v6208 = vshrl.u32 2131351028, %v6202
        %v6209 = vor.u32 %v6207, %v6208
        %v6210 = vshll.u32 2131351028, %v6201
        %v6211 = vshrl.u32 2102212464, %v6202
        %v6212 = vor.u32 %v6210, %v6211
        %v6213 = vshll.u32 2102212464, %v6201
        %v6214 = vshrl.u32 920167782, %v6202
        %v6215 = vor.u32 %v6213, %v6214
        %v6216 = vshll.u32 920167782, %v6201
        %v6217 = vshrl.u32 1326507024, %v6202
        %v6218 = vor.u32 %v6216, %v6217
        %vm6219 = vcmp.lt.s32.totalorder %v6200, 1
        %vm6220 = vcmp.lt.s32.totalorder %v6200, 2
        %vm6221 = vcmp.lt.s32.totalorder %v6200, 3
        %vm6222 = vcmp.lt.s32.totalorder %v6200, 4
        %v6223 = vsel %vm6219, %v6203, %v6206
        %v6224 = vsel %vm6222, %v6212, 2102212464
        %v6225 = vsel %vm6221, %v6209, %v6224
        %v6226 = vsel %vm6220, %v6223, %v6225
        %v6227 = vsel %vm6219, %v6206, %v6209
        %v6228 = vsel %vm6222, %v6215, 920167782
        %v6229 = vsel %vm6221, %v6212, %v6228
        %v6230 = vsel %vm6220, %v6227, %v6229
        %v6231 = vsel %vm6219, %v6209, %v6212
        %v6232 = vsel %vm6222, %v6218, 1326507024
        %v6233 = vsel %vm6221, %v6215, %v6232
        %v6234 = vsel %vm6220, %v6231, %v6233
        %v6235 = vshll.u32 %v6195, 8
        %v6236 = vmul.u32.u64.compose %v6235, %v6234
        %v6237 = vextract.low.u32 %v6236
        %v6238 = vextract.high.u32 %v6236
        %v6239 = vmul.u32.u64.compose %v6235, %v6230
        %v6240 = vextract.low.u32 %v6239
        %v6241 = vextract.high.u32 %v6239
        %v6242 = vmul.u32 %v6235, %v6226
        %v6243 = vadd.s32 %v6238, %v6240
        %vm6244 = vc.u32 %v6238, %v6240
        %v6245 = vadd.s32 %v6241, 1
        %v6246 = vsel %vm6244, %v6245, %v6241
        %v6247 = vadd.s32 %v6242, %v6246
        %v6248 = vadd.s32 %v6247, 536870912
        %v6249 = vshrl.u32 %v6248, 30
        %v6250 = vshll.u32 %v6249, 30
        %v6251 = vsub.s32 %v6247, %v6250
        %vm6252 = vcmp.lt.s32.totalorder %v6251, 0
        %v6253 = vsub.s32 0, %v6251
        %v6254 = vsel %vm6252, %v6253, %v6251
        %v6255 = vclz %v6254
        %v6256 = vsub.s32 %v6255, 2
        %vm6257 = vcmp.gt.s32.totalorder 0, %v6256
        %v6258 = vsel %vm6257, 0, %v6256
        %v6259 = vsub.s32 32, %v6258
        %v6260 = vshll.u32 %v6251, %v6258
        %v6261 = vshrl.u32 %v6243, %v6259
        %v6262 = vor.u32 %v6260, %v6261
        %v6263 = vsub.s32 4294967266, %v6258
        %v6264 = vadd.s32 %v6263, 127
        %v6265 = vshll.u32 %v6264, 23
        %v6266 = vor.u32 4788187, %v6265
        %v6267 = vand.u32 2147483647, %v6266
        %v6269 = vcvt.s32.f32 %v6262
        %v6270 = vmul.f32 %v6269, %v6267
        %v6271 = vxor.u32 %v6270, 2147483648
        %v6272 = vsel %vm6189, %v6271, %v6270
        %v6273 = vsub.s32 4, %v6249
        %v6274 = vsel %vm6189, %v6273, %v6249
        %v6275 = vsel %vm6188, %v754, %v6272
        %v6276 = vsel %vm6188, 0, %v6274
        %v6277 = vcosq.f32.pop %v6275
        %v6278 = vsinq.f32.pop %v6275
        %vm6279 = vweird.f32 %v754
        %v6280 = vand.u32 %v6276, 3
        %vm6281 = vcmp.lt.s32.totalorder %v6280, 2
        %vm6282 = vcmp.eq.s32.totalorder %v6280, 0
        %v6283 = vxor.u32 %v6278, 2147483648
        %v6284 = vsel %vm6282, %v6277, %v6283
        %vm6285 = vcmp.eq.s32.totalorder %v6280, 2
        %v6286 = vxor.u32 %v6277, 2147483648
        %v6287 = vsel %vm6285, %v6286, %v6278
        %v6288 = vsel %vm6281, %v6284, %v6287
        %v6289 = vsel %vm6279, nan, %v6288
        %v6290 = vand.u32 2147483647, %v755
        %vm6291 = vcmp.le.f32.partialorder %v6290, 0.7853982
        %vm6292 = vcmp.lt.s32.totalorder %v755, 0
        %v6293 = vand.u32 %v755, 2139095040
        %v6294 = vshrl.u32 %v6293, 23
        %v6295 = vsub.s32 %v6294, 127
        %v6296 = vand.u32 2147483647, %v755
        %v6297 = vand.u32 %v6296, 8388607
        %v6298 = vor.u32 %v6297, 8388608
        %v6299 = vsub.s32 0, %v6298
        %v6300 = vadd.s32 %v6295, 1
        %vm6301 = vcmp.gt.s32.totalorder %v6300, 0
        %v6302 = vsel %vm6301, %v6300, 0
        %v6303 = vshrl.u32 %v6302, 5
        %v6304 = vand.u32 %v6302, 31
        %v6305 = vsub.s32 32, %v6304
        %v6306 = vshrl.u32 683565275, %v6305
        %v6307 = vshll.u32 683565275, %v6304
        %v6308 = vshrl.u32 2475754826, %v6305
        %v6309 = vor.u32 %v6307, %v6308
        %v6310 = vshll.u32 2475754826, %v6304
        %v6311 = vshrl.u32 2131351028, %v6305
        %v6312 = vor.u32 %v6310, %v6311
        %v6313 = vshll.u32 2131351028, %v6304
        %v6314 = vshrl.u32 2102212464, %v6305
        %v6315 = vor.u32 %v6313, %v6314
        %v6316 = vshll.u32 2102212464, %v6304
        %v6317 = vshrl.u32 920167782, %v6305
        %v6318 = vor.u32 %v6316, %v6317
        %v6319 = vshll.u32 920167782, %v6304
        %v6320 = vshrl.u32 1326507024, %v6305
        %v6321 = vor.u32 %v6319, %v6320
        %vm6322 = vcmp.lt.s32.totalorder %v6303, 1
        %vm6323 = vcmp.lt.s32.totalorder %v6303, 2
        %vm6324 = vcmp.lt.s32.totalorder %v6303, 3
        %vm6325 = vcmp.lt.s32.totalorder %v6303, 4
        %v6326 = vsel %vm6322, %v6306, %v6309
        %v6327 = vsel %vm6325, %v6315, 2102212464
        %v6328 = vsel %vm6324, %v6312, %v6327
        %v6329 = vsel %vm6323, %v6326, %v6328
        %v6330 = vsel %vm6322, %v6309, %v6312
        %v6331 = vsel %vm6325, %v6318, 920167782
        %v6332 = vsel %vm6324, %v6315, %v6331
        %v6333 = vsel %vm6323, %v6330, %v6332
        %v6334 = vsel %vm6322, %v6312, %v6315
        %v6335 = vsel %vm6325, %v6321, 1326507024
        %v6336 = vsel %vm6324, %v6318, %v6335
        %v6337 = vsel %vm6323, %v6334, %v6336
        %v6338 = vshll.u32 %v6298, 8
        %v6339 = vmul.u32.u64.compose %v6338, %v6337
        %v6340 = vextract.low.u32 %v6339
        %v6341 = vextract.high.u32 %v6339
        %v6342 = vmul.u32.u64.compose %v6338, %v6333
        %v6343 = vextract.low.u32 %v6342
        %v6344 = vextract.high.u32 %v6342
        %v6345 = vmul.u32 %v6338, %v6329
        %v6346 = vadd.s32 %v6341, %v6343
        %vm6347 = vc.u32 %v6341, %v6343
        %v6348 = vadd.s32 %v6344, 1
        %v6349 = vsel %vm6347, %v6348, %v6344
        %v6350 = vadd.s32 %v6345, %v6349
        %v6351 = vadd.s32 %v6350, 536870912
        %v6352 = vshrl.u32 %v6351, 30
        %v6353 = vshll.u32 %v6352, 30
        %v6354 = vsub.s32 %v6350, %v6353
        %vm6355 = vcmp.lt.s32.totalorder %v6354, 0
        %v6356 = vsub.s32 0, %v6354
        %v6357 = vsel %vm6355, %v6356, %v6354
        %v6358 = vclz %v6357
        %v6359 = vsub.s32 %v6358, 2
        %vm6360 = vcmp.gt.s32.totalorder 0, %v6359
        %v6361 = vsel %vm6360, 0, %v6359
        %v6362 = vsub.s32 32, %v6361
        %v6363 = vshll.u32 %v6354, %v6361
        %v6364 = vshrl.u32 %v6346, %v6362
        %v6365 = vor.u32 %v6363, %v6364
        %v6366 = vsub.s32 4294967266, %v6361
        %v6367 = vadd.s32 %v6366, 127
        %v6368 = vshll.u32 %v6367, 23
        %v6369 = vor.u32 4788187, %v6368
        %v6370 = vand.u32 2147483647, %v6369
        %v6372 = vcvt.s32.f32 %v6365
        %v6373 = vmul.f32 %v6372, %v6370
        %v6374 = vxor.u32 %v6373, 2147483648
        %v6375 = vsel %vm6292, %v6374, %v6373
        %v6376 = vsub.s32 4, %v6352
        %v6377 = vsel %vm6292, %v6376, %v6352
        %v6378 = vsel %vm6291, %v755, %v6375
        %v6379 = vsel %vm6291, 0, %v6377
        %v6380 = vcosq.f32.pop %v6378
        %v6381 = vsinq.f32.pop %v6378
        %vm6382 = vweird.f32 %v755
        %v6383 = vand.u32 %v6379, 3
        %vm6384 = vcmp.lt.s32.totalorder %v6383, 2
        %vm6385 = vcmp.eq.s32.totalorder %v6383, 0
        %v6386 = vxor.u32 %v6381, 2147483648
        %v6387 = vsel %vm6385, %v6380, %v6386
        %vm6388 = vcmp.eq.s32.totalorder %v6383, 2
        %v6389 = vxor.u32 %v6380, 2147483648
        %v6390 = vsel %vm6388, %v6389, %v6381
        %v6391 = vsel %vm6384, %v6387, %v6390
        %v6392 = vsel %vm6382, nan, %v6391
        %v6393 = vand.u32 2147483647, %v756
        %vm6394 = vcmp.le.f32.partialorder %v6393, 0.7853982
        %vm6395 = vcmp.lt.s32.totalorder %v756, 0
        %v6396 = vand.u32 %v756, 2139095040
        %v6397 = vshrl.u32 %v6396, 23
        %v6398 = vsub.s32 %v6397, 127
        %v6399 = vand.u32 2147483647, %v756
        %v6400 = vand.u32 %v6399, 8388607
        %v6401 = vor.u32 %v6400, 8388608
        %v6402 = vsub.s32 0, %v6401
        %v6403 = vadd.s32 %v6398, 1
        %vm6404 = vcmp.gt.s32.totalorder %v6403, 0
        %v6405 = vsel %vm6404, %v6403, 0
        %v6406 = vshrl.u32 %v6405, 5
        %v6407 = vand.u32 %v6405, 31
        %v6408 = vsub.s32 32, %v6407
        %v6409 = vshrl.u32 683565275, %v6408
        %v6410 = vshll.u32 683565275, %v6407
        %v6411 = vshrl.u32 2475754826, %v6408
        %v6412 = vor.u32 %v6410, %v6411
        %v6413 = vshll.u32 2475754826, %v6407
        %v6414 = vshrl.u32 2131351028, %v6408
        %v6415 = vor.u32 %v6413, %v6414
        %v6416 = vshll.u32 2131351028, %v6407
        %v6417 = vshrl.u32 2102212464, %v6408
        %v6418 = vor.u32 %v6416, %v6417
        %v6419 = vshll.u32 2102212464, %v6407
        %v6420 = vshrl.u32 920167782, %v6408
        %v6421 = vor.u32 %v6419, %v6420
        %v6422 = vshll.u32 920167782, %v6407
        %v6423 = vshrl.u32 1326507024, %v6408
        %v6424 = vor.u32 %v6422, %v6423
        %vm6425 = vcmp.lt.s32.totalorder %v6406, 1
        %vm6426 = vcmp.lt.s32.totalorder %v6406, 2
        %vm6427 = vcmp.lt.s32.totalorder %v6406, 3
        %vm6428 = vcmp.lt.s32.totalorder %v6406, 4
        %v6429 = vsel %vm6425, %v6409, %v6412
        %v6430 = vsel %vm6428, %v6418, 2102212464
        %v6431 = vsel %vm6427, %v6415, %v6430
        %v6432 = vsel %vm6426, %v6429, %v6431
        %v6433 = vsel %vm6425, %v6412, %v6415
        %v6434 = vsel %vm6428, %v6421, 920167782
        %v6435 = vsel %vm6427, %v6418, %v6434
        %v6436 = vsel %vm6426, %v6433, %v6435
        %v6437 = vsel %vm6425, %v6415, %v6418
        %v6438 = vsel %vm6428, %v6424, 1326507024
        %v6439 = vsel %vm6427, %v6421, %v6438
        %v6440 = vsel %vm6426, %v6437, %v6439
        %v6441 = vshll.u32 %v6401, 8
        %v6442 = vmul.u32.u64.compose %v6441, %v6440
        %v6443 = vextract.low.u32 %v6442
        %v6444 = vextract.high.u32 %v6442
        %v6445 = vmul.u32.u64.compose %v6441, %v6436
        %v6446 = vextract.low.u32 %v6445
        %v6447 = vextract.high.u32 %v6445
        %v6448 = vmul.u32 %v6441, %v6432
        %v6449 = vadd.s32 %v6444, %v6446
        %vm6450 = vc.u32 %v6444, %v6446
        %v6451 = vadd.s32 %v6447, 1
        %v6452 = vsel %vm6450, %v6451, %v6447
        %v6453 = vadd.s32 %v6448, %v6452
        %v6454 = vadd.s32 %v6453, 536870912
        %v6455 = vshrl.u32 %v6454, 30
        %v6456 = vshll.u32 %v6455, 30
        %v6457 = vsub.s32 %v6453, %v6456
        %vm6458 = vcmp.lt.s32.totalorder %v6457, 0
        %v6459 = vsub.s32 0, %v6457
        %v6460 = vsel %vm6458, %v6459, %v6457
        %v6461 = vclz %v6460
        %v6462 = vsub.s32 %v6461, 2
        %vm6463 = vcmp.gt.s32.totalorder 0, %v6462
        %v6464 = vsel %vm6463, 0, %v6462
        %v6465 = vsub.s32 32, %v6464
        %v6466 = vshll.u32 %v6457, %v6464
        %v6467 = vshrl.u32 %v6449, %v6465
        %v6468 = vor.u32 %v6466, %v6467
        %v6469 = vsub.s32 4294967266, %v6464
        %v6470 = vadd.s32 %v6469, 127
        %v6471 = vshll.u32 %v6470, 23
        %v6472 = vor.u32 4788187, %v6471
        %v6473 = vand.u32 2147483647, %v6472
        %v6475 = vcvt.s32.f32 %v6468
        %v6476 = vmul.f32 %v6475, %v6473
        %v6477 = vxor.u32 %v6476, 2147483648
        %v6478 = vsel %vm6395, %v6477, %v6476
        %v6479 = vsub.s32 4, %v6455
        %v6480 = vsel %vm6395, %v6479, %v6455
        %v6481 = vsel %vm6394, %v756, %v6478
        %v6482 = vsel %vm6394, 0, %v6480
        %v6483 = vcosq.f32.pop %v6481
        %v6484 = vsinq.f32.pop %v6481
        %vm6485 = vweird.f32 %v756
        %v6486 = vand.u32 %v6482, 3
        %vm6487 = vcmp.lt.s32.totalorder %v6486, 2
        %vm6488 = vcmp.eq.s32.totalorder %v6486, 0
        %v6489 = vxor.u32 %v6484, 2147483648
        %v6490 = vsel %vm6488, %v6483, %v6489
        %vm6491 = vcmp.eq.s32.totalorder %v6486, 2
        %v6492 = vxor.u32 %v6483, 2147483648
        %v6493 = vsel %vm6491, %v6492, %v6484
        %v6494 = vsel %vm6487, %v6490, %v6493
        %v6495 = vsel %vm6485, nan, %v6494
        %v6496 = vand.u32 2147483647, %v757
        %vm6497 = vcmp.le.f32.partialorder %v6496, 0.7853982
        %vm6498 = vcmp.lt.s32.totalorder %v757, 0
        %v6499 = vand.u32 %v757, 2139095040
        %v6500 = vshrl.u32 %v6499, 23
        %v6501 = vsub.s32 %v6500, 127
        %v6502 = vand.u32 2147483647, %v757
        %v6503 = vand.u32 %v6502, 8388607
        %v6504 = vor.u32 %v6503, 8388608
        %v6505 = vsub.s32 0, %v6504
        %v6506 = vadd.s32 %v6501, 1
        %vm6507 = vcmp.gt.s32.totalorder %v6506, 0
        %v6508 = vsel %vm6507, %v6506, 0
        %v6509 = vshrl.u32 %v6508, 5
        %v6510 = vand.u32 %v6508, 31
        %v6511 = vsub.s32 32, %v6510
        %v6512 = vshrl.u32 683565275, %v6511
        %v6513 = vshll.u32 683565275, %v6510
        %v6514 = vshrl.u32 2475754826, %v6511
        %v6515 = vor.u32 %v6513, %v6514
        %v6516 = vshll.u32 2475754826, %v6510
        %v6517 = vshrl.u32 2131351028, %v6511
        %v6518 = vor.u32 %v6516, %v6517
        %v6519 = vshll.u32 2131351028, %v6510
        %v6520 = vshrl.u32 2102212464, %v6511
        %v6521 = vor.u32 %v6519, %v6520
        %v6522 = vshll.u32 2102212464, %v6510
        %v6523 = vshrl.u32 920167782, %v6511
        %v6524 = vor.u32 %v6522, %v6523
        %v6525 = vshll.u32 920167782, %v6510
        %v6526 = vshrl.u32 1326507024, %v6511
        %v6527 = vor.u32 %v6525, %v6526
        %vm6528 = vcmp.lt.s32.totalorder %v6509, 1
        %vm6529 = vcmp.lt.s32.totalorder %v6509, 2
        %vm6530 = vcmp.lt.s32.totalorder %v6509, 3
        %vm6531 = vcmp.lt.s32.totalorder %v6509, 4
        %v6532 = vsel %vm6528, %v6512, %v6515
        %v6533 = vsel %vm6531, %v6521, 2102212464
        %v6534 = vsel %vm6530, %v6518, %v6533
        %v6535 = vsel %vm6529, %v6532, %v6534
        %v6536 = vsel %vm6528, %v6515, %v6518
        %v6537 = vsel %vm6531, %v6524, 920167782
        %v6538 = vsel %vm6530, %v6521, %v6537
        %v6539 = vsel %vm6529, %v6536, %v6538
        %v6540 = vsel %vm6528, %v6518, %v6521
        %v6541 = vsel %vm6531, %v6527, 1326507024
        %v6542 = vsel %vm6530, %v6524, %v6541
        %v6543 = vsel %vm6529, %v6540, %v6542
        %v6544 = vshll.u32 %v6504, 8
        %v6545 = vmul.u32.u64.compose %v6544, %v6543
        %v6546 = vextract.low.u32 %v6545
        %v6547 = vextract.high.u32 %v6545
        %v6548 = vmul.u32.u64.compose %v6544, %v6539
        %v6549 = vextract.low.u32 %v6548
        %v6550 = vextract.high.u32 %v6548
        %v6551 = vmul.u32 %v6544, %v6535
        %v6552 = vadd.s32 %v6547, %v6549
        %vm6553 = vc.u32 %v6547, %v6549
        %v6554 = vadd.s32 %v6550, 1
        %v6555 = vsel %vm6553, %v6554, %v6550
        %v6556 = vadd.s32 %v6551, %v6555
        %v6557 = vadd.s32 %v6556, 536870912
        %v6558 = vshrl.u32 %v6557, 30
        %v6559 = vshll.u32 %v6558, 30
        %v6560 = vsub.s32 %v6556, %v6559
        %vm6561 = vcmp.lt.s32.totalorder %v6560, 0
        %v6562 = vsub.s32 0, %v6560
        %v6563 = vsel %vm6561, %v6562, %v6560
        %v6564 = vclz %v6563
        %v6565 = vsub.s32 %v6564, 2
        %vm6566 = vcmp.gt.s32.totalorder 0, %v6565
        %v6567 = vsel %vm6566, 0, %v6565
        %v6568 = vsub.s32 32, %v6567
        %v6569 = vshll.u32 %v6560, %v6567
        %v6570 = vshrl.u32 %v6552, %v6568
        %v6571 = vor.u32 %v6569, %v6570
        %v6572 = vsub.s32 4294967266, %v6567
        %v6573 = vadd.s32 %v6572, 127
        %v6574 = vshll.u32 %v6573, 23
        %v6575 = vor.u32 4788187, %v6574
        %v6576 = vand.u32 2147483647, %v6575
        %v6578 = vcvt.s32.f32 %v6571
        %v6579 = vmul.f32 %v6578, %v6576
        %v6580 = vxor.u32 %v6579, 2147483648
        %v6581 = vsel %vm6498, %v6580, %v6579
        %v6582 = vsub.s32 4, %v6558
        %v6583 = vsel %vm6498, %v6582, %v6558
        %v6584 = vsel %vm6497, %v757, %v6581
        %v6585 = vsel %vm6497, 0, %v6583
        %v6586 = vcosq.f32.pop %v6584
        %v6587 = vsinq.f32.pop %v6584
        %vm6588 = vweird.f32 %v757
        %v6589 = vand.u32 %v6585, 3
        %vm6590 = vcmp.lt.s32.totalorder %v6589, 2
        %vm6591 = vcmp.eq.s32.totalorder %v6589, 0
        %v6592 = vxor.u32 %v6587, 2147483648
        %v6593 = vsel %vm6591, %v6586, %v6592
        %vm6594 = vcmp.eq.s32.totalorder %v6589, 2
        %v6595 = vxor.u32 %v6586, 2147483648
        %v6596 = vsel %vm6594, %v6595, %v6587
        %v6597 = vsel %vm6590, %v6593, %v6596
        %v6598 = vsel %vm6588, nan, %v6597
        %v6599 = vand.u32 2147483647, %v758
        %vm6600 = vcmp.le.f32.partialorder %v6599, 0.7853982
        %vm6601 = vcmp.lt.s32.totalorder %v758, 0
        %v6602 = vand.u32 %v758, 2139095040
        %v6603 = vshrl.u32 %v6602, 23
        %v6604 = vsub.s32 %v6603, 127
        %v6605 = vand.u32 2147483647, %v758
        %v6606 = vand.u32 %v6605, 8388607
        %v6607 = vor.u32 %v6606, 8388608
        %v6608 = vsub.s32 0, %v6607
        %v6609 = vadd.s32 %v6604, 1
        %vm6610 = vcmp.gt.s32.totalorder %v6609, 0
        %v6611 = vsel %vm6610, %v6609, 0
        %v6612 = vshrl.u32 %v6611, 5
        %v6613 = vand.u32 %v6611, 31
        %v6614 = vsub.s32 32, %v6613
        %v6615 = vshrl.u32 683565275, %v6614
        %v6616 = vshll.u32 683565275, %v6613
        %v6617 = vshrl.u32 2475754826, %v6614
        %v6618 = vor.u32 %v6616, %v6617
        %v6619 = vshll.u32 2475754826, %v6613
        %v6620 = vshrl.u32 2131351028, %v6614
        %v6621 = vor.u32 %v6619, %v6620
        %v6622 = vshll.u32 2131351028, %v6613
        %v6623 = vshrl.u32 2102212464, %v6614
        %v6624 = vor.u32 %v6622, %v6623
        %v6625 = vshll.u32 2102212464, %v6613
        %v6626 = vshrl.u32 920167782, %v6614
        %v6627 = vor.u32 %v6625, %v6626
        %v6628 = vshll.u32 920167782, %v6613
        %v6629 = vshrl.u32 1326507024, %v6614
        %v6630 = vor.u32 %v6628, %v6629
        %vm6631 = vcmp.lt.s32.totalorder %v6612, 1
        %vm6632 = vcmp.lt.s32.totalorder %v6612, 2
        %vm6633 = vcmp.lt.s32.totalorder %v6612, 3
        %vm6634 = vcmp.lt.s32.totalorder %v6612, 4
        %v6635 = vsel %vm6631, %v6615, %v6618
        %v6636 = vsel %vm6634, %v6624, 2102212464
        %v6637 = vsel %vm6633, %v6621, %v6636
        %v6638 = vsel %vm6632, %v6635, %v6637
        %v6639 = vsel %vm6631, %v6618, %v6621
        %v6640 = vsel %vm6634, %v6627, 920167782
        %v6641 = vsel %vm6633, %v6624, %v6640
        %v6642 = vsel %vm6632, %v6639, %v6641
        %v6643 = vsel %vm6631, %v6621, %v6624
        %v6644 = vsel %vm6634, %v6630, 1326507024
        %v6645 = vsel %vm6633, %v6627, %v6644
        %v6646 = vsel %vm6632, %v6643, %v6645
        %v6647 = vshll.u32 %v6607, 8
        %v6648 = vmul.u32.u64.compose %v6647, %v6646
        %v6649 = vextract.low.u32 %v6648
        %v6650 = vextract.high.u32 %v6648
        %v6651 = vmul.u32.u64.compose %v6647, %v6642
        %v6652 = vextract.low.u32 %v6651
        %v6653 = vextract.high.u32 %v6651
        %v6654 = vmul.u32 %v6647, %v6638
        %v6655 = vadd.s32 %v6650, %v6652
        %vm6656 = vc.u32 %v6650, %v6652
        %v6657 = vadd.s32 %v6653, 1
        %v6658 = vsel %vm6656, %v6657, %v6653
        %v6659 = vadd.s32 %v6654, %v6658
        %v6660 = vadd.s32 %v6659, 536870912
        %v6661 = vshrl.u32 %v6660, 30
        %v6662 = vshll.u32 %v6661, 30
        %v6663 = vsub.s32 %v6659, %v6662
        %vm6664 = vcmp.lt.s32.totalorder %v6663, 0
        %v6665 = vsub.s32 0, %v6663
        %v6666 = vsel %vm6664, %v6665, %v6663
        %v6667 = vclz %v6666
        %v6668 = vsub.s32 %v6667, 2
        %vm6669 = vcmp.gt.s32.totalorder 0, %v6668
        %v6670 = vsel %vm6669, 0, %v6668
        %v6671 = vsub.s32 32, %v6670
        %v6672 = vshll.u32 %v6663, %v6670
        %v6673 = vshrl.u32 %v6655, %v6671
        %v6674 = vor.u32 %v6672, %v6673
        %v6675 = vsub.s32 4294967266, %v6670
        %v6676 = vadd.s32 %v6675, 127
        %v6677 = vshll.u32 %v6676, 23
        %v6678 = vor.u32 4788187, %v6677
        %v6679 = vand.u32 2147483647, %v6678
        %v6681 = vcvt.s32.f32 %v6674
        %v6682 = vmul.f32 %v6681, %v6679
        %v6683 = vxor.u32 %v6682, 2147483648
        %v6684 = vsel %vm6601, %v6683, %v6682
        %v6685 = vsub.s32 4, %v6661
        %v6686 = vsel %vm6601, %v6685, %v6661
        %v6687 = vsel %vm6600, %v758, %v6684
        %v6688 = vsel %vm6600, 0, %v6686
        %v6689 = vcosq.f32.pop %v6687
        %v6690 = vsinq.f32.pop %v6687
        %vm6691 = vweird.f32 %v758
        %v6692 = vand.u32 %v6688, 3
        %vm6693 = vcmp.lt.s32.totalorder %v6692, 2
        %vm6694 = vcmp.eq.s32.totalorder %v6692, 0
        %v6695 = vxor.u32 %v6690, 2147483648
        %v6696 = vsel %vm6694, %v6689, %v6695
        %vm6697 = vcmp.eq.s32.totalorder %v6692, 2
        %v6698 = vxor.u32 %v6689, 2147483648
        %v6699 = vsel %vm6697, %v6698, %v6690
        %v6700 = vsel %vm6693, %v6696, %v6699
        %v6701 = vsel %vm6691, nan, %v6700
        %v6702 = vand.u32 2147483647, %v759
        %vm6703 = vcmp.le.f32.partialorder %v6702, 0.7853982
        %vm6704 = vcmp.lt.s32.totalorder %v759, 0
        %v6705 = vand.u32 %v759, 2139095040
        %v6706 = vshrl.u32 %v6705, 23
        %v6707 = vsub.s32 %v6706, 127
        %v6708 = vand.u32 2147483647, %v759
        %v6709 = vand.u32 %v6708, 8388607
        %v6710 = vor.u32 %v6709, 8388608
        %v6711 = vsub.s32 0, %v6710
        %v6712 = vadd.s32 %v6707, 1
        %vm6713 = vcmp.gt.s32.totalorder %v6712, 0
        %v6714 = vsel %vm6713, %v6712, 0
        %v6715 = vshrl.u32 %v6714, 5
        %v6716 = vand.u32 %v6714, 31
        %v6717 = vsub.s32 32, %v6716
        %v6718 = vshrl.u32 683565275, %v6717
        %v6719 = vshll.u32 683565275, %v6716
        %v6720 = vshrl.u32 2475754826, %v6717
        %v6721 = vor.u32 %v6719, %v6720
        %v6722 = vshll.u32 2475754826, %v6716
        %v6723 = vshrl.u32 2131351028, %v6717
        %v6724 = vor.u32 %v6722, %v6723
        %v6725 = vshll.u32 2131351028, %v6716
        %v6726 = vshrl.u32 2102212464, %v6717
        %v6727 = vor.u32 %v6725, %v6726
        %v6728 = vshll.u32 2102212464, %v6716
        %v6729 = vshrl.u32 920167782, %v6717
        %v6730 = vor.u32 %v6728, %v6729
        %v6731 = vshll.u32 920167782, %v6716
        %v6732 = vshrl.u32 1326507024, %v6717
        %v6733 = vor.u32 %v6731, %v6732
        %vm6734 = vcmp.lt.s32.totalorder %v6715, 1
        %vm6735 = vcmp.lt.s32.totalorder %v6715, 2
        %vm6736 = vcmp.lt.s32.totalorder %v6715, 3
        %vm6737 = vcmp.lt.s32.totalorder %v6715, 4
        %v6738 = vsel %vm6734, %v6718, %v6721
        %v6739 = vsel %vm6737, %v6727, 2102212464
        %v6740 = vsel %vm6736, %v6724, %v6739
        %v6741 = vsel %vm6735, %v6738, %v6740
        %v6742 = vsel %vm6734, %v6721, %v6724
        %v6743 = vsel %vm6737, %v6730, 920167782
        %v6744 = vsel %vm6736, %v6727, %v6743
        %v6745 = vsel %vm6735, %v6742, %v6744
        %v6746 = vsel %vm6734, %v6724, %v6727
        %v6747 = vsel %vm6737, %v6733, 1326507024
        %v6748 = vsel %vm6736, %v6730, %v6747
        %v6749 = vsel %vm6735, %v6746, %v6748
        %v6750 = vshll.u32 %v6710, 8
        %v6751 = vmul.u32.u64.compose %v6750, %v6749
        %v6752 = vextract.low.u32 %v6751
        %v6753 = vextract.high.u32 %v6751
        %v6754 = vmul.u32.u64.compose %v6750, %v6745
        %v6755 = vextract.low.u32 %v6754
        %v6756 = vextract.high.u32 %v6754
        %v6757 = vmul.u32 %v6750, %v6741
        %v6758 = vadd.s32 %v6753, %v6755
        %vm6759 = vc.u32 %v6753, %v6755
        %v6760 = vadd.s32 %v6756, 1
        %v6761 = vsel %vm6759, %v6760, %v6756
        %v6762 = vadd.s32 %v6757, %v6761
        %v6763 = vadd.s32 %v6762, 536870912
        %v6764 = vshrl.u32 %v6763, 30
        %v6765 = vshll.u32 %v6764, 30
        %v6766 = vsub.s32 %v6762, %v6765
        %vm6767 = vcmp.lt.s32.totalorder %v6766, 0
        %v6768 = vsub.s32 0, %v6766
        %v6769 = vsel %vm6767, %v6768, %v6766
        %v6770 = vclz %v6769
        %v6771 = vsub.s32 %v6770, 2
        %vm6772 = vcmp.gt.s32.totalorder 0, %v6771
        %v6773 = vsel %vm6772, 0, %v6771
        %v6774 = vsub.s32 32, %v6773
        %v6775 = vshll.u32 %v6766, %v6773
        %v6776 = vshrl.u32 %v6758, %v6774
        %v6777 = vor.u32 %v6775, %v6776
        %v6778 = vsub.s32 4294967266, %v6773
        %v6779 = vadd.s32 %v6778, 127
        %v6780 = vshll.u32 %v6779, 23
        %v6781 = vor.u32 4788187, %v6780
        %v6782 = vand.u32 2147483647, %v6781
        %v6784 = vcvt.s32.f32 %v6777
        %v6785 = vmul.f32 %v6784, %v6782
        %v6786 = vxor.u32 %v6785, 2147483648
        %v6787 = vsel %vm6704, %v6786, %v6785
        %v6788 = vsub.s32 4, %v6764
        %v6789 = vsel %vm6704, %v6788, %v6764
        %v6790 = vsel %vm6703, %v759, %v6787
        %v6791 = vsel %vm6703, 0, %v6789
        %v6792 = vcosq.f32.pop %v6790
        %v6793 = vsinq.f32.pop %v6790
        %vm6794 = vweird.f32 %v759
        %v6795 = vand.u32 %v6791, 3
        %vm6796 = vcmp.lt.s32.totalorder %v6795, 2
        %vm6797 = vcmp.eq.s32.totalorder %v6795, 0
        %v6798 = vxor.u32 %v6793, 2147483648
        %v6799 = vsel %vm6797, %v6792, %v6798
        %vm6800 = vcmp.eq.s32.totalorder %v6795, 2
        %v6801 = vxor.u32 %v6792, 2147483648
        %v6802 = vsel %vm6800, %v6801, %v6793
        %v6803 = vsel %vm6796, %v6799, %v6802
        %v6804 = vsel %vm6794, nan, %v6803
        %v6805 = vand.u32 2147483647, %v760
        %vm6806 = vcmp.le.f32.partialorder %v6805, 0.7853982
        %vm6807 = vcmp.lt.s32.totalorder %v760, 0
        %v6808 = vand.u32 %v760, 2139095040
        %v6809 = vshrl.u32 %v6808, 23
        %v6810 = vsub.s32 %v6809, 127
        %v6811 = vand.u32 2147483647, %v760
        %v6812 = vand.u32 %v6811, 8388607
        %v6813 = vor.u32 %v6812, 8388608
        %v6814 = vsub.s32 0, %v6813
        %v6815 = vadd.s32 %v6810, 1
        %vm6816 = vcmp.gt.s32.totalorder %v6815, 0
        %v6817 = vsel %vm6816, %v6815, 0
        %v6818 = vshrl.u32 %v6817, 5
        %v6819 = vand.u32 %v6817, 31
        %v6820 = vsub.s32 32, %v6819
        %v6821 = vshrl.u32 683565275, %v6820
        %v6822 = vshll.u32 683565275, %v6819
        %v6823 = vshrl.u32 2475754826, %v6820
        %v6824 = vor.u32 %v6822, %v6823
        %v6825 = vshll.u32 2475754826, %v6819
        %v6826 = vshrl.u32 2131351028, %v6820
        %v6827 = vor.u32 %v6825, %v6826
        %v6828 = vshll.u32 2131351028, %v6819
        %v6829 = vshrl.u32 2102212464, %v6820
        %v6830 = vor.u32 %v6828, %v6829
        %v6831 = vshll.u32 2102212464, %v6819
        %v6832 = vshrl.u32 920167782, %v6820
        %v6833 = vor.u32 %v6831, %v6832
        %v6834 = vshll.u32 920167782, %v6819
        %v6835 = vshrl.u32 1326507024, %v6820
        %v6836 = vor.u32 %v6834, %v6835
        %vm6837 = vcmp.lt.s32.totalorder %v6818, 1
        %vm6838 = vcmp.lt.s32.totalorder %v6818, 2
        %vm6839 = vcmp.lt.s32.totalorder %v6818, 3
        %vm6840 = vcmp.lt.s32.totalorder %v6818, 4
        %v6841 = vsel %vm6837, %v6821, %v6824
        %v6842 = vsel %vm6840, %v6830, 2102212464
        %v6843 = vsel %vm6839, %v6827, %v6842
        %v6844 = vsel %vm6838, %v6841, %v6843
        %v6845 = vsel %vm6837, %v6824, %v6827
        %v6846 = vsel %vm6840, %v6833, 920167782
        %v6847 = vsel %vm6839, %v6830, %v6846
        %v6848 = vsel %vm6838, %v6845, %v6847
        %v6849 = vsel %vm6837, %v6827, %v6830
        %v6850 = vsel %vm6840, %v6836, 1326507024
        %v6851 = vsel %vm6839, %v6833, %v6850
        %v6852 = vsel %vm6838, %v6849, %v6851
        %v6853 = vshll.u32 %v6813, 8
        %v6854 = vmul.u32.u64.compose %v6853, %v6852
        %v6855 = vextract.low.u32 %v6854
        %v6856 = vextract.high.u32 %v6854
        %v6857 = vmul.u32.u64.compose %v6853, %v6848
        %v6858 = vextract.low.u32 %v6857
        %v6859 = vextract.high.u32 %v6857
        %v6860 = vmul.u32 %v6853, %v6844
        %v6861 = vadd.s32 %v6856, %v6858
        %vm6862 = vc.u32 %v6856, %v6858
        %v6863 = vadd.s32 %v6859, 1
        %v6864 = vsel %vm6862, %v6863, %v6859
        %v6865 = vadd.s32 %v6860, %v6864
        %v6866 = vadd.s32 %v6865, 536870912
        %v6867 = vshrl.u32 %v6866, 30
        %v6868 = vshll.u32 %v6867, 30
        %v6869 = vsub.s32 %v6865, %v6868
        %vm6870 = vcmp.lt.s32.totalorder %v6869, 0
        %v6871 = vsub.s32 0, %v6869
        %v6872 = vsel %vm6870, %v6871, %v6869
        %v6873 = vclz %v6872
        %v6874 = vsub.s32 %v6873, 2
        %vm6875 = vcmp.gt.s32.totalorder 0, %v6874
        %v6876 = vsel %vm6875, 0, %v6874
        %v6877 = vsub.s32 32, %v6876
        %v6878 = vshll.u32 %v6869, %v6876
        %v6879 = vshrl.u32 %v6861, %v6877
        %v6880 = vor.u32 %v6878, %v6879
        %v6881 = vsub.s32 4294967266, %v6876
        %v6882 = vadd.s32 %v6881, 127
        %v6883 = vshll.u32 %v6882, 23
        %v6884 = vor.u32 4788187, %v6883
        %v6885 = vand.u32 2147483647, %v6884
        %v6887 = vcvt.s32.f32 %v6880
        %v6888 = vmul.f32 %v6887, %v6885
        %v6889 = vxor.u32 %v6888, 2147483648
        %v6890 = vsel %vm6807, %v6889, %v6888
        %v6891 = vsub.s32 4, %v6867
        %v6892 = vsel %vm6807, %v6891, %v6867
        %v6893 = vsel %vm6806, %v760, %v6890
        %v6894 = vsel %vm6806, 0, %v6892
        %v6895 = vcosq.f32.pop %v6893
        %v6896 = vsinq.f32.pop %v6893
        %vm6897 = vweird.f32 %v760
        %v6898 = vand.u32 %v6894, 3
        %vm6899 = vcmp.lt.s32.totalorder %v6898, 2
        %vm6900 = vcmp.eq.s32.totalorder %v6898, 0
        %v6901 = vxor.u32 %v6896, 2147483648
        %v6902 = vsel %vm6900, %v6895, %v6901
        %vm6903 = vcmp.eq.s32.totalorder %v6898, 2
        %v6904 = vxor.u32 %v6895, 2147483648
        %v6905 = vsel %vm6903, %v6904, %v6896
        %v6906 = vsel %vm6899, %v6902, %v6905
        %v6907 = vsel %vm6897, nan, %v6906
        %v6908 = vand.u32 2147483647, %v761
        %vm6909 = vcmp.le.f32.partialorder %v6908, 0.7853982
        %vm6910 = vcmp.lt.s32.totalorder %v761, 0
        %v6911 = vand.u32 %v761, 2139095040
        %v6912 = vshrl.u32 %v6911, 23
        %v6913 = vsub.s32 %v6912, 127
        %v6914 = vand.u32 2147483647, %v761
        %v6915 = vand.u32 %v6914, 8388607
        %v6916 = vor.u32 %v6915, 8388608
        %v6917 = vsub.s32 0, %v6916
        %v6918 = vadd.s32 %v6913, 1
        %vm6919 = vcmp.gt.s32.totalorder %v6918, 0
        %v6920 = vsel %vm6919, %v6918, 0
        %v6921 = vshrl.u32 %v6920, 5
        %v6922 = vand.u32 %v6920, 31
        %v6923 = vsub.s32 32, %v6922
        %v6924 = vshrl.u32 683565275, %v6923
        %v6925 = vshll.u32 683565275, %v6922
        %v6926 = vshrl.u32 2475754826, %v6923
        %v6927 = vor.u32 %v6925, %v6926
        %v6928 = vshll.u32 2475754826, %v6922
        %v6929 = vshrl.u32 2131351028, %v6923
        %v6930 = vor.u32 %v6928, %v6929
        %v6931 = vshll.u32 2131351028, %v6922
        %v6932 = vshrl.u32 2102212464, %v6923
        %v6933 = vor.u32 %v6931, %v6932
        %v6934 = vshll.u32 2102212464, %v6922
        %v6935 = vshrl.u32 920167782, %v6923
        %v6936 = vor.u32 %v6934, %v6935
        %v6937 = vshll.u32 920167782, %v6922
        %v6938 = vshrl.u32 1326507024, %v6923
        %v6939 = vor.u32 %v6937, %v6938
        %vm6940 = vcmp.lt.s32.totalorder %v6921, 1
        %vm6941 = vcmp.lt.s32.totalorder %v6921, 2
        %vm6942 = vcmp.lt.s32.totalorder %v6921, 3
        %vm6943 = vcmp.lt.s32.totalorder %v6921, 4
        %v6944 = vsel %vm6940, %v6924, %v6927
        %v6945 = vsel %vm6943, %v6933, 2102212464
        %v6946 = vsel %vm6942, %v6930, %v6945
        %v6947 = vsel %vm6941, %v6944, %v6946
        %v6948 = vsel %vm6940, %v6927, %v6930
        %v6949 = vsel %vm6943, %v6936, 920167782
        %v6950 = vsel %vm6942, %v6933, %v6949
        %v6951 = vsel %vm6941, %v6948, %v6950
        %v6952 = vsel %vm6940, %v6930, %v6933
        %v6953 = vsel %vm6943, %v6939, 1326507024
        %v6954 = vsel %vm6942, %v6936, %v6953
        %v6955 = vsel %vm6941, %v6952, %v6954
        %v6956 = vshll.u32 %v6916, 8
        %v6957 = vmul.u32.u64.compose %v6956, %v6955
        %v6958 = vextract.low.u32 %v6957
        %v6959 = vextract.high.u32 %v6957
        %v6960 = vmul.u32.u64.compose %v6956, %v6951
        %v6961 = vextract.low.u32 %v6960
        %v6962 = vextract.high.u32 %v6960
        %v6963 = vmul.u32 %v6956, %v6947
        %v6964 = vadd.s32 %v6959, %v6961
        %vm6965 = vc.u32 %v6959, %v6961
        %v6966 = vadd.s32 %v6962, 1
        %v6967 = vsel %vm6965, %v6966, %v6962
        %v6968 = vadd.s32 %v6963, %v6967
        %v6969 = vadd.s32 %v6968, 536870912
        %v6970 = vshrl.u32 %v6969, 30
        %v6971 = vshll.u32 %v6970, 30
        %v6972 = vsub.s32 %v6968, %v6971
        %vm6973 = vcmp.lt.s32.totalorder %v6972, 0
        %v6974 = vsub.s32 0, %v6972
        %v6975 = vsel %vm6973, %v6974, %v6972
        %v6976 = vclz %v6975
        %v6977 = vsub.s32 %v6976, 2
        %vm6978 = vcmp.gt.s32.totalorder 0, %v6977
        %v6979 = vsel %vm6978, 0, %v6977
        %v6980 = vsub.s32 32, %v6979
        %v6981 = vshll.u32 %v6972, %v6979
        %v6982 = vshrl.u32 %v6964, %v6980
        %v6983 = vor.u32 %v6981, %v6982
        %v6984 = vsub.s32 4294967266, %v6979
        %v6985 = vadd.s32 %v6984, 127
        %v6986 = vshll.u32 %v6985, 23
        %v6987 = vor.u32 4788187, %v6986
        %v6988 = vand.u32 2147483647, %v6987
        %v6990 = vcvt.s32.f32 %v6983
        %v6991 = vmul.f32 %v6990, %v6988
        %v6992 = vxor.u32 %v6991, 2147483648
        %v6993 = vsel %vm6910, %v6992, %v6991
        %v6994 = vsub.s32 4, %v6970
        %v6995 = vsel %vm6910, %v6994, %v6970
        %v6996 = vsel %vm6909, %v761, %v6993
        %v6997 = vsel %vm6909, 0, %v6995
        %v6998 = vcosq.f32.pop %v6996
        %v6999 = vsinq.f32.pop %v6996
        %vm7000 = vweird.f32 %v761
        %v7001 = vand.u32 %v6997, 3
        %vm7002 = vcmp.lt.s32.totalorder %v7001, 2
        %vm7003 = vcmp.eq.s32.totalorder %v7001, 0
        %v7004 = vxor.u32 %v6999, 2147483648
        %v7005 = vsel %vm7003, %v6998, %v7004
        %vm7006 = vcmp.eq.s32.totalorder %v7001, 2
        %v7007 = vxor.u32 %v6998, 2147483648
        %v7008 = vsel %vm7006, %v7007, %v6999
        %v7009 = vsel %vm7002, %v7005, %v7008
        %v7010 = vsel %vm7000, nan, %v7009
        %v7011 = vand.u32 2147483647, %v762
        %vm7012 = vcmp.le.f32.partialorder %v7011, 0.7853982
        %vm7013 = vcmp.lt.s32.totalorder %v762, 0
        %v7014 = vand.u32 %v762, 2139095040
        %v7015 = vshrl.u32 %v7014, 23
        %v7016 = vsub.s32 %v7015, 127
        %v7017 = vand.u32 2147483647, %v762
        %v7018 = vand.u32 %v7017, 8388607
        %v7019 = vor.u32 %v7018, 8388608
        %v7020 = vsub.s32 0, %v7019
        %v7021 = vadd.s32 %v7016, 1
        %vm7022 = vcmp.gt.s32.totalorder %v7021, 0
        %v7023 = vsel %vm7022, %v7021, 0
        %v7024 = vshrl.u32 %v7023, 5
        %v7025 = vand.u32 %v7023, 31
        %v7026 = vsub.s32 32, %v7025
        %v7027 = vshrl.u32 683565275, %v7026
        %v7028 = vshll.u32 683565275, %v7025
        %v7029 = vshrl.u32 2475754826, %v7026
        %v7030 = vor.u32 %v7028, %v7029
        %v7031 = vshll.u32 2475754826, %v7025
        %v7032 = vshrl.u32 2131351028, %v7026
        %v7033 = vor.u32 %v7031, %v7032
        %v7034 = vshll.u32 2131351028, %v7025
        %v7035 = vshrl.u32 2102212464, %v7026
        %v7036 = vor.u32 %v7034, %v7035
        %v7037 = vshll.u32 2102212464, %v7025
        %v7038 = vshrl.u32 920167782, %v7026
        %v7039 = vor.u32 %v7037, %v7038
        %v7040 = vshll.u32 920167782, %v7025
        %v7041 = vshrl.u32 1326507024, %v7026
        %v7042 = vor.u32 %v7040, %v7041
        %vm7043 = vcmp.lt.s32.totalorder %v7024, 1
        %vm7044 = vcmp.lt.s32.totalorder %v7024, 2
        %vm7045 = vcmp.lt.s32.totalorder %v7024, 3
        %vm7046 = vcmp.lt.s32.totalorder %v7024, 4
        %v7047 = vsel %vm7043, %v7027, %v7030
        %v7048 = vsel %vm7046, %v7036, 2102212464
        %v7049 = vsel %vm7045, %v7033, %v7048
        %v7050 = vsel %vm7044, %v7047, %v7049
        %v7051 = vsel %vm7043, %v7030, %v7033
        %v7052 = vsel %vm7046, %v7039, 920167782
        %v7053 = vsel %vm7045, %v7036, %v7052
        %v7054 = vsel %vm7044, %v7051, %v7053
        %v7055 = vsel %vm7043, %v7033, %v7036
        %v7056 = vsel %vm7046, %v7042, 1326507024
        %v7057 = vsel %vm7045, %v7039, %v7056
        %v7058 = vsel %vm7044, %v7055, %v7057
        %v7059 = vshll.u32 %v7019, 8
        %v7060 = vmul.u32.u64.compose %v7059, %v7058
        %v7061 = vextract.low.u32 %v7060
        %v7062 = vextract.high.u32 %v7060
        %v7063 = vmul.u32.u64.compose %v7059, %v7054
        %v7064 = vextract.low.u32 %v7063
        %v7065 = vextract.high.u32 %v7063
        %v7066 = vmul.u32 %v7059, %v7050
        %v7067 = vadd.s32 %v7062, %v7064
        %vm7068 = vc.u32 %v7062, %v7064
        %v7069 = vadd.s32 %v7065, 1
        %v7070 = vsel %vm7068, %v7069, %v7065
        %v7071 = vadd.s32 %v7066, %v7070
        %v7072 = vadd.s32 %v7071, 536870912
        %v7073 = vshrl.u32 %v7072, 30
        %v7074 = vshll.u32 %v7073, 30
        %v7075 = vsub.s32 %v7071, %v7074
        %vm7076 = vcmp.lt.s32.totalorder %v7075, 0
        %v7077 = vsub.s32 0, %v7075
        %v7078 = vsel %vm7076, %v7077, %v7075
        %v7079 = vclz %v7078
        %v7080 = vsub.s32 %v7079, 2
        %vm7081 = vcmp.gt.s32.totalorder 0, %v7080
        %v7082 = vsel %vm7081, 0, %v7080
        %v7083 = vsub.s32 32, %v7082
        %v7084 = vshll.u32 %v7075, %v7082
        %v7085 = vshrl.u32 %v7067, %v7083
        %v7086 = vor.u32 %v7084, %v7085
        %v7087 = vsub.s32 4294967266, %v7082
        %v7088 = vadd.s32 %v7087, 127
        %v7089 = vshll.u32 %v7088, 23
        %v7090 = vor.u32 4788187, %v7089
        %v7091 = vand.u32 2147483647, %v7090
        %v7093 = vcvt.s32.f32 %v7086
        %v7094 = vmul.f32 %v7093, %v7091
        %v7095 = vxor.u32 %v7094, 2147483648
        %v7096 = vsel %vm7013, %v7095, %v7094
        %v7097 = vsub.s32 4, %v7073
        %v7098 = vsel %vm7013, %v7097, %v7073
        %v7099 = vsel %vm7012, %v762, %v7096
        %v7100 = vsel %vm7012, 0, %v7098
        %v7101 = vcosq.f32.pop %v7099
        %v7102 = vsinq.f32.pop %v7099
        %vm7103 = vweird.f32 %v762
        %v7104 = vand.u32 %v7100, 3
        %vm7105 = vcmp.lt.s32.totalorder %v7104, 2
        %vm7106 = vcmp.eq.s32.totalorder %v7104, 0
        %v7107 = vxor.u32 %v7102, 2147483648
        %v7108 = vsel %vm7106, %v7101, %v7107
        %vm7109 = vcmp.eq.s32.totalorder %v7104, 2
        %v7110 = vxor.u32 %v7101, 2147483648
        %v7111 = vsel %vm7109, %v7110, %v7102
        %v7112 = vsel %vm7105, %v7108, %v7111
        %v7113 = vsel %vm7103, nan, %v7112
        %v7114 = vand.u32 2147483647, %v763
        %vm7115 = vcmp.le.f32.partialorder %v7114, 0.7853982
        %vm7116 = vcmp.lt.s32.totalorder %v763, 0
        %v7117 = vand.u32 %v763, 2139095040
        %v7118 = vshrl.u32 %v7117, 23
        %v7119 = vsub.s32 %v7118, 127
        %v7120 = vand.u32 2147483647, %v763
        %v7121 = vand.u32 %v7120, 8388607
        %v7122 = vor.u32 %v7121, 8388608
        %v7123 = vsub.s32 0, %v7122
        %v7124 = vadd.s32 %v7119, 1
        %vm7125 = vcmp.gt.s32.totalorder %v7124, 0
        %v7126 = vsel %vm7125, %v7124, 0
        %v7127 = vshrl.u32 %v7126, 5
        %v7128 = vand.u32 %v7126, 31
        %v7129 = vsub.s32 32, %v7128
        %v7130 = vshrl.u32 683565275, %v7129
        %v7131 = vshll.u32 683565275, %v7128
        %v7132 = vshrl.u32 2475754826, %v7129
        %v7133 = vor.u32 %v7131, %v7132
        %v7134 = vshll.u32 2475754826, %v7128
        %v7135 = vshrl.u32 2131351028, %v7129
        %v7136 = vor.u32 %v7134, %v7135
        %v7137 = vshll.u32 2131351028, %v7128
        %v7138 = vshrl.u32 2102212464, %v7129
        %v7139 = vor.u32 %v7137, %v7138
        %v7140 = vshll.u32 2102212464, %v7128
        %v7141 = vshrl.u32 920167782, %v7129
        %v7142 = vor.u32 %v7140, %v7141
        %v7143 = vshll.u32 920167782, %v7128
        %v7144 = vshrl.u32 1326507024, %v7129
        %v7145 = vor.u32 %v7143, %v7144
        %vm7146 = vcmp.lt.s32.totalorder %v7127, 1
        %vm7147 = vcmp.lt.s32.totalorder %v7127, 2
        %vm7148 = vcmp.lt.s32.totalorder %v7127, 3
        %vm7149 = vcmp.lt.s32.totalorder %v7127, 4
        %v7150 = vsel %vm7146, %v7130, %v7133
        %v7151 = vsel %vm7149, %v7139, 2102212464
        %v7152 = vsel %vm7148, %v7136, %v7151
        %v7153 = vsel %vm7147, %v7150, %v7152
        %v7154 = vsel %vm7146, %v7133, %v7136
        %v7155 = vsel %vm7149, %v7142, 920167782
        %v7156 = vsel %vm7148, %v7139, %v7155
        %v7157 = vsel %vm7147, %v7154, %v7156
        %v7158 = vsel %vm7146, %v7136, %v7139
        %v7159 = vsel %vm7149, %v7145, 1326507024
        %v7160 = vsel %vm7148, %v7142, %v7159
        %v7161 = vsel %vm7147, %v7158, %v7160
        %v7162 = vshll.u32 %v7122, 8
        %v7163 = vmul.u32.u64.compose %v7162, %v7161
        %v7164 = vextract.low.u32 %v7163
        %v7165 = vextract.high.u32 %v7163
        %v7166 = vmul.u32.u64.compose %v7162, %v7157
        %v7167 = vextract.low.u32 %v7166
        %v7168 = vextract.high.u32 %v7166
        %v7169 = vmul.u32 %v7162, %v7153
        %v7170 = vadd.s32 %v7165, %v7167
        %vm7171 = vc.u32 %v7165, %v7167
        %v7172 = vadd.s32 %v7168, 1
        %v7173 = vsel %vm7171, %v7172, %v7168
        %v7174 = vadd.s32 %v7169, %v7173
        %v7175 = vadd.s32 %v7174, 536870912
        %v7176 = vshrl.u32 %v7175, 30
        %v7177 = vshll.u32 %v7176, 30
        %v7178 = vsub.s32 %v7174, %v7177
        %vm7179 = vcmp.lt.s32.totalorder %v7178, 0
        %v7180 = vsub.s32 0, %v7178
        %v7181 = vsel %vm7179, %v7180, %v7178
        %v7182 = vclz %v7181
        %v7183 = vsub.s32 %v7182, 2
        %vm7184 = vcmp.gt.s32.totalorder 0, %v7183
        %v7185 = vsel %vm7184, 0, %v7183
        %v7186 = vsub.s32 32, %v7185
        %v7187 = vshll.u32 %v7178, %v7185
        %v7188 = vshrl.u32 %v7170, %v7186
        %v7189 = vor.u32 %v7187, %v7188
        %v7190 = vsub.s32 4294967266, %v7185
        %v7191 = vadd.s32 %v7190, 127
        %v7192 = vshll.u32 %v7191, 23
        %v7193 = vor.u32 4788187, %v7192
        %v7194 = vand.u32 2147483647, %v7193
        %v7196 = vcvt.s32.f32 %v7189
        %v7197 = vmul.f32 %v7196, %v7194
        %v7198 = vxor.u32 %v7197, 2147483648
        %v7199 = vsel %vm7116, %v7198, %v7197
        %v7200 = vsub.s32 4, %v7176
        %v7201 = vsel %vm7116, %v7200, %v7176
        %v7202 = vsel %vm7115, %v763, %v7199
        %v7203 = vsel %vm7115, 0, %v7201
        %v7204 = vcosq.f32.pop %v7202
        %v7205 = vsinq.f32.pop %v7202
        %vm7206 = vweird.f32 %v763
        %v7207 = vand.u32 %v7203, 3
        %vm7208 = vcmp.lt.s32.totalorder %v7207, 2
        %vm7209 = vcmp.eq.s32.totalorder %v7207, 0
        %v7210 = vxor.u32 %v7205, 2147483648
        %v7211 = vsel %vm7209, %v7204, %v7210
        %vm7212 = vcmp.eq.s32.totalorder %v7207, 2
        %v7213 = vxor.u32 %v7204, 2147483648
        %v7214 = vsel %vm7212, %v7213, %v7205
        %v7215 = vsel %vm7208, %v7211, %v7214
        %v7216 = vsel %vm7206, nan, %v7215
        %v7217 = vand.u32 2147483647, %v764
        %vm7218 = vcmp.le.f32.partialorder %v7217, 0.7853982
        %vm7219 = vcmp.lt.s32.totalorder %v764, 0
        %v7220 = vand.u32 %v764, 2139095040
        %v7221 = vshrl.u32 %v7220, 23
        %v7222 = vsub.s32 %v7221, 127
        %v7223 = vand.u32 2147483647, %v764
        %v7224 = vand.u32 %v7223, 8388607
        %v7225 = vor.u32 %v7224, 8388608
        %v7226 = vsub.s32 0, %v7225
        %v7227 = vadd.s32 %v7222, 1
        %vm7228 = vcmp.gt.s32.totalorder %v7227, 0
        %v7229 = vsel %vm7228, %v7227, 0
        %v7230 = vshrl.u32 %v7229, 5
        %v7231 = vand.u32 %v7229, 31
        %v7232 = vsub.s32 32, %v7231
        %v7233 = vshrl.u32 683565275, %v7232
        %v7234 = vshll.u32 683565275, %v7231
        %v7235 = vshrl.u32 2475754826, %v7232
        %v7236 = vor.u32 %v7234, %v7235
        %v7237 = vshll.u32 2475754826, %v7231
        %v7238 = vshrl.u32 2131351028, %v7232
        %v7239 = vor.u32 %v7237, %v7238
        %v7240 = vshll.u32 2131351028, %v7231
        %v7241 = vshrl.u32 2102212464, %v7232
        %v7242 = vor.u32 %v7240, %v7241
        %v7243 = vshll.u32 2102212464, %v7231
        %v7244 = vshrl.u32 920167782, %v7232
        %v7245 = vor.u32 %v7243, %v7244
        %v7246 = vshll.u32 920167782, %v7231
        %v7247 = vshrl.u32 1326507024, %v7232
        %v7248 = vor.u32 %v7246, %v7247
        %vm7249 = vcmp.lt.s32.totalorder %v7230, 1
        %vm7250 = vcmp.lt.s32.totalorder %v7230, 2
        %vm7251 = vcmp.lt.s32.totalorder %v7230, 3
        %vm7252 = vcmp.lt.s32.totalorder %v7230, 4
        %v7253 = vsel %vm7249, %v7233, %v7236
        %v7254 = vsel %vm7252, %v7242, 2102212464
        %v7255 = vsel %vm7251, %v7239, %v7254
        %v7256 = vsel %vm7250, %v7253, %v7255
        %v7257 = vsel %vm7249, %v7236, %v7239
        %v7258 = vsel %vm7252, %v7245, 920167782
        %v7259 = vsel %vm7251, %v7242, %v7258
        %v7260 = vsel %vm7250, %v7257, %v7259
        %v7261 = vsel %vm7249, %v7239, %v7242
        %v7262 = vsel %vm7252, %v7248, 1326507024
        %v7263 = vsel %vm7251, %v7245, %v7262
        %v7264 = vsel %vm7250, %v7261, %v7263
        %v7265 = vshll.u32 %v7225, 8
        %v7266 = vmul.u32.u64.compose %v7265, %v7264
        %v7267 = vextract.low.u32 %v7266
        %v7268 = vextract.high.u32 %v7266
        %v7269 = vmul.u32.u64.compose %v7265, %v7260
        %v7270 = vextract.low.u32 %v7269
        %v7271 = vextract.high.u32 %v7269
        %v7272 = vmul.u32 %v7265, %v7256
        %v7273 = vadd.s32 %v7268, %v7270
        %vm7274 = vc.u32 %v7268, %v7270
        %v7275 = vadd.s32 %v7271, 1
        %v7276 = vsel %vm7274, %v7275, %v7271
        %v7277 = vadd.s32 %v7272, %v7276
        %v7278 = vadd.s32 %v7277, 536870912
        %v7279 = vshrl.u32 %v7278, 30
        %v7280 = vshll.u32 %v7279, 30
        %v7281 = vsub.s32 %v7277, %v7280
        %vm7282 = vcmp.lt.s32.totalorder %v7281, 0
        %v7283 = vsub.s32 0, %v7281
        %v7284 = vsel %vm7282, %v7283, %v7281
        %v7285 = vclz %v7284
        %v7286 = vsub.s32 %v7285, 2
        %vm7287 = vcmp.gt.s32.totalorder 0, %v7286
        %v7288 = vsel %vm7287, 0, %v7286
        %v7289 = vsub.s32 32, %v7288
        %v7290 = vshll.u32 %v7281, %v7288
        %v7291 = vshrl.u32 %v7273, %v7289
        %v7292 = vor.u32 %v7290, %v7291
        %v7293 = vsub.s32 4294967266, %v7288
        %v7294 = vadd.s32 %v7293, 127
        %v7295 = vshll.u32 %v7294, 23
        %v7296 = vor.u32 4788187, %v7295
        %v7297 = vand.u32 2147483647, %v7296
        %v7299 = vcvt.s32.f32 %v7292
        %v7300 = vmul.f32 %v7299, %v7297
        %v7301 = vxor.u32 %v7300, 2147483648
        %v7302 = vsel %vm7219, %v7301, %v7300
        %v7303 = vsub.s32 4, %v7279
        %v7304 = vsel %vm7219, %v7303, %v7279
        %v7305 = vsel %vm7218, %v764, %v7302
        %v7306 = vsel %vm7218, 0, %v7304
        %v7307 = vcosq.f32.pop %v7305
        %v7308 = vsinq.f32.pop %v7305
        %vm7309 = vweird.f32 %v764
        %v7310 = vand.u32 %v7306, 3
        %vm7311 = vcmp.lt.s32.totalorder %v7310, 2
        %vm7312 = vcmp.eq.s32.totalorder %v7310, 0
        %v7313 = vxor.u32 %v7308, 2147483648
        %v7314 = vsel %vm7312, %v7307, %v7313
        %vm7315 = vcmp.eq.s32.totalorder %v7310, 2
        %v7316 = vxor.u32 %v7307, 2147483648
        %v7317 = vsel %vm7315, %v7316, %v7308
        %v7318 = vsel %vm7311, %v7314, %v7317
        %v7319 = vsel %vm7309, nan, %v7318
        %v7320 = vand.u32 2147483647, %v765
        %vm7321 = vcmp.le.f32.partialorder %v7320, 0.7853982
        %vm7322 = vcmp.lt.s32.totalorder %v765, 0
        %v7323 = vand.u32 %v765, 2139095040
        %v7324 = vshrl.u32 %v7323, 23
        %v7325 = vsub.s32 %v7324, 127
        %v7326 = vand.u32 2147483647, %v765
        %v7327 = vand.u32 %v7326, 8388607
        %v7328 = vor.u32 %v7327, 8388608
        %v7329 = vsub.s32 0, %v7328
        %v7330 = vadd.s32 %v7325, 1
        %vm7331 = vcmp.gt.s32.totalorder %v7330, 0
        %v7332 = vsel %vm7331, %v7330, 0
        %v7333 = vshrl.u32 %v7332, 5
        %v7334 = vand.u32 %v7332, 31
        %v7335 = vsub.s32 32, %v7334
        %v7336 = vshrl.u32 683565275, %v7335
        %v7337 = vshll.u32 683565275, %v7334
        %v7338 = vshrl.u32 2475754826, %v7335
        %v7339 = vor.u32 %v7337, %v7338
        %v7340 = vshll.u32 2475754826, %v7334
        %v7341 = vshrl.u32 2131351028, %v7335
        %v7342 = vor.u32 %v7340, %v7341
        %v7343 = vshll.u32 2131351028, %v7334
        %v7344 = vshrl.u32 2102212464, %v7335
        %v7345 = vor.u32 %v7343, %v7344
        %v7346 = vshll.u32 2102212464, %v7334
        %v7347 = vshrl.u32 920167782, %v7335
        %v7348 = vor.u32 %v7346, %v7347
        %v7349 = vshll.u32 920167782, %v7334
        %v7350 = vshrl.u32 1326507024, %v7335
        %v7351 = vor.u32 %v7349, %v7350
        %vm7352 = vcmp.lt.s32.totalorder %v7333, 1
        %vm7353 = vcmp.lt.s32.totalorder %v7333, 2
        %vm7354 = vcmp.lt.s32.totalorder %v7333, 3
        %vm7355 = vcmp.lt.s32.totalorder %v7333, 4
        %v7356 = vsel %vm7352, %v7336, %v7339
        %v7357 = vsel %vm7355, %v7345, 2102212464
        %v7358 = vsel %vm7354, %v7342, %v7357
        %v7359 = vsel %vm7353, %v7356, %v7358
        %v7360 = vsel %vm7352, %v7339, %v7342
        %v7361 = vsel %vm7355, %v7348, 920167782
        %v7362 = vsel %vm7354, %v7345, %v7361
        %v7363 = vsel %vm7353, %v7360, %v7362
        %v7364 = vsel %vm7352, %v7342, %v7345
        %v7365 = vsel %vm7355, %v7351, 1326507024
        %v7366 = vsel %vm7354, %v7348, %v7365
        %v7367 = vsel %vm7353, %v7364, %v7366
        %v7368 = vshll.u32 %v7328, 8
        %v7369 = vmul.u32.u64.compose %v7368, %v7367
        %v7370 = vextract.low.u32 %v7369
        %v7371 = vextract.high.u32 %v7369
        %v7372 = vmul.u32.u64.compose %v7368, %v7363
        %v7373 = vextract.low.u32 %v7372
        %v7374 = vextract.high.u32 %v7372
        %v7375 = vmul.u32 %v7368, %v7359
        %v7376 = vadd.s32 %v7371, %v7373
        %vm7377 = vc.u32 %v7371, %v7373
        %v7378 = vadd.s32 %v7374, 1
        %v7379 = vsel %vm7377, %v7378, %v7374
        %v7380 = vadd.s32 %v7375, %v7379
        %v7381 = vadd.s32 %v7380, 536870912
        %v7382 = vshrl.u32 %v7381, 30
        %v7383 = vshll.u32 %v7382, 30
        %v7384 = vsub.s32 %v7380, %v7383
        %vm7385 = vcmp.lt.s32.totalorder %v7384, 0
        %v7386 = vsub.s32 0, %v7384
        %v7387 = vsel %vm7385, %v7386, %v7384
        %v7388 = vclz %v7387
        %v7389 = vsub.s32 %v7388, 2
        %vm7390 = vcmp.gt.s32.totalorder 0, %v7389
        %v7391 = vsel %vm7390, 0, %v7389
        %v7392 = vsub.s32 32, %v7391
        %v7393 = vshll.u32 %v7384, %v7391
        %v7394 = vshrl.u32 %v7376, %v7392
        %v7395 = vor.u32 %v7393, %v7394
        %v7396 = vsub.s32 4294967266, %v7391
        %v7397 = vadd.s32 %v7396, 127
        %v7398 = vshll.u32 %v7397, 23
        %v7399 = vor.u32 4788187, %v7398
        %v7400 = vand.u32 2147483647, %v7399
        %v7402 = vcvt.s32.f32 %v7395
        %v7403 = vmul.f32 %v7402, %v7400
        %v7404 = vxor.u32 %v7403, 2147483648
        %v7405 = vsel %vm7322, %v7404, %v7403
        %v7406 = vsub.s32 4, %v7382
        %v7407 = vsel %vm7322, %v7406, %v7382
        %v7408 = vsel %vm7321, %v765, %v7405
        %v7409 = vsel %vm7321, 0, %v7407
        %v7410 = vcosq.f32.pop %v7408
        %v7411 = vsinq.f32.pop %v7408
        %vm7412 = vweird.f32 %v765
        %v7413 = vand.u32 %v7409, 3
        %vm7414 = vcmp.lt.s32.totalorder %v7413, 2
        %vm7415 = vcmp.eq.s32.totalorder %v7413, 0
        %v7416 = vxor.u32 %v7411, 2147483648
        %v7417 = vsel %vm7415, %v7410, %v7416
        %vm7418 = vcmp.eq.s32.totalorder %v7413, 2
        %v7419 = vxor.u32 %v7410, 2147483648
        %v7420 = vsel %vm7418, %v7419, %v7411
        %v7421 = vsel %vm7414, %v7417, %v7420
        %v7422 = vsel %vm7412, nan, %v7421
        %7455 = vrot.lane.b32.xlu0 %v4229, 64
        %v7456 = vpop.permute.xlu0 %7455
        %7457 = vrot.lane.b32.xlu0 %v4332, 64
        %v7458 = vpop.permute.xlu0 %7457
        %7459 = vrot.lane.b32.xlu0 %v4435, 64
        %v7460 = vpop.permute.xlu0 %7459
        %7461 = vrot.lane.b32.xlu0 %v4538, 64
        %v7462 = vpop.permute.xlu0 %7461
        %7463 = vrot.lane.b32.xlu0 %v4641, 64
        %v7464 = vpop.permute.xlu0 %7463
        %7465 = vrot.lane.b32.xlu0 %v4744, 64
        %v7466 = vpop.permute.xlu0 %7465
        %7467 = vrot.lane.b32.xlu0 %v4847, 64
        %v7468 = vpop.permute.xlu0 %7467
        %7469 = vrot.lane.b32.xlu0 %v4950, 64
        %v7470 = vpop.permute.xlu0 %7469
        %7471 = vrot.lane.b32.xlu0 %v5053, 64
        %v7472 = vpop.permute.xlu0 %7471
        %7473 = vrot.lane.b32.xlu0 %v5156, 64
        %v7474 = vpop.permute.xlu0 %7473
        %7475 = vrot.lane.b32.xlu0 %v5259, 64
        %v7476 = vpop.permute.xlu0 %7475
        %7477 = vrot.lane.b32.xlu0 %v5362, 64
        %v7478 = vpop.permute.xlu0 %7477
        %7479 = vrot.lane.b32.xlu0 %v5465, 64
        %v7480 = vpop.permute.xlu0 %7479
        %7481 = vrot.lane.b32.xlu0 %v5568, 64
        %v7482 = vpop.permute.xlu0 %7481
        %7483 = vrot.lane.b32.xlu0 %v5671, 64
        %v7484 = vpop.permute.xlu0 %7483
        %7485 = vrot.lane.b32.xlu0 %v5774, 64
        %v7486 = vpop.permute.xlu0 %7485
        %7487 = vrot.lane.b32.xlu0 %v5877, 64
        %v7488 = vpop.permute.xlu0 %7487
        %7489 = vrot.lane.b32.xlu0 %v5980, 64
        %v7490 = vpop.permute.xlu0 %7489
        %7491 = vrot.lane.b32.xlu0 %v6083, 64
        %v7492 = vpop.permute.xlu0 %7491
        %7493 = vrot.lane.b32.xlu0 %v6186, 64
        %v7494 = vpop.permute.xlu0 %7493
        %7495 = vrot.lane.b32.xlu0 %v6289, 64
        %v7496 = vpop.permute.xlu0 %7495
        %7497 = vrot.lane.b32.xlu0 %v6392, 64
        %v7498 = vpop.permute.xlu0 %7497
        %7499 = vrot.lane.b32.xlu0 %v6495, 64
        %v7500 = vpop.permute.xlu0 %7499
        %7501 = vrot.lane.b32.xlu0 %v6598, 64
        %v7502 = vpop.permute.xlu0 %7501
        %7503 = vrot.lane.b32.xlu0 %v6701, 64
        %v7504 = vpop.permute.xlu0 %7503
        %7505 = vrot.lane.b32.xlu0 %v6804, 64
        %v7506 = vpop.permute.xlu0 %7505
        %7507 = vrot.lane.b32.xlu0 %v6907, 64
        %v7508 = vpop.permute.xlu0 %7507
        %7509 = vrot.lane.b32.xlu0 %v7010, 64
        %v7510 = vpop.permute.xlu0 %7509
        %7511 = vrot.lane.b32.xlu0 %v7113, 64
        %v7512 = vpop.permute.xlu0 %7511
        %7513 = vrot.lane.b32.xlu0 %v7216, 64
        %v7514 = vpop.permute.xlu0 %7513
        %7515 = vrot.lane.b32.xlu0 %v7319, 64
        %v7516 = vpop.permute.xlu0 %7515
        %7517 = vrot.lane.b32.xlu0 %v7422, 64
        %v7518 = vpop.permute.xlu0 %7517
        %vm7551 = vcmask 1048064
        %7552 = vst.msk [vmem:[%s137] sm:$0xff] %vm7551, %v7456
        %7553 = vst.msk [vmem:[%s137 + $0x8] sm:$0xff] %vm7551, %v7458
        %7554 = vst.msk [vmem:[%s137 + $0x10] sm:$0xff] %vm7551, %v7460
        %7555 = vst.msk [vmem:[%s137 + $0x18] sm:$0xff] %vm7551, %v7462
        %7556 = vst.msk [vmem:[%s137 + $0x20] sm:$0xff] %vm7551, %v7464
        %7557 = vst.msk [vmem:[%s137 + $0x28] sm:$0xff] %vm7551, %v7466
        %7558 = vst.msk [vmem:[%s137 + $0x30] sm:$0xff] %vm7551, %v7468
        %7559 = vst.msk [vmem:[%s137 + $0x38] sm:$0xff] %vm7551, %v7470
        %7560 = vst.msk [vmem:[%s137 + $0x40] sm:$0xff] %vm7551, %v7472
        %7561 = vst.msk [vmem:[%s137 + $0x48] sm:$0xff] %vm7551, %v7474
        %7562 = vst.msk [vmem:[%s137 + $0x50] sm:$0xff] %vm7551, %v7476
        %7563 = vst.msk [vmem:[%s137 + $0x58] sm:$0xff] %vm7551, %v7478
        %7564 = vst.msk [vmem:[%s137 + $0x60] sm:$0xff] %vm7551, %v7480
        %7565 = vst.msk [vmem:[%s137 + $0x68] sm:$0xff] %vm7551, %v7482
        %7566 = vst.msk [vmem:[%s137 + $0x70] sm:$0xff] %vm7551, %v7484
        %7567 = vst.msk [vmem:[%s137 + $0x78] sm:$0xff] %vm7551, %v7486
        %7568 = vst.msk [vmem:[%s137 + $0x80] sm:$0xff] %vm7551, %v7488
        %7569 = vst.msk [vmem:[%s137 + $0x88] sm:$0xff] %vm7551, %v7490
        %7570 = vst.msk [vmem:[%s137 + $0x90] sm:$0xff] %vm7551, %v7492
        %7571 = vst.msk [vmem:[%s137 + $0x98] sm:$0xff] %vm7551, %v7494
        %7572 = vst.msk [vmem:[%s137 + $0xa0] sm:$0xff] %vm7551, %v7496
        %7573 = vst.msk [vmem:[%s137 + $0xa8] sm:$0xff] %vm7551, %v7498
        %7574 = vst.msk [vmem:[%s137 + $0xb0] sm:$0xff] %vm7551, %v7500
        %7575 = vst.msk [vmem:[%s137 + $0xb8] sm:$0xff] %vm7551, %v7502
        %7576 = vst.msk [vmem:[%s137 + $0xc0] sm:$0xff] %vm7551, %v7504
        %7577 = vst.msk [vmem:[%s137 + $0xc8] sm:$0xff] %vm7551, %v7506
        %7578 = vst.msk [vmem:[%s137 + $0xd0] sm:$0xff] %vm7551, %v7508
        %7579 = vst.msk [vmem:[%s137 + $0xd8] sm:$0xff] %vm7551, %v7510
        %7580 = vst.msk [vmem:[%s137 + $0xe0] sm:$0xff] %vm7551, %v7512
        %7581 = vst.msk [vmem:[%s137 + $0xe8] sm:$0xff] %vm7551, %v7514
        %7582 = vst.msk [vmem:[%s137 + $0xf0] sm:$0xff] %vm7551, %v7516
        %7583 = vst.msk [vmem:[%s137 + $0xf8] sm:$0xff] %vm7551, %v7518
        %s7584 = sand.u32 %s71, 1
        %s7585 = scalar_lea.sflag [#allocation3], %s7584
        %s7586 = sand.u32 %s71, 1
        %s7587 = smul.addr %s7586, 256
        %s7588 = scalar_lea.vmem [#allocation2], %s7587
        // Predicated region
        $region29: #{tpu_custom_call.1} parent=27 // pred_check
          %p7589 = pneg %p81
        $region30: #{tpu_custom_call.1} parent=27 // pred_check_branch
          %7591 = sbr.rel (%p7589) target = $region32
        $region31: #{tpu_custom_call.1} parent=27 // pred_region
          %s7592 = smul.u32 32, %s16
          %s7594 = ssub.s32 4096, 4096
          %7595 = vsyncadd %s7585, %s7594
          %s7596 = smul.addr %s7592, 128
          %s7597 = scalar_lea.hbm %s2, %s7596
          %s7598 = sshll.u32 %s7588, 4
          %s7599 = int_to_ptr.vmem [resolvable:$true] %s7598
          %7604 = dma.vmem_to_hbm [thread:$0]  %s7599, 4096, %s7597, %s7585, 128, 128, 8
        $region32: #{tpu_custom_call.1} parent=27 // pred_fallthru
          _
      $region28: #{tpu_custom_call.1} parent=5 // pred_fallthru
        _
      %p7605 = scmp.le.s32.totalorder 2, %s11
      // Predicated region
      $region33: #{tpu_custom_call.1} parent=5 // pred_check
        %p7606 = pneg %p7605
      $region34: #{tpu_custom_call.1} parent=5 // pred_check_branch
        %7608 = sbr.rel (%p7606) target = $region36
      $region35: #{tpu_custom_call.1} parent=5 // pred_region
        %s7609 = ssub.s32 %s11, 2
        // Predicated region
        $region37: #{tpu_custom_call.1} parent=35 // pred_check
          %p7610 = pneg %p87
        $region38: #{tpu_custom_call.1} parent=35 // pred_check_branch
          %7612 = sbr.rel (%p7610) target = $region40
        $region39: #{tpu_custom_call.1} parent=35 // pred_region
          %s7613 = sand.u32 %s72, 1
          %s7614 = scalar_lea.sflag [#allocation3], %s7613
          %s7615 = sand.u32 %s72, 1
          %s7616 = smul.addr %s7615, 256
          %s7617 = scalar_lea.vmem [#allocation2], %s7616
          %7618 = dma.done %s7614, 4096
        $region40: #{tpu_custom_call.1} parent=35 // pred_fallthru
          _
      $region36: #{tpu_custom_call.1} parent=5 // pred_fallthru
        _
    $region6: #{tpu_custom_call.1} parent=1 // loop_footer
      %s15 = sadd.s32 1, %s11
    $region7: #{tpu_custom_call.1} parent=1 // loop_footer_branch
      %10 = sbr.rel target = $region3
    $region8: #{tpu_custom_call.1} parent=1 // loop_exit
      _
    %7619 = vsyncpa [#allocation3], 1
    %s7620 = scalar_lea.sflag [#allocation3], 1
    %7621 = vsyncpa %s7620, 1

</llo_original>
